<compile_context>
chip_gen: v6e
topology: v6e:2x2x1
jax: 0.10.0
libtpu: 0.0.40
codegen_flags: <defaults>
</compile_context>

<pallas_src>
import jax
import jax.numpy as jnp
from jax.experimental import pallas as pl
from jax.experimental.pallas import tpu as pltpu

IN_FEATURES = 75648              # fixed by the module definition
HIDDEN = 256
OUT = 9

N_SPLIT = 2                      # fc1 output halves (one per v7x TensorCore)
NH = HIDDEN // N_SPLIT           # 128
K_TILES = 3                      # 75648 = 3 * 25216
TK = IN_FEATURES // K_TILES      # 25216  (multiple of 128 and of 32)

assert K_TILES * TK == IN_FEATURES
assert TK % 128 == 0 and TK % 32 == 0


def _mlp_kernel(x_ref, w1_ref, s1_ref, b1_ref, w2_ref, out_ref, acc_ref):
    # grid = (N_SPLIT, K_TILES): axis 0 = fc1 output half ("parallel"; shards
    # across TensorCores on multi-TC chips), axis 1 = fc1 reduction
    # ("arbitrary", kept last).
    k = pl.program_id(1)

    @pl.when(k == 0)
    def _():
        acc_ref[...] = jnp.zeros_like(acc_ref)

    # int8 weight tile -> bf16 on the VPU (values -127..127 are exact in
    # bf16); per-output-channel scale is applied after the K reduction, so
    # the MXU dot just accumulates in f32.
    acc_ref[...] += jnp.dot(x_ref[...],                              # (1, TK) bf16
                            w1_ref[...].astype(jnp.bfloat16),        # (TK, NH)
                            preferred_element_type=jnp.float32)      # (1, NH)

    @pl.when(k == pl.num_programs(1) - 1)
    def _():
        # Dequant scale + bias + ReLU for this hidden half.
        h = jnp.maximum(acc_ref[...] * s1_ref[...] + b1_ref[...], 0.0)
        # fc2 partial product for this half (bf16 operands, f32 accumulate).
        # No b2 / final ReLU here: the two halves are summed in the wrapper.
        y = jnp.dot(h.astype(jnp.bfloat16), w2_ref[...],
                    preferred_element_type=jnp.float32)              # (1, OUT)
        out_ref[...] = y.astype(out_ref.dtype)


def pack_params(w1_t, b1, w2_t, b2):
    """One-time parameter repack/quantization.  Call OUTSIDE the per-step
    forward (e.g. at parameter-load time) and reuse the result.
      w1_t: (75648, 256), b1: (256,), w2_t: (256, 9), b2: (9,)"""
    w1_p = jnp.transpose(
        jnp.reshape(w1_t.astype(jnp.float32), (IN_FEATURES, N_SPLIT, NH)),
        (1, 0, 2))                                            # (2, 75648, 128)
    # Symmetric per-output-channel int8 quantization of the streamed weight.
    w1_scale = jnp.maximum(jnp.max(jnp.abs(w1_p), axis=1, keepdims=True),
                           1e-12) / 127.0                     # (2, 1, 128) f32
    w1_q = jnp.clip(jnp.round(w1_p / w1_scale), -127, 127).astype(jnp.int8)
    b1_p = jnp.reshape(b1.astype(jnp.float32), (N_SPLIT, 1, NH))   # (2, 1, 128)
    w2_p = jnp.reshape(w2_t.astype(jnp.bfloat16), (N_SPLIT, NH, OUT))  # (2,128,9)
    return w1_q, w1_scale.astype(jnp.float32), b1_p, w2_p, b2.astype(jnp.float32)


def _forward(x, w1_q, w1_scale, b1_p, w2_p, b2):
    """x: any shape with 75648 elements.  Packed params from pack_params().
    Returns (9,) f32 == relu(relu(x.flat @ W1 + b1) @ W2 + b2)."""
    x2d = jnp.reshape(x, (1, IN_FEATURES)).astype(jnp.bfloat16)   # 151 KB, cheap

    flops = 2 * IN_FEATURES * HIDDEN + 2 * HIDDEN * OUT
    bytes_accessed = (IN_FEATURES * HIDDEN * 1      # int8 W1 stream (dominant)
                      + IN_FEATURES * 2             # bf16 x
                      + HIDDEN * 4 * 2              # b1 + per-channel scales
                      + HIDDEN * OUT * 2            # bf16 W2
                      + N_SPLIT * OUT * 4)          # partial outputs

    partial = pl.pallas_call(
        _mlp_kernel,
        out_shape=jax.ShapeDtypeStruct((N_SPLIT, 1, OUT), jnp.float32),
        grid_spec=pltpu.PrefetchScalarGridSpec(
            num_scalar_prefetch=0,
            grid=(N_SPLIT, K_TILES),
            in_specs=[
                # k-th contiguous chunk of the flattened input (bf16)
                pl.BlockSpec((1, TK), lambda n, k: (0, k)),
                # fc1 weight half n, streamed in K-slices of TK rows (int8)
                pl.BlockSpec((None, TK, NH), lambda n, k: (n, k, 0)),
                # per-output-channel dequant scale for half n
                pl.BlockSpec((None, 1, NH), lambda n, k: (n, 0, 0)),
                # fc1 bias half n
                pl.BlockSpec((None, 1, NH), lambda n, k: (n, 0, 0)),
                # fc2 weight rows belonging to half n (bf16)
                pl.BlockSpec((None, NH, OUT), lambda n, k: (n, 0, 0)),
            ],
            out_specs=pl.BlockSpec((None, 1, OUT), lambda n, k: (n, 0, 0)),
            scratch_shapes=[pltpu.VMEM((1, NH), jnp.float32)],
        ),
        compiler_params=pltpu.CompilerParams(
            # TODO(synk): on v7x, pltpu.CORE_PARALLEL on axis 0 would force the
            # two hidden halves onto the two TensorCores; plain "parallel" is
            # kept because it also lowers on single-TC v5e/v6e.
            dimension_semantics=("parallel", "arbitrary"),
            vmem_limit_bytes=32 * 1024 * 1024,
        ),
        cost_estimate=pl.CostEstimate(
            flops=flops, transcendentals=0, bytes_accessed=bytes_accessed),
    )(x2d, w1_q, w1_scale, b1_p, w2_p)

    # Combine the two hidden-half fc2 partials, then bias + final ReLU
    # (9 elements -> plain JAX inside the same jit).
    return jnp.maximum(jnp.sum(partial[:, 0, :], axis=0) + b2, 0.0)


cnn_model_forward = jax.jit(_forward)


def _init_params(key):
    # Deterministic synthetic init mirroring nn.Linear shapes
    # (stored transposed: (in_features, out_features)).
    k1, k2, k3, k4 = jax.random.split(key, 4)
    bound1 = 1.0 / (IN_FEATURES ** 0.5)
    bound2 = 1.0 / (HIDDEN ** 0.5)
    w1_t = jax.random.uniform(k1, (IN_FEATURES, HIDDEN), jnp.float32,
                              -bound1, bound1)
    b1 = jax.random.uniform(k2, (HIDDEN,), jnp.float32, -bound1, bound1)
    w2_t = jax.random.uniform(k3, (HIDDEN, OUT), jnp.float32,
                              -bound2, bound2)
    b2 = jax.random.uniform(k4, (OUT,), jnp.float32, -bound2, bound2)
    return w1_t, b1, w2_t, b2


if __name__ == "__main__":
    key = jax.random.PRNGKey(0)
    kx, kp = jax.random.split(key)

    # The module hard-codes fc1 = Linear(75648, 256), so the input must have
    # exactly 75648 elements: 3 * 197 * 128 = 75648.
    x = jax.random.normal(kx, (3, 197, 128), jnp.float32)
    w1_t, b1, w2_t, b2 = _init_params(kp)

    # One-time packing (outside the per-call forward path, per perf review).
    packed = jax.block_until_ready(pack_params(w1_t, b1, w2_t, b2))

    out = jax.block_until_ready(cnn_model_forward(x, *packed))

    # Pure-JAX f32 reference; int8 W1 / bf16 activation streaming => loosened
    # tolerance (estimated error ~1e-3, well under 2e-2).
    xf = jnp.reshape(x, (-1,))
    ref = jnp.maximum(xf @ w1_t + b1, 0.0)
    ref = jnp.maximum(ref @ w2_t + b2, 0.0)
    assert out.shape == (OUT,)
    assert jnp.allclose(out, ref, atol=2e-2, rtol=2e-2), (out, ref)

    print("KERNEL_OK")
</pallas_src>

<mosaic_0001>
module attributes {stable_mosaic.version = 11 : i64} {
  func.func @_mlp_kernel(%arg0: i32, %arg1: i32, %arg2: memref<1x25216xbf16, #tpu.memory_space<vmem>>, %arg3: memref<1x25216x128xi8, #tpu.memory_space<vmem>>, %arg4: memref<1x1x128xf32, #tpu.memory_space<vmem>>, %arg5: memref<1x1x128xf32, #tpu.memory_space<vmem>>, %arg6: memref<1x128x9xbf16, #tpu.memory_space<vmem>>, %arg7: memref<1x1x9xf32, #tpu.memory_space<vmem>>, %arg8: memref<1x128xf32, #tpu.memory_space<vmem>>) attributes {dimension_semantics = [#tpu.dimension_semantics<parallel>, #tpu.dimension_semantics<arbitrary>], iteration_bounds = array<i64: 2, 3>, scalar_prefetch = 0 : i64, scratch_operands = 1 : i64, tpu.core_type = #tpu.core_type<tc>, window_params = [{transform_indices = @transform_0, window_bounds = array<i64: 1, 25216>}, {transform_indices = @transform_1, window_bounds = array<i64: 1, 25216, 128>}, {transform_indices = @transform_2, window_bounds = array<i64: 1, 1, 128>}, {transform_indices = @transform_3, window_bounds = array<i64: 1, 1, 128>}, {transform_indices = @transform_4, window_bounds = array<i64: 1, 128, 9>}, {transform_indices = @transform_5, window_bounds = array<i64: 1, 1, 9>}]} {
    %c0_i32 = arith.constant 0 : i32
    %0 = arith.cmpi eq, %arg1, %c0_i32 : i32
    %1 = arith.extui %0 : i1 to i32
    %c0_i32_0 = arith.constant 0 : i32
    %2 = arith.cmpi ne, %1, %c0_i32_0 : i32
    scf.if %2 {
      %cst_10 = arith.constant 0.000000e+00 : f32
      %14 = vector.broadcast %cst_10 : f32 to vector<1x128xf32>
      %c0_11 = arith.constant 0 : index
      %c0_12 = arith.constant 0 : index
      %15 = vector.load %arg8[%c0_11, %c0_12] : memref<1x128xf32, #tpu.memory_space<vmem>>, vector<1x128xf32>
      tpu.vector_store %arg8[%c0_11, %c0_12], %14 {strides = array<i32>} : memref<1x128xf32, #tpu.memory_space<vmem>>, vector<1x128xf32>,
    } else {
    }
    %c0 = arith.constant 0 : index
    %c0_1 = arith.constant 0 : index
    %3 = vector.load %arg8[%c0, %c0_1] : memref<1x128xf32, #tpu.memory_space<vmem>>, vector<1x128xf32>
    %c0_2 = arith.constant 0 : index
    %c0_3 = arith.constant 0 : index
    %4 = vector.load %arg2[%c0_2, %c0_3] : memref<1x25216xbf16, #tpu.memory_space<vmem>>, vector<1x25216xbf16>
    %c0_4 = arith.constant 0 : index
    %c0_5 = arith.constant 0 : index
    %c0_6 = arith.constant 0 : index
    %5 = vector.load %arg3[%c0_4, %c0_5, %c0_6] : memref<1x25216x128xi8, #tpu.memory_space<vmem>>, vector<1x25216x128xi8>
    %6 = vector.shape_cast %5 : vector<1x25216x128xi8> to vector<25216x128xi8>
    %7 = arith.sitofp %6 : vector<25216x128xi8> to vector<25216x128xbf16>
    %cst = arith.constant dense<0.000000e+00> : vector<1x128xf32>
    %8 = tpu.matmul %4, %7, %cst {dimension_numbers = #tpu.dot_dimension_numbers<[1], [0], [0], [1], [0, 0, 1, 1], [], []>} : vector<1x25216xbf16>, vector<25216x128xbf16>, vector<1x128xf32> -> vector<1x128xf32>
    %9 = arith.addf %3, %8 : vector<1x128xf32>
    %c0_7 = arith.constant 0 : index
    %c0_8 = arith.constant 0 : index
    %10 = vector.load %arg8[%c0_7, %c0_8] : memref<1x128xf32, #tpu.memory_space<vmem>>, vector<1x128xf32>
    tpu.vector_store %arg8[%c0_7, %c0_8], %9 {strides = array<i32>} : memref<1x128xf32, #tpu.memory_space<vmem>>, vector<1x128xf32>,
    %c2_i32 = arith.constant 2 : i32
    %11 = arith.cmpi eq, %arg1, %c2_i32 : i32
    %12 = arith.extui %11 : i1 to i32
    %c0_i32_9 = arith.constant 0 : i32
    %13 = arith.cmpi ne, %12, %c0_i32_9 : i32
    scf.if %13 {
      %c0_10 = arith.constant 0 : index
      %c0_11 = arith.constant 0 : index
      %14 = vector.load %arg8[%c0_10, %c0_11] : memref<1x128xf32, #tpu.memory_space<vmem>>, vector<1x128xf32>
      %c0_12 = arith.constant 0 : index
      %c0_13 = arith.constant 0 : index
      %c0_14 = arith.constant 0 : index
      %15 = vector.load %arg4[%c0_12, %c0_13, %c0_14] : memref<1x1x128xf32, #tpu.memory_space<vmem>>, vector<1x1x128xf32>
      %16 = vector.shape_cast %15 : vector<1x1x128xf32> to vector<1x128xf32>
      %17 = arith.mulf %14, %16 : vector<1x128xf32>
      %c0_15 = arith.constant 0 : index
      %c0_16 = arith.constant 0 : index
      %c0_17 = arith.constant 0 : index
      %18 = vector.load %arg5[%c0_15, %c0_16, %c0_17] : memref<1x1x128xf32, #tpu.memory_space<vmem>>, vector<1x1x128xf32>
      %19 = vector.shape_cast %18 : vector<1x1x128xf32> to vector<1x128xf32>
      %20 = arith.addf %17, %19 : vector<1x128xf32>
      %cst_18 = arith.constant 0.000000e+00 : f32
      %21 = vector.broadcast %cst_18 : f32 to vector<1x128xf32>
      %22 = arith.maximumf %20, %21 : vector<1x128xf32>
      %23 = arith.truncf %22 : vector<1x128xf32> to vector<1x128xbf16>
      %c0_19 = arith.constant 0 : index
      %c0_20 = arith.constant 0 : index
      %c0_21 = arith.constant 0 : index
      %24 = vector.load %arg6[%c0_19, %c0_20, %c0_21] : memref<1x128x9xbf16, #tpu.memory_space<vmem>>, vector<1x128x9xbf16>
      %25 = vector.shape_cast %24 : vector<1x128x9xbf16> to vector<128x9xbf16>
      %cst_22 = arith.constant dense<0.000000e+00> : vector<1x9xf32>
      %26 = tpu.matmul %23, %25, %cst_22 {dimension_numbers = #tpu.dot_dimension_numbers<[1], [0], [0], [1], [0, 0, 1, 1], [], []>} : vector<1x128xbf16>, vector<128x9xbf16>, vector<1x9xf32> -> vector<1x9xf32>
      %c0_23 = arith.constant 0 : index
      %c0_24 = arith.constant 0 : index
      %c0_25 = arith.constant 0 : index
      %27 = vector.load %arg7[%c0_23, %c0_24, %c0_25] : memref<1x1x9xf32, #tpu.memory_space<vmem>>, vector<1x1x9xf32>
      %28 = vector.shape_cast %27 : vector<1x1x9xf32> to vector<1x9xf32>
      %29 = vector.shape_cast %26 : vector<1x9xf32> to vector<1x1x9xf32>
      tpu.vector_store %arg7[%c0_23, %c0_24, %c0_25], %29 {strides = array<i32>} : memref<1x1x9xf32, #tpu.memory_space<vmem>>, vector<1x1x9xf32>,
    } else {
    }
    return
  }
  func.func @transform_0(%arg0: i32, %arg1: i32) -> (i32, i32) {
    %c0_i32 = arith.constant 0 : i32
    %c0_i32_0 = arith.constant 0 : i32
    return %c0_i32, %arg1 : i32, i32
  }
  func.func @transform_1(%arg0: i32, %arg1: i32) -> (i32, i32, i32) {
    %c0_i32 = arith.constant 0 : i32
    %c0_i32_0 = arith.constant 0 : i32
    return %arg0, %arg1, %c0_i32 : i32, i32, i32
  }
  func.func @transform_2(%arg0: i32, %arg1: i32) -> (i32, i32, i32) {
    %c0_i32 = arith.constant 0 : i32
    %c0_i32_0 = arith.constant 0 : i32
    %c0_i32_1 = arith.constant 0 : i32
    return %arg0, %c0_i32, %c0_i32_0 : i32, i32, i32
  }
  func.func @transform_3(%arg0: i32, %arg1: i32) -> (i32, i32, i32) {
    %c0_i32 = arith.constant 0 : i32
    %c0_i32_0 = arith.constant 0 : i32
    %c0_i32_1 = arith.constant 0 : i32
    return %arg0, %c0_i32, %c0_i32_0 : i32, i32, i32
  }
  func.func @transform_4(%arg0: i32, %arg1: i32) -> (i32, i32, i32) {
    %c0_i32 = arith.constant 0 : i32
    %c0_i32_0 = arith.constant 0 : i32
    %c0_i32_1 = arith.constant 0 : i32
    return %arg0, %c0_i32, %c0_i32_0 : i32, i32, i32
  }
  func.func @transform_5(%arg0: i32, %arg1: i32) -> (i32, i32, i32) {
    %c0_i32 = arith.constant 0 : i32
    %c0_i32_0 = arith.constant 0 : i32
    %c0_i32_1 = arith.constant 0 : i32
    return %arg0, %c0_i32, %c0_i32_0 : i32, i32, i32
  }
}

</mosaic_0001>

<llo_original>
// kernel: _forward.1
$region0: #{_forward.1}
  #allocation0 [shape = 'u32[]', space=smem, size = 0x4, offset = 0x4, fixed_abs, tag = 'smem constant byte address 0x4 - core index']
  #allocation1 [shape = 'u32[144,128]{1,0:T(1,128)}', space=vmem, size = 0x12000, scoped, tag = 'internal scratch']
  #allocation2 [shape = 'f32[1,128]{1,0:T(1,128)}', space=vmem, size = 0x200, scoped, tag = 'scratch operand']
  %s0 = inlined_call_operand.vmem [shape: bf16[1,75648], index: 0, kind: input, shape index: {}]
  %s1 = inlined_call_operand.hbm [shape: s8[2,75648,128], index: 1, kind: input, shape index: {}]
  %s2 = inlined_call_operand.hbm [shape: f32[2,1,128], index: 2, kind: input, shape index: {}]
  %s3 = inlined_call_operand.hbm [shape: f32[2,1,128], index: 3, kind: input, shape index: {}]
  %s4 = inlined_call_operand.vmem [shape: bf16[2,128,9], index: 4, kind: input, shape index: {}]
  %s5 = inlined_call_operand.vmem [shape: f32[2,1,9], index: 5, kind: output, shape index: {}]
  %s6 = sld [smem:[#allocation0]]
  $region73: #{_forward.1} parent=0
    _
  %s8 = ssub.s32 1, %s6
  %s9 = scalar_select 0, %s8, %s6
  $region1: #{_forward.1} parent=0
    #allocation3 [shape = 'u8[6455296]{0}', space=vmem, size = 0x628000, scoped, tag = 'input window, operand 1']
    #allocation4 [shape = 's32[2]{0}', space=sflag, size = 0x8, scoped, tag = 'scoped memory for _forward.1']
    #allocation5 [shape = 'u8[1024]{0}', space=vmem, size = 0x400, scoped, tag = 'input window, operand 2']
    #allocation6 [shape = 's32[2]{0}', space=sflag, size = 0x8, scoped, tag = 'scoped memory for _forward.1']
    #allocation7 [shape = 'u8[1024]{0}', space=vmem, size = 0x400, scoped, tag = 'input window, operand 3']
    %10 = vsyncpa [#allocation4], 0
    %s11 = scalar_lea.sflag [#allocation4], 1
    %12 = vsyncpa %s11, 0
    %13 = vsyncpa [#allocation6], 0
    %s14 = scalar_lea.sflag [#allocation6], 1
    %15 = vsyncpa %s14, 0
    loop: start=0, step=1, limit=8
    $region2: #{_forward.1} parent=1 // loop_pre_header
      _
    $region3: #{_forward.1} parent=1 // loop_header
      %s17 = sphi 0, %s21
      %p18 = scmp.ge.s32.totalorder %s17, 8
      %s24 = sphi 0, %s36
      %s25 = sphi 0, %s32
      %s26 = sphi 0, %s24
      %s27 = sphi 0, %s25
      %s28 = sphi 0, %s26
      %s29 = sphi 0, %s27
      %s39 = sphi 0, %s41
      %s42 = sphi 0, %s39
      %s43 = sphi 0, %s42
      %s59 = sphi 0, %s43
      %s67 = sphi 0, %s69
      %s70 = sphi 0, %s67
      %s71 = sphi 0, %s70
      %s87 = sphi 0, %s71
      %s93 = sphi 0, %s95
      %s96 = sphi 0, %s93
      %s97 = sphi 0, %s96
      %s113 = sphi 0, %s97
      %s119 = sphi 0, %s121
      %s122 = sphi 0, %s119
      %s123 = sphi 0, %s122
      %s139 = sphi 0, %s123
      %s145 = sphi 0, %s147
      %s148 = sphi 0, %s145
      %s149 = sphi 0, %s148
      %s165 = sphi 0, %s149
      %s171 = sphi 0, %s173
      %s174 = sphi 0, %s171
      %s175 = sphi 0, %s174
      %s191 = sphi 0, %s175
    $region4: #{_forward.1} parent=1 // loop_header_branch
      %20 = sbr.rel (%p18) target = $region8
    $region5: #{_forward.1} parent=1 // loop_body
      %s22 = ssub.s32 %s17, 1
      %s23 = ssub.s32 %s17, 2
      %s30 = sadd.s32 1, %s25
      %p31 = scmp.ge.s32.totalorder %s30, 3
      %s32 = scalar_select %p31, 0, %s30
      %s33 = sadd.s32 1, %s24
      %s34 = scalar_select %p31, %s33, %s24
      %p35 = scmp.ge.s32.totalorder %s34, 2
      %s36 = scalar_select %p35, 0, %s34
      %s37 = ssub.s32 %s25, %s32
      %p38 = scmp.eq.s32.totalorder %s37, 0
      %s40 = sadd.s32 %s39, 1
      %s41 = scalar_select %p38, %s39, %s40
      %p44 = pneg %p38
      %p45 = scmp.eq.s32.totalorder %s17, 5
      %p46 = por %p44, %p45
      %p47 = scmp.ne.s32.totalorder %s39, %s42
      %p48 = scmp.eq.s32.totalorder %s17, 0
      %p49 = por %p47, %p48
      %p50 = scmp.ne.s32.totalorder %s39, %s42
      %p51 = scmp.eq.s32.totalorder %s22, 5
      %p52 = por %p50, %p51
      %p53 = scmp.ne.s32.totalorder %s42, %s43
      %p54 = scmp.eq.s32.totalorder %s22, 0
      %p55 = por %p53, %p54
      %p56 = scmp.ne.s32.totalorder %s42, %s43
      %p57 = scmp.eq.s32.totalorder %s23, 5
      %p58 = por %p56, %p57
      %p60 = scmp.ne.s32.totalorder %s43, %s59
      %p61 = scmp.eq.s32.totalorder %s23, 0
      %p62 = por %p60, %p61
      %s63 = ssub.s32 %s24, %s36
      %s64 = ssub.s32 %s25, %s32
      %s65 = sor.u32 %s63, %s64
      %p66 = scmp.eq.s32.totalorder %s65, 0
      %s68 = sadd.s32 %s67, 1
      %s69 = scalar_select %p66, %s67, %s68
      %p72 = pneg %p66
      %p73 = scmp.eq.s32.totalorder %s17, 5
      %p74 = por %p72, %p73
      %p75 = scmp.ne.s32.totalorder %s67, %s70
      %p76 = scmp.eq.s32.totalorder %s17, 0
      %p77 = por %p75, %p76
      %p78 = scmp.ne.s32.totalorder %s67, %s70
      %p79 = scmp.eq.s32.totalorder %s22, 5
      %p80 = por %p78, %p79
      %p81 = scmp.ne.s32.totalorder %s70, %s71
      %p82 = scmp.eq.s32.totalorder %s22, 0
      %p83 = por %p81, %p82
      %p84 = scmp.ne.s32.totalorder %s70, %s71
      %p85 = scmp.eq.s32.totalorder %s23, 5
      %p86 = por %p84, %p85
      %p88 = scmp.ne.s32.totalorder %s71, %s87
      %p89 = scmp.eq.s32.totalorder %s23, 0
      %p90 = por %p88, %p89
      %s91 = ssub.s32 %s24, %s36
      %p92 = scmp.eq.s32.totalorder %s91, 0
      %s94 = sadd.s32 %s93, 1
      %s95 = scalar_select %p92, %s93, %s94
      %p98 = pneg %p92
      %p99 = scmp.eq.s32.totalorder %s17, 5
      %p100 = por %p98, %p99
      %p101 = scmp.ne.s32.totalorder %s93, %s96
      %p102 = scmp.eq.s32.totalorder %s17, 0
      %p103 = por %p101, %p102
      %p104 = scmp.ne.s32.totalorder %s93, %s96
      %p105 = scmp.eq.s32.totalorder %s22, 5
      %p106 = por %p104, %p105
      %p107 = scmp.ne.s32.totalorder %s96, %s97
      %p108 = scmp.eq.s32.totalorder %s22, 0
      %p109 = por %p107, %p108
      %p110 = scmp.ne.s32.totalorder %s96, %s97
      %p111 = scmp.eq.s32.totalorder %s23, 5
      %p112 = por %p110, %p111
      %p114 = scmp.ne.s32.totalorder %s97, %s113
      %p115 = scmp.eq.s32.totalorder %s23, 0
      %p116 = por %p114, %p115
      %s117 = ssub.s32 %s24, %s36
      %p118 = scmp.eq.s32.totalorder %s117, 0
      %s120 = sadd.s32 %s119, 1
      %s121 = scalar_select %p118, %s119, %s120
      %p124 = pneg %p118
      %p125 = scmp.eq.s32.totalorder %s17, 5
      %p126 = por %p124, %p125
      %p127 = scmp.ne.s32.totalorder %s119, %s122
      %p128 = scmp.eq.s32.totalorder %s17, 0
      %p129 = por %p127, %p128
      %p130 = scmp.ne.s32.totalorder %s119, %s122
      %p131 = scmp.eq.s32.totalorder %s22, 5
      %p132 = por %p130, %p131
      %p133 = scmp.ne.s32.totalorder %s122, %s123
      %p134 = scmp.eq.s32.totalorder %s22, 0
      %p135 = por %p133, %p134
      %p136 = scmp.ne.s32.totalorder %s122, %s123
      %p137 = scmp.eq.s32.totalorder %s23, 5
      %p138 = por %p136, %p137
      %p140 = scmp.ne.s32.totalorder %s123, %s139
      %p141 = scmp.eq.s32.totalorder %s23, 0
      %p142 = por %p140, %p141
      %s143 = ssub.s32 %s24, %s36
      %p144 = scmp.eq.s32.totalorder %s143, 0
      %s146 = sadd.s32 %s145, 1
      %s147 = scalar_select %p144, %s145, %s146
      %p150 = pneg %p144
      %p151 = scmp.eq.s32.totalorder %s17, 5
      %p152 = por %p150, %p151
      %p153 = scmp.ne.s32.totalorder %s145, %s148
      %p154 = scmp.eq.s32.totalorder %s17, 0
      %p155 = por %p153, %p154
      %p156 = scmp.ne.s32.totalorder %s145, %s148
      %p157 = scmp.eq.s32.totalorder %s22, 5
      %p158 = por %p156, %p157
      %p159 = scmp.ne.s32.totalorder %s148, %s149
      %p160 = scmp.eq.s32.totalorder %s22, 0
      %p161 = por %p159, %p160
      %p162 = scmp.ne.s32.totalorder %s148, %s149
      %p163 = scmp.eq.s32.totalorder %s23, 5
      %p164 = por %p162, %p163
      %p166 = scmp.ne.s32.totalorder %s149, %s165
      %p167 = scmp.eq.s32.totalorder %s23, 0
      %p168 = por %p166, %p167
      %s169 = ssub.s32 %s24, %s36
      %p170 = scmp.eq.s32.totalorder %s169, 0
      %s172 = sadd.s32 %s171, 1
      %s173 = scalar_select %p170, %s171, %s172
      %p176 = pneg %p170
      %p177 = scmp.eq.s32.totalorder %s17, 5
      %p178 = por %p176, %p177
      %p179 = scmp.ne.s32.totalorder %s171, %s174
      %p180 = scmp.eq.s32.totalorder %s17, 0
      %p181 = por %p179, %p180
      %p182 = scmp.ne.s32.totalorder %s171, %s174
      %p183 = scmp.eq.s32.totalorder %s22, 5
      %p184 = por %p182, %p183
      %p185 = scmp.ne.s32.totalorder %s174, %s175
      %p186 = scmp.eq.s32.totalorder %s22, 0
      %p187 = por %p185, %p186
      %p188 = scmp.ne.s32.totalorder %s174, %s175
      %p189 = scmp.eq.s32.totalorder %s23, 5
      %p190 = por %p188, %p189
      %p192 = scmp.ne.s32.totalorder %s175, %s191
      %p193 = scmp.eq.s32.totalorder %s23, 0
      %p194 = por %p192, %p193
      %p195 = scmp.le.s32.totalorder 1, %s17
      %p196 = scmp.lt.s32.totalorder %s17, 7
      %p197 = pnand %p195, %p196
      %p198 = pneg %p197
      // Predicated region
      $region9: #{_forward.1} parent=5 // pred_check
        _
      $region10: #{_forward.1} parent=5 // pred_check_branch
        %200 = sbr.rel (%p197) target = $region12
      $region11: #{_forward.1} parent=5 // pred_region
        %s201 = ssub.s32 %s17, 1
      $region12: #{_forward.1} parent=5 // pred_fallthru
        _
      %p202 = scmp.lt.s32.totalorder %s17, 6
      // Predicated region
      $region13: #{_forward.1} parent=5 // pred_check
        %p203 = pneg %p202
      $region14: #{_forward.1} parent=5 // pred_check_branch
        %205 = sbr.rel (%p203) target = $region16
      $region15: #{_forward.1} parent=5 // pred_region
        // Predicated region
        $region17: #{_forward.1} parent=15 // pred_check
          %p206 = pneg %p49
        $region18: #{_forward.1} parent=15 // pred_check_branch
          %208 = sbr.rel (%p206) target = $region20
        $region19: #{_forward.1} parent=15 // pred_region
          %s209 = smul.u32 197, %s25
          %p210 = scmp.lt.s32.totalorder %s209, 590
          %s211 = scalar_select %p210, %s209, 590
          %s212 = scalar_lea.vmem %s0, %s211
          %s213 = smul.u32 197, %s25
        $region20: #{_forward.1} parent=15 // pred_fallthru
          _
        // Predicated region
        $region21: #{_forward.1} parent=15 // pred_check
          %p214 = pneg %p77
        $region22: #{_forward.1} parent=15 // pred_check_branch
          %216 = sbr.rel (%p214) target = $region24
        $region23: #{_forward.1} parent=15 // pred_region
          %s217 = sand.u32 %s67, 1
          %s218 = scalar_lea.sflag [#allocation4], %s217
          %s219 = sand.u32 %s67, 1
          %s220 = smul.addr %s219, 6304
          %s221 = scalar_lea.vmem [#allocation3], %s220
          %s222 = smul.u32 788, %s25
          %s224 = ssub.s32 100864, 100864
          %225 = vsyncadd %s218, %s224
          %s226 = smul.addr %s24, 2364
          %s227 = sadd.s32 %s222, %s226
          %s228 = smul.addr %s227, 128
          %s229 = scalar_lea.hbm %s1, %s228
          %s230 = sshll.u32 %s221, 4
          %s231 = int_to_ptr.vmem [resolvable:$true] %s230
          %236 = dma.hbm_to_vmem [thread:$0]  %s229, 100864, %s231, %s218, 128, 128, 8
        $region24: #{_forward.1} parent=15 // pred_fallthru
          _
        // Predicated region
        $region25: #{_forward.1} parent=15 // pred_check
          %p237 = pneg %p103
        $region26: #{_forward.1} parent=15 // pred_check_branch
          %239 = sbr.rel (%p237) target = $region28
        $region27: #{_forward.1} parent=15 // pred_region
          %s240 = sand.u32 %s17, 1
          %s241 = scalar_lea.sflag [#allocation6], %s240
          %s242 = sand.u32 %s93, 1
          %s243 = scalar_lea.vmem [#allocation5], %s242
          %s245 = ssub.s32 16, 16
          %246 = vsyncadd %s241, %s245
          %s247 = smul.addr %s24, 16
          %s248 = scalar_lea.hbm %s2, %s247
          %s250 = sshll.u32 %s243, 4
          %s251 = int_to_ptr.vmem [resolvable:$true] %s250
          %253 = dma.hbm_to_vmem [thread:$0]  %s248, 16, %s251, %s241
        $region28: #{_forward.1} parent=15 // pred_fallthru
          _
        // Predicated region
        $region29: #{_forward.1} parent=15 // pred_check
          %p254 = pneg %p129
        $region30: #{_forward.1} parent=15 // pred_check_branch
          %256 = sbr.rel (%p254) target = $region32
        $region31: #{_forward.1} parent=15 // pred_region
          %s257 = sand.u32 %s17, 1
          %s258 = scalar_lea.sflag [#allocation6], %s257
          %s259 = sand.u32 %s119, 1
          %s260 = scalar_lea.vmem [#allocation7], %s259
          %s262 = ssub.s32 16, 16
          %263 = vsyncadd %s258, %s262
          %s264 = smul.addr %s24, 16
          %s265 = scalar_lea.hbm %s3, %s264
          %s267 = sshll.u32 %s260, 4
          %s268 = int_to_ptr.vmem [resolvable:$true] %s267
          %270 = dma.hbm_to_vmem [thread:$0]  %s265, 16, %s268, %s258
        $region32: #{_forward.1} parent=15 // pred_fallthru
          _
        // Predicated region
        $region33: #{_forward.1} parent=15 // pred_check
          %p271 = pneg %p155
        $region34: #{_forward.1} parent=15 // pred_check_branch
          %273 = sbr.rel (%p271) target = $region36
        $region35: #{_forward.1} parent=15 // pred_region
          %p274 = scmp.lt.s32.totalorder %s24, 1
          %s275 = scalar_select %p274, %s24, 1
          %s276 = smul.addr %s275, 16
          %s277 = smul.addr %s276, 4
          %s278 = scalar_lea.vmem %s4, %s277
        $region36: #{_forward.1} parent=15 // pred_fallthru
          _
      $region16: #{_forward.1} parent=5 // pred_fallthru
        _
      %p279 = scmp.le.s32.totalorder 1, %s17
      %p280 = scmp.lt.s32.totalorder %s17, 7
      %p281 = pnand %p279, %p280
      %p282 = pneg %p281
      // Predicated region
      $region37: #{_forward.1} parent=5 // pred_check
        _
      $region38: #{_forward.1} parent=5 // pred_check_branch
        %284 = sbr.rel (%p281) target = $region40
      $region39: #{_forward.1} parent=5 // pred_region
        %s285 = ssub.s32 %s17, 1
        %s286 = sand.u32 %s70, 1
        %s287 = scalar_lea.sflag [#allocation4], %s286
        %s288 = sand.u32 %s70, 1
        %s289 = smul.addr %s288, 6304
        %s290 = scalar_lea.vmem [#allocation3], %s289
        // Predicated region
        $region41: #{_forward.1} parent=39 // pred_check
          %p291 = pneg %p83
        $region42: #{_forward.1} parent=39 // pred_check_branch
          %293 = sbr.rel (%p291) target = $region44
        $region43: #{_forward.1} parent=39 // pred_region
          %294 = dma.done %s287, 100864
        $region44: #{_forward.1} parent=39 // pred_fallthru
          _
        %s295 = sand.u32 %s22, 1
        %s296 = scalar_lea.sflag [#allocation6], %s295
        %s297 = sand.u32 %s96, 1
        %s298 = scalar_lea.vmem [#allocation5], %s297
        // Predicated region
        $region45: #{_forward.1} parent=39 // pred_check
          %p299 = pneg %p109
        $region46: #{_forward.1} parent=39 // pred_check_branch
          %301 = sbr.rel (%p299) target = $region48
        $region47: #{_forward.1} parent=39 // pred_region
          %302 = dma.done %s296, 16
        $region48: #{_forward.1} parent=39 // pred_fallthru
          _
        %s303 = sand.u32 %s22, 1
        %s304 = scalar_lea.sflag [#allocation6], %s303
        %s305 = sand.u32 %s122, 1
        %s306 = scalar_lea.vmem [#allocation7], %s305
        // Predicated region
        $region49: #{_forward.1} parent=39 // pred_check
          %p307 = pneg %p135
        $region50: #{_forward.1} parent=39 // pred_check_branch
          %309 = sbr.rel (%p307) target = $region52
        $region51: #{_forward.1} parent=39 // pred_region
          %310 = dma.done %s304, 16
        $region52: #{_forward.1} parent=39 // pred_fallthru
          _
        %s311 = smul.u32 197, %s27
        %p312 = scmp.lt.s32.totalorder %s311, 590
        %s313 = scalar_select %p312, %s311, 590
        %s314 = scalar_lea.vmem %s0, %s313
        %p315 = pneg %p55
        %p316 = pneg %p52
        %s317 = sand.u32 %s70, 1
        %s318 = scalar_lea.sflag [#allocation4], %s317
        %s319 = sand.u32 %s70, 1
        %s320 = smul.addr %s319, 6304
        %s321 = scalar_lea.vmem [#allocation3], %s320
        %p322 = pneg %p83
        %p323 = pneg %p80
        %s324 = sand.u32 %s22, 1
        %s325 = scalar_lea.sflag [#allocation6], %s324
        %s326 = sand.u32 %s96, 1
        %s327 = scalar_lea.vmem [#allocation5], %s326
        %p328 = pneg %p109
        %p329 = pneg %p106
        %s330 = sand.u32 %s22, 1
        %s331 = scalar_lea.sflag [#allocation6], %s330
        %s332 = sand.u32 %s122, 1
        %s333 = scalar_lea.vmem [#allocation7], %s332
        %p334 = pneg %p135
        %p335 = pneg %p132
        %p336 = scmp.lt.s32.totalorder %s26, 1
        %s337 = scalar_select %p336, %s26, 1
        %s338 = smul.addr %s337, 16
        %s339 = smul.addr %s338, 4
        %s340 = scalar_lea.vmem %s4, %s339
        %p341 = pneg %p161
        %p342 = pneg %p158
        %p343 = pneg %p187
        %p344 = pneg %p184
        %p345 = scmp.lt.s32.totalorder %s26, 1
        %s346 = scalar_select %p345, %s26, 1
        %s347 = scalar_lea.vmem %s5, %s346
        %s348 = smul.u32 197, %s27
        %p349 = scmp.lt.s32.totalorder %s348, 590
        %s350 = scalar_select %p349, %s348, 590
        %s351 = scalar_lea.vmem %s0, %s350
        %s352 = smul.u32 197, %s27
        %s353 = smul.u32 788, %s27
        %p354 = scmp.lt.s32.totalorder %s26, 1
        %s355 = scalar_select %p354, %s26, 1
        %s356 = smul.addr %s355, 16
        %s357 = smul.addr %s356, 4
        %s358 = scalar_lea.vmem %s4, %s357
        %p359 = scmp.lt.s32.totalorder %s26, 1
        %s360 = scalar_select %p359, %s26, 1
        %s361 = scalar_lea.vmem %s5, %s360
        %p363 = scmp.eq.s32.totalorder %s27, 0
        // Predicated region
        $region53: #{_forward.1} parent=39 // pred_check
          %p364 = pneg %p363
        $region54: #{_forward.1} parent=39 // pred_check_branch
          %366 = sbr.rel (%p364) target = $region56
        $region55: #{_forward.1} parent=39 // pred_region
          %367 = vst [vmem:[#allocation2] sm:$0x1] 0.0
        $region56: #{_forward.1} parent=39 // pred_fallthru
          _
        %v368 = vld [vmem:[#allocation2] sm:$0x1]
        %v369 = vld [vmem:[%s351] sm:$0xff]
        %v370 = vld [vmem:[%s351 + $0x8] sm:$0xff]
        %v371 = vld [vmem:[%s351 + $0x10] sm:$0xff]
        %v372 = vld [vmem:[%s351 + $0x18] sm:$0xff]
        %v373 = vld [vmem:[%s351 + $0x20] sm:$0xff]
        %v374 = vld [vmem:[%s351 + $0x28] sm:$0xff]
        %v375 = vld [vmem:[%s351 + $0x30] sm:$0xff]
        %v376 = vld [vmem:[%s351 + $0x38] sm:$0xff]
        %v377 = vld [vmem:[%s351 + $0x40] sm:$0xff]
        %v378 = vld [vmem:[%s351 + $0x48] sm:$0xff]
        %v379 = vld [vmem:[%s351 + $0x50] sm:$0xff]
        %v380 = vld [vmem:[%s351 + $0x58] sm:$0xff]
        %v381 = vld [vmem:[%s351 + $0x60] sm:$0xff]
        %v382 = vld [vmem:[%s351 + $0x68] sm:$0xff]
        %v383 = vld [vmem:[%s351 + $0x70] sm:$0xff]
        %v384 = vld [vmem:[%s351 + $0x78] sm:$0xff]
        %v385 = vld [vmem:[%s351 + $0x80] sm:$0xff]
        %v386 = vld [vmem:[%s351 + $0x88] sm:$0xff]
        %v387 = vld [vmem:[%s351 + $0x90] sm:$0xff]
        %v388 = vld [vmem:[%s351 + $0x98] sm:$0xff]
        %v389 = vld [vmem:[%s351 + $0xa0] sm:$0xff]
        %v390 = vld [vmem:[%s351 + $0xa8] sm:$0xff]
        %v391 = vld [vmem:[%s351 + $0xb0] sm:$0xff]
        %v392 = vld [vmem:[%s351 + $0xb8] sm:$0xff]
        %v393 = vld [vmem:[%s351 + $0xc0] sm:$0x1f]
        %v394 = vld [vmem:[%s290] sm:$0xff]
        %v395 = vld [vmem:[%s290 + $0x8] sm:$0xff]
        %v396 = vld [vmem:[%s290 + $0x10] sm:$0xff]
        %v397 = vld [vmem:[%s290 + $0x18] sm:$0xff]
        %v398 = vld [vmem:[%s290 + $0x20] sm:$0xff]
        %v399 = vld [vmem:[%s290 + $0x28] sm:$0xff]
        %v400 = vld [vmem:[%s290 + $0x30] sm:$0xff]
        %v401 = vld [vmem:[%s290 + $0x38] sm:$0xff]
        %v402 = vld [vmem:[%s290 + $0x40] sm:$0xff]
        %v403 = vld [vmem:[%s290 + $0x48] sm:$0xff]
        %v404 = vld [vmem:[%s290 + $0x50] sm:$0xff]
        %v405 = vld [vmem:[%s290 + $0x58] sm:$0xff]
        %v406 = vld [vmem:[%s290 + $0x60] sm:$0xff]
        %v407 = vld [vmem:[%s290 + $0x68] sm:$0xff]
        %v408 = vld [vmem:[%s290 + $0x70] sm:$0xff]
        %v409 = vld [vmem:[%s290 + $0x78] sm:$0xff]
        %v410 = vld [vmem:[%s290 + $0x80] sm:$0xff]
        %v411 = vld [vmem:[%s290 + $0x88] sm:$0xff]
        %v412 = vld [vmem:[%s290 + $0x90] sm:$0xff]
        %v413 = vld [vmem:[%s290 + $0x98] sm:$0xff]
        %v414 = vld [vmem:[%s290 + $0xa0] sm:$0xff]
        %v415 = vld [vmem:[%s290 + $0xa8] sm:$0xff]
        %v416 = vld [vmem:[%s290 + $0xb0] sm:$0xff]
        %v417 = vld [vmem:[%s290 + $0xb8] sm:$0xff]
        %v418 = vld [vmem:[%s290 + $0xc0] sm:$0xff]
        %v419 = vld [vmem:[%s290 + $0xc8] sm:$0xff]
        %v420 = vld [vmem:[%s290 + $0xd0] sm:$0xff]
        %v421 = vld [vmem:[%s290 + $0xd8] sm:$0xff]
        %v422 = vld [vmem:[%s290 + $0xe0] sm:$0xff]
        %v423 = vld [vmem:[%s290 + $0xe8] sm:$0xff]
        %v424 = vld [vmem:[%s290 + $0xf0] sm:$0xff]
        %v425 = vld [vmem:[%s290 + $0xf8] sm:$0xff]
        %v426 = vld [vmem:[%s290 + $0x100] sm:$0xff]
        %v427 = vld [vmem:[%s290 + $0x108] sm:$0xff]
        %v428 = vld [vmem:[%s290 + $0x110] sm:$0xff]
        %v429 = vld [vmem:[%s290 + $0x118] sm:$0xff]
        %v430 = vld [vmem:[%s290 + $0x120] sm:$0xff]
        %v431 = vld [vmem:[%s290 + $0x128] sm:$0xff]
        %v432 = vld [vmem:[%s290 + $0x130] sm:$0xff]
        %v433 = vld [vmem:[%s290 + $0x138] sm:$0xff]
        %v434 = vld [vmem:[%s290 + $0x140] sm:$0xff]
        %v435 = vld [vmem:[%s290 + $0x148] sm:$0xff]
        %v436 = vld [vmem:[%s290 + $0x150] sm:$0xff]
        %v437 = vld [vmem:[%s290 + $0x158] sm:$0xff]
        %v438 = vld [vmem:[%s290 + $0x160] sm:$0xff]
        %v439 = vld [vmem:[%s290 + $0x168] sm:$0xff]
        %v440 = vld [vmem:[%s290 + $0x170] sm:$0xff]
        %v441 = vld [vmem:[%s290 + $0x178] sm:$0xff]
        %v442 = vld [vmem:[%s290 + $0x180] sm:$0xff]
        %v443 = vld [vmem:[%s290 + $0x188] sm:$0xff]
        %v444 = vld [vmem:[%s290 + $0x190] sm:$0xff]
        %v445 = vld [vmem:[%s290 + $0x198] sm:$0xff]
        %v446 = vld [vmem:[%s290 + $0x1a0] sm:$0xff]
        %v447 = vld [vmem:[%s290 + $0x1a8] sm:$0xff]
        %v448 = vld [vmem:[%s290 + $0x1b0] sm:$0xff]
        %v449 = vld [vmem:[%s290 + $0x1b8] sm:$0xff]
        %v450 = vld [vmem:[%s290 + $0x1c0] sm:$0xff]
        %v451 = vld [vmem:[%s290 + $0x1c8] sm:$0xff]
        %v452 = vld [vmem:[%s290 + $0x1d0] sm:$0xff]
        %v453 = vld [vmem:[%s290 + $0x1d8] sm:$0xff]
        %v454 = vld [vmem:[%s290 + $0x1e0] sm:$0xff]
        %v455 = vld [vmem:[%s290 + $0x1e8] sm:$0xff]
        %v456 = vld [vmem:[%s290 + $0x1f0] sm:$0xff]
        %v457 = vld [vmem:[%s290 + $0x1f8] sm:$0xff]
        %v458 = vld [vmem:[%s290 + $0x200] sm:$0xff]
        %v459 = vld [vmem:[%s290 + $0x208] sm:$0xff]
        %v460 = vld [vmem:[%s290 + $0x210] sm:$0xff]
        %v461 = vld [vmem:[%s290 + $0x218] sm:$0xff]
        %v462 = vld [vmem:[%s290 + $0x220] sm:$0xff]
        %v463 = vld [vmem:[%s290 + $0x228] sm:$0xff]
        %v464 = vld [vmem:[%s290 + $0x230] sm:$0xff]
        %v465 = vld [vmem:[%s290 + $0x238] sm:$0xff]
        %v466 = vld [vmem:[%s290 + $0x240] sm:$0xff]
        %v467 = vld [vmem:[%s290 + $0x248] sm:$0xff]
        %v468 = vld [vmem:[%s290 + $0x250] sm:$0xff]
        %v469 = vld [vmem:[%s290 + $0x258] sm:$0xff]
        %v470 = vld [vmem:[%s290 + $0x260] sm:$0xff]
        %v471 = vld [vmem:[%s290 + $0x268] sm:$0xff]
        %v472 = vld [vmem:[%s290 + $0x270] sm:$0xff]
        %v473 = vld [vmem:[%s290 + $0x278] sm:$0xff]
        %v474 = vld [vmem:[%s290 + $0x280] sm:$0xff]
        %v475 = vld [vmem:[%s290 + $0x288] sm:$0xff]
        %v476 = vld [vmem:[%s290 + $0x290] sm:$0xff]
        %v477 = vld [vmem:[%s290 + $0x298] sm:$0xff]
        %v478 = vld [vmem:[%s290 + $0x2a0] sm:$0xff]
        %v479 = vld [vmem:[%s290 + $0x2a8] sm:$0xff]
        %v480 = vld [vmem:[%s290 + $0x2b0] sm:$0xff]
        %v481 = vld [vmem:[%s290 + $0x2b8] sm:$0xff]
        %v482 = vld [vmem:[%s290 + $0x2c0] sm:$0xff]
        %v483 = vld [vmem:[%s290 + $0x2c8] sm:$0xff]
        %v484 = vld [vmem:[%s290 + $0x2d0] sm:$0xff]
        %v485 = vld [vmem:[%s290 + $0x2d8] sm:$0xff]
        %v486 = vld [vmem:[%s290 + $0x2e0] sm:$0xff]
        %v487 = vld [vmem:[%s290 + $0x2e8] sm:$0xff]
        %v488 = vld [vmem:[%s290 + $0x2f0] sm:$0xff]
        %v489 = vld [vmem:[%s290 + $0x2f8] sm:$0xff]
        %v490 = vld [vmem:[%s290 + $0x300] sm:$0xff]
        %v491 = vld [vmem:[%s290 + $0x308] sm:$0xff]
        %v492 = vld [vmem:[%s290 + $0x310] sm:$0xff]
        %v493 = vld [vmem:[%s290 + $0x318] sm:$0xff]
        %v494 = vld [vmem:[%s290 + $0x320] sm:$0xff]
        %v495 = vld [vmem:[%s290 + $0x328] sm:$0xff]
        %v496 = vld [vmem:[%s290 + $0x330] sm:$0xff]
        %v497 = vld [vmem:[%s290 + $0x338] sm:$0xff]
        %v498 = vld [vmem:[%s290 + $0x340] sm:$0xff]
        %v499 = vld [vmem:[%s290 + $0x348] sm:$0xff]
        %v500 = vld [vmem:[%s290 + $0x350] sm:$0xff]
        %v501 = vld [vmem:[%s290 + $0x358] sm:$0xff]
        %v502 = vld [vmem:[%s290 + $0x360] sm:$0xff]
        %v503 = vld [vmem:[%s290 + $0x368] sm:$0xff]
        %v504 = vld [vmem:[%s290 + $0x370] sm:$0xff]
        %v505 = vld [vmem:[%s290 + $0x378] sm:$0xff]
        %v506 = vld [vmem:[%s290 + $0x380] sm:$0xff]
        %v507 = vld [vmem:[%s290 + $0x388] sm:$0xff]
        %v508 = vld [vmem:[%s290 + $0x390] sm:$0xff]
        %v509 = vld [vmem:[%s290 + $0x398] sm:$0xff]
        %v510 = vld [vmem:[%s290 + $0x3a0] sm:$0xff]
        %v511 = vld [vmem:[%s290 + $0x3a8] sm:$0xff]
        %v512 = vld [vmem:[%s290 + $0x3b0] sm:$0xff]
        %v513 = vld [vmem:[%s290 + $0x3b8] sm:$0xff]
        %v514 = vld [vmem:[%s290 + $0x3c0] sm:$0xff]
        %v515 = vld [vmem:[%s290 + $0x3c8] sm:$0xff]
        %v516 = vld [vmem:[%s290 + $0x3d0] sm:$0xff]
        %v517 = vld [vmem:[%s290 + $0x3d8] sm:$0xff]
        %v518 = vld [vmem:[%s290 + $0x3e0] sm:$0xff]
        %v519 = vld [vmem:[%s290 + $0x3e8] sm:$0xff]
        %v520 = vld [vmem:[%s290 + $0x3f0] sm:$0xff]
        %v521 = vld [vmem:[%s290 + $0x3f8] sm:$0xff]
        %v522 = vld [vmem:[%s290 + $0x400] sm:$0xff]
        %v523 = vld [vmem:[%s290 + $0x408] sm:$0xff]
        %v524 = vld [vmem:[%s290 + $0x410] sm:$0xff]
        %v525 = vld [vmem:[%s290 + $0x418] sm:$0xff]
        %v526 = vld [vmem:[%s290 + $0x420] sm:$0xff]
        %v527 = vld [vmem:[%s290 + $0x428] sm:$0xff]
        %v528 = vld [vmem:[%s290 + $0x430] sm:$0xff]
        %v529 = vld [vmem:[%s290 + $0x438] sm:$0xff]
        %v530 = vld [vmem:[%s290 + $0x440] sm:$0xff]
        %v531 = vld [vmem:[%s290 + $0x448] sm:$0xff]
        %v532 = vld [vmem:[%s290 + $0x450] sm:$0xff]
        %v533 = vld [vmem:[%s290 + $0x458] sm:$0xff]
        %v534 = vld [vmem:[%s290 + $0x460] sm:$0xff]
        %v535 = vld [vmem:[%s290 + $0x468] sm:$0xff]
        %v536 = vld [vmem:[%s290 + $0x470] sm:$0xff]
        %v537 = vld [vmem:[%s290 + $0x478] sm:$0xff]
        %v538 = vld [vmem:[%s290 + $0x480] sm:$0xff]
        %v539 = vld [vmem:[%s290 + $0x488] sm:$0xff]
        %v540 = vld [vmem:[%s290 + $0x490] sm:$0xff]
        %v541 = vld [vmem:[%s290 + $0x498] sm:$0xff]
        %v542 = vld [vmem:[%s290 + $0x4a0] sm:$0xff]
        %v543 = vld [vmem:[%s290 + $0x4a8] sm:$0xff]
        %v544 = vld [vmem:[%s290 + $0x4b0] sm:$0xff]
        %v545 = vld [vmem:[%s290 + $0x4b8] sm:$0xff]
        %v546 = vld [vmem:[%s290 + $0x4c0] sm:$0xff]
        %v547 = vld [vmem:[%s290 + $0x4c8] sm:$0xff]
        %v548 = vld [vmem:[%s290 + $0x4d0] sm:$0xff]
        %v549 = vld [vmem:[%s290 + $0x4d8] sm:$0xff]
        %v550 = vld [vmem:[%s290 + $0x4e0] sm:$0xff]
        %v551 = vld [vmem:[%s290 + $0x4e8] sm:$0xff]
        %v552 = vld [vmem:[%s290 + $0x4f0] sm:$0xff]
        %v553 = vld [vmem:[%s290 + $0x4f8] sm:$0xff]
        %v554 = vld [vmem:[%s290 + $0x500] sm:$0xff]
        %v555 = vld [vmem:[%s290 + $0x508] sm:$0xff]
        %v556 = vld [vmem:[%s290 + $0x510] sm:$0xff]
        %v557 = vld [vmem:[%s290 + $0x518] sm:$0xff]
        %v558 = vld [vmem:[%s290 + $0x520] sm:$0xff]
        %v559 = vld [vmem:[%s290 + $0x528] sm:$0xff]
        %v560 = vld [vmem:[%s290 + $0x530] sm:$0xff]
        %v561 = vld [vmem:[%s290 + $0x538] sm:$0xff]
        %v562 = vld [vmem:[%s290 + $0x540] sm:$0xff]
        %v563 = vld [vmem:[%s290 + $0x548] sm:$0xff]
        %v564 = vld [vmem:[%s290 + $0x550] sm:$0xff]
        %v565 = vld [vmem:[%s290 + $0x558] sm:$0xff]
        %v566 = vld [vmem:[%s290 + $0x560] sm:$0xff]
        %v567 = vld [vmem:[%s290 + $0x568] sm:$0xff]
        %v568 = vld [vmem:[%s290 + $0x570] sm:$0xff]
        %v569 = vld [vmem:[%s290 + $0x578] sm:$0xff]
        %v570 = vld [vmem:[%s290 + $0x580] sm:$0xff]
        %v571 = vld [vmem:[%s290 + $0x588] sm:$0xff]
        %v572 = vld [vmem:[%s290 + $0x590] sm:$0xff]
        %v573 = vld [vmem:[%s290 + $0x598] sm:$0xff]
        %v574 = vld [vmem:[%s290 + $0x5a0] sm:$0xff]
        %v575 = vld [vmem:[%s290 + $0x5a8] sm:$0xff]
        %v576 = vld [vmem:[%s290 + $0x5b0] sm:$0xff]
        %v577 = vld [vmem:[%s290 + $0x5b8] sm:$0xff]
        %v578 = vld [vmem:[%s290 + $0x5c0] sm:$0xff]
        %v579 = vld [vmem:[%s290 + $0x5c8] sm:$0xff]
        %v580 = vld [vmem:[%s290 + $0x5d0] sm:$0xff]
        %v581 = vld [vmem:[%s290 + $0x5d8] sm:$0xff]
        %v582 = vld [vmem:[%s290 + $0x5e0] sm:$0xff]
        %v583 = vld [vmem:[%s290 + $0x5e8] sm:$0xff]
        %v584 = vld [vmem:[%s290 + $0x5f0] sm:$0xff]
        %v585 = vld [vmem:[%s290 + $0x5f8] sm:$0xff]
        %v586 = vld [vmem:[%s290 + $0x600] sm:$0xff]
        %v587 = vld [vmem:[%s290 + $0x608] sm:$0xff]
        %v588 = vld [vmem:[%s290 + $0x610] sm:$0xff]
        %v589 = vld [vmem:[%s290 + $0x618] sm:$0xff]
        %v590 = vld [vmem:[%s290 + $0x620] sm:$0xff]
        %v591 = vld [vmem:[%s290 + $0x628] sm:$0xff]
        %v592 = vld [vmem:[%s290 + $0x630] sm:$0xff]
        %v593 = vld [vmem:[%s290 + $0x638] sm:$0xff]
        %v594 = vld [vmem:[%s290 + $0x640] sm:$0xff]
        %v595 = vld [vmem:[%s290 + $0x648] sm:$0xff]
        %v596 = vld [vmem:[%s290 + $0x650] sm:$0xff]
        %v597 = vld [vmem:[%s290 + $0x658] sm:$0xff]
        %v598 = vld [vmem:[%s290 + $0x660] sm:$0xff]
        %v599 = vld [vmem:[%s290 + $0x668] sm:$0xff]
        %v600 = vld [vmem:[%s290 + $0x670] sm:$0xff]
        %v601 = vld [vmem:[%s290 + $0x678] sm:$0xff]
        %v602 = vld [vmem:[%s290 + $0x680] sm:$0xff]
        %v603 = vld [vmem:[%s290 + $0x688] sm:$0xff]
        %v604 = vld [vmem:[%s290 + $0x690] sm:$0xff]
        %v605 = vld [vmem:[%s290 + $0x698] sm:$0xff]
        %v606 = vld [vmem:[%s290 + $0x6a0] sm:$0xff]
        %v607 = vld [vmem:[%s290 + $0x6a8] sm:$0xff]
        %v608 = vld [vmem:[%s290 + $0x6b0] sm:$0xff]
        %v609 = vld [vmem:[%s290 + $0x6b8] sm:$0xff]
        %v610 = vld [vmem:[%s290 + $0x6c0] sm:$0xff]
        %v611 = vld [vmem:[%s290 + $0x6c8] sm:$0xff]
        %v612 = vld [vmem:[%s290 + $0x6d0] sm:$0xff]
        %v613 = vld [vmem:[%s290 + $0x6d8] sm:$0xff]
        %v614 = vld [vmem:[%s290 + $0x6e0] sm:$0xff]
        %v615 = vld [vmem:[%s290 + $0x6e8] sm:$0xff]
        %v616 = vld [vmem:[%s290 + $0x6f0] sm:$0xff]
        %v617 = vld [vmem:[%s290 + $0x6f8] sm:$0xff]
        %v618 = vld [vmem:[%s290 + $0x700] sm:$0xff]
        %v619 = vld [vmem:[%s290 + $0x708] sm:$0xff]
        %v620 = vld [vmem:[%s290 + $0x710] sm:$0xff]
        %v621 = vld [vmem:[%s290 + $0x718] sm:$0xff]
        %v622 = vld [vmem:[%s290 + $0x720] sm:$0xff]
        %v623 = vld [vmem:[%s290 + $0x728] sm:$0xff]
        %v624 = vld [vmem:[%s290 + $0x730] sm:$0xff]
        %v625 = vld [vmem:[%s290 + $0x738] sm:$0xff]
        %v626 = vld [vmem:[%s290 + $0x740] sm:$0xff]
        %v627 = vld [vmem:[%s290 + $0x748] sm:$0xff]
        %v628 = vld [vmem:[%s290 + $0x750] sm:$0xff]
        %v629 = vld [vmem:[%s290 + $0x758] sm:$0xff]
        %v630 = vld [vmem:[%s290 + $0x760] sm:$0xff]
        %v631 = vld [vmem:[%s290 + $0x768] sm:$0xff]
        %v632 = vld [vmem:[%s290 + $0x770] sm:$0xff]
        %v633 = vld [vmem:[%s290 + $0x778] sm:$0xff]
        %v634 = vld [vmem:[%s290 + $0x780] sm:$0xff]
        %v635 = vld [vmem:[%s290 + $0x788] sm:$0xff]
        %v636 = vld [vmem:[%s290 + $0x790] sm:$0xff]
        %v637 = vld [vmem:[%s290 + $0x798] sm:$0xff]
        %v638 = vld [vmem:[%s290 + $0x7a0] sm:$0xff]
        %v639 = vld [vmem:[%s290 + $0x7a8] sm:$0xff]
        %v640 = vld [vmem:[%s290 + $0x7b0] sm:$0xff]
        %v641 = vld [vmem:[%s290 + $0x7b8] sm:$0xff]
        %v642 = vld [vmem:[%s290 + $0x7c0] sm:$0xff]
        %v643 = vld [vmem:[%s290 + $0x7c8] sm:$0xff]
        %v644 = vld [vmem:[%s290 + $0x7d0] sm:$0xff]
        %v645 = vld [vmem:[%s290 + $0x7d8] sm:$0xff]
        %v646 = vld [vmem:[%s290 + $0x7e0] sm:$0xff]
        %v647 = vld [vmem:[%s290 + $0x7e8] sm:$0xff]
        %v648 = vld [vmem:[%s290 + $0x7f0] sm:$0xff]
        %v649 = vld [vmem:[%s290 + $0x7f8] sm:$0xff]
        %v650 = vld [vmem:[%s290 + $0x800] sm:$0xff]
        %v651 = vld [vmem:[%s290 + $0x808] sm:$0xff]
        %v652 = vld [vmem:[%s290 + $0x810] sm:$0xff]
        %v653 = vld [vmem:[%s290 + $0x818] sm:$0xff]
        %v654 = vld [vmem:[%s290 + $0x820] sm:$0xff]
        %v655 = vld [vmem:[%s290 + $0x828] sm:$0xff]
        %v656 = vld [vmem:[%s290 + $0x830] sm:$0xff]
        %v657 = vld [vmem:[%s290 + $0x838] sm:$0xff]
        %v658 = vld [vmem:[%s290 + $0x840] sm:$0xff]
        %v659 = vld [vmem:[%s290 + $0x848] sm:$0xff]
        %v660 = vld [vmem:[%s290 + $0x850] sm:$0xff]
        %v661 = vld [vmem:[%s290 + $0x858] sm:$0xff]
        %v662 = vld [vmem:[%s290 + $0x860] sm:$0xff]
        %v663 = vld [vmem:[%s290 + $0x868] sm:$0xff]
        %v664 = vld [vmem:[%s290 + $0x870] sm:$0xff]
        %v665 = vld [vmem:[%s290 + $0x878] sm:$0xff]
        %v666 = vld [vmem:[%s290 + $0x880] sm:$0xff]
        %v667 = vld [vmem:[%s290 + $0x888] sm:$0xff]
        %v668 = vld [vmem:[%s290 + $0x890] sm:$0xff]
        %v669 = vld [vmem:[%s290 + $0x898] sm:$0xff]
        %v670 = vld [vmem:[%s290 + $0x8a0] sm:$0xff]
        %v671 = vld [vmem:[%s290 + $0x8a8] sm:$0xff]
        %v672 = vld [vmem:[%s290 + $0x8b0] sm:$0xff]
        %v673 = vld [vmem:[%s290 + $0x8b8] sm:$0xff]
        %v674 = vld [vmem:[%s290 + $0x8c0] sm:$0xff]
        %v675 = vld [vmem:[%s290 + $0x8c8] sm:$0xff]
        %v676 = vld [vmem:[%s290 + $0x8d0] sm:$0xff]
        %v677 = vld [vmem:[%s290 + $0x8d8] sm:$0xff]
        %v678 = vld [vmem:[%s290 + $0x8e0] sm:$0xff]
        %v679 = vld [vmem:[%s290 + $0x8e8] sm:$0xff]
        %v680 = vld [vmem:[%s290 + $0x8f0] sm:$0xff]
        %v681 = vld [vmem:[%s290 + $0x8f8] sm:$0xff]
        %v682 = vld [vmem:[%s290 + $0x900] sm:$0xff]
        %v683 = vld [vmem:[%s290 + $0x908] sm:$0xff]
        %v684 = vld [vmem:[%s290 + $0x910] sm:$0xff]
        %v685 = vld [vmem:[%s290 + $0x918] sm:$0xff]
        %v686 = vld [vmem:[%s290 + $0x920] sm:$0xff]
        %v687 = vld [vmem:[%s290 + $0x928] sm:$0xff]
        %v688 = vld [vmem:[%s290 + $0x930] sm:$0xff]
        %v689 = vld [vmem:[%s290 + $0x938] sm:$0xff]
        %v690 = vld [vmem:[%s290 + $0x940] sm:$0xff]
        %v691 = vld [vmem:[%s290 + $0x948] sm:$0xff]
        %v692 = vld [vmem:[%s290 + $0x950] sm:$0xff]
        %v693 = vld [vmem:[%s290 + $0x958] sm:$0xff]
        %v694 = vld [vmem:[%s290 + $0x960] sm:$0xff]
        %v695 = vld [vmem:[%s290 + $0x968] sm:$0xff]
        %v696 = vld [vmem:[%s290 + $0x970] sm:$0xff]
        %v697 = vld [vmem:[%s290 + $0x978] sm:$0xff]
        %v698 = vld [vmem:[%s290 + $0x980] sm:$0xff]
        %v699 = vld [vmem:[%s290 + $0x988] sm:$0xff]
        %v700 = vld [vmem:[%s290 + $0x990] sm:$0xff]
        %v701 = vld [vmem:[%s290 + $0x998] sm:$0xff]
        %v702 = vld [vmem:[%s290 + $0x9a0] sm:$0xff]
        %v703 = vld [vmem:[%s290 + $0x9a8] sm:$0xff]
        %v704 = vld [vmem:[%s290 + $0x9b0] sm:$0xff]
        %v705 = vld [vmem:[%s290 + $0x9b8] sm:$0xff]
        %v706 = vld [vmem:[%s290 + $0x9c0] sm:$0xff]
        %v707 = vld [vmem:[%s290 + $0x9c8] sm:$0xff]
        %v708 = vld [vmem:[%s290 + $0x9d0] sm:$0xff]
        %v709 = vld [vmem:[%s290 + $0x9d8] sm:$0xff]
        %v710 = vld [vmem:[%s290 + $0x9e0] sm:$0xff]
        %v711 = vld [vmem:[%s290 + $0x9e8] sm:$0xff]
        %v712 = vld [vmem:[%s290 + $0x9f0] sm:$0xff]
        %v713 = vld [vmem:[%s290 + $0x9f8] sm:$0xff]
        %v714 = vld [vmem:[%s290 + $0xa00] sm:$0xff]
        %v715 = vld [vmem:[%s290 + $0xa08] sm:$0xff]
        %v716 = vld [vmem:[%s290 + $0xa10] sm:$0xff]
        %v717 = vld [vmem:[%s290 + $0xa18] sm:$0xff]
        %v718 = vld [vmem:[%s290 + $0xa20] sm:$0xff]
        %v719 = vld [vmem:[%s290 + $0xa28] sm:$0xff]
        %v720 = vld [vmem:[%s290 + $0xa30] sm:$0xff]
        %v721 = vld [vmem:[%s290 + $0xa38] sm:$0xff]
        %v722 = vld [vmem:[%s290 + $0xa40] sm:$0xff]
        %v723 = vld [vmem:[%s290 + $0xa48] sm:$0xff]
        %v724 = vld [vmem:[%s290 + $0xa50] sm:$0xff]
        %v725 = vld [vmem:[%s290 + $0xa58] sm:$0xff]
        %v726 = vld [vmem:[%s290 + $0xa60] sm:$0xff]
        %v727 = vld [vmem:[%s290 + $0xa68] sm:$0xff]
        %v728 = vld [vmem:[%s290 + $0xa70] sm:$0xff]
        %v729 = vld [vmem:[%s290 + $0xa78] sm:$0xff]
        %v730 = vld [vmem:[%s290 + $0xa80] sm:$0xff]
        %v731 = vld [vmem:[%s290 + $0xa88] sm:$0xff]
        %v732 = vld [vmem:[%s290 + $0xa90] sm:$0xff]
        %v733 = vld [vmem:[%s290 + $0xa98] sm:$0xff]
        %v734 = vld [vmem:[%s290 + $0xaa0] sm:$0xff]
        %v735 = vld [vmem:[%s290 + $0xaa8] sm:$0xff]
        %v736 = vld [vmem:[%s290 + $0xab0] sm:$0xff]
        %v737 = vld [vmem:[%s290 + $0xab8] sm:$0xff]
        %v738 = vld [vmem:[%s290 + $0xac0] sm:$0xff]
        %v739 = vld [vmem:[%s290 + $0xac8] sm:$0xff]
        %v740 = vld [vmem:[%s290 + $0xad0] sm:$0xff]
        %v741 = vld [vmem:[%s290 + $0xad8] sm:$0xff]
        %v742 = vld [vmem:[%s290 + $0xae0] sm:$0xff]
        %v743 = vld [vmem:[%s290 + $0xae8] sm:$0xff]
        %v744 = vld [vmem:[%s290 + $0xaf0] sm:$0xff]
        %v745 = vld [vmem:[%s290 + $0xaf8] sm:$0xff]
        %v746 = vld [vmem:[%s290 + $0xb00] sm:$0xff]
        %v747 = vld [vmem:[%s290 + $0xb08] sm:$0xff]
        %v748 = vld [vmem:[%s290 + $0xb10] sm:$0xff]
        %v749 = vld [vmem:[%s290 + $0xb18] sm:$0xff]
        %v750 = vld [vmem:[%s290 + $0xb20] sm:$0xff]
        %v751 = vld [vmem:[%s290 + $0xb28] sm:$0xff]
        %v752 = vld [vmem:[%s290 + $0xb30] sm:$0xff]
        %v753 = vld [vmem:[%s290 + $0xb38] sm:$0xff]
        %v754 = vld [vmem:[%s290 + $0xb40] sm:$0xff]
        %v755 = vld [vmem:[%s290 + $0xb48] sm:$0xff]
        %v756 = vld [vmem:[%s290 + $0xb50] sm:$0xff]
        %v757 = vld [vmem:[%s290 + $0xb58] sm:$0xff]
        %v758 = vld [vmem:[%s290 + $0xb60] sm:$0xff]
        %v759 = vld [vmem:[%s290 + $0xb68] sm:$0xff]
        %v760 = vld [vmem:[%s290 + $0xb70] sm:$0xff]
        %v761 = vld [vmem:[%s290 + $0xb78] sm:$0xff]
        %v762 = vld [vmem:[%s290 + $0xb80] sm:$0xff]
        %v763 = vld [vmem:[%s290 + $0xb88] sm:$0xff]
        %v764 = vld [vmem:[%s290 + $0xb90] sm:$0xff]
        %v765 = vld [vmem:[%s290 + $0xb98] sm:$0xff]
        %v766 = vld [vmem:[%s290 + $0xba0] sm:$0xff]
        %v767 = vld [vmem:[%s290 + $0xba8] sm:$0xff]
        %v768 = vld [vmem:[%s290 + $0xbb0] sm:$0xff]
        %v769 = vld [vmem:[%s290 + $0xbb8] sm:$0xff]
        %v770 = vld [vmem:[%s290 + $0xbc0] sm:$0xff]
        %v771 = vld [vmem:[%s290 + $0xbc8] sm:$0xff]
        %v772 = vld [vmem:[%s290 + $0xbd0] sm:$0xff]
        %v773 = vld [vmem:[%s290 + $0xbd8] sm:$0xff]
        %v774 = vld [vmem:[%s290 + $0xbe0] sm:$0xff]
        %v775 = vld [vmem:[%s290 + $0xbe8] sm:$0xff]
        %v776 = vld [vmem:[%s290 + $0xbf0] sm:$0xff]
        %v777 = vld [vmem:[%s290 + $0xbf8] sm:$0xff]
        %v778 = vld [vmem:[%s290 + $0xc00] sm:$0xff]
        %v779 = vld [vmem:[%s290 + $0xc08] sm:$0xff]
        %v780 = vld [vmem:[%s290 + $0xc10] sm:$0xff]
        %v781 = vld [vmem:[%s290 + $0xc18] sm:$0xff]
        %v782 = vld [vmem:[%s290 + $0xc20] sm:$0xff]
        %v783 = vld [vmem:[%s290 + $0xc28] sm:$0xff]
        %v784 = vld [vmem:[%s290 + $0xc30] sm:$0xff]
        %v785 = vld [vmem:[%s290 + $0xc38] sm:$0xff]
        %v786 = vld [vmem:[%s290 + $0xc40] sm:$0xff]
        %v787 = vld [vmem:[%s290 + $0xc48] sm:$0xff]
        %v788 = vld [vmem:[%s290 + $0xc50] sm:$0xff]
        %v789 = vld [vmem:[%s290 + $0xc58] sm:$0xff]
        %v790 = vld [vmem:[%s290 + $0xc60] sm:$0xff]
        %v791 = vld [vmem:[%s290 + $0xc68] sm:$0xff]
        %v792 = vld [vmem:[%s290 + $0xc70] sm:$0xff]
        %v793 = vld [vmem:[%s290 + $0xc78] sm:$0xff]
        %v794 = vld [vmem:[%s290 + $0xc80] sm:$0xff]
        %v795 = vld [vmem:[%s290 + $0xc88] sm:$0xff]
        %v796 = vld [vmem:[%s290 + $0xc90] sm:$0xff]
        %v797 = vld [vmem:[%s290 + $0xc98] sm:$0xff]
        %v798 = vld [vmem:[%s290 + $0xca0] sm:$0xff]
        %v799 = vld [vmem:[%s290 + $0xca8] sm:$0xff]
        %v800 = vld [vmem:[%s290 + $0xcb0] sm:$0xff]
        %v801 = vld [vmem:[%s290 + $0xcb8] sm:$0xff]
        %v802 = vld [vmem:[%s290 + $0xcc0] sm:$0xff]
        %v803 = vld [vmem:[%s290 + $0xcc8] sm:$0xff]
        %v804 = vld [vmem:[%s290 + $0xcd0] sm:$0xff]
        %v805 = vld [vmem:[%s290 + $0xcd8] sm:$0xff]
        %v806 = vld [vmem:[%s290 + $0xce0] sm:$0xff]
        %v807 = vld [vmem:[%s290 + $0xce8] sm:$0xff]
        %v808 = vld [vmem:[%s290 + $0xcf0] sm:$0xff]
        %v809 = vld [vmem:[%s290 + $0xcf8] sm:$0xff]
        %v810 = vld [vmem:[%s290 + $0xd00] sm:$0xff]
        %v811 = vld [vmem:[%s290 + $0xd08] sm:$0xff]
        %v812 = vld [vmem:[%s290 + $0xd10] sm:$0xff]
        %v813 = vld [vmem:[%s290 + $0xd18] sm:$0xff]
        %v814 = vld [vmem:[%s290 + $0xd20] sm:$0xff]
        %v815 = vld [vmem:[%s290 + $0xd28] sm:$0xff]
        %v816 = vld [vmem:[%s290 + $0xd30] sm:$0xff]
        %v817 = vld [vmem:[%s290 + $0xd38] sm:$0xff]
        %v818 = vld [vmem:[%s290 + $0xd40] sm:$0xff]
        %v819 = vld [vmem:[%s290 + $0xd48] sm:$0xff]
        %v820 = vld [vmem:[%s290 + $0xd50] sm:$0xff]
        %v821 = vld [vmem:[%s290 + $0xd58] sm:$0xff]
        %v822 = vld [vmem:[%s290 + $0xd60] sm:$0xff]
        %v823 = vld [vmem:[%s290 + $0xd68] sm:$0xff]
        %v824 = vld [vmem:[%s290 + $0xd70] sm:$0xff]
        %v825 = vld [vmem:[%s290 + $0xd78] sm:$0xff]
        %v826 = vld [vmem:[%s290 + $0xd80] sm:$0xff]
        %v827 = vld [vmem:[%s290 + $0xd88] sm:$0xff]
        %v828 = vld [vmem:[%s290 + $0xd90] sm:$0xff]
        %v829 = vld [vmem:[%s290 + $0xd98] sm:$0xff]
        %v830 = vld [vmem:[%s290 + $0xda0] sm:$0xff]
        %v831 = vld [vmem:[%s290 + $0xda8] sm:$0xff]
        %v832 = vld [vmem:[%s290 + $0xdb0] sm:$0xff]
        %v833 = vld [vmem:[%s290 + $0xdb8] sm:$0xff]
        %v834 = vld [vmem:[%s290 + $0xdc0] sm:$0xff]
        %v835 = vld [vmem:[%s290 + $0xdc8] sm:$0xff]
        %v836 = vld [vmem:[%s290 + $0xdd0] sm:$0xff]
        %v837 = vld [vmem:[%s290 + $0xdd8] sm:$0xff]
        %v838 = vld [vmem:[%s290 + $0xde0] sm:$0xff]
        %v839 = vld [vmem:[%s290 + $0xde8] sm:$0xff]
        %v840 = vld [vmem:[%s290 + $0xdf0] sm:$0xff]
        %v841 = vld [vmem:[%s290 + $0xdf8] sm:$0xff]
        %v842 = vld [vmem:[%s290 + $0xe00] sm:$0xff]
        %v843 = vld [vmem:[%s290 + $0xe08] sm:$0xff]
        %v844 = vld [vmem:[%s290 + $0xe10] sm:$0xff]
        %v845 = vld [vmem:[%s290 + $0xe18] sm:$0xff]
        %v846 = vld [vmem:[%s290 + $0xe20] sm:$0xff]
        %v847 = vld [vmem:[%s290 + $0xe28] sm:$0xff]
        %v848 = vld [vmem:[%s290 + $0xe30] sm:$0xff]
        %v849 = vld [vmem:[%s290 + $0xe38] sm:$0xff]
        %v850 = vld [vmem:[%s290 + $0xe40] sm:$0xff]
        %v851 = vld [vmem:[%s290 + $0xe48] sm:$0xff]
        %v852 = vld [vmem:[%s290 + $0xe50] sm:$0xff]
        %v853 = vld [vmem:[%s290 + $0xe58] sm:$0xff]
        %v854 = vld [vmem:[%s290 + $0xe60] sm:$0xff]
        %v855 = vld [vmem:[%s290 + $0xe68] sm:$0xff]
        %v856 = vld [vmem:[%s290 + $0xe70] sm:$0xff]
        %v857 = vld [vmem:[%s290 + $0xe78] sm:$0xff]
        %v858 = vld [vmem:[%s290 + $0xe80] sm:$0xff]
        %v859 = vld [vmem:[%s290 + $0xe88] sm:$0xff]
        %v860 = vld [vmem:[%s290 + $0xe90] sm:$0xff]
        %v861 = vld [vmem:[%s290 + $0xe98] sm:$0xff]
        %v862 = vld [vmem:[%s290 + $0xea0] sm:$0xff]
        %v863 = vld [vmem:[%s290 + $0xea8] sm:$0xff]
        %v864 = vld [vmem:[%s290 + $0xeb0] sm:$0xff]
        %v865 = vld [vmem:[%s290 + $0xeb8] sm:$0xff]
        %v866 = vld [vmem:[%s290 + $0xec0] sm:$0xff]
        %v867 = vld [vmem:[%s290 + $0xec8] sm:$0xff]
        %v868 = vld [vmem:[%s290 + $0xed0] sm:$0xff]
        %v869 = vld [vmem:[%s290 + $0xed8] sm:$0xff]
        %v870 = vld [vmem:[%s290 + $0xee0] sm:$0xff]
        %v871 = vld [vmem:[%s290 + $0xee8] sm:$0xff]
        %v872 = vld [vmem:[%s290 + $0xef0] sm:$0xff]
        %v873 = vld [vmem:[%s290 + $0xef8] sm:$0xff]
        %v874 = vld [vmem:[%s290 + $0xf00] sm:$0xff]
        %v875 = vld [vmem:[%s290 + $0xf08] sm:$0xff]
        %v876 = vld [vmem:[%s290 + $0xf10] sm:$0xff]
        %v877 = vld [vmem:[%s290 + $0xf18] sm:$0xff]
        %v878 = vld [vmem:[%s290 + $0xf20] sm:$0xff]
        %v879 = vld [vmem:[%s290 + $0xf28] sm:$0xff]
        %v880 = vld [vmem:[%s290 + $0xf30] sm:$0xff]
        %v881 = vld [vmem:[%s290 + $0xf38] sm:$0xff]
        %v882 = vld [vmem:[%s290 + $0xf40] sm:$0xff]
        %v883 = vld [vmem:[%s290 + $0xf48] sm:$0xff]
        %v884 = vld [vmem:[%s290 + $0xf50] sm:$0xff]
        %v885 = vld [vmem:[%s290 + $0xf58] sm:$0xff]
        %v886 = vld [vmem:[%s290 + $0xf60] sm:$0xff]
        %v887 = vld [vmem:[%s290 + $0xf68] sm:$0xff]
        %v888 = vld [vmem:[%s290 + $0xf70] sm:$0xff]
        %v889 = vld [vmem:[%s290 + $0xf78] sm:$0xff]
        %v890 = vld [vmem:[%s290 + $0xf80] sm:$0xff]
        %v891 = vld [vmem:[%s290 + $0xf88] sm:$0xff]
        %v892 = vld [vmem:[%s290 + $0xf90] sm:$0xff]
        %v893 = vld [vmem:[%s290 + $0xf98] sm:$0xff]
        %v894 = vld [vmem:[%s290 + $0xfa0] sm:$0xff]
        %v895 = vld [vmem:[%s290 + $0xfa8] sm:$0xff]
        %v896 = vld [vmem:[%s290 + $0xfb0] sm:$0xff]
        %v897 = vld [vmem:[%s290 + $0xfb8] sm:$0xff]
        %v898 = vld [vmem:[%s290 + $0xfc0] sm:$0xff]
        %v899 = vld [vmem:[%s290 + $0xfc8] sm:$0xff]
        %v900 = vld [vmem:[%s290 + $0xfd0] sm:$0xff]
        %v901 = vld [vmem:[%s290 + $0xfd8] sm:$0xff]
        %v902 = vld [vmem:[%s290 + $0xfe0] sm:$0xff]
        %v903 = vld [vmem:[%s290 + $0xfe8] sm:$0xff]
        %v904 = vld [vmem:[%s290 + $0xff0] sm:$0xff]
        %v905 = vld [vmem:[%s290 + $0xff8] sm:$0xff]
        %v906 = vld [vmem:[%s290 + $0x1000] sm:$0xff]
        %v907 = vld [vmem:[%s290 + $0x1008] sm:$0xff]
        %v908 = vld [vmem:[%s290 + $0x1010] sm:$0xff]
        %v909 = vld [vmem:[%s290 + $0x1018] sm:$0xff]
        %v910 = vld [vmem:[%s290 + $0x1020] sm:$0xff]
        %v911 = vld [vmem:[%s290 + $0x1028] sm:$0xff]
        %v912 = vld [vmem:[%s290 + $0x1030] sm:$0xff]
        %v913 = vld [vmem:[%s290 + $0x1038] sm:$0xff]
        %v914 = vld [vmem:[%s290 + $0x1040] sm:$0xff]
        %v915 = vld [vmem:[%s290 + $0x1048] sm:$0xff]
        %v916 = vld [vmem:[%s290 + $0x1050] sm:$0xff]
        %v917 = vld [vmem:[%s290 + $0x1058] sm:$0xff]
        %v918 = vld [vmem:[%s290 + $0x1060] sm:$0xff]
        %v919 = vld [vmem:[%s290 + $0x1068] sm:$0xff]
        %v920 = vld [vmem:[%s290 + $0x1070] sm:$0xff]
        %v921 = vld [vmem:[%s290 + $0x1078] sm:$0xff]
        %v922 = vld [vmem:[%s290 + $0x1080] sm:$0xff]
        %v923 = vld [vmem:[%s290 + $0x1088] sm:$0xff]
        %v924 = vld [vmem:[%s290 + $0x1090] sm:$0xff]
        %v925 = vld [vmem:[%s290 + $0x1098] sm:$0xff]
        %v926 = vld [vmem:[%s290 + $0x10a0] sm:$0xff]
        %v927 = vld [vmem:[%s290 + $0x10a8] sm:$0xff]
        %v928 = vld [vmem:[%s290 + $0x10b0] sm:$0xff]
        %v929 = vld [vmem:[%s290 + $0x10b8] sm:$0xff]
        %v930 = vld [vmem:[%s290 + $0x10c0] sm:$0xff]
        %v931 = vld [vmem:[%s290 + $0x10c8] sm:$0xff]
        %v932 = vld [vmem:[%s290 + $0x10d0] sm:$0xff]
        %v933 = vld [vmem:[%s290 + $0x10d8] sm:$0xff]
        %v934 = vld [vmem:[%s290 + $0x10e0] sm:$0xff]
        %v935 = vld [vmem:[%s290 + $0x10e8] sm:$0xff]
        %v936 = vld [vmem:[%s290 + $0x10f0] sm:$0xff]
        %v937 = vld [vmem:[%s290 + $0x10f8] sm:$0xff]
        %v938 = vld [vmem:[%s290 + $0x1100] sm:$0xff]
        %v939 = vld [vmem:[%s290 + $0x1108] sm:$0xff]
        %v940 = vld [vmem:[%s290 + $0x1110] sm:$0xff]
        %v941 = vld [vmem:[%s290 + $0x1118] sm:$0xff]
        %v942 = vld [vmem:[%s290 + $0x1120] sm:$0xff]
        %v943 = vld [vmem:[%s290 + $0x1128] sm:$0xff]
        %v944 = vld [vmem:[%s290 + $0x1130] sm:$0xff]
        %v945 = vld [vmem:[%s290 + $0x1138] sm:$0xff]
        %v946 = vld [vmem:[%s290 + $0x1140] sm:$0xff]
        %v947 = vld [vmem:[%s290 + $0x1148] sm:$0xff]
        %v948 = vld [vmem:[%s290 + $0x1150] sm:$0xff]
        %v949 = vld [vmem:[%s290 + $0x1158] sm:$0xff]
        %v950 = vld [vmem:[%s290 + $0x1160] sm:$0xff]
        %v951 = vld [vmem:[%s290 + $0x1168] sm:$0xff]
        %v952 = vld [vmem:[%s290 + $0x1170] sm:$0xff]
        %v953 = vld [vmem:[%s290 + $0x1178] sm:$0xff]
        %v954 = vld [vmem:[%s290 + $0x1180] sm:$0xff]
        %v955 = vld [vmem:[%s290 + $0x1188] sm:$0xff]
        %v956 = vld [vmem:[%s290 + $0x1190] sm:$0xff]
        %v957 = vld [vmem:[%s290 + $0x1198] sm:$0xff]
        %v958 = vld [vmem:[%s290 + $0x11a0] sm:$0xff]
        %v959 = vld [vmem:[%s290 + $0x11a8] sm:$0xff]
        %v960 = vld [vmem:[%s290 + $0x11b0] sm:$0xff]
        %v961 = vld [vmem:[%s290 + $0x11b8] sm:$0xff]
        %v962 = vld [vmem:[%s290 + $0x11c0] sm:$0xff]
        %v963 = vld [vmem:[%s290 + $0x11c8] sm:$0xff]
        %v964 = vld [vmem:[%s290 + $0x11d0] sm:$0xff]
        %v965 = vld [vmem:[%s290 + $0x11d8] sm:$0xff]
        %v966 = vld [vmem:[%s290 + $0x11e0] sm:$0xff]
        %v967 = vld [vmem:[%s290 + $0x11e8] sm:$0xff]
        %v968 = vld [vmem:[%s290 + $0x11f0] sm:$0xff]
        %v969 = vld [vmem:[%s290 + $0x11f8] sm:$0xff]
        %v970 = vld [vmem:[%s290 + $0x1200] sm:$0xff]
        %v971 = vld [vmem:[%s290 + $0x1208] sm:$0xff]
        %v972 = vld [vmem:[%s290 + $0x1210] sm:$0xff]
        %v973 = vld [vmem:[%s290 + $0x1218] sm:$0xff]
        %v974 = vld [vmem:[%s290 + $0x1220] sm:$0xff]
        %v975 = vld [vmem:[%s290 + $0x1228] sm:$0xff]
        %v976 = vld [vmem:[%s290 + $0x1230] sm:$0xff]
        %v977 = vld [vmem:[%s290 + $0x1238] sm:$0xff]
        %v978 = vld [vmem:[%s290 + $0x1240] sm:$0xff]
        %v979 = vld [vmem:[%s290 + $0x1248] sm:$0xff]
        %v980 = vld [vmem:[%s290 + $0x1250] sm:$0xff]
        %v981 = vld [vmem:[%s290 + $0x1258] sm:$0xff]
        %v982 = vld [vmem:[%s290 + $0x1260] sm:$0xff]
        %v983 = vld [vmem:[%s290 + $0x1268] sm:$0xff]
        %v984 = vld [vmem:[%s290 + $0x1270] sm:$0xff]
        %v985 = vld [vmem:[%s290 + $0x1278] sm:$0xff]
        %v986 = vld [vmem:[%s290 + $0x1280] sm:$0xff]
        %v987 = vld [vmem:[%s290 + $0x1288] sm:$0xff]
        %v988 = vld [vmem:[%s290 + $0x1290] sm:$0xff]
        %v989 = vld [vmem:[%s290 + $0x1298] sm:$0xff]
        %v990 = vld [vmem:[%s290 + $0x12a0] sm:$0xff]
        %v991 = vld [vmem:[%s290 + $0x12a8] sm:$0xff]
        %v992 = vld [vmem:[%s290 + $0x12b0] sm:$0xff]
        %v993 = vld [vmem:[%s290 + $0x12b8] sm:$0xff]
        %v994 = vld [vmem:[%s290 + $0x12c0] sm:$0xff]
        %v995 = vld [vmem:[%s290 + $0x12c8] sm:$0xff]
        %v996 = vld [vmem:[%s290 + $0x12d0] sm:$0xff]
        %v997 = vld [vmem:[%s290 + $0x12d8] sm:$0xff]
        %v998 = vld [vmem:[%s290 + $0x12e0] sm:$0xff]
        %v999 = vld [vmem:[%s290 + $0x12e8] sm:$0xff]
        %v1000 = vld [vmem:[%s290 + $0x12f0] sm:$0xff]
        %v1001 = vld [vmem:[%s290 + $0x12f8] sm:$0xff]
        %v1002 = vld [vmem:[%s290 + $0x1300] sm:$0xff]
        %v1003 = vld [vmem:[%s290 + $0x1308] sm:$0xff]
        %v1004 = vld [vmem:[%s290 + $0x1310] sm:$0xff]
        %v1005 = vld [vmem:[%s290 + $0x1318] sm:$0xff]
        %v1006 = vld [vmem:[%s290 + $0x1320] sm:$0xff]
        %v1007 = vld [vmem:[%s290 + $0x1328] sm:$0xff]
        %v1008 = vld [vmem:[%s290 + $0x1330] sm:$0xff]
        %v1009 = vld [vmem:[%s290 + $0x1338] sm:$0xff]
        %v1010 = vld [vmem:[%s290 + $0x1340] sm:$0xff]
        %v1011 = vld [vmem:[%s290 + $0x1348] sm:$0xff]
        %v1012 = vld [vmem:[%s290 + $0x1350] sm:$0xff]
        %v1013 = vld [vmem:[%s290 + $0x1358] sm:$0xff]
        %v1014 = vld [vmem:[%s290 + $0x1360] sm:$0xff]
        %v1015 = vld [vmem:[%s290 + $0x1368] sm:$0xff]
        %v1016 = vld [vmem:[%s290 + $0x1370] sm:$0xff]
        %v1017 = vld [vmem:[%s290 + $0x1378] sm:$0xff]
        %v1018 = vld [vmem:[%s290 + $0x1380] sm:$0xff]
        %v1019 = vld [vmem:[%s290 + $0x1388] sm:$0xff]
        %v1020 = vld [vmem:[%s290 + $0x1390] sm:$0xff]
        %v1021 = vld [vmem:[%s290 + $0x1398] sm:$0xff]
        %v1022 = vld [vmem:[%s290 + $0x13a0] sm:$0xff]
        %v1023 = vld [vmem:[%s290 + $0x13a8] sm:$0xff]
        %v1024 = vld [vmem:[%s290 + $0x13b0] sm:$0xff]
        %v1025 = vld [vmem:[%s290 + $0x13b8] sm:$0xff]
        %v1026 = vld [vmem:[%s290 + $0x13c0] sm:$0xff]
        %v1027 = vld [vmem:[%s290 + $0x13c8] sm:$0xff]
        %v1028 = vld [vmem:[%s290 + $0x13d0] sm:$0xff]
        %v1029 = vld [vmem:[%s290 + $0x13d8] sm:$0xff]
        %v1030 = vld [vmem:[%s290 + $0x13e0] sm:$0xff]
        %v1031 = vld [vmem:[%s290 + $0x13e8] sm:$0xff]
        %v1032 = vld [vmem:[%s290 + $0x13f0] sm:$0xff]
        %v1033 = vld [vmem:[%s290 + $0x13f8] sm:$0xff]
        %v1034 = vld [vmem:[%s290 + $0x1400] sm:$0xff]
        %v1035 = vld [vmem:[%s290 + $0x1408] sm:$0xff]
        %v1036 = vld [vmem:[%s290 + $0x1410] sm:$0xff]
        %v1037 = vld [vmem:[%s290 + $0x1418] sm:$0xff]
        %v1038 = vld [vmem:[%s290 + $0x1420] sm:$0xff]
        %v1039 = vld [vmem:[%s290 + $0x1428] sm:$0xff]
        %v1040 = vld [vmem:[%s290 + $0x1430] sm:$0xff]
        %v1041 = vld [vmem:[%s290 + $0x1438] sm:$0xff]
        %v1042 = vld [vmem:[%s290 + $0x1440] sm:$0xff]
        %v1043 = vld [vmem:[%s290 + $0x1448] sm:$0xff]
        %v1044 = vld [vmem:[%s290 + $0x1450] sm:$0xff]
        %v1045 = vld [vmem:[%s290 + $0x1458] sm:$0xff]
        %v1046 = vld [vmem:[%s290 + $0x1460] sm:$0xff]
        %v1047 = vld [vmem:[%s290 + $0x1468] sm:$0xff]
        %v1048 = vld [vmem:[%s290 + $0x1470] sm:$0xff]
        %v1049 = vld [vmem:[%s290 + $0x1478] sm:$0xff]
        %v1050 = vld [vmem:[%s290 + $0x1480] sm:$0xff]
        %v1051 = vld [vmem:[%s290 + $0x1488] sm:$0xff]
        %v1052 = vld [vmem:[%s290 + $0x1490] sm:$0xff]
        %v1053 = vld [vmem:[%s290 + $0x1498] sm:$0xff]
        %v1054 = vld [vmem:[%s290 + $0x14a0] sm:$0xff]
        %v1055 = vld [vmem:[%s290 + $0x14a8] sm:$0xff]
        %v1056 = vld [vmem:[%s290 + $0x14b0] sm:$0xff]
        %v1057 = vld [vmem:[%s290 + $0x14b8] sm:$0xff]
        %v1058 = vld [vmem:[%s290 + $0x14c0] sm:$0xff]
        %v1059 = vld [vmem:[%s290 + $0x14c8] sm:$0xff]
        %v1060 = vld [vmem:[%s290 + $0x14d0] sm:$0xff]
        %v1061 = vld [vmem:[%s290 + $0x14d8] sm:$0xff]
        %v1062 = vld [vmem:[%s290 + $0x14e0] sm:$0xff]
        %v1063 = vld [vmem:[%s290 + $0x14e8] sm:$0xff]
        %v1064 = vld [vmem:[%s290 + $0x14f0] sm:$0xff]
        %v1065 = vld [vmem:[%s290 + $0x14f8] sm:$0xff]
        %v1066 = vld [vmem:[%s290 + $0x1500] sm:$0xff]
        %v1067 = vld [vmem:[%s290 + $0x1508] sm:$0xff]
        %v1068 = vld [vmem:[%s290 + $0x1510] sm:$0xff]
        %v1069 = vld [vmem:[%s290 + $0x1518] sm:$0xff]
        %v1070 = vld [vmem:[%s290 + $0x1520] sm:$0xff]
        %v1071 = vld [vmem:[%s290 + $0x1528] sm:$0xff]
        %v1072 = vld [vmem:[%s290 + $0x1530] sm:$0xff]
        %v1073 = vld [vmem:[%s290 + $0x1538] sm:$0xff]
        %v1074 = vld [vmem:[%s290 + $0x1540] sm:$0xff]
        %v1075 = vld [vmem:[%s290 + $0x1548] sm:$0xff]
        %v1076 = vld [vmem:[%s290 + $0x1550] sm:$0xff]
        %v1077 = vld [vmem:[%s290 + $0x1558] sm:$0xff]
        %v1078 = vld [vmem:[%s290 + $0x1560] sm:$0xff]
        %v1079 = vld [vmem:[%s290 + $0x1568] sm:$0xff]
        %v1080 = vld [vmem:[%s290 + $0x1570] sm:$0xff]
        %v1081 = vld [vmem:[%s290 + $0x1578] sm:$0xff]
        %v1082 = vld [vmem:[%s290 + $0x1580] sm:$0xff]
        %v1083 = vld [vmem:[%s290 + $0x1588] sm:$0xff]
        %v1084 = vld [vmem:[%s290 + $0x1590] sm:$0xff]
        %v1085 = vld [vmem:[%s290 + $0x1598] sm:$0xff]
        %v1086 = vld [vmem:[%s290 + $0x15a0] sm:$0xff]
        %v1087 = vld [vmem:[%s290 + $0x15a8] sm:$0xff]
        %v1088 = vld [vmem:[%s290 + $0x15b0] sm:$0xff]
        %v1089 = vld [vmem:[%s290 + $0x15b8] sm:$0xff]
        %v1090 = vld [vmem:[%s290 + $0x15c0] sm:$0xff]
        %v1091 = vld [vmem:[%s290 + $0x15c8] sm:$0xff]
        %v1092 = vld [vmem:[%s290 + $0x15d0] sm:$0xff]
        %v1093 = vld [vmem:[%s290 + $0x15d8] sm:$0xff]
        %v1094 = vld [vmem:[%s290 + $0x15e0] sm:$0xff]
        %v1095 = vld [vmem:[%s290 + $0x15e8] sm:$0xff]
        %v1096 = vld [vmem:[%s290 + $0x15f0] sm:$0xff]
        %v1097 = vld [vmem:[%s290 + $0x15f8] sm:$0xff]
        %v1098 = vld [vmem:[%s290 + $0x1600] sm:$0xff]
        %v1099 = vld [vmem:[%s290 + $0x1608] sm:$0xff]
        %v1100 = vld [vmem:[%s290 + $0x1610] sm:$0xff]
        %v1101 = vld [vmem:[%s290 + $0x1618] sm:$0xff]
        %v1102 = vld [vmem:[%s290 + $0x1620] sm:$0xff]
        %v1103 = vld [vmem:[%s290 + $0x1628] sm:$0xff]
        %v1104 = vld [vmem:[%s290 + $0x1630] sm:$0xff]
        %v1105 = vld [vmem:[%s290 + $0x1638] sm:$0xff]
        %v1106 = vld [vmem:[%s290 + $0x1640] sm:$0xff]
        %v1107 = vld [vmem:[%s290 + $0x1648] sm:$0xff]
        %v1108 = vld [vmem:[%s290 + $0x1650] sm:$0xff]
        %v1109 = vld [vmem:[%s290 + $0x1658] sm:$0xff]
        %v1110 = vld [vmem:[%s290 + $0x1660] sm:$0xff]
        %v1111 = vld [vmem:[%s290 + $0x1668] sm:$0xff]
        %v1112 = vld [vmem:[%s290 + $0x1670] sm:$0xff]
        %v1113 = vld [vmem:[%s290 + $0x1678] sm:$0xff]
        %v1114 = vld [vmem:[%s290 + $0x1680] sm:$0xff]
        %v1115 = vld [vmem:[%s290 + $0x1688] sm:$0xff]
        %v1116 = vld [vmem:[%s290 + $0x1690] sm:$0xff]
        %v1117 = vld [vmem:[%s290 + $0x1698] sm:$0xff]
        %v1118 = vld [vmem:[%s290 + $0x16a0] sm:$0xff]
        %v1119 = vld [vmem:[%s290 + $0x16a8] sm:$0xff]
        %v1120 = vld [vmem:[%s290 + $0x16b0] sm:$0xff]
        %v1121 = vld [vmem:[%s290 + $0x16b8] sm:$0xff]
        %v1122 = vld [vmem:[%s290 + $0x16c0] sm:$0xff]
        %v1123 = vld [vmem:[%s290 + $0x16c8] sm:$0xff]
        %v1124 = vld [vmem:[%s290 + $0x16d0] sm:$0xff]
        %v1125 = vld [vmem:[%s290 + $0x16d8] sm:$0xff]
        %v1126 = vld [vmem:[%s290 + $0x16e0] sm:$0xff]
        %v1127 = vld [vmem:[%s290 + $0x16e8] sm:$0xff]
        %v1128 = vld [vmem:[%s290 + $0x16f0] sm:$0xff]
        %v1129 = vld [vmem:[%s290 + $0x16f8] sm:$0xff]
        %v1130 = vld [vmem:[%s290 + $0x1700] sm:$0xff]
        %v1131 = vld [vmem:[%s290 + $0x1708] sm:$0xff]
        %v1132 = vld [vmem:[%s290 + $0x1710] sm:$0xff]
        %v1133 = vld [vmem:[%s290 + $0x1718] sm:$0xff]
        %v1134 = vld [vmem:[%s290 + $0x1720] sm:$0xff]
        %v1135 = vld [vmem:[%s290 + $0x1728] sm:$0xff]
        %v1136 = vld [vmem:[%s290 + $0x1730] sm:$0xff]
        %v1137 = vld [vmem:[%s290 + $0x1738] sm:$0xff]
        %v1138 = vld [vmem:[%s290 + $0x1740] sm:$0xff]
        %v1139 = vld [vmem:[%s290 + $0x1748] sm:$0xff]
        %v1140 = vld [vmem:[%s290 + $0x1750] sm:$0xff]
        %v1141 = vld [vmem:[%s290 + $0x1758] sm:$0xff]
        %v1142 = vld [vmem:[%s290 + $0x1760] sm:$0xff]
        %v1143 = vld [vmem:[%s290 + $0x1768] sm:$0xff]
        %v1144 = vld [vmem:[%s290 + $0x1770] sm:$0xff]
        %v1145 = vld [vmem:[%s290 + $0x1778] sm:$0xff]
        %v1146 = vld [vmem:[%s290 + $0x1780] sm:$0xff]
        %v1147 = vld [vmem:[%s290 + $0x1788] sm:$0xff]
        %v1148 = vld [vmem:[%s290 + $0x1790] sm:$0xff]
        %v1149 = vld [vmem:[%s290 + $0x1798] sm:$0xff]
        %v1150 = vld [vmem:[%s290 + $0x17a0] sm:$0xff]
        %v1151 = vld [vmem:[%s290 + $0x17a8] sm:$0xff]
        %v1152 = vld [vmem:[%s290 + $0x17b0] sm:$0xff]
        %v1153 = vld [vmem:[%s290 + $0x17b8] sm:$0xff]
        %v1154 = vld [vmem:[%s290 + $0x17c0] sm:$0xff]
        %v1155 = vld [vmem:[%s290 + $0x17c8] sm:$0xff]
        %v1156 = vld [vmem:[%s290 + $0x17d0] sm:$0xff]
        %v1157 = vld [vmem:[%s290 + $0x17d8] sm:$0xff]
        %v1158 = vld [vmem:[%s290 + $0x17e0] sm:$0xff]
        %v1159 = vld [vmem:[%s290 + $0x17e8] sm:$0xff]
        %v1160 = vld [vmem:[%s290 + $0x17f0] sm:$0xff]
        %v1161 = vld [vmem:[%s290 + $0x17f8] sm:$0xff]
        %v1162 = vld [vmem:[%s290 + $0x1800] sm:$0xff]
        %v1163 = vld [vmem:[%s290 + $0x1808] sm:$0xff]
        %v1164 = vld [vmem:[%s290 + $0x1810] sm:$0xff]
        %v1165 = vld [vmem:[%s290 + $0x1818] sm:$0xff]
        %v1166 = vld [vmem:[%s290 + $0x1820] sm:$0xff]
        %v1167 = vld [vmem:[%s290 + $0x1828] sm:$0xff]
        %v1168 = vld [vmem:[%s290 + $0x1830] sm:$0xff]
        %v1169 = vld [vmem:[%s290 + $0x1838] sm:$0xff]
        %v1170 = vld [vmem:[%s290 + $0x1840] sm:$0xff]
        %v1171 = vld [vmem:[%s290 + $0x1848] sm:$0xff]
        %v1172 = vld [vmem:[%s290 + $0x1850] sm:$0xff]
        %v1173 = vld [vmem:[%s290 + $0x1858] sm:$0xff]
        %v1174 = vld [vmem:[%s290 + $0x1860] sm:$0xff]
        %v1175 = vld [vmem:[%s290 + $0x1868] sm:$0xff]
        %v1176 = vld [vmem:[%s290 + $0x1870] sm:$0xff]
        %v1177 = vld [vmem:[%s290 + $0x1878] sm:$0xff]
        %v1178 = vld [vmem:[%s290 + $0x1880] sm:$0xff]
        %v1179 = vld [vmem:[%s290 + $0x1888] sm:$0xff]
        %v1180 = vld [vmem:[%s290 + $0x1890] sm:$0xff]
        %v1181 = vld [vmem:[%s290 + $0x1898] sm:$0xff]
        %v1182 = vunpack.c.l.s8.bf16 %v394
        %v1183 = vunpack.c.h.s8.bf16 %v394
        %v1184 = vunpack.c.l.s8.bf16 %v395
        %v1185 = vunpack.c.h.s8.bf16 %v395
        %v1186 = vunpack.c.l.s8.bf16 %v396
        %v1187 = vunpack.c.h.s8.bf16 %v396
        %v1188 = vunpack.c.l.s8.bf16 %v397
        %v1189 = vunpack.c.h.s8.bf16 %v397
        %v1190 = vunpack.c.l.s8.bf16 %v398
        %v1191 = vunpack.c.h.s8.bf16 %v398
        %v1192 = vunpack.c.l.s8.bf16 %v399
        %v1193 = vunpack.c.h.s8.bf16 %v399
        %v1194 = vunpack.c.l.s8.bf16 %v400
        %v1195 = vunpack.c.h.s8.bf16 %v400
        %v1196 = vunpack.c.l.s8.bf16 %v401
        %v1197 = vunpack.c.h.s8.bf16 %v401
        %v1198 = vunpack.c.l.s8.bf16 %v402
        %v1199 = vunpack.c.h.s8.bf16 %v402
        %v1200 = vunpack.c.l.s8.bf16 %v403
        %v1201 = vunpack.c.h.s8.bf16 %v403
        %v1202 = vunpack.c.l.s8.bf16 %v404
        %v1203 = vunpack.c.h.s8.bf16 %v404
        %v1204 = vunpack.c.l.s8.bf16 %v405
        %v1205 = vunpack.c.h.s8.bf16 %v405
        %v1206 = vunpack.c.l.s8.bf16 %v406
        %v1207 = vunpack.c.h.s8.bf16 %v406
        %v1208 = vunpack.c.l.s8.bf16 %v407
        %v1209 = vunpack.c.h.s8.bf16 %v407
        %v1210 = vunpack.c.l.s8.bf16 %v408
        %v1211 = vunpack.c.h.s8.bf16 %v408
        %v1212 = vunpack.c.l.s8.bf16 %v409
        %v1213 = vunpack.c.h.s8.bf16 %v409
        %v1214 = vunpack.c.l.s8.bf16 %v410
        %v1215 = vunpack.c.h.s8.bf16 %v410
        %v1216 = vunpack.c.l.s8.bf16 %v411
        %v1217 = vunpack.c.h.s8.bf16 %v411
        %v1218 = vunpack.c.l.s8.bf16 %v412
        %v1219 = vunpack.c.h.s8.bf16 %v412
        %v1220 = vunpack.c.l.s8.bf16 %v413
        %v1221 = vunpack.c.h.s8.bf16 %v413
        %v1222 = vunpack.c.l.s8.bf16 %v414
        %v1223 = vunpack.c.h.s8.bf16 %v414
        %v1224 = vunpack.c.l.s8.bf16 %v415
        %v1225 = vunpack.c.h.s8.bf16 %v415
        %v1226 = vunpack.c.l.s8.bf16 %v416
        %v1227 = vunpack.c.h.s8.bf16 %v416
        %v1228 = vunpack.c.l.s8.bf16 %v417
        %v1229 = vunpack.c.h.s8.bf16 %v417
        %v1230 = vunpack.c.l.s8.bf16 %v418
        %v1231 = vunpack.c.h.s8.bf16 %v418
        %v1232 = vunpack.c.l.s8.bf16 %v419
        %v1233 = vunpack.c.h.s8.bf16 %v419
        %v1234 = vunpack.c.l.s8.bf16 %v420
        %v1235 = vunpack.c.h.s8.bf16 %v420
        %v1236 = vunpack.c.l.s8.bf16 %v421
        %v1237 = vunpack.c.h.s8.bf16 %v421
        %v1238 = vunpack.c.l.s8.bf16 %v422
        %v1239 = vunpack.c.h.s8.bf16 %v422
        %v1240 = vunpack.c.l.s8.bf16 %v423
        %v1241 = vunpack.c.h.s8.bf16 %v423
        %v1242 = vunpack.c.l.s8.bf16 %v424
        %v1243 = vunpack.c.h.s8.bf16 %v424
        %v1244 = vunpack.c.l.s8.bf16 %v425
        %v1245 = vunpack.c.h.s8.bf16 %v425
        %v1246 = vunpack.c.l.s8.bf16 %v426
        %v1247 = vunpack.c.h.s8.bf16 %v426
        %v1248 = vunpack.c.l.s8.bf16 %v427
        %v1249 = vunpack.c.h.s8.bf16 %v427
        %v1250 = vunpack.c.l.s8.bf16 %v428
        %v1251 = vunpack.c.h.s8.bf16 %v428
        %v1252 = vunpack.c.l.s8.bf16 %v429
        %v1253 = vunpack.c.h.s8.bf16 %v429
        %v1254 = vunpack.c.l.s8.bf16 %v430
        %v1255 = vunpack.c.h.s8.bf16 %v430
        %v1256 = vunpack.c.l.s8.bf16 %v431
        %v1257 = vunpack.c.h.s8.bf16 %v431
        %v1258 = vunpack.c.l.s8.bf16 %v432
        %v1259 = vunpack.c.h.s8.bf16 %v432
        %v1260 = vunpack.c.l.s8.bf16 %v433
        %v1261 = vunpack.c.h.s8.bf16 %v433
        %v1262 = vunpack.c.l.s8.bf16 %v434
        %v1263 = vunpack.c.h.s8.bf16 %v434
        %v1264 = vunpack.c.l.s8.bf16 %v435
        %v1265 = vunpack.c.h.s8.bf16 %v435
        %v1266 = vunpack.c.l.s8.bf16 %v436
        %v1267 = vunpack.c.h.s8.bf16 %v436
        %v1268 = vunpack.c.l.s8.bf16 %v437
        %v1269 = vunpack.c.h.s8.bf16 %v437
        %v1270 = vunpack.c.l.s8.bf16 %v438
        %v1271 = vunpack.c.h.s8.bf16 %v438
        %v1272 = vunpack.c.l.s8.bf16 %v439
        %v1273 = vunpack.c.h.s8.bf16 %v439
        %v1274 = vunpack.c.l.s8.bf16 %v440
        %v1275 = vunpack.c.h.s8.bf16 %v440
        %v1276 = vunpack.c.l.s8.bf16 %v441
        %v1277 = vunpack.c.h.s8.bf16 %v441
        %v1278 = vunpack.c.l.s8.bf16 %v442
        %v1279 = vunpack.c.h.s8.bf16 %v442
        %v1280 = vunpack.c.l.s8.bf16 %v443
        %v1281 = vunpack.c.h.s8.bf16 %v443
        %v1282 = vunpack.c.l.s8.bf16 %v444
        %v1283 = vunpack.c.h.s8.bf16 %v444
        %v1284 = vunpack.c.l.s8.bf16 %v445
        %v1285 = vunpack.c.h.s8.bf16 %v445
        %v1286 = vunpack.c.l.s8.bf16 %v446
        %v1287 = vunpack.c.h.s8.bf16 %v446
        %v1288 = vunpack.c.l.s8.bf16 %v447
        %v1289 = vunpack.c.h.s8.bf16 %v447
        %v1290 = vunpack.c.l.s8.bf16 %v448
        %v1291 = vunpack.c.h.s8.bf16 %v448
        %v1292 = vunpack.c.l.s8.bf16 %v449
        %v1293 = vunpack.c.h.s8.bf16 %v449
        %v1294 = vunpack.c.l.s8.bf16 %v450
        %v1295 = vunpack.c.h.s8.bf16 %v450
        %v1296 = vunpack.c.l.s8.bf16 %v451
        %v1297 = vunpack.c.h.s8.bf16 %v451
        %v1298 = vunpack.c.l.s8.bf16 %v452
        %v1299 = vunpack.c.h.s8.bf16 %v452
        %v1300 = vunpack.c.l.s8.bf16 %v453
        %v1301 = vunpack.c.h.s8.bf16 %v453
        %v1302 = vunpack.c.l.s8.bf16 %v454
        %v1303 = vunpack.c.h.s8.bf16 %v454
        %v1304 = vunpack.c.l.s8.bf16 %v455
        %v1305 = vunpack.c.h.s8.bf16 %v455
        %v1306 = vunpack.c.l.s8.bf16 %v456
        %v1307 = vunpack.c.h.s8.bf16 %v456
        %v1308 = vunpack.c.l.s8.bf16 %v457
        %v1309 = vunpack.c.h.s8.bf16 %v457
        %v1310 = vunpack.c.l.s8.bf16 %v458
        %v1311 = vunpack.c.h.s8.bf16 %v458
        %v1312 = vunpack.c.l.s8.bf16 %v459
        %v1313 = vunpack.c.h.s8.bf16 %v459
        %v1314 = vunpack.c.l.s8.bf16 %v460
        %v1315 = vunpack.c.h.s8.bf16 %v460
        %v1316 = vunpack.c.l.s8.bf16 %v461
        %v1317 = vunpack.c.h.s8.bf16 %v461
        %v1318 = vunpack.c.l.s8.bf16 %v462
        %v1319 = vunpack.c.h.s8.bf16 %v462
        %v1320 = vunpack.c.l.s8.bf16 %v463
        %v1321 = vunpack.c.h.s8.bf16 %v463
        %v1322 = vunpack.c.l.s8.bf16 %v464
        %v1323 = vunpack.c.h.s8.bf16 %v464
        %v1324 = vunpack.c.l.s8.bf16 %v465
        %v1325 = vunpack.c.h.s8.bf16 %v465
        %v1326 = vunpack.c.l.s8.bf16 %v466
        %v1327 = vunpack.c.h.s8.bf16 %v466
        %v1328 = vunpack.c.l.s8.bf16 %v467
        %v1329 = vunpack.c.h.s8.bf16 %v467
        %v1330 = vunpack.c.l.s8.bf16 %v468
        %v1331 = vunpack.c.h.s8.bf16 %v468
        %v1332 = vunpack.c.l.s8.bf16 %v469
        %v1333 = vunpack.c.h.s8.bf16 %v469
        %v1334 = vunpack.c.l.s8.bf16 %v470
        %v1335 = vunpack.c.h.s8.bf16 %v470
        %v1336 = vunpack.c.l.s8.bf16 %v471
        %v1337 = vunpack.c.h.s8.bf16 %v471
        %v1338 = vunpack.c.l.s8.bf16 %v472
        %v1339 = vunpack.c.h.s8.bf16 %v472
        %v1340 = vunpack.c.l.s8.bf16 %v473
        %v1341 = vunpack.c.h.s8.bf16 %v473
        %v1342 = vunpack.c.l.s8.bf16 %v474
        %v1343 = vunpack.c.h.s8.bf16 %v474
        %v1344 = vunpack.c.l.s8.bf16 %v475
        %v1345 = vunpack.c.h.s8.bf16 %v475
        %v1346 = vunpack.c.l.s8.bf16 %v476
        %v1347 = vunpack.c.h.s8.bf16 %v476
        %v1348 = vunpack.c.l.s8.bf16 %v477
        %v1349 = vunpack.c.h.s8.bf16 %v477
        %v1350 = vunpack.c.l.s8.bf16 %v478
        %v1351 = vunpack.c.h.s8.bf16 %v478
        %v1352 = vunpack.c.l.s8.bf16 %v479
        %v1353 = vunpack.c.h.s8.bf16 %v479
        %v1354 = vunpack.c.l.s8.bf16 %v480
        %v1355 = vunpack.c.h.s8.bf16 %v480
        %v1356 = vunpack.c.l.s8.bf16 %v481
        %v1357 = vunpack.c.h.s8.bf16 %v481
        %v1358 = vunpack.c.l.s8.bf16 %v482
        %v1359 = vunpack.c.h.s8.bf16 %v482
        %v1360 = vunpack.c.l.s8.bf16 %v483
        %v1361 = vunpack.c.h.s8.bf16 %v483
        %v1362 = vunpack.c.l.s8.bf16 %v484
        %v1363 = vunpack.c.h.s8.bf16 %v484
        %v1364 = vunpack.c.l.s8.bf16 %v485
        %v1365 = vunpack.c.h.s8.bf16 %v485
        %v1366 = vunpack.c.l.s8.bf16 %v486
        %v1367 = vunpack.c.h.s8.bf16 %v486
        %v1368 = vunpack.c.l.s8.bf16 %v487
        %v1369 = vunpack.c.h.s8.bf16 %v487
        %v1370 = vunpack.c.l.s8.bf16 %v488
        %v1371 = vunpack.c.h.s8.bf16 %v488
        %v1372 = vunpack.c.l.s8.bf16 %v489
        %v1373 = vunpack.c.h.s8.bf16 %v489
        %v1374 = vunpack.c.l.s8.bf16 %v490
        %v1375 = vunpack.c.h.s8.bf16 %v490
        %v1376 = vunpack.c.l.s8.bf16 %v491
        %v1377 = vunpack.c.h.s8.bf16 %v491
        %v1378 = vunpack.c.l.s8.bf16 %v492
        %v1379 = vunpack.c.h.s8.bf16 %v492
        %v1380 = vunpack.c.l.s8.bf16 %v493
        %v1381 = vunpack.c.h.s8.bf16 %v493
        %v1382 = vunpack.c.l.s8.bf16 %v494
        %v1383 = vunpack.c.h.s8.bf16 %v494
        %v1384 = vunpack.c.l.s8.bf16 %v495
        %v1385 = vunpack.c.h.s8.bf16 %v495
        %v1386 = vunpack.c.l.s8.bf16 %v496
        %v1387 = vunpack.c.h.s8.bf16 %v496
        %v1388 = vunpack.c.l.s8.bf16 %v497
        %v1389 = vunpack.c.h.s8.bf16 %v497
        %v1390 = vunpack.c.l.s8.bf16 %v498
        %v1391 = vunpack.c.h.s8.bf16 %v498
        %v1392 = vunpack.c.l.s8.bf16 %v499
        %v1393 = vunpack.c.h.s8.bf16 %v499
        %v1394 = vunpack.c.l.s8.bf16 %v500
        %v1395 = vunpack.c.h.s8.bf16 %v500
        %v1396 = vunpack.c.l.s8.bf16 %v501
        %v1397 = vunpack.c.h.s8.bf16 %v501
        %v1398 = vunpack.c.l.s8.bf16 %v502
        %v1399 = vunpack.c.h.s8.bf16 %v502
        %v1400 = vunpack.c.l.s8.bf16 %v503
        %v1401 = vunpack.c.h.s8.bf16 %v503
        %v1402 = vunpack.c.l.s8.bf16 %v504
        %v1403 = vunpack.c.h.s8.bf16 %v504
        %v1404 = vunpack.c.l.s8.bf16 %v505
        %v1405 = vunpack.c.h.s8.bf16 %v505
        %v1406 = vunpack.c.l.s8.bf16 %v506
        %v1407 = vunpack.c.h.s8.bf16 %v506
        %v1408 = vunpack.c.l.s8.bf16 %v507
        %v1409 = vunpack.c.h.s8.bf16 %v507
        %v1410 = vunpack.c.l.s8.bf16 %v508
        %v1411 = vunpack.c.h.s8.bf16 %v508
        %v1412 = vunpack.c.l.s8.bf16 %v509
        %v1413 = vunpack.c.h.s8.bf16 %v509
        %v1414 = vunpack.c.l.s8.bf16 %v510
        %v1415 = vunpack.c.h.s8.bf16 %v510
        %v1416 = vunpack.c.l.s8.bf16 %v511
        %v1417 = vunpack.c.h.s8.bf16 %v511
        %v1418 = vunpack.c.l.s8.bf16 %v512
        %v1419 = vunpack.c.h.s8.bf16 %v512
        %v1420 = vunpack.c.l.s8.bf16 %v513
        %v1421 = vunpack.c.h.s8.bf16 %v513
        %v1422 = vunpack.c.l.s8.bf16 %v514
        %v1423 = vunpack.c.h.s8.bf16 %v514
        %v1424 = vunpack.c.l.s8.bf16 %v515
        %v1425 = vunpack.c.h.s8.bf16 %v515
        %v1426 = vunpack.c.l.s8.bf16 %v516
        %v1427 = vunpack.c.h.s8.bf16 %v516
        %v1428 = vunpack.c.l.s8.bf16 %v517
        %v1429 = vunpack.c.h.s8.bf16 %v517
        %v1430 = vunpack.c.l.s8.bf16 %v518
        %v1431 = vunpack.c.h.s8.bf16 %v518
        %v1432 = vunpack.c.l.s8.bf16 %v519
        %v1433 = vunpack.c.h.s8.bf16 %v519
        %v1434 = vunpack.c.l.s8.bf16 %v520
        %v1435 = vunpack.c.h.s8.bf16 %v520
        %v1436 = vunpack.c.l.s8.bf16 %v521
        %v1437 = vunpack.c.h.s8.bf16 %v521
        %v1438 = vunpack.c.l.s8.bf16 %v522
        %v1439 = vunpack.c.h.s8.bf16 %v522
        %v1440 = vunpack.c.l.s8.bf16 %v523
        %v1441 = vunpack.c.h.s8.bf16 %v523
        %v1442 = vunpack.c.l.s8.bf16 %v524
        %v1443 = vunpack.c.h.s8.bf16 %v524
        %v1444 = vunpack.c.l.s8.bf16 %v525
        %v1445 = vunpack.c.h.s8.bf16 %v525
        %v1446 = vunpack.c.l.s8.bf16 %v526
        %v1447 = vunpack.c.h.s8.bf16 %v526
        %v1448 = vunpack.c.l.s8.bf16 %v527
        %v1449 = vunpack.c.h.s8.bf16 %v527
        %v1450 = vunpack.c.l.s8.bf16 %v528
        %v1451 = vunpack.c.h.s8.bf16 %v528
        %v1452 = vunpack.c.l.s8.bf16 %v529
        %v1453 = vunpack.c.h.s8.bf16 %v529
        %v1454 = vunpack.c.l.s8.bf16 %v530
        %v1455 = vunpack.c.h.s8.bf16 %v530
        %v1456 = vunpack.c.l.s8.bf16 %v531
        %v1457 = vunpack.c.h.s8.bf16 %v531
        %v1458 = vunpack.c.l.s8.bf16 %v532
        %v1459 = vunpack.c.h.s8.bf16 %v532
        %v1460 = vunpack.c.l.s8.bf16 %v533
        %v1461 = vunpack.c.h.s8.bf16 %v533
        %v1462 = vunpack.c.l.s8.bf16 %v534
        %v1463 = vunpack.c.h.s8.bf16 %v534
        %v1464 = vunpack.c.l.s8.bf16 %v535
        %v1465 = vunpack.c.h.s8.bf16 %v535
        %v1466 = vunpack.c.l.s8.bf16 %v536
        %v1467 = vunpack.c.h.s8.bf16 %v536
        %v1468 = vunpack.c.l.s8.bf16 %v537
        %v1469 = vunpack.c.h.s8.bf16 %v537
        %v1470 = vunpack.c.l.s8.bf16 %v538
        %v1471 = vunpack.c.h.s8.bf16 %v538
        %v1472 = vunpack.c.l.s8.bf16 %v539
        %v1473 = vunpack.c.h.s8.bf16 %v539
        %v1474 = vunpack.c.l.s8.bf16 %v540
        %v1475 = vunpack.c.h.s8.bf16 %v540
        %v1476 = vunpack.c.l.s8.bf16 %v541
        %v1477 = vunpack.c.h.s8.bf16 %v541
        %v1478 = vunpack.c.l.s8.bf16 %v542
        %v1479 = vunpack.c.h.s8.bf16 %v542
        %v1480 = vunpack.c.l.s8.bf16 %v543
        %v1481 = vunpack.c.h.s8.bf16 %v543
        %v1482 = vunpack.c.l.s8.bf16 %v544
        %v1483 = vunpack.c.h.s8.bf16 %v544
        %v1484 = vunpack.c.l.s8.bf16 %v545
        %v1485 = vunpack.c.h.s8.bf16 %v545
        %v1486 = vunpack.c.l.s8.bf16 %v546
        %v1487 = vunpack.c.h.s8.bf16 %v546
        %v1488 = vunpack.c.l.s8.bf16 %v547
        %v1489 = vunpack.c.h.s8.bf16 %v547
        %v1490 = vunpack.c.l.s8.bf16 %v548
        %v1491 = vunpack.c.h.s8.bf16 %v548
        %v1492 = vunpack.c.l.s8.bf16 %v549
        %v1493 = vunpack.c.h.s8.bf16 %v549
        %v1494 = vunpack.c.l.s8.bf16 %v550
        %v1495 = vunpack.c.h.s8.bf16 %v550
        %v1496 = vunpack.c.l.s8.bf16 %v551
        %v1497 = vunpack.c.h.s8.bf16 %v551
        %v1498 = vunpack.c.l.s8.bf16 %v552
        %v1499 = vunpack.c.h.s8.bf16 %v552
        %v1500 = vunpack.c.l.s8.bf16 %v553
        %v1501 = vunpack.c.h.s8.bf16 %v553
        %v1502 = vunpack.c.l.s8.bf16 %v554
        %v1503 = vunpack.c.h.s8.bf16 %v554
        %v1504 = vunpack.c.l.s8.bf16 %v555
        %v1505 = vunpack.c.h.s8.bf16 %v555
        %v1506 = vunpack.c.l.s8.bf16 %v556
        %v1507 = vunpack.c.h.s8.bf16 %v556
        %v1508 = vunpack.c.l.s8.bf16 %v557
        %v1509 = vunpack.c.h.s8.bf16 %v557
        %v1510 = vunpack.c.l.s8.bf16 %v558
        %v1511 = vunpack.c.h.s8.bf16 %v558
        %v1512 = vunpack.c.l.s8.bf16 %v559
        %v1513 = vunpack.c.h.s8.bf16 %v559
        %v1514 = vunpack.c.l.s8.bf16 %v560
        %v1515 = vunpack.c.h.s8.bf16 %v560
        %v1516 = vunpack.c.l.s8.bf16 %v561
        %v1517 = vunpack.c.h.s8.bf16 %v561
        %v1518 = vunpack.c.l.s8.bf16 %v562
        %v1519 = vunpack.c.h.s8.bf16 %v562
        %v1520 = vunpack.c.l.s8.bf16 %v563
        %v1521 = vunpack.c.h.s8.bf16 %v563
        %v1522 = vunpack.c.l.s8.bf16 %v564
        %v1523 = vunpack.c.h.s8.bf16 %v564
        %v1524 = vunpack.c.l.s8.bf16 %v565
        %v1525 = vunpack.c.h.s8.bf16 %v565
        %v1526 = vunpack.c.l.s8.bf16 %v566
        %v1527 = vunpack.c.h.s8.bf16 %v566
        %v1528 = vunpack.c.l.s8.bf16 %v567
        %v1529 = vunpack.c.h.s8.bf16 %v567
        %v1530 = vunpack.c.l.s8.bf16 %v568
        %v1531 = vunpack.c.h.s8.bf16 %v568
        %v1532 = vunpack.c.l.s8.bf16 %v569
        %v1533 = vunpack.c.h.s8.bf16 %v569
        %v1534 = vunpack.c.l.s8.bf16 %v570
        %v1535 = vunpack.c.h.s8.bf16 %v570
        %v1536 = vunpack.c.l.s8.bf16 %v571
        %v1537 = vunpack.c.h.s8.bf16 %v571
        %v1538 = vunpack.c.l.s8.bf16 %v572
        %v1539 = vunpack.c.h.s8.bf16 %v572
        %v1540 = vunpack.c.l.s8.bf16 %v573
        %v1541 = vunpack.c.h.s8.bf16 %v573
        %v1542 = vunpack.c.l.s8.bf16 %v574
        %v1543 = vunpack.c.h.s8.bf16 %v574
        %v1544 = vunpack.c.l.s8.bf16 %v575
        %v1545 = vunpack.c.h.s8.bf16 %v575
        %v1546 = vunpack.c.l.s8.bf16 %v576
        %v1547 = vunpack.c.h.s8.bf16 %v576
        %v1548 = vunpack.c.l.s8.bf16 %v577
        %v1549 = vunpack.c.h.s8.bf16 %v577
        %v1550 = vunpack.c.l.s8.bf16 %v578
        %v1551 = vunpack.c.h.s8.bf16 %v578
        %v1552 = vunpack.c.l.s8.bf16 %v579
        %v1553 = vunpack.c.h.s8.bf16 %v579
        %v1554 = vunpack.c.l.s8.bf16 %v580
        %v1555 = vunpack.c.h.s8.bf16 %v580
        %v1556 = vunpack.c.l.s8.bf16 %v581
        %v1557 = vunpack.c.h.s8.bf16 %v581
        %v1558 = vunpack.c.l.s8.bf16 %v582
        %v1559 = vunpack.c.h.s8.bf16 %v582
        %v1560 = vunpack.c.l.s8.bf16 %v583
        %v1561 = vunpack.c.h.s8.bf16 %v583
        %v1562 = vunpack.c.l.s8.bf16 %v584
        %v1563 = vunpack.c.h.s8.bf16 %v584
        %v1564 = vunpack.c.l.s8.bf16 %v585
        %v1565 = vunpack.c.h.s8.bf16 %v585
        %v1566 = vunpack.c.l.s8.bf16 %v586
        %v1567 = vunpack.c.h.s8.bf16 %v586
        %v1568 = vunpack.c.l.s8.bf16 %v587
        %v1569 = vunpack.c.h.s8.bf16 %v587
        %v1570 = vunpack.c.l.s8.bf16 %v588
        %v1571 = vunpack.c.h.s8.bf16 %v588
        %v1572 = vunpack.c.l.s8.bf16 %v589
        %v1573 = vunpack.c.h.s8.bf16 %v589
        %v1574 = vunpack.c.l.s8.bf16 %v590
        %v1575 = vunpack.c.h.s8.bf16 %v590
        %v1576 = vunpack.c.l.s8.bf16 %v591
        %v1577 = vunpack.c.h.s8.bf16 %v591
        %v1578 = vunpack.c.l.s8.bf16 %v592
        %v1579 = vunpack.c.h.s8.bf16 %v592
        %v1580 = vunpack.c.l.s8.bf16 %v593
        %v1581 = vunpack.c.h.s8.bf16 %v593
        %v1582 = vunpack.c.l.s8.bf16 %v594
        %v1583 = vunpack.c.h.s8.bf16 %v594
        %v1584 = vunpack.c.l.s8.bf16 %v595
        %v1585 = vunpack.c.h.s8.bf16 %v595
        %v1586 = vunpack.c.l.s8.bf16 %v596
        %v1587 = vunpack.c.h.s8.bf16 %v596
        %v1588 = vunpack.c.l.s8.bf16 %v597
        %v1589 = vunpack.c.h.s8.bf16 %v597
        %v1590 = vunpack.c.l.s8.bf16 %v598
        %v1591 = vunpack.c.h.s8.bf16 %v598
        %v1592 = vunpack.c.l.s8.bf16 %v599
        %v1593 = vunpack.c.h.s8.bf16 %v599
        %v1594 = vunpack.c.l.s8.bf16 %v600
        %v1595 = vunpack.c.h.s8.bf16 %v600
        %v1596 = vunpack.c.l.s8.bf16 %v601
        %v1597 = vunpack.c.h.s8.bf16 %v601
        %v1598 = vunpack.c.l.s8.bf16 %v602
        %v1599 = vunpack.c.h.s8.bf16 %v602
        %v1600 = vunpack.c.l.s8.bf16 %v603
        %v1601 = vunpack.c.h.s8.bf16 %v603
        %v1602 = vunpack.c.l.s8.bf16 %v604
        %v1603 = vunpack.c.h.s8.bf16 %v604
        %v1604 = vunpack.c.l.s8.bf16 %v605
        %v1605 = vunpack.c.h.s8.bf16 %v605
        %v1606 = vunpack.c.l.s8.bf16 %v606
        %v1607 = vunpack.c.h.s8.bf16 %v606
        %v1608 = vunpack.c.l.s8.bf16 %v607
        %v1609 = vunpack.c.h.s8.bf16 %v607
        %v1610 = vunpack.c.l.s8.bf16 %v608
        %v1611 = vunpack.c.h.s8.bf16 %v608
        %v1612 = vunpack.c.l.s8.bf16 %v609
        %v1613 = vunpack.c.h.s8.bf16 %v609
        %v1614 = vunpack.c.l.s8.bf16 %v610
        %v1615 = vunpack.c.h.s8.bf16 %v610
        %v1616 = vunpack.c.l.s8.bf16 %v611
        %v1617 = vunpack.c.h.s8.bf16 %v611
        %v1618 = vunpack.c.l.s8.bf16 %v612
        %v1619 = vunpack.c.h.s8.bf16 %v612
        %v1620 = vunpack.c.l.s8.bf16 %v613
        %v1621 = vunpack.c.h.s8.bf16 %v613
        %v1622 = vunpack.c.l.s8.bf16 %v614
        %v1623 = vunpack.c.h.s8.bf16 %v614
        %v1624 = vunpack.c.l.s8.bf16 %v615
        %v1625 = vunpack.c.h.s8.bf16 %v615
        %v1626 = vunpack.c.l.s8.bf16 %v616
        %v1627 = vunpack.c.h.s8.bf16 %v616
        %v1628 = vunpack.c.l.s8.bf16 %v617
        %v1629 = vunpack.c.h.s8.bf16 %v617
        %v1630 = vunpack.c.l.s8.bf16 %v618
        %v1631 = vunpack.c.h.s8.bf16 %v618
        %v1632 = vunpack.c.l.s8.bf16 %v619
        %v1633 = vunpack.c.h.s8.bf16 %v619
        %v1634 = vunpack.c.l.s8.bf16 %v620
        %v1635 = vunpack.c.h.s8.bf16 %v620
        %v1636 = vunpack.c.l.s8.bf16 %v621
        %v1637 = vunpack.c.h.s8.bf16 %v621
        %v1638 = vunpack.c.l.s8.bf16 %v622
        %v1639 = vunpack.c.h.s8.bf16 %v622
        %v1640 = vunpack.c.l.s8.bf16 %v623
        %v1641 = vunpack.c.h.s8.bf16 %v623
        %v1642 = vunpack.c.l.s8.bf16 %v624
        %v1643 = vunpack.c.h.s8.bf16 %v624
        %v1644 = vunpack.c.l.s8.bf16 %v625
        %v1645 = vunpack.c.h.s8.bf16 %v625
        %v1646 = vunpack.c.l.s8.bf16 %v626
        %v1647 = vunpack.c.h.s8.bf16 %v626
        %v1648 = vunpack.c.l.s8.bf16 %v627
        %v1649 = vunpack.c.h.s8.bf16 %v627
        %v1650 = vunpack.c.l.s8.bf16 %v628
        %v1651 = vunpack.c.h.s8.bf16 %v628
        %v1652 = vunpack.c.l.s8.bf16 %v629
        %v1653 = vunpack.c.h.s8.bf16 %v629
        %v1654 = vunpack.c.l.s8.bf16 %v630
        %v1655 = vunpack.c.h.s8.bf16 %v630
        %v1656 = vunpack.c.l.s8.bf16 %v631
        %v1657 = vunpack.c.h.s8.bf16 %v631
        %v1658 = vunpack.c.l.s8.bf16 %v632
        %v1659 = vunpack.c.h.s8.bf16 %v632
        %v1660 = vunpack.c.l.s8.bf16 %v633
        %v1661 = vunpack.c.h.s8.bf16 %v633
        %v1662 = vunpack.c.l.s8.bf16 %v634
        %v1663 = vunpack.c.h.s8.bf16 %v634
        %v1664 = vunpack.c.l.s8.bf16 %v635
        %v1665 = vunpack.c.h.s8.bf16 %v635
        %v1666 = vunpack.c.l.s8.bf16 %v636
        %v1667 = vunpack.c.h.s8.bf16 %v636
        %v1668 = vunpack.c.l.s8.bf16 %v637
        %v1669 = vunpack.c.h.s8.bf16 %v637
        %v1670 = vunpack.c.l.s8.bf16 %v638
        %v1671 = vunpack.c.h.s8.bf16 %v638
        %v1672 = vunpack.c.l.s8.bf16 %v639
        %v1673 = vunpack.c.h.s8.bf16 %v639
        %v1674 = vunpack.c.l.s8.bf16 %v640
        %v1675 = vunpack.c.h.s8.bf16 %v640
        %v1676 = vunpack.c.l.s8.bf16 %v641
        %v1677 = vunpack.c.h.s8.bf16 %v641
        %v1678 = vunpack.c.l.s8.bf16 %v642
        %v1679 = vunpack.c.h.s8.bf16 %v642
        %v1680 = vunpack.c.l.s8.bf16 %v643
        %v1681 = vunpack.c.h.s8.bf16 %v643
        %v1682 = vunpack.c.l.s8.bf16 %v644
        %v1683 = vunpack.c.h.s8.bf16 %v644
        %v1684 = vunpack.c.l.s8.bf16 %v645
        %v1685 = vunpack.c.h.s8.bf16 %v645
        %v1686 = vunpack.c.l.s8.bf16 %v646
        %v1687 = vunpack.c.h.s8.bf16 %v646
        %v1688 = vunpack.c.l.s8.bf16 %v647
        %v1689 = vunpack.c.h.s8.bf16 %v647
        %v1690 = vunpack.c.l.s8.bf16 %v648
        %v1691 = vunpack.c.h.s8.bf16 %v648
        %v1692 = vunpack.c.l.s8.bf16 %v649
        %v1693 = vunpack.c.h.s8.bf16 %v649
        %v1694 = vunpack.c.l.s8.bf16 %v650
        %v1695 = vunpack.c.h.s8.bf16 %v650
        %v1696 = vunpack.c.l.s8.bf16 %v651
        %v1697 = vunpack.c.h.s8.bf16 %v651
        %v1698 = vunpack.c.l.s8.bf16 %v652
        %v1699 = vunpack.c.h.s8.bf16 %v652
        %v1700 = vunpack.c.l.s8.bf16 %v653
        %v1701 = vunpack.c.h.s8.bf16 %v653
        %v1702 = vunpack.c.l.s8.bf16 %v654
        %v1703 = vunpack.c.h.s8.bf16 %v654
        %v1704 = vunpack.c.l.s8.bf16 %v655
        %v1705 = vunpack.c.h.s8.bf16 %v655
        %v1706 = vunpack.c.l.s8.bf16 %v656
        %v1707 = vunpack.c.h.s8.bf16 %v656
        %v1708 = vunpack.c.l.s8.bf16 %v657
        %v1709 = vunpack.c.h.s8.bf16 %v657
        %v1710 = vunpack.c.l.s8.bf16 %v658
        %v1711 = vunpack.c.h.s8.bf16 %v658
        %v1712 = vunpack.c.l.s8.bf16 %v659
        %v1713 = vunpack.c.h.s8.bf16 %v659
        %v1714 = vunpack.c.l.s8.bf16 %v660
        %v1715 = vunpack.c.h.s8.bf16 %v660
        %v1716 = vunpack.c.l.s8.bf16 %v661
        %v1717 = vunpack.c.h.s8.bf16 %v661
        %v1718 = vunpack.c.l.s8.bf16 %v662
        %v1719 = vunpack.c.h.s8.bf16 %v662
        %v1720 = vunpack.c.l.s8.bf16 %v663
        %v1721 = vunpack.c.h.s8.bf16 %v663
        %v1722 = vunpack.c.l.s8.bf16 %v664
        %v1723 = vunpack.c.h.s8.bf16 %v664
        %v1724 = vunpack.c.l.s8.bf16 %v665
        %v1725 = vunpack.c.h.s8.bf16 %v665
        %v1726 = vunpack.c.l.s8.bf16 %v666
        %v1727 = vunpack.c.h.s8.bf16 %v666
        %v1728 = vunpack.c.l.s8.bf16 %v667
        %v1729 = vunpack.c.h.s8.bf16 %v667
        %v1730 = vunpack.c.l.s8.bf16 %v668
        %v1731 = vunpack.c.h.s8.bf16 %v668
        %v1732 = vunpack.c.l.s8.bf16 %v669
        %v1733 = vunpack.c.h.s8.bf16 %v669
        %v1734 = vunpack.c.l.s8.bf16 %v670
        %v1735 = vunpack.c.h.s8.bf16 %v670
        %v1736 = vunpack.c.l.s8.bf16 %v671
        %v1737 = vunpack.c.h.s8.bf16 %v671
        %v1738 = vunpack.c.l.s8.bf16 %v672
        %v1739 = vunpack.c.h.s8.bf16 %v672
        %v1740 = vunpack.c.l.s8.bf16 %v673
        %v1741 = vunpack.c.h.s8.bf16 %v673
        %v1742 = vunpack.c.l.s8.bf16 %v674
        %v1743 = vunpack.c.h.s8.bf16 %v674
        %v1744 = vunpack.c.l.s8.bf16 %v675
        %v1745 = vunpack.c.h.s8.bf16 %v675
        %v1746 = vunpack.c.l.s8.bf16 %v676
        %v1747 = vunpack.c.h.s8.bf16 %v676
        %v1748 = vunpack.c.l.s8.bf16 %v677
        %v1749 = vunpack.c.h.s8.bf16 %v677
        %v1750 = vunpack.c.l.s8.bf16 %v678
        %v1751 = vunpack.c.h.s8.bf16 %v678
        %v1752 = vunpack.c.l.s8.bf16 %v679
        %v1753 = vunpack.c.h.s8.bf16 %v679
        %v1754 = vunpack.c.l.s8.bf16 %v680
        %v1755 = vunpack.c.h.s8.bf16 %v680
        %v1756 = vunpack.c.l.s8.bf16 %v681
        %v1757 = vunpack.c.h.s8.bf16 %v681
        %v1758 = vunpack.c.l.s8.bf16 %v682
        %v1759 = vunpack.c.h.s8.bf16 %v682
        %v1760 = vunpack.c.l.s8.bf16 %v683
        %v1761 = vunpack.c.h.s8.bf16 %v683
        %v1762 = vunpack.c.l.s8.bf16 %v684
        %v1763 = vunpack.c.h.s8.bf16 %v684
        %v1764 = vunpack.c.l.s8.bf16 %v685
        %v1765 = vunpack.c.h.s8.bf16 %v685
        %v1766 = vunpack.c.l.s8.bf16 %v686
        %v1767 = vunpack.c.h.s8.bf16 %v686
        %v1768 = vunpack.c.l.s8.bf16 %v687
        %v1769 = vunpack.c.h.s8.bf16 %v687
        %v1770 = vunpack.c.l.s8.bf16 %v688
        %v1771 = vunpack.c.h.s8.bf16 %v688
        %v1772 = vunpack.c.l.s8.bf16 %v689
        %v1773 = vunpack.c.h.s8.bf16 %v689
        %v1774 = vunpack.c.l.s8.bf16 %v690
        %v1775 = vunpack.c.h.s8.bf16 %v690
        %v1776 = vunpack.c.l.s8.bf16 %v691
        %v1777 = vunpack.c.h.s8.bf16 %v691
        %v1778 = vunpack.c.l.s8.bf16 %v692
        %v1779 = vunpack.c.h.s8.bf16 %v692
        %v1780 = vunpack.c.l.s8.bf16 %v693
        %v1781 = vunpack.c.h.s8.bf16 %v693
        %v1782 = vunpack.c.l.s8.bf16 %v694
        %v1783 = vunpack.c.h.s8.bf16 %v694
        %v1784 = vunpack.c.l.s8.bf16 %v695
        %v1785 = vunpack.c.h.s8.bf16 %v695
        %v1786 = vunpack.c.l.s8.bf16 %v696
        %v1787 = vunpack.c.h.s8.bf16 %v696
        %v1788 = vunpack.c.l.s8.bf16 %v697
        %v1789 = vunpack.c.h.s8.bf16 %v697
        %v1790 = vunpack.c.l.s8.bf16 %v698
        %v1791 = vunpack.c.h.s8.bf16 %v698
        %v1792 = vunpack.c.l.s8.bf16 %v699
        %v1793 = vunpack.c.h.s8.bf16 %v699
        %v1794 = vunpack.c.l.s8.bf16 %v700
        %v1795 = vunpack.c.h.s8.bf16 %v700
        %v1796 = vunpack.c.l.s8.bf16 %v701
        %v1797 = vunpack.c.h.s8.bf16 %v701
        %v1798 = vunpack.c.l.s8.bf16 %v702
        %v1799 = vunpack.c.h.s8.bf16 %v702
        %v1800 = vunpack.c.l.s8.bf16 %v703
        %v1801 = vunpack.c.h.s8.bf16 %v703
        %v1802 = vunpack.c.l.s8.bf16 %v704
        %v1803 = vunpack.c.h.s8.bf16 %v704
        %v1804 = vunpack.c.l.s8.bf16 %v705
        %v1805 = vunpack.c.h.s8.bf16 %v705
        %v1806 = vunpack.c.l.s8.bf16 %v706
        %v1807 = vunpack.c.h.s8.bf16 %v706
        %v1808 = vunpack.c.l.s8.bf16 %v707
        %v1809 = vunpack.c.h.s8.bf16 %v707
        %v1810 = vunpack.c.l.s8.bf16 %v708
        %v1811 = vunpack.c.h.s8.bf16 %v708
        %v1812 = vunpack.c.l.s8.bf16 %v709
        %v1813 = vunpack.c.h.s8.bf16 %v709
        %v1814 = vunpack.c.l.s8.bf16 %v710
        %v1815 = vunpack.c.h.s8.bf16 %v710
        %v1816 = vunpack.c.l.s8.bf16 %v711
        %v1817 = vunpack.c.h.s8.bf16 %v711
        %v1818 = vunpack.c.l.s8.bf16 %v712
        %v1819 = vunpack.c.h.s8.bf16 %v712
        %v1820 = vunpack.c.l.s8.bf16 %v713
        %v1821 = vunpack.c.h.s8.bf16 %v713
        %v1822 = vunpack.c.l.s8.bf16 %v714
        %v1823 = vunpack.c.h.s8.bf16 %v714
        %v1824 = vunpack.c.l.s8.bf16 %v715
        %v1825 = vunpack.c.h.s8.bf16 %v715
        %v1826 = vunpack.c.l.s8.bf16 %v716
        %v1827 = vunpack.c.h.s8.bf16 %v716
        %v1828 = vunpack.c.l.s8.bf16 %v717
        %v1829 = vunpack.c.h.s8.bf16 %v717
        %v1830 = vunpack.c.l.s8.bf16 %v718
        %v1831 = vunpack.c.h.s8.bf16 %v718
        %v1832 = vunpack.c.l.s8.bf16 %v719
        %v1833 = vunpack.c.h.s8.bf16 %v719
        %v1834 = vunpack.c.l.s8.bf16 %v720
        %v1835 = vunpack.c.h.s8.bf16 %v720
        %v1836 = vunpack.c.l.s8.bf16 %v721
        %v1837 = vunpack.c.h.s8.bf16 %v721
        %v1838 = vunpack.c.l.s8.bf16 %v722
        %v1839 = vunpack.c.h.s8.bf16 %v722
        %v1840 = vunpack.c.l.s8.bf16 %v723
        %v1841 = vunpack.c.h.s8.bf16 %v723
        %v1842 = vunpack.c.l.s8.bf16 %v724
        %v1843 = vunpack.c.h.s8.bf16 %v724
        %v1844 = vunpack.c.l.s8.bf16 %v725
        %v1845 = vunpack.c.h.s8.bf16 %v725
        %v1846 = vunpack.c.l.s8.bf16 %v726
        %v1847 = vunpack.c.h.s8.bf16 %v726
        %v1848 = vunpack.c.l.s8.bf16 %v727
        %v1849 = vunpack.c.h.s8.bf16 %v727
        %v1850 = vunpack.c.l.s8.bf16 %v728
        %v1851 = vunpack.c.h.s8.bf16 %v728
        %v1852 = vunpack.c.l.s8.bf16 %v729
        %v1853 = vunpack.c.h.s8.bf16 %v729
        %v1854 = vunpack.c.l.s8.bf16 %v730
        %v1855 = vunpack.c.h.s8.bf16 %v730
        %v1856 = vunpack.c.l.s8.bf16 %v731
        %v1857 = vunpack.c.h.s8.bf16 %v731
        %v1858 = vunpack.c.l.s8.bf16 %v732
        %v1859 = vunpack.c.h.s8.bf16 %v732
        %v1860 = vunpack.c.l.s8.bf16 %v733
        %v1861 = vunpack.c.h.s8.bf16 %v733
        %v1862 = vunpack.c.l.s8.bf16 %v734
        %v1863 = vunpack.c.h.s8.bf16 %v734
        %v1864 = vunpack.c.l.s8.bf16 %v735
        %v1865 = vunpack.c.h.s8.bf16 %v735
        %v1866 = vunpack.c.l.s8.bf16 %v736
        %v1867 = vunpack.c.h.s8.bf16 %v736
        %v1868 = vunpack.c.l.s8.bf16 %v737
        %v1869 = vunpack.c.h.s8.bf16 %v737
        %v1870 = vunpack.c.l.s8.bf16 %v738
        %v1871 = vunpack.c.h.s8.bf16 %v738
        %v1872 = vunpack.c.l.s8.bf16 %v739
        %v1873 = vunpack.c.h.s8.bf16 %v739
        %v1874 = vunpack.c.l.s8.bf16 %v740
        %v1875 = vunpack.c.h.s8.bf16 %v740
        %v1876 = vunpack.c.l.s8.bf16 %v741
        %v1877 = vunpack.c.h.s8.bf16 %v741
        %v1878 = vunpack.c.l.s8.bf16 %v742
        %v1879 = vunpack.c.h.s8.bf16 %v742
        %v1880 = vunpack.c.l.s8.bf16 %v743
        %v1881 = vunpack.c.h.s8.bf16 %v743
        %v1882 = vunpack.c.l.s8.bf16 %v744
        %v1883 = vunpack.c.h.s8.bf16 %v744
        %v1884 = vunpack.c.l.s8.bf16 %v745
        %v1885 = vunpack.c.h.s8.bf16 %v745
        %v1886 = vunpack.c.l.s8.bf16 %v746
        %v1887 = vunpack.c.h.s8.bf16 %v746
        %v1888 = vunpack.c.l.s8.bf16 %v747
        %v1889 = vunpack.c.h.s8.bf16 %v747
        %v1890 = vunpack.c.l.s8.bf16 %v748
        %v1891 = vunpack.c.h.s8.bf16 %v748
        %v1892 = vunpack.c.l.s8.bf16 %v749
        %v1893 = vunpack.c.h.s8.bf16 %v749
        %v1894 = vunpack.c.l.s8.bf16 %v750
        %v1895 = vunpack.c.h.s8.bf16 %v750
        %v1896 = vunpack.c.l.s8.bf16 %v751
        %v1897 = vunpack.c.h.s8.bf16 %v751
        %v1898 = vunpack.c.l.s8.bf16 %v752
        %v1899 = vunpack.c.h.s8.bf16 %v752
        %v1900 = vunpack.c.l.s8.bf16 %v753
        %v1901 = vunpack.c.h.s8.bf16 %v753
        %v1902 = vunpack.c.l.s8.bf16 %v754
        %v1903 = vunpack.c.h.s8.bf16 %v754
        %v1904 = vunpack.c.l.s8.bf16 %v755
        %v1905 = vunpack.c.h.s8.bf16 %v755
        %v1906 = vunpack.c.l.s8.bf16 %v756
        %v1907 = vunpack.c.h.s8.bf16 %v756
        %v1908 = vunpack.c.l.s8.bf16 %v757
        %v1909 = vunpack.c.h.s8.bf16 %v757
        %v1910 = vunpack.c.l.s8.bf16 %v758
        %v1911 = vunpack.c.h.s8.bf16 %v758
        %v1912 = vunpack.c.l.s8.bf16 %v759
        %v1913 = vunpack.c.h.s8.bf16 %v759
        %v1914 = vunpack.c.l.s8.bf16 %v760
        %v1915 = vunpack.c.h.s8.bf16 %v760
        %v1916 = vunpack.c.l.s8.bf16 %v761
        %v1917 = vunpack.c.h.s8.bf16 %v761
        %v1918 = vunpack.c.l.s8.bf16 %v762
        %v1919 = vunpack.c.h.s8.bf16 %v762
        %v1920 = vunpack.c.l.s8.bf16 %v763
        %v1921 = vunpack.c.h.s8.bf16 %v763
        %v1922 = vunpack.c.l.s8.bf16 %v764
        %v1923 = vunpack.c.h.s8.bf16 %v764
        %v1924 = vunpack.c.l.s8.bf16 %v765
        %v1925 = vunpack.c.h.s8.bf16 %v765
        %v1926 = vunpack.c.l.s8.bf16 %v766
        %v1927 = vunpack.c.h.s8.bf16 %v766
        %v1928 = vunpack.c.l.s8.bf16 %v767
        %v1929 = vunpack.c.h.s8.bf16 %v767
        %v1930 = vunpack.c.l.s8.bf16 %v768
        %v1931 = vunpack.c.h.s8.bf16 %v768
        %v1932 = vunpack.c.l.s8.bf16 %v769
        %v1933 = vunpack.c.h.s8.bf16 %v769
        %v1934 = vunpack.c.l.s8.bf16 %v770
        %v1935 = vunpack.c.h.s8.bf16 %v770
        %v1936 = vunpack.c.l.s8.bf16 %v771
        %v1937 = vunpack.c.h.s8.bf16 %v771
        %v1938 = vunpack.c.l.s8.bf16 %v772
        %v1939 = vunpack.c.h.s8.bf16 %v772
        %v1940 = vunpack.c.l.s8.bf16 %v773
        %v1941 = vunpack.c.h.s8.bf16 %v773
        %v1942 = vunpack.c.l.s8.bf16 %v774
        %v1943 = vunpack.c.h.s8.bf16 %v774
        %v1944 = vunpack.c.l.s8.bf16 %v775
        %v1945 = vunpack.c.h.s8.bf16 %v775
        %v1946 = vunpack.c.l.s8.bf16 %v776
        %v1947 = vunpack.c.h.s8.bf16 %v776
        %v1948 = vunpack.c.l.s8.bf16 %v777
        %v1949 = vunpack.c.h.s8.bf16 %v777
        %v1950 = vunpack.c.l.s8.bf16 %v778
        %v1951 = vunpack.c.h.s8.bf16 %v778
        %v1952 = vunpack.c.l.s8.bf16 %v779
        %v1953 = vunpack.c.h.s8.bf16 %v779
        %v1954 = vunpack.c.l.s8.bf16 %v780
        %v1955 = vunpack.c.h.s8.bf16 %v780
        %v1956 = vunpack.c.l.s8.bf16 %v781
        %v1957 = vunpack.c.h.s8.bf16 %v781
        %v1958 = vunpack.c.l.s8.bf16 %v782
        %v1959 = vunpack.c.h.s8.bf16 %v782
        %v1960 = vunpack.c.l.s8.bf16 %v783
        %v1961 = vunpack.c.h.s8.bf16 %v783
        %v1962 = vunpack.c.l.s8.bf16 %v784
        %v1963 = vunpack.c.h.s8.bf16 %v784
        %v1964 = vunpack.c.l.s8.bf16 %v785
        %v1965 = vunpack.c.h.s8.bf16 %v785
        %v1966 = vunpack.c.l.s8.bf16 %v786
        %v1967 = vunpack.c.h.s8.bf16 %v786
        %v1968 = vunpack.c.l.s8.bf16 %v787
        %v1969 = vunpack.c.h.s8.bf16 %v787
        %v1970 = vunpack.c.l.s8.bf16 %v788
        %v1971 = vunpack.c.h.s8.bf16 %v788
        %v1972 = vunpack.c.l.s8.bf16 %v789
        %v1973 = vunpack.c.h.s8.bf16 %v789
        %v1974 = vunpack.c.l.s8.bf16 %v790
        %v1975 = vunpack.c.h.s8.bf16 %v790
        %v1976 = vunpack.c.l.s8.bf16 %v791
        %v1977 = vunpack.c.h.s8.bf16 %v791
        %v1978 = vunpack.c.l.s8.bf16 %v792
        %v1979 = vunpack.c.h.s8.bf16 %v792
        %v1980 = vunpack.c.l.s8.bf16 %v793
        %v1981 = vunpack.c.h.s8.bf16 %v793
        %v1982 = vunpack.c.l.s8.bf16 %v794
        %v1983 = vunpack.c.h.s8.bf16 %v794
        %v1984 = vunpack.c.l.s8.bf16 %v795
        %v1985 = vunpack.c.h.s8.bf16 %v795
        %v1986 = vunpack.c.l.s8.bf16 %v796
        %v1987 = vunpack.c.h.s8.bf16 %v796
        %v1988 = vunpack.c.l.s8.bf16 %v797
        %v1989 = vunpack.c.h.s8.bf16 %v797
        %v1990 = vunpack.c.l.s8.bf16 %v798
        %v1991 = vunpack.c.h.s8.bf16 %v798
        %v1992 = vunpack.c.l.s8.bf16 %v799
        %v1993 = vunpack.c.h.s8.bf16 %v799
        %v1994 = vunpack.c.l.s8.bf16 %v800
        %v1995 = vunpack.c.h.s8.bf16 %v800
        %v1996 = vunpack.c.l.s8.bf16 %v801
        %v1997 = vunpack.c.h.s8.bf16 %v801
        %v1998 = vunpack.c.l.s8.bf16 %v802
        %v1999 = vunpack.c.h.s8.bf16 %v802
        %v2000 = vunpack.c.l.s8.bf16 %v803
        %v2001 = vunpack.c.h.s8.bf16 %v803
        %v2002 = vunpack.c.l.s8.bf16 %v804
        %v2003 = vunpack.c.h.s8.bf16 %v804
        %v2004 = vunpack.c.l.s8.bf16 %v805
        %v2005 = vunpack.c.h.s8.bf16 %v805
        %v2006 = vunpack.c.l.s8.bf16 %v806
        %v2007 = vunpack.c.h.s8.bf16 %v806
        %v2008 = vunpack.c.l.s8.bf16 %v807
        %v2009 = vunpack.c.h.s8.bf16 %v807
        %v2010 = vunpack.c.l.s8.bf16 %v808
        %v2011 = vunpack.c.h.s8.bf16 %v808
        %v2012 = vunpack.c.l.s8.bf16 %v809
        %v2013 = vunpack.c.h.s8.bf16 %v809
        %v2014 = vunpack.c.l.s8.bf16 %v810
        %v2015 = vunpack.c.h.s8.bf16 %v810
        %v2016 = vunpack.c.l.s8.bf16 %v811
        %v2017 = vunpack.c.h.s8.bf16 %v811
        %v2018 = vunpack.c.l.s8.bf16 %v812
        %v2019 = vunpack.c.h.s8.bf16 %v812
        %v2020 = vunpack.c.l.s8.bf16 %v813
        %v2021 = vunpack.c.h.s8.bf16 %v813
        %v2022 = vunpack.c.l.s8.bf16 %v814
        %v2023 = vunpack.c.h.s8.bf16 %v814
        %v2024 = vunpack.c.l.s8.bf16 %v815
        %v2025 = vunpack.c.h.s8.bf16 %v815
        %v2026 = vunpack.c.l.s8.bf16 %v816
        %v2027 = vunpack.c.h.s8.bf16 %v816
        %v2028 = vunpack.c.l.s8.bf16 %v817
        %v2029 = vunpack.c.h.s8.bf16 %v817
        %v2030 = vunpack.c.l.s8.bf16 %v818
        %v2031 = vunpack.c.h.s8.bf16 %v818
        %v2032 = vunpack.c.l.s8.bf16 %v819
        %v2033 = vunpack.c.h.s8.bf16 %v819
        %v2034 = vunpack.c.l.s8.bf16 %v820
        %v2035 = vunpack.c.h.s8.bf16 %v820
        %v2036 = vunpack.c.l.s8.bf16 %v821
        %v2037 = vunpack.c.h.s8.bf16 %v821
        %v2038 = vunpack.c.l.s8.bf16 %v822
        %v2039 = vunpack.c.h.s8.bf16 %v822
        %v2040 = vunpack.c.l.s8.bf16 %v823
        %v2041 = vunpack.c.h.s8.bf16 %v823
        %v2042 = vunpack.c.l.s8.bf16 %v824
        %v2043 = vunpack.c.h.s8.bf16 %v824
        %v2044 = vunpack.c.l.s8.bf16 %v825
        %v2045 = vunpack.c.h.s8.bf16 %v825
        %v2046 = vunpack.c.l.s8.bf16 %v826
        %v2047 = vunpack.c.h.s8.bf16 %v826
        %v2048 = vunpack.c.l.s8.bf16 %v827
        %v2049 = vunpack.c.h.s8.bf16 %v827
        %v2050 = vunpack.c.l.s8.bf16 %v828
        %v2051 = vunpack.c.h.s8.bf16 %v828
        %v2052 = vunpack.c.l.s8.bf16 %v829
        %v2053 = vunpack.c.h.s8.bf16 %v829
        %v2054 = vunpack.c.l.s8.bf16 %v830
        %v2055 = vunpack.c.h.s8.bf16 %v830
        %v2056 = vunpack.c.l.s8.bf16 %v831
        %v2057 = vunpack.c.h.s8.bf16 %v831
        %v2058 = vunpack.c.l.s8.bf16 %v832
        %v2059 = vunpack.c.h.s8.bf16 %v832
        %v2060 = vunpack.c.l.s8.bf16 %v833
        %v2061 = vunpack.c.h.s8.bf16 %v833
        %v2062 = vunpack.c.l.s8.bf16 %v834
        %v2063 = vunpack.c.h.s8.bf16 %v834
        %v2064 = vunpack.c.l.s8.bf16 %v835
        %v2065 = vunpack.c.h.s8.bf16 %v835
        %v2066 = vunpack.c.l.s8.bf16 %v836
        %v2067 = vunpack.c.h.s8.bf16 %v836
        %v2068 = vunpack.c.l.s8.bf16 %v837
        %v2069 = vunpack.c.h.s8.bf16 %v837
        %v2070 = vunpack.c.l.s8.bf16 %v838
        %v2071 = vunpack.c.h.s8.bf16 %v838
        %v2072 = vunpack.c.l.s8.bf16 %v839
        %v2073 = vunpack.c.h.s8.bf16 %v839
        %v2074 = vunpack.c.l.s8.bf16 %v840
        %v2075 = vunpack.c.h.s8.bf16 %v840
        %v2076 = vunpack.c.l.s8.bf16 %v841
        %v2077 = vunpack.c.h.s8.bf16 %v841
        %v2078 = vunpack.c.l.s8.bf16 %v842
        %v2079 = vunpack.c.h.s8.bf16 %v842
        %v2080 = vunpack.c.l.s8.bf16 %v843
        %v2081 = vunpack.c.h.s8.bf16 %v843
        %v2082 = vunpack.c.l.s8.bf16 %v844
        %v2083 = vunpack.c.h.s8.bf16 %v844
        %v2084 = vunpack.c.l.s8.bf16 %v845
        %v2085 = vunpack.c.h.s8.bf16 %v845
        %v2086 = vunpack.c.l.s8.bf16 %v846
        %v2087 = vunpack.c.h.s8.bf16 %v846
        %v2088 = vunpack.c.l.s8.bf16 %v847
        %v2089 = vunpack.c.h.s8.bf16 %v847
        %v2090 = vunpack.c.l.s8.bf16 %v848
        %v2091 = vunpack.c.h.s8.bf16 %v848
        %v2092 = vunpack.c.l.s8.bf16 %v849
        %v2093 = vunpack.c.h.s8.bf16 %v849
        %v2094 = vunpack.c.l.s8.bf16 %v850
        %v2095 = vunpack.c.h.s8.bf16 %v850
        %v2096 = vunpack.c.l.s8.bf16 %v851
        %v2097 = vunpack.c.h.s8.bf16 %v851
        %v2098 = vunpack.c.l.s8.bf16 %v852
        %v2099 = vunpack.c.h.s8.bf16 %v852
        %v2100 = vunpack.c.l.s8.bf16 %v853
        %v2101 = vunpack.c.h.s8.bf16 %v853
        %v2102 = vunpack.c.l.s8.bf16 %v854
        %v2103 = vunpack.c.h.s8.bf16 %v854
        %v2104 = vunpack.c.l.s8.bf16 %v855
        %v2105 = vunpack.c.h.s8.bf16 %v855
        %v2106 = vunpack.c.l.s8.bf16 %v856
        %v2107 = vunpack.c.h.s8.bf16 %v856
        %v2108 = vunpack.c.l.s8.bf16 %v857
        %v2109 = vunpack.c.h.s8.bf16 %v857
        %v2110 = vunpack.c.l.s8.bf16 %v858
        %v2111 = vunpack.c.h.s8.bf16 %v858
        %v2112 = vunpack.c.l.s8.bf16 %v859
        %v2113 = vunpack.c.h.s8.bf16 %v859
        %v2114 = vunpack.c.l.s8.bf16 %v860
        %v2115 = vunpack.c.h.s8.bf16 %v860
        %v2116 = vunpack.c.l.s8.bf16 %v861
        %v2117 = vunpack.c.h.s8.bf16 %v861
        %v2118 = vunpack.c.l.s8.bf16 %v862
        %v2119 = vunpack.c.h.s8.bf16 %v862
        %v2120 = vunpack.c.l.s8.bf16 %v863
        %v2121 = vunpack.c.h.s8.bf16 %v863
        %v2122 = vunpack.c.l.s8.bf16 %v864
        %v2123 = vunpack.c.h.s8.bf16 %v864
        %v2124 = vunpack.c.l.s8.bf16 %v865
        %v2125 = vunpack.c.h.s8.bf16 %v865
        %v2126 = vunpack.c.l.s8.bf16 %v866
        %v2127 = vunpack.c.h.s8.bf16 %v866
        %v2128 = vunpack.c.l.s8.bf16 %v867
        %v2129 = vunpack.c.h.s8.bf16 %v867
        %v2130 = vunpack.c.l.s8.bf16 %v868
        %v2131 = vunpack.c.h.s8.bf16 %v868
        %v2132 = vunpack.c.l.s8.bf16 %v869
        %v2133 = vunpack.c.h.s8.bf16 %v869
        %v2134 = vunpack.c.l.s8.bf16 %v870
        %v2135 = vunpack.c.h.s8.bf16 %v870
        %v2136 = vunpack.c.l.s8.bf16 %v871
        %v2137 = vunpack.c.h.s8.bf16 %v871
        %v2138 = vunpack.c.l.s8.bf16 %v872
        %v2139 = vunpack.c.h.s8.bf16 %v872
        %v2140 = vunpack.c.l.s8.bf16 %v873
        %v2141 = vunpack.c.h.s8.bf16 %v873
        %v2142 = vunpack.c.l.s8.bf16 %v874
        %v2143 = vunpack.c.h.s8.bf16 %v874
        %v2144 = vunpack.c.l.s8.bf16 %v875
        %v2145 = vunpack.c.h.s8.bf16 %v875
        %v2146 = vunpack.c.l.s8.bf16 %v876
        %v2147 = vunpack.c.h.s8.bf16 %v876
        %v2148 = vunpack.c.l.s8.bf16 %v877
        %v2149 = vunpack.c.h.s8.bf16 %v877
        %v2150 = vunpack.c.l.s8.bf16 %v878
        %v2151 = vunpack.c.h.s8.bf16 %v878
        %v2152 = vunpack.c.l.s8.bf16 %v879
        %v2153 = vunpack.c.h.s8.bf16 %v879
        %v2154 = vunpack.c.l.s8.bf16 %v880
        %v2155 = vunpack.c.h.s8.bf16 %v880
        %v2156 = vunpack.c.l.s8.bf16 %v881
        %v2157 = vunpack.c.h.s8.bf16 %v881
        %v2158 = vunpack.c.l.s8.bf16 %v882
        %v2159 = vunpack.c.h.s8.bf16 %v882
        %v2160 = vunpack.c.l.s8.bf16 %v883
        %v2161 = vunpack.c.h.s8.bf16 %v883
        %v2162 = vunpack.c.l.s8.bf16 %v884
        %v2163 = vunpack.c.h.s8.bf16 %v884
        %v2164 = vunpack.c.l.s8.bf16 %v885
        %v2165 = vunpack.c.h.s8.bf16 %v885
        %v2166 = vunpack.c.l.s8.bf16 %v886
        %v2167 = vunpack.c.h.s8.bf16 %v886
        %v2168 = vunpack.c.l.s8.bf16 %v887
        %v2169 = vunpack.c.h.s8.bf16 %v887
        %v2170 = vunpack.c.l.s8.bf16 %v888
        %v2171 = vunpack.c.h.s8.bf16 %v888
        %v2172 = vunpack.c.l.s8.bf16 %v889
        %v2173 = vunpack.c.h.s8.bf16 %v889
        %v2174 = vunpack.c.l.s8.bf16 %v890
        %v2175 = vunpack.c.h.s8.bf16 %v890
        %v2176 = vunpack.c.l.s8.bf16 %v891
        %v2177 = vunpack.c.h.s8.bf16 %v891
        %v2178 = vunpack.c.l.s8.bf16 %v892
        %v2179 = vunpack.c.h.s8.bf16 %v892
        %v2180 = vunpack.c.l.s8.bf16 %v893
        %v2181 = vunpack.c.h.s8.bf16 %v893
        %v2182 = vunpack.c.l.s8.bf16 %v894
        %v2183 = vunpack.c.h.s8.bf16 %v894
        %v2184 = vunpack.c.l.s8.bf16 %v895
        %v2185 = vunpack.c.h.s8.bf16 %v895
        %v2186 = vunpack.c.l.s8.bf16 %v896
        %v2187 = vunpack.c.h.s8.bf16 %v896
        %v2188 = vunpack.c.l.s8.bf16 %v897
        %v2189 = vunpack.c.h.s8.bf16 %v897
        %v2190 = vunpack.c.l.s8.bf16 %v898
        %v2191 = vunpack.c.h.s8.bf16 %v898
        %v2192 = vunpack.c.l.s8.bf16 %v899
        %v2193 = vunpack.c.h.s8.bf16 %v899
        %v2194 = vunpack.c.l.s8.bf16 %v900
        %v2195 = vunpack.c.h.s8.bf16 %v900
        %v2196 = vunpack.c.l.s8.bf16 %v901
        %v2197 = vunpack.c.h.s8.bf16 %v901
        %v2198 = vunpack.c.l.s8.bf16 %v902
        %v2199 = vunpack.c.h.s8.bf16 %v902
        %v2200 = vunpack.c.l.s8.bf16 %v903
        %v2201 = vunpack.c.h.s8.bf16 %v903
        %v2202 = vunpack.c.l.s8.bf16 %v904
        %v2203 = vunpack.c.h.s8.bf16 %v904
        %v2204 = vunpack.c.l.s8.bf16 %v905
        %v2205 = vunpack.c.h.s8.bf16 %v905
        %v2206 = vunpack.c.l.s8.bf16 %v906
        %v2207 = vunpack.c.h.s8.bf16 %v906
        %v2208 = vunpack.c.l.s8.bf16 %v907
        %v2209 = vunpack.c.h.s8.bf16 %v907
        %v2210 = vunpack.c.l.s8.bf16 %v908
        %v2211 = vunpack.c.h.s8.bf16 %v908
        %v2212 = vunpack.c.l.s8.bf16 %v909
        %v2213 = vunpack.c.h.s8.bf16 %v909
        %v2214 = vunpack.c.l.s8.bf16 %v910
        %v2215 = vunpack.c.h.s8.bf16 %v910
        %v2216 = vunpack.c.l.s8.bf16 %v911
        %v2217 = vunpack.c.h.s8.bf16 %v911
        %v2218 = vunpack.c.l.s8.bf16 %v912
        %v2219 = vunpack.c.h.s8.bf16 %v912
        %v2220 = vunpack.c.l.s8.bf16 %v913
        %v2221 = vunpack.c.h.s8.bf16 %v913
        %v2222 = vunpack.c.l.s8.bf16 %v914
        %v2223 = vunpack.c.h.s8.bf16 %v914
        %v2224 = vunpack.c.l.s8.bf16 %v915
        %v2225 = vunpack.c.h.s8.bf16 %v915
        %v2226 = vunpack.c.l.s8.bf16 %v916
        %v2227 = vunpack.c.h.s8.bf16 %v916
        %v2228 = vunpack.c.l.s8.bf16 %v917
        %v2229 = vunpack.c.h.s8.bf16 %v917
        %v2230 = vunpack.c.l.s8.bf16 %v918
        %v2231 = vunpack.c.h.s8.bf16 %v918
        %v2232 = vunpack.c.l.s8.bf16 %v919
        %v2233 = vunpack.c.h.s8.bf16 %v919
        %v2234 = vunpack.c.l.s8.bf16 %v920
        %v2235 = vunpack.c.h.s8.bf16 %v920
        %v2236 = vunpack.c.l.s8.bf16 %v921
        %v2237 = vunpack.c.h.s8.bf16 %v921
        %v2238 = vunpack.c.l.s8.bf16 %v922
        %v2239 = vunpack.c.h.s8.bf16 %v922
        %v2240 = vunpack.c.l.s8.bf16 %v923
        %v2241 = vunpack.c.h.s8.bf16 %v923
        %v2242 = vunpack.c.l.s8.bf16 %v924
        %v2243 = vunpack.c.h.s8.bf16 %v924
        %v2244 = vunpack.c.l.s8.bf16 %v925
        %v2245 = vunpack.c.h.s8.bf16 %v925
        %v2246 = vunpack.c.l.s8.bf16 %v926
        %v2247 = vunpack.c.h.s8.bf16 %v926
        %v2248 = vunpack.c.l.s8.bf16 %v927
        %v2249 = vunpack.c.h.s8.bf16 %v927
        %v2250 = vunpack.c.l.s8.bf16 %v928
        %v2251 = vunpack.c.h.s8.bf16 %v928
        %v2252 = vunpack.c.l.s8.bf16 %v929
        %v2253 = vunpack.c.h.s8.bf16 %v929
        %v2254 = vunpack.c.l.s8.bf16 %v930
        %v2255 = vunpack.c.h.s8.bf16 %v930
        %v2256 = vunpack.c.l.s8.bf16 %v931
        %v2257 = vunpack.c.h.s8.bf16 %v931
        %v2258 = vunpack.c.l.s8.bf16 %v932
        %v2259 = vunpack.c.h.s8.bf16 %v932
        %v2260 = vunpack.c.l.s8.bf16 %v933
        %v2261 = vunpack.c.h.s8.bf16 %v933
        %v2262 = vunpack.c.l.s8.bf16 %v934
        %v2263 = vunpack.c.h.s8.bf16 %v934
        %v2264 = vunpack.c.l.s8.bf16 %v935
        %v2265 = vunpack.c.h.s8.bf16 %v935
        %v2266 = vunpack.c.l.s8.bf16 %v936
        %v2267 = vunpack.c.h.s8.bf16 %v936
        %v2268 = vunpack.c.l.s8.bf16 %v937
        %v2269 = vunpack.c.h.s8.bf16 %v937
        %v2270 = vunpack.c.l.s8.bf16 %v938
        %v2271 = vunpack.c.h.s8.bf16 %v938
        %v2272 = vunpack.c.l.s8.bf16 %v939
        %v2273 = vunpack.c.h.s8.bf16 %v939
        %v2274 = vunpack.c.l.s8.bf16 %v940
        %v2275 = vunpack.c.h.s8.bf16 %v940
        %v2276 = vunpack.c.l.s8.bf16 %v941
        %v2277 = vunpack.c.h.s8.bf16 %v941
        %v2278 = vunpack.c.l.s8.bf16 %v942
        %v2279 = vunpack.c.h.s8.bf16 %v942
        %v2280 = vunpack.c.l.s8.bf16 %v943
        %v2281 = vunpack.c.h.s8.bf16 %v943
        %v2282 = vunpack.c.l.s8.bf16 %v944
        %v2283 = vunpack.c.h.s8.bf16 %v944
        %v2284 = vunpack.c.l.s8.bf16 %v945
        %v2285 = vunpack.c.h.s8.bf16 %v945
        %v2286 = vunpack.c.l.s8.bf16 %v946
        %v2287 = vunpack.c.h.s8.bf16 %v946
        %v2288 = vunpack.c.l.s8.bf16 %v947
        %v2289 = vunpack.c.h.s8.bf16 %v947
        %v2290 = vunpack.c.l.s8.bf16 %v948
        %v2291 = vunpack.c.h.s8.bf16 %v948
        %v2292 = vunpack.c.l.s8.bf16 %v949
        %v2293 = vunpack.c.h.s8.bf16 %v949
        %v2294 = vunpack.c.l.s8.bf16 %v950
        %v2295 = vunpack.c.h.s8.bf16 %v950
        %v2296 = vunpack.c.l.s8.bf16 %v951
        %v2297 = vunpack.c.h.s8.bf16 %v951
        %v2298 = vunpack.c.l.s8.bf16 %v952
        %v2299 = vunpack.c.h.s8.bf16 %v952
        %v2300 = vunpack.c.l.s8.bf16 %v953
        %v2301 = vunpack.c.h.s8.bf16 %v953
        %v2302 = vunpack.c.l.s8.bf16 %v954
        %v2303 = vunpack.c.h.s8.bf16 %v954
        %v2304 = vunpack.c.l.s8.bf16 %v955
        %v2305 = vunpack.c.h.s8.bf16 %v955
        %v2306 = vunpack.c.l.s8.bf16 %v956
        %v2307 = vunpack.c.h.s8.bf16 %v956
        %v2308 = vunpack.c.l.s8.bf16 %v957
        %v2309 = vunpack.c.h.s8.bf16 %v957
        %v2310 = vunpack.c.l.s8.bf16 %v958
        %v2311 = vunpack.c.h.s8.bf16 %v958
        %v2312 = vunpack.c.l.s8.bf16 %v959
        %v2313 = vunpack.c.h.s8.bf16 %v959
        %v2314 = vunpack.c.l.s8.bf16 %v960
        %v2315 = vunpack.c.h.s8.bf16 %v960
        %v2316 = vunpack.c.l.s8.bf16 %v961
        %v2317 = vunpack.c.h.s8.bf16 %v961
        %v2318 = vunpack.c.l.s8.bf16 %v962
        %v2319 = vunpack.c.h.s8.bf16 %v962
        %v2320 = vunpack.c.l.s8.bf16 %v963
        %v2321 = vunpack.c.h.s8.bf16 %v963
        %v2322 = vunpack.c.l.s8.bf16 %v964
        %v2323 = vunpack.c.h.s8.bf16 %v964
        %v2324 = vunpack.c.l.s8.bf16 %v965
        %v2325 = vunpack.c.h.s8.bf16 %v965
        %v2326 = vunpack.c.l.s8.bf16 %v966
        %v2327 = vunpack.c.h.s8.bf16 %v966
        %v2328 = vunpack.c.l.s8.bf16 %v967
        %v2329 = vunpack.c.h.s8.bf16 %v967
        %v2330 = vunpack.c.l.s8.bf16 %v968
        %v2331 = vunpack.c.h.s8.bf16 %v968
        %v2332 = vunpack.c.l.s8.bf16 %v969
        %v2333 = vunpack.c.h.s8.bf16 %v969
        %v2334 = vunpack.c.l.s8.bf16 %v970
        %v2335 = vunpack.c.h.s8.bf16 %v970
        %v2336 = vunpack.c.l.s8.bf16 %v971
        %v2337 = vunpack.c.h.s8.bf16 %v971
        %v2338 = vunpack.c.l.s8.bf16 %v972
        %v2339 = vunpack.c.h.s8.bf16 %v972
        %v2340 = vunpack.c.l.s8.bf16 %v973
        %v2341 = vunpack.c.h.s8.bf16 %v973
        %v2342 = vunpack.c.l.s8.bf16 %v974
        %v2343 = vunpack.c.h.s8.bf16 %v974
        %v2344 = vunpack.c.l.s8.bf16 %v975
        %v2345 = vunpack.c.h.s8.bf16 %v975
        %v2346 = vunpack.c.l.s8.bf16 %v976
        %v2347 = vunpack.c.h.s8.bf16 %v976
        %v2348 = vunpack.c.l.s8.bf16 %v977
        %v2349 = vunpack.c.h.s8.bf16 %v977
        %v2350 = vunpack.c.l.s8.bf16 %v978
        %v2351 = vunpack.c.h.s8.bf16 %v978
        %v2352 = vunpack.c.l.s8.bf16 %v979
        %v2353 = vunpack.c.h.s8.bf16 %v979
        %v2354 = vunpack.c.l.s8.bf16 %v980
        %v2355 = vunpack.c.h.s8.bf16 %v980
        %v2356 = vunpack.c.l.s8.bf16 %v981
        %v2357 = vunpack.c.h.s8.bf16 %v981
        %v2358 = vunpack.c.l.s8.bf16 %v982
        %v2359 = vunpack.c.h.s8.bf16 %v982
        %v2360 = vunpack.c.l.s8.bf16 %v983
        %v2361 = vunpack.c.h.s8.bf16 %v983
        %v2362 = vunpack.c.l.s8.bf16 %v984
        %v2363 = vunpack.c.h.s8.bf16 %v984
        %v2364 = vunpack.c.l.s8.bf16 %v985
        %v2365 = vunpack.c.h.s8.bf16 %v985
        %v2366 = vunpack.c.l.s8.bf16 %v986
        %v2367 = vunpack.c.h.s8.bf16 %v986
        %v2368 = vunpack.c.l.s8.bf16 %v987
        %v2369 = vunpack.c.h.s8.bf16 %v987
        %v2370 = vunpack.c.l.s8.bf16 %v988
        %v2371 = vunpack.c.h.s8.bf16 %v988
        %v2372 = vunpack.c.l.s8.bf16 %v989
        %v2373 = vunpack.c.h.s8.bf16 %v989
        %v2374 = vunpack.c.l.s8.bf16 %v990
        %v2375 = vunpack.c.h.s8.bf16 %v990
        %v2376 = vunpack.c.l.s8.bf16 %v991
        %v2377 = vunpack.c.h.s8.bf16 %v991
        %v2378 = vunpack.c.l.s8.bf16 %v992
        %v2379 = vunpack.c.h.s8.bf16 %v992
        %v2380 = vunpack.c.l.s8.bf16 %v993
        %v2381 = vunpack.c.h.s8.bf16 %v993
        %v2382 = vunpack.c.l.s8.bf16 %v994
        %v2383 = vunpack.c.h.s8.bf16 %v994
        %v2384 = vunpack.c.l.s8.bf16 %v995
        %v2385 = vunpack.c.h.s8.bf16 %v995
        %v2386 = vunpack.c.l.s8.bf16 %v996
        %v2387 = vunpack.c.h.s8.bf16 %v996
        %v2388 = vunpack.c.l.s8.bf16 %v997
        %v2389 = vunpack.c.h.s8.bf16 %v997
        %v2390 = vunpack.c.l.s8.bf16 %v998
        %v2391 = vunpack.c.h.s8.bf16 %v998
        %v2392 = vunpack.c.l.s8.bf16 %v999
        %v2393 = vunpack.c.h.s8.bf16 %v999
        %v2394 = vunpack.c.l.s8.bf16 %v1000
        %v2395 = vunpack.c.h.s8.bf16 %v1000
        %v2396 = vunpack.c.l.s8.bf16 %v1001
        %v2397 = vunpack.c.h.s8.bf16 %v1001
        %v2398 = vunpack.c.l.s8.bf16 %v1002
        %v2399 = vunpack.c.h.s8.bf16 %v1002
        %v2400 = vunpack.c.l.s8.bf16 %v1003
        %v2401 = vunpack.c.h.s8.bf16 %v1003
        %v2402 = vunpack.c.l.s8.bf16 %v1004
        %v2403 = vunpack.c.h.s8.bf16 %v1004
        %v2404 = vunpack.c.l.s8.bf16 %v1005
        %v2405 = vunpack.c.h.s8.bf16 %v1005
        %v2406 = vunpack.c.l.s8.bf16 %v1006
        %v2407 = vunpack.c.h.s8.bf16 %v1006
        %v2408 = vunpack.c.l.s8.bf16 %v1007
        %v2409 = vunpack.c.h.s8.bf16 %v1007
        %v2410 = vunpack.c.l.s8.bf16 %v1008
        %v2411 = vunpack.c.h.s8.bf16 %v1008
        %v2412 = vunpack.c.l.s8.bf16 %v1009
        %v2413 = vunpack.c.h.s8.bf16 %v1009
        %v2414 = vunpack.c.l.s8.bf16 %v1010
        %v2415 = vunpack.c.h.s8.bf16 %v1010
        %v2416 = vunpack.c.l.s8.bf16 %v1011
        %v2417 = vunpack.c.h.s8.bf16 %v1011
        %v2418 = vunpack.c.l.s8.bf16 %v1012
        %v2419 = vunpack.c.h.s8.bf16 %v1012
        %v2420 = vunpack.c.l.s8.bf16 %v1013
        %v2421 = vunpack.c.h.s8.bf16 %v1013
        %v2422 = vunpack.c.l.s8.bf16 %v1014
        %v2423 = vunpack.c.h.s8.bf16 %v1014
        %v2424 = vunpack.c.l.s8.bf16 %v1015
        %v2425 = vunpack.c.h.s8.bf16 %v1015
        %v2426 = vunpack.c.l.s8.bf16 %v1016
        %v2427 = vunpack.c.h.s8.bf16 %v1016
        %v2428 = vunpack.c.l.s8.bf16 %v1017
        %v2429 = vunpack.c.h.s8.bf16 %v1017
        %v2430 = vunpack.c.l.s8.bf16 %v1018
        %v2431 = vunpack.c.h.s8.bf16 %v1018
        %v2432 = vunpack.c.l.s8.bf16 %v1019
        %v2433 = vunpack.c.h.s8.bf16 %v1019
        %v2434 = vunpack.c.l.s8.bf16 %v1020
        %v2435 = vunpack.c.h.s8.bf16 %v1020
        %v2436 = vunpack.c.l.s8.bf16 %v1021
        %v2437 = vunpack.c.h.s8.bf16 %v1021
        %v2438 = vunpack.c.l.s8.bf16 %v1022
        %v2439 = vunpack.c.h.s8.bf16 %v1022
        %v2440 = vunpack.c.l.s8.bf16 %v1023
        %v2441 = vunpack.c.h.s8.bf16 %v1023
        %v2442 = vunpack.c.l.s8.bf16 %v1024
        %v2443 = vunpack.c.h.s8.bf16 %v1024
        %v2444 = vunpack.c.l.s8.bf16 %v1025
        %v2445 = vunpack.c.h.s8.bf16 %v1025
        %v2446 = vunpack.c.l.s8.bf16 %v1026
        %v2447 = vunpack.c.h.s8.bf16 %v1026
        %v2448 = vunpack.c.l.s8.bf16 %v1027
        %v2449 = vunpack.c.h.s8.bf16 %v1027
        %v2450 = vunpack.c.l.s8.bf16 %v1028
        %v2451 = vunpack.c.h.s8.bf16 %v1028
        %v2452 = vunpack.c.l.s8.bf16 %v1029
        %v2453 = vunpack.c.h.s8.bf16 %v1029
        %v2454 = vunpack.c.l.s8.bf16 %v1030
        %v2455 = vunpack.c.h.s8.bf16 %v1030
        %v2456 = vunpack.c.l.s8.bf16 %v1031
        %v2457 = vunpack.c.h.s8.bf16 %v1031
        %v2458 = vunpack.c.l.s8.bf16 %v1032
        %v2459 = vunpack.c.h.s8.bf16 %v1032
        %v2460 = vunpack.c.l.s8.bf16 %v1033
        %v2461 = vunpack.c.h.s8.bf16 %v1033
        %v2462 = vunpack.c.l.s8.bf16 %v1034
        %v2463 = vunpack.c.h.s8.bf16 %v1034
        %v2464 = vunpack.c.l.s8.bf16 %v1035
        %v2465 = vunpack.c.h.s8.bf16 %v1035
        %v2466 = vunpack.c.l.s8.bf16 %v1036
        %v2467 = vunpack.c.h.s8.bf16 %v1036
        %v2468 = vunpack.c.l.s8.bf16 %v1037
        %v2469 = vunpack.c.h.s8.bf16 %v1037
        %v2470 = vunpack.c.l.s8.bf16 %v1038
        %v2471 = vunpack.c.h.s8.bf16 %v1038
        %v2472 = vunpack.c.l.s8.bf16 %v1039
        %v2473 = vunpack.c.h.s8.bf16 %v1039
        %v2474 = vunpack.c.l.s8.bf16 %v1040
        %v2475 = vunpack.c.h.s8.bf16 %v1040
        %v2476 = vunpack.c.l.s8.bf16 %v1041
        %v2477 = vunpack.c.h.s8.bf16 %v1041
        %v2478 = vunpack.c.l.s8.bf16 %v1042
        %v2479 = vunpack.c.h.s8.bf16 %v1042
        %v2480 = vunpack.c.l.s8.bf16 %v1043
        %v2481 = vunpack.c.h.s8.bf16 %v1043
        %v2482 = vunpack.c.l.s8.bf16 %v1044
        %v2483 = vunpack.c.h.s8.bf16 %v1044
        %v2484 = vunpack.c.l.s8.bf16 %v1045
        %v2485 = vunpack.c.h.s8.bf16 %v1045
        %v2486 = vunpack.c.l.s8.bf16 %v1046
        %v2487 = vunpack.c.h.s8.bf16 %v1046
        %v2488 = vunpack.c.l.s8.bf16 %v1047
        %v2489 = vunpack.c.h.s8.bf16 %v1047
        %v2490 = vunpack.c.l.s8.bf16 %v1048
        %v2491 = vunpack.c.h.s8.bf16 %v1048
        %v2492 = vunpack.c.l.s8.bf16 %v1049
        %v2493 = vunpack.c.h.s8.bf16 %v1049
        %v2494 = vunpack.c.l.s8.bf16 %v1050
        %v2495 = vunpack.c.h.s8.bf16 %v1050
        %v2496 = vunpack.c.l.s8.bf16 %v1051
        %v2497 = vunpack.c.h.s8.bf16 %v1051
        %v2498 = vunpack.c.l.s8.bf16 %v1052
        %v2499 = vunpack.c.h.s8.bf16 %v1052
        %v2500 = vunpack.c.l.s8.bf16 %v1053
        %v2501 = vunpack.c.h.s8.bf16 %v1053
        %v2502 = vunpack.c.l.s8.bf16 %v1054
        %v2503 = vunpack.c.h.s8.bf16 %v1054
        %v2504 = vunpack.c.l.s8.bf16 %v1055
        %v2505 = vunpack.c.h.s8.bf16 %v1055
        %v2506 = vunpack.c.l.s8.bf16 %v1056
        %v2507 = vunpack.c.h.s8.bf16 %v1056
        %v2508 = vunpack.c.l.s8.bf16 %v1057
        %v2509 = vunpack.c.h.s8.bf16 %v1057
        %v2510 = vunpack.c.l.s8.bf16 %v1058
        %v2511 = vunpack.c.h.s8.bf16 %v1058
        %v2512 = vunpack.c.l.s8.bf16 %v1059
        %v2513 = vunpack.c.h.s8.bf16 %v1059
        %v2514 = vunpack.c.l.s8.bf16 %v1060
        %v2515 = vunpack.c.h.s8.bf16 %v1060
        %v2516 = vunpack.c.l.s8.bf16 %v1061
        %v2517 = vunpack.c.h.s8.bf16 %v1061
        %v2518 = vunpack.c.l.s8.bf16 %v1062
        %v2519 = vunpack.c.h.s8.bf16 %v1062
        %v2520 = vunpack.c.l.s8.bf16 %v1063
        %v2521 = vunpack.c.h.s8.bf16 %v1063
        %v2522 = vunpack.c.l.s8.bf16 %v1064
        %v2523 = vunpack.c.h.s8.bf16 %v1064
        %v2524 = vunpack.c.l.s8.bf16 %v1065
        %v2525 = vunpack.c.h.s8.bf16 %v1065
        %v2526 = vunpack.c.l.s8.bf16 %v1066
        %v2527 = vunpack.c.h.s8.bf16 %v1066
        %v2528 = vunpack.c.l.s8.bf16 %v1067
        %v2529 = vunpack.c.h.s8.bf16 %v1067
        %v2530 = vunpack.c.l.s8.bf16 %v1068
        %v2531 = vunpack.c.h.s8.bf16 %v1068
        %v2532 = vunpack.c.l.s8.bf16 %v1069
        %v2533 = vunpack.c.h.s8.bf16 %v1069
        %v2534 = vunpack.c.l.s8.bf16 %v1070
        %v2535 = vunpack.c.h.s8.bf16 %v1070
        %v2536 = vunpack.c.l.s8.bf16 %v1071
        %v2537 = vunpack.c.h.s8.bf16 %v1071
        %v2538 = vunpack.c.l.s8.bf16 %v1072
        %v2539 = vunpack.c.h.s8.bf16 %v1072
        %v2540 = vunpack.c.l.s8.bf16 %v1073
        %v2541 = vunpack.c.h.s8.bf16 %v1073
        %v2542 = vunpack.c.l.s8.bf16 %v1074
        %v2543 = vunpack.c.h.s8.bf16 %v1074
        %v2544 = vunpack.c.l.s8.bf16 %v1075
        %v2545 = vunpack.c.h.s8.bf16 %v1075
        %v2546 = vunpack.c.l.s8.bf16 %v1076
        %v2547 = vunpack.c.h.s8.bf16 %v1076
        %v2548 = vunpack.c.l.s8.bf16 %v1077
        %v2549 = vunpack.c.h.s8.bf16 %v1077
        %v2550 = vunpack.c.l.s8.bf16 %v1078
        %v2551 = vunpack.c.h.s8.bf16 %v1078
        %v2552 = vunpack.c.l.s8.bf16 %v1079
        %v2553 = vunpack.c.h.s8.bf16 %v1079
        %v2554 = vunpack.c.l.s8.bf16 %v1080
        %v2555 = vunpack.c.h.s8.bf16 %v1080
        %v2556 = vunpack.c.l.s8.bf16 %v1081
        %v2557 = vunpack.c.h.s8.bf16 %v1081
        %v2558 = vunpack.c.l.s8.bf16 %v1082
        %v2559 = vunpack.c.h.s8.bf16 %v1082
        %v2560 = vunpack.c.l.s8.bf16 %v1083
        %v2561 = vunpack.c.h.s8.bf16 %v1083
        %v2562 = vunpack.c.l.s8.bf16 %v1084
        %v2563 = vunpack.c.h.s8.bf16 %v1084
        %v2564 = vunpack.c.l.s8.bf16 %v1085
        %v2565 = vunpack.c.h.s8.bf16 %v1085
        %v2566 = vunpack.c.l.s8.bf16 %v1086
        %v2567 = vunpack.c.h.s8.bf16 %v1086
        %v2568 = vunpack.c.l.s8.bf16 %v1087
        %v2569 = vunpack.c.h.s8.bf16 %v1087
        %v2570 = vunpack.c.l.s8.bf16 %v1088
        %v2571 = vunpack.c.h.s8.bf16 %v1088
        %v2572 = vunpack.c.l.s8.bf16 %v1089
        %v2573 = vunpack.c.h.s8.bf16 %v1089
        %v2574 = vunpack.c.l.s8.bf16 %v1090
        %v2575 = vunpack.c.h.s8.bf16 %v1090
        %v2576 = vunpack.c.l.s8.bf16 %v1091
        %v2577 = vunpack.c.h.s8.bf16 %v1091
        %v2578 = vunpack.c.l.s8.bf16 %v1092
        %v2579 = vunpack.c.h.s8.bf16 %v1092
        %v2580 = vunpack.c.l.s8.bf16 %v1093
        %v2581 = vunpack.c.h.s8.bf16 %v1093
        %v2582 = vunpack.c.l.s8.bf16 %v1094
        %v2583 = vunpack.c.h.s8.bf16 %v1094
        %v2584 = vunpack.c.l.s8.bf16 %v1095
        %v2585 = vunpack.c.h.s8.bf16 %v1095
        %v2586 = vunpack.c.l.s8.bf16 %v1096
        %v2587 = vunpack.c.h.s8.bf16 %v1096
        %v2588 = vunpack.c.l.s8.bf16 %v1097
        %v2589 = vunpack.c.h.s8.bf16 %v1097
        %v2590 = vunpack.c.l.s8.bf16 %v1098
        %v2591 = vunpack.c.h.s8.bf16 %v1098
        %v2592 = vunpack.c.l.s8.bf16 %v1099
        %v2593 = vunpack.c.h.s8.bf16 %v1099
        %v2594 = vunpack.c.l.s8.bf16 %v1100
        %v2595 = vunpack.c.h.s8.bf16 %v1100
        %v2596 = vunpack.c.l.s8.bf16 %v1101
        %v2597 = vunpack.c.h.s8.bf16 %v1101
        %v2598 = vunpack.c.l.s8.bf16 %v1102
        %v2599 = vunpack.c.h.s8.bf16 %v1102
        %v2600 = vunpack.c.l.s8.bf16 %v1103
        %v2601 = vunpack.c.h.s8.bf16 %v1103
        %v2602 = vunpack.c.l.s8.bf16 %v1104
        %v2603 = vunpack.c.h.s8.bf16 %v1104
        %v2604 = vunpack.c.l.s8.bf16 %v1105
        %v2605 = vunpack.c.h.s8.bf16 %v1105
        %v2606 = vunpack.c.l.s8.bf16 %v1106
        %v2607 = vunpack.c.h.s8.bf16 %v1106
        %v2608 = vunpack.c.l.s8.bf16 %v1107
        %v2609 = vunpack.c.h.s8.bf16 %v1107
        %v2610 = vunpack.c.l.s8.bf16 %v1108
        %v2611 = vunpack.c.h.s8.bf16 %v1108
        %v2612 = vunpack.c.l.s8.bf16 %v1109
        %v2613 = vunpack.c.h.s8.bf16 %v1109
        %v2614 = vunpack.c.l.s8.bf16 %v1110
        %v2615 = vunpack.c.h.s8.bf16 %v1110
        %v2616 = vunpack.c.l.s8.bf16 %v1111
        %v2617 = vunpack.c.h.s8.bf16 %v1111
        %v2618 = vunpack.c.l.s8.bf16 %v1112
        %v2619 = vunpack.c.h.s8.bf16 %v1112
        %v2620 = vunpack.c.l.s8.bf16 %v1113
        %v2621 = vunpack.c.h.s8.bf16 %v1113
        %v2622 = vunpack.c.l.s8.bf16 %v1114
        %v2623 = vunpack.c.h.s8.bf16 %v1114
        %v2624 = vunpack.c.l.s8.bf16 %v1115
        %v2625 = vunpack.c.h.s8.bf16 %v1115
        %v2626 = vunpack.c.l.s8.bf16 %v1116
        %v2627 = vunpack.c.h.s8.bf16 %v1116
        %v2628 = vunpack.c.l.s8.bf16 %v1117
        %v2629 = vunpack.c.h.s8.bf16 %v1117
        %v2630 = vunpack.c.l.s8.bf16 %v1118
        %v2631 = vunpack.c.h.s8.bf16 %v1118
        %v2632 = vunpack.c.l.s8.bf16 %v1119
        %v2633 = vunpack.c.h.s8.bf16 %v1119
        %v2634 = vunpack.c.l.s8.bf16 %v1120
        %v2635 = vunpack.c.h.s8.bf16 %v1120
        %v2636 = vunpack.c.l.s8.bf16 %v1121
        %v2637 = vunpack.c.h.s8.bf16 %v1121
        %v2638 = vunpack.c.l.s8.bf16 %v1122
        %v2639 = vunpack.c.h.s8.bf16 %v1122
        %v2640 = vunpack.c.l.s8.bf16 %v1123
        %v2641 = vunpack.c.h.s8.bf16 %v1123
        %v2642 = vunpack.c.l.s8.bf16 %v1124
        %v2643 = vunpack.c.h.s8.bf16 %v1124
        %v2644 = vunpack.c.l.s8.bf16 %v1125
        %v2645 = vunpack.c.h.s8.bf16 %v1125
        %v2646 = vunpack.c.l.s8.bf16 %v1126
        %v2647 = vunpack.c.h.s8.bf16 %v1126
        %v2648 = vunpack.c.l.s8.bf16 %v1127
        %v2649 = vunpack.c.h.s8.bf16 %v1127
        %v2650 = vunpack.c.l.s8.bf16 %v1128
        %v2651 = vunpack.c.h.s8.bf16 %v1128
        %v2652 = vunpack.c.l.s8.bf16 %v1129
        %v2653 = vunpack.c.h.s8.bf16 %v1129
        %v2654 = vunpack.c.l.s8.bf16 %v1130
        %v2655 = vunpack.c.h.s8.bf16 %v1130
        %v2656 = vunpack.c.l.s8.bf16 %v1131
        %v2657 = vunpack.c.h.s8.bf16 %v1131
        %v2658 = vunpack.c.l.s8.bf16 %v1132
        %v2659 = vunpack.c.h.s8.bf16 %v1132
        %v2660 = vunpack.c.l.s8.bf16 %v1133
        %v2661 = vunpack.c.h.s8.bf16 %v1133
        %v2662 = vunpack.c.l.s8.bf16 %v1134
        %v2663 = vunpack.c.h.s8.bf16 %v1134
        %v2664 = vunpack.c.l.s8.bf16 %v1135
        %v2665 = vunpack.c.h.s8.bf16 %v1135
        %v2666 = vunpack.c.l.s8.bf16 %v1136
        %v2667 = vunpack.c.h.s8.bf16 %v1136
        %v2668 = vunpack.c.l.s8.bf16 %v1137
        %v2669 = vunpack.c.h.s8.bf16 %v1137
        %v2670 = vunpack.c.l.s8.bf16 %v1138
        %v2671 = vunpack.c.h.s8.bf16 %v1138
        %v2672 = vunpack.c.l.s8.bf16 %v1139
        %v2673 = vunpack.c.h.s8.bf16 %v1139
        %v2674 = vunpack.c.l.s8.bf16 %v1140
        %v2675 = vunpack.c.h.s8.bf16 %v1140
        %v2676 = vunpack.c.l.s8.bf16 %v1141
        %v2677 = vunpack.c.h.s8.bf16 %v1141
        %v2678 = vunpack.c.l.s8.bf16 %v1142
        %v2679 = vunpack.c.h.s8.bf16 %v1142
        %v2680 = vunpack.c.l.s8.bf16 %v1143
        %v2681 = vunpack.c.h.s8.bf16 %v1143
        %v2682 = vunpack.c.l.s8.bf16 %v1144
        %v2683 = vunpack.c.h.s8.bf16 %v1144
        %v2684 = vunpack.c.l.s8.bf16 %v1145
        %v2685 = vunpack.c.h.s8.bf16 %v1145
        %v2686 = vunpack.c.l.s8.bf16 %v1146
        %v2687 = vunpack.c.h.s8.bf16 %v1146
        %v2688 = vunpack.c.l.s8.bf16 %v1147
        %v2689 = vunpack.c.h.s8.bf16 %v1147
        %v2690 = vunpack.c.l.s8.bf16 %v1148
        %v2691 = vunpack.c.h.s8.bf16 %v1148
        %v2692 = vunpack.c.l.s8.bf16 %v1149
        %v2693 = vunpack.c.h.s8.bf16 %v1149
        %v2694 = vunpack.c.l.s8.bf16 %v1150
        %v2695 = vunpack.c.h.s8.bf16 %v1150
        %v2696 = vunpack.c.l.s8.bf16 %v1151
        %v2697 = vunpack.c.h.s8.bf16 %v1151
        %v2698 = vunpack.c.l.s8.bf16 %v1152
        %v2699 = vunpack.c.h.s8.bf16 %v1152
        %v2700 = vunpack.c.l.s8.bf16 %v1153
        %v2701 = vunpack.c.h.s8.bf16 %v1153
        %v2702 = vunpack.c.l.s8.bf16 %v1154
        %v2703 = vunpack.c.h.s8.bf16 %v1154
        %v2704 = vunpack.c.l.s8.bf16 %v1155
        %v2705 = vunpack.c.h.s8.bf16 %v1155
        %v2706 = vunpack.c.l.s8.bf16 %v1156
        %v2707 = vunpack.c.h.s8.bf16 %v1156
        %v2708 = vunpack.c.l.s8.bf16 %v1157
        %v2709 = vunpack.c.h.s8.bf16 %v1157
        %v2710 = vunpack.c.l.s8.bf16 %v1158
        %v2711 = vunpack.c.h.s8.bf16 %v1158
        %v2712 = vunpack.c.l.s8.bf16 %v1159
        %v2713 = vunpack.c.h.s8.bf16 %v1159
        %v2714 = vunpack.c.l.s8.bf16 %v1160
        %v2715 = vunpack.c.h.s8.bf16 %v1160
        %v2716 = vunpack.c.l.s8.bf16 %v1161
        %v2717 = vunpack.c.h.s8.bf16 %v1161
        %v2718 = vunpack.c.l.s8.bf16 %v1162
        %v2719 = vunpack.c.h.s8.bf16 %v1162
        %v2720 = vunpack.c.l.s8.bf16 %v1163
        %v2721 = vunpack.c.h.s8.bf16 %v1163
        %v2722 = vunpack.c.l.s8.bf16 %v1164
        %v2723 = vunpack.c.h.s8.bf16 %v1164
        %v2724 = vunpack.c.l.s8.bf16 %v1165
        %v2725 = vunpack.c.h.s8.bf16 %v1165
        %v2726 = vunpack.c.l.s8.bf16 %v1166
        %v2727 = vunpack.c.h.s8.bf16 %v1166
        %v2728 = vunpack.c.l.s8.bf16 %v1167
        %v2729 = vunpack.c.h.s8.bf16 %v1167
        %v2730 = vunpack.c.l.s8.bf16 %v1168
        %v2731 = vunpack.c.h.s8.bf16 %v1168
        %v2732 = vunpack.c.l.s8.bf16 %v1169
        %v2733 = vunpack.c.h.s8.bf16 %v1169
        %v2734 = vunpack.c.l.s8.bf16 %v1170
        %v2735 = vunpack.c.h.s8.bf16 %v1170
        %v2736 = vunpack.c.l.s8.bf16 %v1171
        %v2737 = vunpack.c.h.s8.bf16 %v1171
        %v2738 = vunpack.c.l.s8.bf16 %v1172
        %v2739 = vunpack.c.h.s8.bf16 %v1172
        %v2740 = vunpack.c.l.s8.bf16 %v1173
        %v2741 = vunpack.c.h.s8.bf16 %v1173
        %v2742 = vunpack.c.l.s8.bf16 %v1174
        %v2743 = vunpack.c.h.s8.bf16 %v1174
        %v2744 = vunpack.c.l.s8.bf16 %v1175
        %v2745 = vunpack.c.h.s8.bf16 %v1175
        %v2746 = vunpack.c.l.s8.bf16 %v1176
        %v2747 = vunpack.c.h.s8.bf16 %v1176
        %v2748 = vunpack.c.l.s8.bf16 %v1177
        %v2749 = vunpack.c.h.s8.bf16 %v1177
        %v2750 = vunpack.c.l.s8.bf16 %v1178
        %v2751 = vunpack.c.h.s8.bf16 %v1178
        %v2752 = vunpack.c.l.s8.bf16 %v1179
        %v2753 = vunpack.c.h.s8.bf16 %v1179
        %v2754 = vunpack.c.l.s8.bf16 %v1180
        %v2755 = vunpack.c.h.s8.bf16 %v1180
        %v2756 = vunpack.c.l.s8.bf16 %v1181
        %v2757 = vunpack.c.h.s8.bf16 %v1181
        %v2783 = vcombine.high %v369, %v369
        %v2785 = vunpack.c.l.s4 1966171168
        %v2786 = vunpack.c.0.s8 %v2785
        %v2787 = vlaneseq
        %v2788 = vshrl.u32 %v2787, 7
        %v2789 = vsub.s32 %v2786, %v2788
        %v2790 = vrot.slane %v369, %v2789
        %v2792 = vunpack.c.l.s4 1966171168
        %v2793 = vunpack.c.0.s8 %v2792
        %v2794 = vlaneseq
        %v2795 = vshrl.u32 %v2794, 7
        %v2796 = vsub.s32 %v2793, %v2795
        %v2797 = vrot.slane %v2783, %v2796
        %v2798 = vcombine.high %v2790, %v2790
        %v2799 = vcombine.high %v2797, %v2797
        %v2801 = vunpack.c.l.s4 1966171168
        %v2802 = vunpack.c.0.s8 %v2801
        %v2803 = vlaneseq
        %v2804 = vshrl.u32 %v2803, 7
        %v2805 = vsub.s32 %v2802, %v2804
        %v2806 = vrot.slane %v2790, %v2805
        %v2808 = vunpack.c.l.s4 1966171168
        %v2809 = vunpack.c.0.s8 %v2808
        %v2810 = vlaneseq
        %v2811 = vshrl.u32 %v2810, 7
        %v2812 = vsub.s32 %v2809, %v2811
        %v2813 = vrot.slane %v2797, %v2812
        %v2815 = vunpack.c.l.s4 1966171168
        %v2816 = vunpack.c.0.s8 %v2815
        %v2817 = vlaneseq
        %v2818 = vshrl.u32 %v2817, 7
        %v2819 = vsub.s32 %v2816, %v2818
        %v2820 = vrot.slane %v2798, %v2819
        %v2822 = vunpack.c.l.s4 1966171168
        %v2823 = vunpack.c.0.s8 %v2822
        %v2824 = vlaneseq
        %v2825 = vshrl.u32 %v2824, 7
        %v2826 = vsub.s32 %v2823, %v2825
        %v2827 = vrot.slane %v2799, %v2826
        %v2828 = vcombine.high %v2806, %v2806
        %v2829 = vcombine.high %v2813, %v2813
        %v2830 = vcombine.high %v2820, %v2820
        %v2831 = vcombine.high %v2827, %v2827
        %v2832 = vcombine.high %v370, %v370
        %v2834 = vunpack.c.l.s4 1966171168
        %v2835 = vunpack.c.0.s8 %v2834
        %v2836 = vlaneseq
        %v2837 = vshrl.u32 %v2836, 7
        %v2838 = vsub.s32 %v2835, %v2837
        %v2839 = vrot.slane %v370, %v2838
        %v2841 = vunpack.c.l.s4 1966171168
        %v2842 = vunpack.c.0.s8 %v2841
        %v2843 = vlaneseq
        %v2844 = vshrl.u32 %v2843, 7
        %v2845 = vsub.s32 %v2842, %v2844
        %v2846 = vrot.slane %v2832, %v2845
        %v2847 = vcombine.high %v2839, %v2839
        %v2848 = vcombine.high %v2846, %v2846
        %v2850 = vunpack.c.l.s4 1966171168
        %v2851 = vunpack.c.0.s8 %v2850
        %v2852 = vlaneseq
        %v2853 = vshrl.u32 %v2852, 7
        %v2854 = vsub.s32 %v2851, %v2853
        %v2855 = vrot.slane %v2839, %v2854
        %v2857 = vunpack.c.l.s4 1966171168
        %v2858 = vunpack.c.0.s8 %v2857
        %v2859 = vlaneseq
        %v2860 = vshrl.u32 %v2859, 7
        %v2861 = vsub.s32 %v2858, %v2860
        %v2862 = vrot.slane %v2846, %v2861
        %v2864 = vunpack.c.l.s4 1966171168
        %v2865 = vunpack.c.0.s8 %v2864
        %v2866 = vlaneseq
        %v2867 = vshrl.u32 %v2866, 7
        %v2868 = vsub.s32 %v2865, %v2867
        %v2869 = vrot.slane %v2847, %v2868
        %v2871 = vunpack.c.l.s4 1966171168
        %v2872 = vunpack.c.0.s8 %v2871
        %v2873 = vlaneseq
        %v2874 = vshrl.u32 %v2873, 7
        %v2875 = vsub.s32 %v2872, %v2874
        %v2876 = vrot.slane %v2848, %v2875
        %v2877 = vcombine.high %v2855, %v2855
        %v2878 = vcombine.high %v2862, %v2862
        %v2879 = vcombine.high %v2869, %v2869
        %v2880 = vcombine.high %v2876, %v2876
        %v2881 = vcombine.high %v371, %v371
        %v2883 = vunpack.c.l.s4 1966171168
        %v2884 = vunpack.c.0.s8 %v2883
        %v2885 = vlaneseq
        %v2886 = vshrl.u32 %v2885, 7
        %v2887 = vsub.s32 %v2884, %v2886
        %v2888 = vrot.slane %v371, %v2887
        %v2890 = vunpack.c.l.s4 1966171168
        %v2891 = vunpack.c.0.s8 %v2890
        %v2892 = vlaneseq
        %v2893 = vshrl.u32 %v2892, 7
        %v2894 = vsub.s32 %v2891, %v2893
        %v2895 = vrot.slane %v2881, %v2894
        %v2896 = vcombine.high %v2888, %v2888
        %v2897 = vcombine.high %v2895, %v2895
        %v2899 = vunpack.c.l.s4 1966171168
        %v2900 = vunpack.c.0.s8 %v2899
        %v2901 = vlaneseq
        %v2902 = vshrl.u32 %v2901, 7
        %v2903 = vsub.s32 %v2900, %v2902
        %v2904 = vrot.slane %v2888, %v2903
        %v2906 = vunpack.c.l.s4 1966171168
        %v2907 = vunpack.c.0.s8 %v2906
        %v2908 = vlaneseq
        %v2909 = vshrl.u32 %v2908, 7
        %v2910 = vsub.s32 %v2907, %v2909
        %v2911 = vrot.slane %v2895, %v2910
        %v2913 = vunpack.c.l.s4 1966171168
        %v2914 = vunpack.c.0.s8 %v2913
        %v2915 = vlaneseq
        %v2916 = vshrl.u32 %v2915, 7
        %v2917 = vsub.s32 %v2914, %v2916
        %v2918 = vrot.slane %v2896, %v2917
        %v2920 = vunpack.c.l.s4 1966171168
        %v2921 = vunpack.c.0.s8 %v2920
        %v2922 = vlaneseq
        %v2923 = vshrl.u32 %v2922, 7
        %v2924 = vsub.s32 %v2921, %v2923
        %v2925 = vrot.slane %v2897, %v2924
        %v2926 = vcombine.high %v2904, %v2904
        %v2927 = vcombine.high %v2911, %v2911
        %v2928 = vcombine.high %v2918, %v2918
        %v2929 = vcombine.high %v2925, %v2925
        %v2930 = vcombine.high %v372, %v372
        %v2932 = vunpack.c.l.s4 1966171168
        %v2933 = vunpack.c.0.s8 %v2932
        %v2934 = vlaneseq
        %v2935 = vshrl.u32 %v2934, 7
        %v2936 = vsub.s32 %v2933, %v2935
        %v2937 = vrot.slane %v372, %v2936
        %v2939 = vunpack.c.l.s4 1966171168
        %v2940 = vunpack.c.0.s8 %v2939
        %v2941 = vlaneseq
        %v2942 = vshrl.u32 %v2941, 7
        %v2943 = vsub.s32 %v2940, %v2942
        %v2944 = vrot.slane %v2930, %v2943
        %v2945 = vcombine.high %v2937, %v2937
        %v2946 = vcombine.high %v2944, %v2944
        %v2948 = vunpack.c.l.s4 1966171168
        %v2949 = vunpack.c.0.s8 %v2948
        %v2950 = vlaneseq
        %v2951 = vshrl.u32 %v2950, 7
        %v2952 = vsub.s32 %v2949, %v2951
        %v2953 = vrot.slane %v2937, %v2952
        %v2955 = vunpack.c.l.s4 1966171168
        %v2956 = vunpack.c.0.s8 %v2955
        %v2957 = vlaneseq
        %v2958 = vshrl.u32 %v2957, 7
        %v2959 = vsub.s32 %v2956, %v2958
        %v2960 = vrot.slane %v2944, %v2959
        %v2962 = vunpack.c.l.s4 1966171168
        %v2963 = vunpack.c.0.s8 %v2962
        %v2964 = vlaneseq
        %v2965 = vshrl.u32 %v2964, 7
        %v2966 = vsub.s32 %v2963, %v2965
        %v2967 = vrot.slane %v2945, %v2966
        %v2969 = vunpack.c.l.s4 1966171168
        %v2970 = vunpack.c.0.s8 %v2969
        %v2971 = vlaneseq
        %v2972 = vshrl.u32 %v2971, 7
        %v2973 = vsub.s32 %v2970, %v2972
        %v2974 = vrot.slane %v2946, %v2973
        %v2975 = vcombine.high %v2953, %v2953
        %v2976 = vcombine.high %v2960, %v2960
        %v2977 = vcombine.high %v2967, %v2967
        %v2978 = vcombine.high %v2974, %v2974
        %v2979 = vcombine.high %v373, %v373
        %v2981 = vunpack.c.l.s4 1966171168
        %v2982 = vunpack.c.0.s8 %v2981
        %v2983 = vlaneseq
        %v2984 = vshrl.u32 %v2983, 7
        %v2985 = vsub.s32 %v2982, %v2984
        %v2986 = vrot.slane %v373, %v2985
        %v2988 = vunpack.c.l.s4 1966171168
        %v2989 = vunpack.c.0.s8 %v2988
        %v2990 = vlaneseq
        %v2991 = vshrl.u32 %v2990, 7
        %v2992 = vsub.s32 %v2989, %v2991
        %v2993 = vrot.slane %v2979, %v2992
        %v2994 = vcombine.high %v2986, %v2986
        %v2995 = vcombine.high %v2993, %v2993
        %v2997 = vunpack.c.l.s4 1966171168
        %v2998 = vunpack.c.0.s8 %v2997
        %v2999 = vlaneseq
        %v3000 = vshrl.u32 %v2999, 7
        %v3001 = vsub.s32 %v2998, %v3000
        %v3002 = vrot.slane %v2986, %v3001
        %v3004 = vunpack.c.l.s4 1966171168
        %v3005 = vunpack.c.0.s8 %v3004
        %v3006 = vlaneseq
        %v3007 = vshrl.u32 %v3006, 7
        %v3008 = vsub.s32 %v3005, %v3007
        %v3009 = vrot.slane %v2993, %v3008
        %v3011 = vunpack.c.l.s4 1966171168
        %v3012 = vunpack.c.0.s8 %v3011
        %v3013 = vlaneseq
        %v3014 = vshrl.u32 %v3013, 7
        %v3015 = vsub.s32 %v3012, %v3014
        %v3016 = vrot.slane %v2994, %v3015
        %v3018 = vunpack.c.l.s4 1966171168
        %v3019 = vunpack.c.0.s8 %v3018
        %v3020 = vlaneseq
        %v3021 = vshrl.u32 %v3020, 7
        %v3022 = vsub.s32 %v3019, %v3021
        %v3023 = vrot.slane %v2995, %v3022
        %v3024 = vcombine.high %v3002, %v3002
        %v3025 = vcombine.high %v3009, %v3009
        %v3026 = vcombine.high %v3016, %v3016
        %v3027 = vcombine.high %v3023, %v3023
        %v3028 = vcombine.high %v374, %v374
        %v3030 = vunpack.c.l.s4 1966171168
        %v3031 = vunpack.c.0.s8 %v3030
        %v3032 = vlaneseq
        %v3033 = vshrl.u32 %v3032, 7
        %v3034 = vsub.s32 %v3031, %v3033
        %v3035 = vrot.slane %v374, %v3034
        %v3037 = vunpack.c.l.s4 1966171168
        %v3038 = vunpack.c.0.s8 %v3037
        %v3039 = vlaneseq
        %v3040 = vshrl.u32 %v3039, 7
        %v3041 = vsub.s32 %v3038, %v3040
        %v3042 = vrot.slane %v3028, %v3041
        %v3043 = vcombine.high %v3035, %v3035
        %v3044 = vcombine.high %v3042, %v3042
        %v3046 = vunpack.c.l.s4 1966171168
        %v3047 = vunpack.c.0.s8 %v3046
        %v3048 = vlaneseq
        %v3049 = vshrl.u32 %v3048, 7
        %v3050 = vsub.s32 %v3047, %v3049
        %v3051 = vrot.slane %v3035, %v3050
        %v3053 = vunpack.c.l.s4 1966171168
        %v3054 = vunpack.c.0.s8 %v3053
        %v3055 = vlaneseq
        %v3056 = vshrl.u32 %v3055, 7
        %v3057 = vsub.s32 %v3054, %v3056
        %v3058 = vrot.slane %v3042, %v3057
        %v3060 = vunpack.c.l.s4 1966171168
        %v3061 = vunpack.c.0.s8 %v3060
        %v3062 = vlaneseq
        %v3063 = vshrl.u32 %v3062, 7
        %v3064 = vsub.s32 %v3061, %v3063
        %v3065 = vrot.slane %v3043, %v3064
        %v3067 = vunpack.c.l.s4 1966171168
        %v3068 = vunpack.c.0.s8 %v3067
        %v3069 = vlaneseq
        %v3070 = vshrl.u32 %v3069, 7
        %v3071 = vsub.s32 %v3068, %v3070
        %v3072 = vrot.slane %v3044, %v3071
        %v3073 = vcombine.high %v3051, %v3051
        %v3074 = vcombine.high %v3058, %v3058
        %v3075 = vcombine.high %v3065, %v3065
        %v3076 = vcombine.high %v3072, %v3072
        %v3077 = vcombine.high %v375, %v375
        %v3079 = vunpack.c.l.s4 1966171168
        %v3080 = vunpack.c.0.s8 %v3079
        %v3081 = vlaneseq
        %v3082 = vshrl.u32 %v3081, 7
        %v3083 = vsub.s32 %v3080, %v3082
        %v3084 = vrot.slane %v375, %v3083
        %v3086 = vunpack.c.l.s4 1966171168
        %v3087 = vunpack.c.0.s8 %v3086
        %v3088 = vlaneseq
        %v3089 = vshrl.u32 %v3088, 7
        %v3090 = vsub.s32 %v3087, %v3089
        %v3091 = vrot.slane %v3077, %v3090
        %v3092 = vcombine.high %v3084, %v3084
        %v3093 = vcombine.high %v3091, %v3091
        %v3095 = vunpack.c.l.s4 1966171168
        %v3096 = vunpack.c.0.s8 %v3095
        %v3097 = vlaneseq
        %v3098 = vshrl.u32 %v3097, 7
        %v3099 = vsub.s32 %v3096, %v3098
        %v3100 = vrot.slane %v3084, %v3099
        %v3102 = vunpack.c.l.s4 1966171168
        %v3103 = vunpack.c.0.s8 %v3102
        %v3104 = vlaneseq
        %v3105 = vshrl.u32 %v3104, 7
        %v3106 = vsub.s32 %v3103, %v3105
        %v3107 = vrot.slane %v3091, %v3106
        %v3109 = vunpack.c.l.s4 1966171168
        %v3110 = vunpack.c.0.s8 %v3109
        %v3111 = vlaneseq
        %v3112 = vshrl.u32 %v3111, 7
        %v3113 = vsub.s32 %v3110, %v3112
        %v3114 = vrot.slane %v3092, %v3113
        %v3116 = vunpack.c.l.s4 1966171168
        %v3117 = vunpack.c.0.s8 %v3116
        %v3118 = vlaneseq
        %v3119 = vshrl.u32 %v3118, 7
        %v3120 = vsub.s32 %v3117, %v3119
        %v3121 = vrot.slane %v3093, %v3120
        %v3122 = vcombine.high %v3100, %v3100
        %v3123 = vcombine.high %v3107, %v3107
        %v3124 = vcombine.high %v3114, %v3114
        %v3125 = vcombine.high %v3121, %v3121
        %v3126 = vcombine.high %v376, %v376
        %v3128 = vunpack.c.l.s4 1966171168
        %v3129 = vunpack.c.0.s8 %v3128
        %v3130 = vlaneseq
        %v3131 = vshrl.u32 %v3130, 7
        %v3132 = vsub.s32 %v3129, %v3131
        %v3133 = vrot.slane %v376, %v3132
        %v3135 = vunpack.c.l.s4 1966171168
        %v3136 = vunpack.c.0.s8 %v3135
        %v3137 = vlaneseq
        %v3138 = vshrl.u32 %v3137, 7
        %v3139 = vsub.s32 %v3136, %v3138
        %v3140 = vrot.slane %v3126, %v3139
        %v3141 = vcombine.high %v3133, %v3133
        %v3142 = vcombine.high %v3140, %v3140
        %v3144 = vunpack.c.l.s4 1966171168
        %v3145 = vunpack.c.0.s8 %v3144
        %v3146 = vlaneseq
        %v3147 = vshrl.u32 %v3146, 7
        %v3148 = vsub.s32 %v3145, %v3147
        %v3149 = vrot.slane %v3133, %v3148
        %v3151 = vunpack.c.l.s4 1966171168
        %v3152 = vunpack.c.0.s8 %v3151
        %v3153 = vlaneseq
        %v3154 = vshrl.u32 %v3153, 7
        %v3155 = vsub.s32 %v3152, %v3154
        %v3156 = vrot.slane %v3140, %v3155
        %v3158 = vunpack.c.l.s4 1966171168
        %v3159 = vunpack.c.0.s8 %v3158
        %v3160 = vlaneseq
        %v3161 = vshrl.u32 %v3160, 7
        %v3162 = vsub.s32 %v3159, %v3161
        %v3163 = vrot.slane %v3141, %v3162
        %v3165 = vunpack.c.l.s4 1966171168
        %v3166 = vunpack.c.0.s8 %v3165
        %v3167 = vlaneseq
        %v3168 = vshrl.u32 %v3167, 7
        %v3169 = vsub.s32 %v3166, %v3168
        %v3170 = vrot.slane %v3142, %v3169
        %v3171 = vcombine.high %v3149, %v3149
        %v3172 = vcombine.high %v3156, %v3156
        %v3173 = vcombine.high %v3163, %v3163
        %v3174 = vcombine.high %v3170, %v3170
        %v3175 = vcombine.high %v377, %v377
        %v3177 = vunpack.c.l.s4 1966171168
        %v3178 = vunpack.c.0.s8 %v3177
        %v3179 = vlaneseq
        %v3180 = vshrl.u32 %v3179, 7
        %v3181 = vsub.s32 %v3178, %v3180
        %v3182 = vrot.slane %v377, %v3181
        %v3184 = vunpack.c.l.s4 1966171168
        %v3185 = vunpack.c.0.s8 %v3184
        %v3186 = vlaneseq
        %v3187 = vshrl.u32 %v3186, 7
        %v3188 = vsub.s32 %v3185, %v3187
        %v3189 = vrot.slane %v3175, %v3188
        %v3190 = vcombine.high %v3182, %v3182
        %v3191 = vcombine.high %v3189, %v3189
        %v3193 = vunpack.c.l.s4 1966171168
        %v3194 = vunpack.c.0.s8 %v3193
        %v3195 = vlaneseq
        %v3196 = vshrl.u32 %v3195, 7
        %v3197 = vsub.s32 %v3194, %v3196
        %v3198 = vrot.slane %v3182, %v3197
        %v3200 = vunpack.c.l.s4 1966171168
        %v3201 = vunpack.c.0.s8 %v3200
        %v3202 = vlaneseq
        %v3203 = vshrl.u32 %v3202, 7
        %v3204 = vsub.s32 %v3201, %v3203
        %v3205 = vrot.slane %v3189, %v3204
        %v3207 = vunpack.c.l.s4 1966171168
        %v3208 = vunpack.c.0.s8 %v3207
        %v3209 = vlaneseq
        %v3210 = vshrl.u32 %v3209, 7
        %v3211 = vsub.s32 %v3208, %v3210
        %v3212 = vrot.slane %v3190, %v3211
        %v3214 = vunpack.c.l.s4 1966171168
        %v3215 = vunpack.c.0.s8 %v3214
        %v3216 = vlaneseq
        %v3217 = vshrl.u32 %v3216, 7
        %v3218 = vsub.s32 %v3215, %v3217
        %v3219 = vrot.slane %v3191, %v3218
        %v3220 = vcombine.high %v3198, %v3198
        %v3221 = vcombine.high %v3205, %v3205
        %v3222 = vcombine.high %v3212, %v3212
        %v3223 = vcombine.high %v3219, %v3219
        %v3224 = vcombine.high %v378, %v378
        %v3226 = vunpack.c.l.s4 1966171168
        %v3227 = vunpack.c.0.s8 %v3226
        %v3228 = vlaneseq
        %v3229 = vshrl.u32 %v3228, 7
        %v3230 = vsub.s32 %v3227, %v3229
        %v3231 = vrot.slane %v378, %v3230
        %v3233 = vunpack.c.l.s4 1966171168
        %v3234 = vunpack.c.0.s8 %v3233
        %v3235 = vlaneseq
        %v3236 = vshrl.u32 %v3235, 7
        %v3237 = vsub.s32 %v3234, %v3236
        %v3238 = vrot.slane %v3224, %v3237
        %v3239 = vcombine.high %v3231, %v3231
        %v3240 = vcombine.high %v3238, %v3238
        %v3242 = vunpack.c.l.s4 1966171168
        %v3243 = vunpack.c.0.s8 %v3242
        %v3244 = vlaneseq
        %v3245 = vshrl.u32 %v3244, 7
        %v3246 = vsub.s32 %v3243, %v3245
        %v3247 = vrot.slane %v3231, %v3246
        %v3249 = vunpack.c.l.s4 1966171168
        %v3250 = vunpack.c.0.s8 %v3249
        %v3251 = vlaneseq
        %v3252 = vshrl.u32 %v3251, 7
        %v3253 = vsub.s32 %v3250, %v3252
        %v3254 = vrot.slane %v3238, %v3253
        %v3256 = vunpack.c.l.s4 1966171168
        %v3257 = vunpack.c.0.s8 %v3256
        %v3258 = vlaneseq
        %v3259 = vshrl.u32 %v3258, 7
        %v3260 = vsub.s32 %v3257, %v3259
        %v3261 = vrot.slane %v3239, %v3260
        %v3263 = vunpack.c.l.s4 1966171168
        %v3264 = vunpack.c.0.s8 %v3263
        %v3265 = vlaneseq
        %v3266 = vshrl.u32 %v3265, 7
        %v3267 = vsub.s32 %v3264, %v3266
        %v3268 = vrot.slane %v3240, %v3267
        %v3269 = vcombine.high %v3247, %v3247
        %v3270 = vcombine.high %v3254, %v3254
        %v3271 = vcombine.high %v3261, %v3261
        %v3272 = vcombine.high %v3268, %v3268
        %v3273 = vcombine.high %v379, %v379
        %v3275 = vunpack.c.l.s4 1966171168
        %v3276 = vunpack.c.0.s8 %v3275
        %v3277 = vlaneseq
        %v3278 = vshrl.u32 %v3277, 7
        %v3279 = vsub.s32 %v3276, %v3278
        %v3280 = vrot.slane %v379, %v3279
        %v3282 = vunpack.c.l.s4 1966171168
        %v3283 = vunpack.c.0.s8 %v3282
        %v3284 = vlaneseq
        %v3285 = vshrl.u32 %v3284, 7
        %v3286 = vsub.s32 %v3283, %v3285
        %v3287 = vrot.slane %v3273, %v3286
        %v3288 = vcombine.high %v3280, %v3280
        %v3289 = vcombine.high %v3287, %v3287
        %v3291 = vunpack.c.l.s4 1966171168
        %v3292 = vunpack.c.0.s8 %v3291
        %v3293 = vlaneseq
        %v3294 = vshrl.u32 %v3293, 7
        %v3295 = vsub.s32 %v3292, %v3294
        %v3296 = vrot.slane %v3280, %v3295
        %v3298 = vunpack.c.l.s4 1966171168
        %v3299 = vunpack.c.0.s8 %v3298
        %v3300 = vlaneseq
        %v3301 = vshrl.u32 %v3300, 7
        %v3302 = vsub.s32 %v3299, %v3301
        %v3303 = vrot.slane %v3287, %v3302
        %v3305 = vunpack.c.l.s4 1966171168
        %v3306 = vunpack.c.0.s8 %v3305
        %v3307 = vlaneseq
        %v3308 = vshrl.u32 %v3307, 7
        %v3309 = vsub.s32 %v3306, %v3308
        %v3310 = vrot.slane %v3288, %v3309
        %v3312 = vunpack.c.l.s4 1966171168
        %v3313 = vunpack.c.0.s8 %v3312
        %v3314 = vlaneseq
        %v3315 = vshrl.u32 %v3314, 7
        %v3316 = vsub.s32 %v3313, %v3315
        %v3317 = vrot.slane %v3289, %v3316
        %v3318 = vcombine.high %v3296, %v3296
        %v3319 = vcombine.high %v3303, %v3303
        %v3320 = vcombine.high %v3310, %v3310
        %v3321 = vcombine.high %v3317, %v3317
        %v3322 = vcombine.high %v380, %v380
        %v3324 = vunpack.c.l.s4 1966171168
        %v3325 = vunpack.c.0.s8 %v3324
        %v3326 = vlaneseq
        %v3327 = vshrl.u32 %v3326, 7
        %v3328 = vsub.s32 %v3325, %v3327
        %v3329 = vrot.slane %v380, %v3328
        %v3331 = vunpack.c.l.s4 1966171168
        %v3332 = vunpack.c.0.s8 %v3331
        %v3333 = vlaneseq
        %v3334 = vshrl.u32 %v3333, 7
        %v3335 = vsub.s32 %v3332, %v3334
        %v3336 = vrot.slane %v3322, %v3335
        %v3337 = vcombine.high %v3329, %v3329
        %v3338 = vcombine.high %v3336, %v3336
        %v3340 = vunpack.c.l.s4 1966171168
        %v3341 = vunpack.c.0.s8 %v3340
        %v3342 = vlaneseq
        %v3343 = vshrl.u32 %v3342, 7
        %v3344 = vsub.s32 %v3341, %v3343
        %v3345 = vrot.slane %v3329, %v3344
        %v3347 = vunpack.c.l.s4 1966171168
        %v3348 = vunpack.c.0.s8 %v3347
        %v3349 = vlaneseq
        %v3350 = vshrl.u32 %v3349, 7
        %v3351 = vsub.s32 %v3348, %v3350
        %v3352 = vrot.slane %v3336, %v3351
        %v3354 = vunpack.c.l.s4 1966171168
        %v3355 = vunpack.c.0.s8 %v3354
        %v3356 = vlaneseq
        %v3357 = vshrl.u32 %v3356, 7
        %v3358 = vsub.s32 %v3355, %v3357
        %v3359 = vrot.slane %v3337, %v3358
        %v3361 = vunpack.c.l.s4 1966171168
        %v3362 = vunpack.c.0.s8 %v3361
        %v3363 = vlaneseq
        %v3364 = vshrl.u32 %v3363, 7
        %v3365 = vsub.s32 %v3362, %v3364
        %v3366 = vrot.slane %v3338, %v3365
        %v3367 = vcombine.high %v3345, %v3345
        %v3368 = vcombine.high %v3352, %v3352
        %v3369 = vcombine.high %v3359, %v3359
        %v3370 = vcombine.high %v3366, %v3366
        %v3371 = vcombine.high %v381, %v381
        %v3373 = vunpack.c.l.s4 1966171168
        %v3374 = vunpack.c.0.s8 %v3373
        %v3375 = vlaneseq
        %v3376 = vshrl.u32 %v3375, 7
        %v3377 = vsub.s32 %v3374, %v3376
        %v3378 = vrot.slane %v381, %v3377
        %v3380 = vunpack.c.l.s4 1966171168
        %v3381 = vunpack.c.0.s8 %v3380
        %v3382 = vlaneseq
        %v3383 = vshrl.u32 %v3382, 7
        %v3384 = vsub.s32 %v3381, %v3383
        %v3385 = vrot.slane %v3371, %v3384
        %v3386 = vcombine.high %v3378, %v3378
        %v3387 = vcombine.high %v3385, %v3385
        %v3389 = vunpack.c.l.s4 1966171168
        %v3390 = vunpack.c.0.s8 %v3389
        %v3391 = vlaneseq
        %v3392 = vshrl.u32 %v3391, 7
        %v3393 = vsub.s32 %v3390, %v3392
        %v3394 = vrot.slane %v3378, %v3393
        %v3396 = vunpack.c.l.s4 1966171168
        %v3397 = vunpack.c.0.s8 %v3396
        %v3398 = vlaneseq
        %v3399 = vshrl.u32 %v3398, 7
        %v3400 = vsub.s32 %v3397, %v3399
        %v3401 = vrot.slane %v3385, %v3400
        %v3403 = vunpack.c.l.s4 1966171168
        %v3404 = vunpack.c.0.s8 %v3403
        %v3405 = vlaneseq
        %v3406 = vshrl.u32 %v3405, 7
        %v3407 = vsub.s32 %v3404, %v3406
        %v3408 = vrot.slane %v3386, %v3407
        %v3410 = vunpack.c.l.s4 1966171168
        %v3411 = vunpack.c.0.s8 %v3410
        %v3412 = vlaneseq
        %v3413 = vshrl.u32 %v3412, 7
        %v3414 = vsub.s32 %v3411, %v3413
        %v3415 = vrot.slane %v3387, %v3414
        %v3416 = vcombine.high %v3394, %v3394
        %v3417 = vcombine.high %v3401, %v3401
        %v3418 = vcombine.high %v3408, %v3408
        %v3419 = vcombine.high %v3415, %v3415
        %v3420 = vcombine.high %v382, %v382
        %v3422 = vunpack.c.l.s4 1966171168
        %v3423 = vunpack.c.0.s8 %v3422
        %v3424 = vlaneseq
        %v3425 = vshrl.u32 %v3424, 7
        %v3426 = vsub.s32 %v3423, %v3425
        %v3427 = vrot.slane %v382, %v3426
        %v3429 = vunpack.c.l.s4 1966171168
        %v3430 = vunpack.c.0.s8 %v3429
        %v3431 = vlaneseq
        %v3432 = vshrl.u32 %v3431, 7
        %v3433 = vsub.s32 %v3430, %v3432
        %v3434 = vrot.slane %v3420, %v3433
        %v3435 = vcombine.high %v3427, %v3427
        %v3436 = vcombine.high %v3434, %v3434
        %v3438 = vunpack.c.l.s4 1966171168
        %v3439 = vunpack.c.0.s8 %v3438
        %v3440 = vlaneseq
        %v3441 = vshrl.u32 %v3440, 7
        %v3442 = vsub.s32 %v3439, %v3441
        %v3443 = vrot.slane %v3427, %v3442
        %v3445 = vunpack.c.l.s4 1966171168
        %v3446 = vunpack.c.0.s8 %v3445
        %v3447 = vlaneseq
        %v3448 = vshrl.u32 %v3447, 7
        %v3449 = vsub.s32 %v3446, %v3448
        %v3450 = vrot.slane %v3434, %v3449
        %v3452 = vunpack.c.l.s4 1966171168
        %v3453 = vunpack.c.0.s8 %v3452
        %v3454 = vlaneseq
        %v3455 = vshrl.u32 %v3454, 7
        %v3456 = vsub.s32 %v3453, %v3455
        %v3457 = vrot.slane %v3435, %v3456
        %v3459 = vunpack.c.l.s4 1966171168
        %v3460 = vunpack.c.0.s8 %v3459
        %v3461 = vlaneseq
        %v3462 = vshrl.u32 %v3461, 7
        %v3463 = vsub.s32 %v3460, %v3462
        %v3464 = vrot.slane %v3436, %v3463
        %v3465 = vcombine.high %v3443, %v3443
        %v3466 = vcombine.high %v3450, %v3450
        %v3467 = vcombine.high %v3457, %v3457
        %v3468 = vcombine.high %v3464, %v3464
        %v3469 = vcombine.high %v383, %v383
        %v3471 = vunpack.c.l.s4 1966171168
        %v3472 = vunpack.c.0.s8 %v3471
        %v3473 = vlaneseq
        %v3474 = vshrl.u32 %v3473, 7
        %v3475 = vsub.s32 %v3472, %v3474
        %v3476 = vrot.slane %v383, %v3475
        %v3478 = vunpack.c.l.s4 1966171168
        %v3479 = vunpack.c.0.s8 %v3478
        %v3480 = vlaneseq
        %v3481 = vshrl.u32 %v3480, 7
        %v3482 = vsub.s32 %v3479, %v3481
        %v3483 = vrot.slane %v3469, %v3482
        %v3484 = vcombine.high %v3476, %v3476
        %v3485 = vcombine.high %v3483, %v3483
        %v3487 = vunpack.c.l.s4 1966171168
        %v3488 = vunpack.c.0.s8 %v3487
        %v3489 = vlaneseq
        %v3490 = vshrl.u32 %v3489, 7
        %v3491 = vsub.s32 %v3488, %v3490
        %v3492 = vrot.slane %v3476, %v3491
        %v3494 = vunpack.c.l.s4 1966171168
        %v3495 = vunpack.c.0.s8 %v3494
        %v3496 = vlaneseq
        %v3497 = vshrl.u32 %v3496, 7
        %v3498 = vsub.s32 %v3495, %v3497
        %v3499 = vrot.slane %v3483, %v3498
        %v3501 = vunpack.c.l.s4 1966171168
        %v3502 = vunpack.c.0.s8 %v3501
        %v3503 = vlaneseq
        %v3504 = vshrl.u32 %v3503, 7
        %v3505 = vsub.s32 %v3502, %v3504
        %v3506 = vrot.slane %v3484, %v3505
        %v3508 = vunpack.c.l.s4 1966171168
        %v3509 = vunpack.c.0.s8 %v3508
        %v3510 = vlaneseq
        %v3511 = vshrl.u32 %v3510, 7
        %v3512 = vsub.s32 %v3509, %v3511
        %v3513 = vrot.slane %v3485, %v3512
        %v3514 = vcombine.high %v3492, %v3492
        %v3515 = vcombine.high %v3499, %v3499
        %v3516 = vcombine.high %v3506, %v3506
        %v3517 = vcombine.high %v3513, %v3513
        %v3518 = vcombine.high %v384, %v384
        %v3520 = vunpack.c.l.s4 1966171168
        %v3521 = vunpack.c.0.s8 %v3520
        %v3522 = vlaneseq
        %v3523 = vshrl.u32 %v3522, 7
        %v3524 = vsub.s32 %v3521, %v3523
        %v3525 = vrot.slane %v384, %v3524
        %v3527 = vunpack.c.l.s4 1966171168
        %v3528 = vunpack.c.0.s8 %v3527
        %v3529 = vlaneseq
        %v3530 = vshrl.u32 %v3529, 7
        %v3531 = vsub.s32 %v3528, %v3530
        %v3532 = vrot.slane %v3518, %v3531
        %v3533 = vcombine.high %v3525, %v3525
        %v3534 = vcombine.high %v3532, %v3532
        %v3536 = vunpack.c.l.s4 1966171168
        %v3537 = vunpack.c.0.s8 %v3536
        %v3538 = vlaneseq
        %v3539 = vshrl.u32 %v3538, 7
        %v3540 = vsub.s32 %v3537, %v3539
        %v3541 = vrot.slane %v3525, %v3540
        %v3543 = vunpack.c.l.s4 1966171168
        %v3544 = vunpack.c.0.s8 %v3543
        %v3545 = vlaneseq
        %v3546 = vshrl.u32 %v3545, 7
        %v3547 = vsub.s32 %v3544, %v3546
        %v3548 = vrot.slane %v3532, %v3547
        %v3550 = vunpack.c.l.s4 1966171168
        %v3551 = vunpack.c.0.s8 %v3550
        %v3552 = vlaneseq
        %v3553 = vshrl.u32 %v3552, 7
        %v3554 = vsub.s32 %v3551, %v3553
        %v3555 = vrot.slane %v3533, %v3554
        %v3557 = vunpack.c.l.s4 1966171168
        %v3558 = vunpack.c.0.s8 %v3557
        %v3559 = vlaneseq
        %v3560 = vshrl.u32 %v3559, 7
        %v3561 = vsub.s32 %v3558, %v3560
        %v3562 = vrot.slane %v3534, %v3561
        %v3563 = vcombine.high %v3541, %v3541
        %v3564 = vcombine.high %v3548, %v3548
        %v3565 = vcombine.high %v3555, %v3555
        %v3566 = vcombine.high %v3562, %v3562
        %v3567 = vcombine.high %v385, %v385
        %v3569 = vunpack.c.l.s4 1966171168
        %v3570 = vunpack.c.0.s8 %v3569
        %v3571 = vlaneseq
        %v3572 = vshrl.u32 %v3571, 7
        %v3573 = vsub.s32 %v3570, %v3572
        %v3574 = vrot.slane %v385, %v3573
        %v3576 = vunpack.c.l.s4 1966171168
        %v3577 = vunpack.c.0.s8 %v3576
        %v3578 = vlaneseq
        %v3579 = vshrl.u32 %v3578, 7
        %v3580 = vsub.s32 %v3577, %v3579
        %v3581 = vrot.slane %v3567, %v3580
        %v3582 = vcombine.high %v3574, %v3574
        %v3583 = vcombine.high %v3581, %v3581
        %v3585 = vunpack.c.l.s4 1966171168
        %v3586 = vunpack.c.0.s8 %v3585
        %v3587 = vlaneseq
        %v3588 = vshrl.u32 %v3587, 7
        %v3589 = vsub.s32 %v3586, %v3588
        %v3590 = vrot.slane %v3574, %v3589
        %v3592 = vunpack.c.l.s4 1966171168
        %v3593 = vunpack.c.0.s8 %v3592
        %v3594 = vlaneseq
        %v3595 = vshrl.u32 %v3594, 7
        %v3596 = vsub.s32 %v3593, %v3595
        %v3597 = vrot.slane %v3581, %v3596
        %v3599 = vunpack.c.l.s4 1966171168
        %v3600 = vunpack.c.0.s8 %v3599
        %v3601 = vlaneseq
        %v3602 = vshrl.u32 %v3601, 7
        %v3603 = vsub.s32 %v3600, %v3602
        %v3604 = vrot.slane %v3582, %v3603
        %v3606 = vunpack.c.l.s4 1966171168
        %v3607 = vunpack.c.0.s8 %v3606
        %v3608 = vlaneseq
        %v3609 = vshrl.u32 %v3608, 7
        %v3610 = vsub.s32 %v3607, %v3609
        %v3611 = vrot.slane %v3583, %v3610
        %v3612 = vcombine.high %v3590, %v3590
        %v3613 = vcombine.high %v3597, %v3597
        %v3614 = vcombine.high %v3604, %v3604
        %v3615 = vcombine.high %v3611, %v3611
        %v3616 = vcombine.high %v386, %v386
        %v3618 = vunpack.c.l.s4 1966171168
        %v3619 = vunpack.c.0.s8 %v3618
        %v3620 = vlaneseq
        %v3621 = vshrl.u32 %v3620, 7
        %v3622 = vsub.s32 %v3619, %v3621
        %v3623 = vrot.slane %v386, %v3622
        %v3625 = vunpack.c.l.s4 1966171168
        %v3626 = vunpack.c.0.s8 %v3625
        %v3627 = vlaneseq
        %v3628 = vshrl.u32 %v3627, 7
        %v3629 = vsub.s32 %v3626, %v3628
        %v3630 = vrot.slane %v3616, %v3629
        %v3631 = vcombine.high %v3623, %v3623
        %v3632 = vcombine.high %v3630, %v3630
        %v3634 = vunpack.c.l.s4 1966171168
        %v3635 = vunpack.c.0.s8 %v3634
        %v3636 = vlaneseq
        %v3637 = vshrl.u32 %v3636, 7
        %v3638 = vsub.s32 %v3635, %v3637
        %v3639 = vrot.slane %v3623, %v3638
        %v3641 = vunpack.c.l.s4 1966171168
        %v3642 = vunpack.c.0.s8 %v3641
        %v3643 = vlaneseq
        %v3644 = vshrl.u32 %v3643, 7
        %v3645 = vsub.s32 %v3642, %v3644
        %v3646 = vrot.slane %v3630, %v3645
        %v3648 = vunpack.c.l.s4 1966171168
        %v3649 = vunpack.c.0.s8 %v3648
        %v3650 = vlaneseq
        %v3651 = vshrl.u32 %v3650, 7
        %v3652 = vsub.s32 %v3649, %v3651
        %v3653 = vrot.slane %v3631, %v3652
        %v3655 = vunpack.c.l.s4 1966171168
        %v3656 = vunpack.c.0.s8 %v3655
        %v3657 = vlaneseq
        %v3658 = vshrl.u32 %v3657, 7
        %v3659 = vsub.s32 %v3656, %v3658
        %v3660 = vrot.slane %v3632, %v3659
        %v3661 = vcombine.high %v3639, %v3639
        %v3662 = vcombine.high %v3646, %v3646
        %v3663 = vcombine.high %v3653, %v3653
        %v3664 = vcombine.high %v3660, %v3660
        %v3665 = vcombine.high %v387, %v387
        %v3667 = vunpack.c.l.s4 1966171168
        %v3668 = vunpack.c.0.s8 %v3667
        %v3669 = vlaneseq
        %v3670 = vshrl.u32 %v3669, 7
        %v3671 = vsub.s32 %v3668, %v3670
        %v3672 = vrot.slane %v387, %v3671
        %v3674 = vunpack.c.l.s4 1966171168
        %v3675 = vunpack.c.0.s8 %v3674
        %v3676 = vlaneseq
        %v3677 = vshrl.u32 %v3676, 7
        %v3678 = vsub.s32 %v3675, %v3677
        %v3679 = vrot.slane %v3665, %v3678
        %v3680 = vcombine.high %v3672, %v3672
        %v3681 = vcombine.high %v3679, %v3679
        %v3683 = vunpack.c.l.s4 1966171168
        %v3684 = vunpack.c.0.s8 %v3683
        %v3685 = vlaneseq
        %v3686 = vshrl.u32 %v3685, 7
        %v3687 = vsub.s32 %v3684, %v3686
        %v3688 = vrot.slane %v3672, %v3687
        %v3690 = vunpack.c.l.s4 1966171168
        %v3691 = vunpack.c.0.s8 %v3690
        %v3692 = vlaneseq
        %v3693 = vshrl.u32 %v3692, 7
        %v3694 = vsub.s32 %v3691, %v3693
        %v3695 = vrot.slane %v3679, %v3694
        %v3697 = vunpack.c.l.s4 1966171168
        %v3698 = vunpack.c.0.s8 %v3697
        %v3699 = vlaneseq
        %v3700 = vshrl.u32 %v3699, 7
        %v3701 = vsub.s32 %v3698, %v3700
        %v3702 = vrot.slane %v3680, %v3701
        %v3704 = vunpack.c.l.s4 1966171168
        %v3705 = vunpack.c.0.s8 %v3704
        %v3706 = vlaneseq
        %v3707 = vshrl.u32 %v3706, 7
        %v3708 = vsub.s32 %v3705, %v3707
        %v3709 = vrot.slane %v3681, %v3708
        %v3710 = vcombine.high %v3688, %v3688
        %v3711 = vcombine.high %v3695, %v3695
        %v3712 = vcombine.high %v3702, %v3702
        %v3713 = vcombine.high %v3709, %v3709
        %v3714 = vcombine.high %v388, %v388
        %v3716 = vunpack.c.l.s4 1966171168
        %v3717 = vunpack.c.0.s8 %v3716
        %v3718 = vlaneseq
        %v3719 = vshrl.u32 %v3718, 7
        %v3720 = vsub.s32 %v3717, %v3719
        %v3721 = vrot.slane %v388, %v3720
        %v3723 = vunpack.c.l.s4 1966171168
        %v3724 = vunpack.c.0.s8 %v3723
        %v3725 = vlaneseq
        %v3726 = vshrl.u32 %v3725, 7
        %v3727 = vsub.s32 %v3724, %v3726
        %v3728 = vrot.slane %v3714, %v3727
        %v3729 = vcombine.high %v3721, %v3721
        %v3730 = vcombine.high %v3728, %v3728
        %v3732 = vunpack.c.l.s4 1966171168
        %v3733 = vunpack.c.0.s8 %v3732
        %v3734 = vlaneseq
        %v3735 = vshrl.u32 %v3734, 7
        %v3736 = vsub.s32 %v3733, %v3735
        %v3737 = vrot.slane %v3721, %v3736
        %v3739 = vunpack.c.l.s4 1966171168
        %v3740 = vunpack.c.0.s8 %v3739
        %v3741 = vlaneseq
        %v3742 = vshrl.u32 %v3741, 7
        %v3743 = vsub.s32 %v3740, %v3742
        %v3744 = vrot.slane %v3728, %v3743
        %v3746 = vunpack.c.l.s4 1966171168
        %v3747 = vunpack.c.0.s8 %v3746
        %v3748 = vlaneseq
        %v3749 = vshrl.u32 %v3748, 7
        %v3750 = vsub.s32 %v3747, %v3749
        %v3751 = vrot.slane %v3729, %v3750
        %v3753 = vunpack.c.l.s4 1966171168
        %v3754 = vunpack.c.0.s8 %v3753
        %v3755 = vlaneseq
        %v3756 = vshrl.u32 %v3755, 7
        %v3757 = vsub.s32 %v3754, %v3756
        %v3758 = vrot.slane %v3730, %v3757
        %v3759 = vcombine.high %v3737, %v3737
        %v3760 = vcombine.high %v3744, %v3744
        %v3761 = vcombine.high %v3751, %v3751
        %v3762 = vcombine.high %v3758, %v3758
        %v3763 = vcombine.high %v389, %v389
        %v3765 = vunpack.c.l.s4 1966171168
        %v3766 = vunpack.c.0.s8 %v3765
        %v3767 = vlaneseq
        %v3768 = vshrl.u32 %v3767, 7
        %v3769 = vsub.s32 %v3766, %v3768
        %v3770 = vrot.slane %v389, %v3769
        %v3772 = vunpack.c.l.s4 1966171168
        %v3773 = vunpack.c.0.s8 %v3772
        %v3774 = vlaneseq
        %v3775 = vshrl.u32 %v3774, 7
        %v3776 = vsub.s32 %v3773, %v3775
        %v3777 = vrot.slane %v3763, %v3776
        %v3778 = vcombine.high %v3770, %v3770
        %v3779 = vcombine.high %v3777, %v3777
        %v3781 = vunpack.c.l.s4 1966171168
        %v3782 = vunpack.c.0.s8 %v3781
        %v3783 = vlaneseq
        %v3784 = vshrl.u32 %v3783, 7
        %v3785 = vsub.s32 %v3782, %v3784
        %v3786 = vrot.slane %v3770, %v3785
        %v3788 = vunpack.c.l.s4 1966171168
        %v3789 = vunpack.c.0.s8 %v3788
        %v3790 = vlaneseq
        %v3791 = vshrl.u32 %v3790, 7
        %v3792 = vsub.s32 %v3789, %v3791
        %v3793 = vrot.slane %v3777, %v3792
        %v3795 = vunpack.c.l.s4 1966171168
        %v3796 = vunpack.c.0.s8 %v3795
        %v3797 = vlaneseq
        %v3798 = vshrl.u32 %v3797, 7
        %v3799 = vsub.s32 %v3796, %v3798
        %v3800 = vrot.slane %v3778, %v3799
        %v3802 = vunpack.c.l.s4 1966171168
        %v3803 = vunpack.c.0.s8 %v3802
        %v3804 = vlaneseq
        %v3805 = vshrl.u32 %v3804, 7
        %v3806 = vsub.s32 %v3803, %v3805
        %v3807 = vrot.slane %v3779, %v3806
        %v3808 = vcombine.high %v3786, %v3786
        %v3809 = vcombine.high %v3793, %v3793
        %v3810 = vcombine.high %v3800, %v3800
        %v3811 = vcombine.high %v3807, %v3807
        %v3812 = vcombine.high %v390, %v390
        %v3814 = vunpack.c.l.s4 1966171168
        %v3815 = vunpack.c.0.s8 %v3814
        %v3816 = vlaneseq
        %v3817 = vshrl.u32 %v3816, 7
        %v3818 = vsub.s32 %v3815, %v3817
        %v3819 = vrot.slane %v390, %v3818
        %v3821 = vunpack.c.l.s4 1966171168
        %v3822 = vunpack.c.0.s8 %v3821
        %v3823 = vlaneseq
        %v3824 = vshrl.u32 %v3823, 7
        %v3825 = vsub.s32 %v3822, %v3824
        %v3826 = vrot.slane %v3812, %v3825
        %v3827 = vcombine.high %v3819, %v3819
        %v3828 = vcombine.high %v3826, %v3826
        %v3830 = vunpack.c.l.s4 1966171168
        %v3831 = vunpack.c.0.s8 %v3830
        %v3832 = vlaneseq
        %v3833 = vshrl.u32 %v3832, 7
        %v3834 = vsub.s32 %v3831, %v3833
        %v3835 = vrot.slane %v3819, %v3834
        %v3837 = vunpack.c.l.s4 1966171168
        %v3838 = vunpack.c.0.s8 %v3837
        %v3839 = vlaneseq
        %v3840 = vshrl.u32 %v3839, 7
        %v3841 = vsub.s32 %v3838, %v3840
        %v3842 = vrot.slane %v3826, %v3841
        %v3844 = vunpack.c.l.s4 1966171168
        %v3845 = vunpack.c.0.s8 %v3844
        %v3846 = vlaneseq
        %v3847 = vshrl.u32 %v3846, 7
        %v3848 = vsub.s32 %v3845, %v3847
        %v3849 = vrot.slane %v3827, %v3848
        %v3851 = vunpack.c.l.s4 1966171168
        %v3852 = vunpack.c.0.s8 %v3851
        %v3853 = vlaneseq
        %v3854 = vshrl.u32 %v3853, 7
        %v3855 = vsub.s32 %v3852, %v3854
        %v3856 = vrot.slane %v3828, %v3855
        %v3857 = vcombine.high %v3835, %v3835
        %v3858 = vcombine.high %v3842, %v3842
        %v3859 = vcombine.high %v3849, %v3849
        %v3860 = vcombine.high %v3856, %v3856
        %v3861 = vcombine.high %v391, %v391
        %v3863 = vunpack.c.l.s4 1966171168
        %v3864 = vunpack.c.0.s8 %v3863
        %v3865 = vlaneseq
        %v3866 = vshrl.u32 %v3865, 7
        %v3867 = vsub.s32 %v3864, %v3866
        %v3868 = vrot.slane %v391, %v3867
        %v3870 = vunpack.c.l.s4 1966171168
        %v3871 = vunpack.c.0.s8 %v3870
        %v3872 = vlaneseq
        %v3873 = vshrl.u32 %v3872, 7
        %v3874 = vsub.s32 %v3871, %v3873
        %v3875 = vrot.slane %v3861, %v3874
        %v3876 = vcombine.high %v3868, %v3868
        %v3877 = vcombine.high %v3875, %v3875
        %v3879 = vunpack.c.l.s4 1966171168
        %v3880 = vunpack.c.0.s8 %v3879
        %v3881 = vlaneseq
        %v3882 = vshrl.u32 %v3881, 7
        %v3883 = vsub.s32 %v3880, %v3882
        %v3884 = vrot.slane %v3868, %v3883
        %v3886 = vunpack.c.l.s4 1966171168
        %v3887 = vunpack.c.0.s8 %v3886
        %v3888 = vlaneseq
        %v3889 = vshrl.u32 %v3888, 7
        %v3890 = vsub.s32 %v3887, %v3889
        %v3891 = vrot.slane %v3875, %v3890
        %v3893 = vunpack.c.l.s4 1966171168
        %v3894 = vunpack.c.0.s8 %v3893
        %v3895 = vlaneseq
        %v3896 = vshrl.u32 %v3895, 7
        %v3897 = vsub.s32 %v3894, %v3896
        %v3898 = vrot.slane %v3876, %v3897
        %v3900 = vunpack.c.l.s4 1966171168
        %v3901 = vunpack.c.0.s8 %v3900
        %v3902 = vlaneseq
        %v3903 = vshrl.u32 %v3902, 7
        %v3904 = vsub.s32 %v3901, %v3903
        %v3905 = vrot.slane %v3877, %v3904
        %v3906 = vcombine.high %v3884, %v3884
        %v3907 = vcombine.high %v3891, %v3891
        %v3908 = vcombine.high %v3898, %v3898
        %v3909 = vcombine.high %v3905, %v3905
        %v3910 = vcombine.high %v392, %v392
        %v3912 = vunpack.c.l.s4 1966171168
        %v3913 = vunpack.c.0.s8 %v3912
        %v3914 = vlaneseq
        %v3915 = vshrl.u32 %v3914, 7
        %v3916 = vsub.s32 %v3913, %v3915
        %v3917 = vrot.slane %v392, %v3916
        %v3919 = vunpack.c.l.s4 1966171168
        %v3920 = vunpack.c.0.s8 %v3919
        %v3921 = vlaneseq
        %v3922 = vshrl.u32 %v3921, 7
        %v3923 = vsub.s32 %v3920, %v3922
        %v3924 = vrot.slane %v3910, %v3923
        %v3925 = vcombine.high %v3917, %v3917
        %v3926 = vcombine.high %v3924, %v3924
        %v3928 = vunpack.c.l.s4 1966171168
        %v3929 = vunpack.c.0.s8 %v3928
        %v3930 = vlaneseq
        %v3931 = vshrl.u32 %v3930, 7
        %v3932 = vsub.s32 %v3929, %v3931
        %v3933 = vrot.slane %v3917, %v3932
        %v3935 = vunpack.c.l.s4 1966171168
        %v3936 = vunpack.c.0.s8 %v3935
        %v3937 = vlaneseq
        %v3938 = vshrl.u32 %v3937, 7
        %v3939 = vsub.s32 %v3936, %v3938
        %v3940 = vrot.slane %v3924, %v3939
        %v3942 = vunpack.c.l.s4 1966171168
        %v3943 = vunpack.c.0.s8 %v3942
        %v3944 = vlaneseq
        %v3945 = vshrl.u32 %v3944, 7
        %v3946 = vsub.s32 %v3943, %v3945
        %v3947 = vrot.slane %v3925, %v3946
        %v3949 = vunpack.c.l.s4 1966171168
        %v3950 = vunpack.c.0.s8 %v3949
        %v3951 = vlaneseq
        %v3952 = vshrl.u32 %v3951, 7
        %v3953 = vsub.s32 %v3950, %v3952
        %v3954 = vrot.slane %v3926, %v3953
        %v3955 = vcombine.high %v3933, %v3933
        %v3956 = vcombine.high %v3940, %v3940
        %v3957 = vcombine.high %v3947, %v3947
        %v3958 = vcombine.high %v3954, %v3954
        %v3959 = vcombine.high %v393, %v393
        %v3961 = vunpack.c.l.s4 1966171168
        %v3962 = vunpack.c.0.s8 %v3961
        %v3963 = vlaneseq
        %v3964 = vshrl.u32 %v3963, 7
        %v3965 = vsub.s32 %v3962, %v3964
        %v3966 = vrot.slane %v393, %v3965
        %v3968 = vunpack.c.l.s4 1966171168
        %v3969 = vunpack.c.0.s8 %v3968
        %v3970 = vlaneseq
        %v3971 = vshrl.u32 %v3970, 7
        %v3972 = vsub.s32 %v3969, %v3971
        %v3973 = vrot.slane %v3959, %v3972
        %v3974 = vcombine.high %v3966, %v3966
        %v3976 = vunpack.c.l.s4 1966171168
        %v3977 = vunpack.c.0.s8 %v3976
        %v3978 = vlaneseq
        %v3979 = vshrl.u32 %v3978, 7
        %v3980 = vsub.s32 %v3977, %v3979
        %v3981 = vrot.slane %v3966, %v3980
        %v3983 = vunpack.c.l.s4 1966171168
        %v3984 = vunpack.c.0.s8 %v3983
        %v3985 = vlaneseq
        %v3986 = vshrl.u32 %v3985, 7
        %v3987 = vsub.s32 %v3984, %v3986
        %v3988 = vrot.slane %v3973, %v3987
        %v3990 = vunpack.c.l.s4 1966171168
        %v3991 = vunpack.c.0.s8 %v3990
        %v3992 = vlaneseq
        %v3993 = vshrl.u32 %v3992, 7
        %v3994 = vsub.s32 %v3991, %v3993
        %v3995 = vrot.slane %v3974, %v3994
        %v3996 = vcombine.high %v3981, %v3981
        %v3997 = vcombine.high %v3995, %v3995
        %4195 = vmatprep.subr.bf16.mxu0 0
        %4196 = vmatpush1.bf16.msra.mxu0 %v1189
        %4197 = vmatprep.subr.bf16.mxu0 0
        %4198 = vmatpush1.bf16.msra.mxu0 %v1188
        %4199 = vmatprep.subr.bf16.mxu0 0
        %4200 = vmatpush1.bf16.msra.mxu0 %v1187
        %4201 = vmatprep.subr.bf16.mxu0 0
        %4202 = vmatpush1.bf16.msra.mxu0 %v1186
        %4203 = vmatprep.subr.bf16.mxu0 0
        %4204 = vmatpush1.bf16.msra.mxu0 %v1185
        %4205 = vmatprep.subr.bf16.mxu0 0
        %4206 = vmatpush1.bf16.msra.mxu0 %v1184
        %4207 = vmatprep.subr.bf16.mxu0 0
        %4208 = vmatpush1.bf16.msra.mxu0 %v1183
        %4209 = vmatprep.subr.bf16.mxu0 0
        %4210 = vmatpush1.bf16.msra.mxu0 %v1182
        %4211 = vmatprep.subr.bf16.mxu0 0
        %4212 = vmatpush2.bf16.msra.mxu0 %v1197
        %4213 = vmatprep.subr.bf16.mxu0 0
        %4214 = vmatpush2.bf16.msra.mxu0 %v1196
        %4215 = vmatprep.subr.bf16.mxu0 0
        %4216 = vmatpush2.bf16.msra.mxu0 %v1195
        %4217 = vmatprep.subr.bf16.mxu0 0
        %4218 = vmatpush2.bf16.msra.mxu0 %v1194
        %4219 = vmatprep.subr.bf16.mxu0 0
        %4220 = vmatpush2.bf16.msra.mxu0 %v1193
        %4221 = vmatprep.subr.bf16.mxu0 0
        %4222 = vmatpush2.bf16.msra.mxu0 %v1192
        %4223 = vmatprep.subr.bf16.mxu0 0
        %4224 = vmatpush2.bf16.msra.mxu0 %v1191
        %4225 = vmatprep.subr.bf16.mxu0 0
        %4226 = vmatpush2.bf16.msra.mxu0 %v1190
        %4227 = vmatprep.mubr.bf16.mxu0 %v2820
        %4228 = vmatmul.mubr.bf16.gmra.mxu0 %v2806
        %v4229 = vpop.f32.mrf.mxu0
        %v4230 = vadd.f32 0.0, %v4229
        %v4231 = vpop.f32.mrf.mxu0
        %v4232 = vpop.f32.mrf.mxu0
        %v4233 = vpop.f32.mrf.mxu0
        %4234 = vdwg.mxu0
        %4235 = vmatprep.subr.bf16.mxu0 0
        %4236 = vmatpush1.bf16.msra.mxu0 %v1205
        %4237 = vmatprep.subr.bf16.mxu0 0
        %4238 = vmatpush1.bf16.msra.mxu0 %v1204
        %4239 = vmatprep.subr.bf16.mxu0 0
        %4240 = vmatpush1.bf16.msra.mxu0 %v1203
        %4241 = vmatprep.subr.bf16.mxu0 0
        %4242 = vmatpush1.bf16.msra.mxu0 %v1202
        %4243 = vmatprep.subr.bf16.mxu0 0
        %4244 = vmatpush1.bf16.msra.mxu0 %v1201
        %4245 = vmatprep.subr.bf16.mxu0 0
        %4246 = vmatpush1.bf16.msra.mxu0 %v1200
        %4247 = vmatprep.subr.bf16.mxu0 0
        %4248 = vmatpush1.bf16.msra.mxu0 %v1199
        %4249 = vmatprep.subr.bf16.mxu0 0
        %4250 = vmatpush1.bf16.msra.mxu0 %v1198
        %4251 = vmatprep.subr.bf16.mxu0 0
        %4252 = vmatpush2.bf16.msra.mxu0 %v1213
        %4253 = vmatprep.subr.bf16.mxu0 0
        %4254 = vmatpush2.bf16.msra.mxu0 %v1212
        %4255 = vmatprep.subr.bf16.mxu0 0
        %4256 = vmatpush2.bf16.msra.mxu0 %v1211
        %4257 = vmatprep.subr.bf16.mxu0 0
        %4258 = vmatpush2.bf16.msra.mxu0 %v1210
        %4259 = vmatprep.subr.bf16.mxu0 0
        %4260 = vmatpush2.bf16.msra.mxu0 %v1209
        %4261 = vmatprep.subr.bf16.mxu0 0
        %4262 = vmatpush2.bf16.msra.mxu0 %v1208
        %4263 = vmatprep.subr.bf16.mxu0 0
        %4264 = vmatpush2.bf16.msra.mxu0 %v1207
        %4265 = vmatprep.subr.bf16.mxu0 0
        %4266 = vmatpush2.bf16.msra.mxu0 %v1206
        %4267 = vmatprep.mubr.bf16.mxu0 %v2830
        %4268 = vmatmul.mubr.bf16.gmra.mxu0 %v2828
        %v4269 = vpop.f32.mrf.mxu0
        %v4270 = vadd.f32 %v4230, %v4269
        %v4271 = vpop.f32.mrf.mxu0
        %v4272 = vpop.f32.mrf.mxu0
        %v4273 = vpop.f32.mrf.mxu0
        %4274 = vdwg.mxu0
        %4275 = vmatprep.subr.bf16.mxu0 0
        %4276 = vmatpush1.bf16.msra.mxu0 %v1221
        %4277 = vmatprep.subr.bf16.mxu0 0
        %4278 = vmatpush1.bf16.msra.mxu0 %v1220
        %4279 = vmatprep.subr.bf16.mxu0 0
        %4280 = vmatpush1.bf16.msra.mxu0 %v1219
        %4281 = vmatprep.subr.bf16.mxu0 0
        %4282 = vmatpush1.bf16.msra.mxu0 %v1218
        %4283 = vmatprep.subr.bf16.mxu0 0
        %4284 = vmatpush1.bf16.msra.mxu0 %v1217
        %4285 = vmatprep.subr.bf16.mxu0 0
        %4286 = vmatpush1.bf16.msra.mxu0 %v1216
        %4287 = vmatprep.subr.bf16.mxu0 0
        %4288 = vmatpush1.bf16.msra.mxu0 %v1215
        %4289 = vmatprep.subr.bf16.mxu0 0
        %4290 = vmatpush1.bf16.msra.mxu0 %v1214
        %4291 = vmatprep.subr.bf16.mxu0 0
        %4292 = vmatpush2.bf16.msra.mxu0 %v1229
        %4293 = vmatprep.subr.bf16.mxu0 0
        %4294 = vmatpush2.bf16.msra.mxu0 %v1228
        %4295 = vmatprep.subr.bf16.mxu0 0
        %4296 = vmatpush2.bf16.msra.mxu0 %v1227
        %4297 = vmatprep.subr.bf16.mxu0 0
        %4298 = vmatpush2.bf16.msra.mxu0 %v1226
        %4299 = vmatprep.subr.bf16.mxu0 0
        %4300 = vmatpush2.bf16.msra.mxu0 %v1225
        %4301 = vmatprep.subr.bf16.mxu0 0
        %4302 = vmatpush2.bf16.msra.mxu0 %v1224
        %4303 = vmatprep.subr.bf16.mxu0 0
        %4304 = vmatpush2.bf16.msra.mxu0 %v1223
        %4305 = vmatprep.subr.bf16.mxu0 0
        %4306 = vmatpush2.bf16.msra.mxu0 %v1222
        %4307 = vmatprep.mubr.bf16.mxu0 %v2827
        %4308 = vmatmul.mubr.bf16.gmra.mxu0 %v2813
        %v4309 = vpop.f32.mrf.mxu0
        %v4310 = vadd.f32 %v4270, %v4309
        %v4311 = vpop.f32.mrf.mxu0
        %v4312 = vpop.f32.mrf.mxu0
        %v4313 = vpop.f32.mrf.mxu0
        %4314 = vdwg.mxu0
        %4315 = vmatprep.subr.bf16.mxu0 0
        %4316 = vmatpush1.bf16.msra.mxu0 %v1237
        %4317 = vmatprep.subr.bf16.mxu0 0
        %4318 = vmatpush1.bf16.msra.mxu0 %v1236
        %4319 = vmatprep.subr.bf16.mxu0 0
        %4320 = vmatpush1.bf16.msra.mxu0 %v1235
        %4321 = vmatprep.subr.bf16.mxu0 0
        %4322 = vmatpush1.bf16.msra.mxu0 %v1234
        %4323 = vmatprep.subr.bf16.mxu0 0
        %4324 = vmatpush1.bf16.msra.mxu0 %v1233
        %4325 = vmatprep.subr.bf16.mxu0 0
        %4326 = vmatpush1.bf16.msra.mxu0 %v1232
        %4327 = vmatprep.subr.bf16.mxu0 0
        %4328 = vmatpush1.bf16.msra.mxu0 %v1231
        %4329 = vmatprep.subr.bf16.mxu0 0
        %4330 = vmatpush1.bf16.msra.mxu0 %v1230
        %4331 = vmatprep.subr.bf16.mxu0 0
        %4332 = vmatpush2.bf16.msra.mxu0 %v1245
        %4333 = vmatprep.subr.bf16.mxu0 0
        %4334 = vmatpush2.bf16.msra.mxu0 %v1244
        %4335 = vmatprep.subr.bf16.mxu0 0
        %4336 = vmatpush2.bf16.msra.mxu0 %v1243
        %4337 = vmatprep.subr.bf16.mxu0 0
        %4338 = vmatpush2.bf16.msra.mxu0 %v1242
        %4339 = vmatprep.subr.bf16.mxu0 0
        %4340 = vmatpush2.bf16.msra.mxu0 %v1241
        %4341 = vmatprep.subr.bf16.mxu0 0
        %4342 = vmatpush2.bf16.msra.mxu0 %v1240
        %4343 = vmatprep.subr.bf16.mxu0 0
        %4344 = vmatpush2.bf16.msra.mxu0 %v1239
        %4345 = vmatprep.subr.bf16.mxu0 0
        %4346 = vmatpush2.bf16.msra.mxu0 %v1238
        %4347 = vmatprep.mubr.bf16.mxu0 %v2831
        %4348 = vmatmul.mubr.bf16.gmra.mxu0 %v2829
        %v4349 = vpop.f32.mrf.mxu0
        %v4350 = vadd.f32 %v4310, %v4349
        %v4351 = vpop.f32.mrf.mxu0
        %v4352 = vpop.f32.mrf.mxu0
        %v4353 = vpop.f32.mrf.mxu0
        %4354 = vdwg.mxu0
        %4355 = vmatprep.subr.bf16.mxu0 0
        %4356 = vmatpush1.bf16.msra.mxu0 %v1253
        %4357 = vmatprep.subr.bf16.mxu0 0
        %4358 = vmatpush1.bf16.msra.mxu0 %v1252
        %4359 = vmatprep.subr.bf16.mxu0 0
        %4360 = vmatpush1.bf16.msra.mxu0 %v1251
        %4361 = vmatprep.subr.bf16.mxu0 0
        %4362 = vmatpush1.bf16.msra.mxu0 %v1250
        %4363 = vmatprep.subr.bf16.mxu0 0
        %4364 = vmatpush1.bf16.msra.mxu0 %v1249
        %4365 = vmatprep.subr.bf16.mxu0 0
        %4366 = vmatpush1.bf16.msra.mxu0 %v1248
        %4367 = vmatprep.subr.bf16.mxu0 0
        %4368 = vmatpush1.bf16.msra.mxu0 %v1247
        %4369 = vmatprep.subr.bf16.mxu0 0
        %4370 = vmatpush1.bf16.msra.mxu0 %v1246
        %4371 = vmatprep.subr.bf16.mxu0 0
        %4372 = vmatpush2.bf16.msra.mxu0 %v1261
        %4373 = vmatprep.subr.bf16.mxu0 0
        %4374 = vmatpush2.bf16.msra.mxu0 %v1260
        %4375 = vmatprep.subr.bf16.mxu0 0
        %4376 = vmatpush2.bf16.msra.mxu0 %v1259
        %4377 = vmatprep.subr.bf16.mxu0 0
        %4378 = vmatpush2.bf16.msra.mxu0 %v1258
        %4379 = vmatprep.subr.bf16.mxu0 0
        %4380 = vmatpush2.bf16.msra.mxu0 %v1257
        %4381 = vmatprep.subr.bf16.mxu0 0
        %4382 = vmatpush2.bf16.msra.mxu0 %v1256
        %4383 = vmatprep.subr.bf16.mxu0 0
        %4384 = vmatpush2.bf16.msra.mxu0 %v1255
        %4385 = vmatprep.subr.bf16.mxu0 0
        %4386 = vmatpush2.bf16.msra.mxu0 %v1254
        %4387 = vmatprep.mubr.bf16.mxu0 %v2869
        %4388 = vmatmul.mubr.bf16.gmra.mxu0 %v2855
        %v4389 = vpop.f32.mrf.mxu0
        %v4390 = vadd.f32 %v4350, %v4389
        %v4391 = vpop.f32.mrf.mxu0
        %v4392 = vpop.f32.mrf.mxu0
        %v4393 = vpop.f32.mrf.mxu0
        %4394 = vdwg.mxu0
        %4395 = vmatprep.subr.bf16.mxu0 0
        %4396 = vmatpush1.bf16.msra.mxu0 %v1269
        %4397 = vmatprep.subr.bf16.mxu0 0
        %4398 = vmatpush1.bf16.msra.mxu0 %v1268
        %4399 = vmatprep.subr.bf16.mxu0 0
        %4400 = vmatpush1.bf16.msra.mxu0 %v1267
        %4401 = vmatprep.subr.bf16.mxu0 0
        %4402 = vmatpush1.bf16.msra.mxu0 %v1266
        %4403 = vmatprep.subr.bf16.mxu0 0
        %4404 = vmatpush1.bf16.msra.mxu0 %v1265
        %4405 = vmatprep.subr.bf16.mxu0 0
        %4406 = vmatpush1.bf16.msra.mxu0 %v1264
        %4407 = vmatprep.subr.bf16.mxu0 0
        %4408 = vmatpush1.bf16.msra.mxu0 %v1263
        %4409 = vmatprep.subr.bf16.mxu0 0
        %4410 = vmatpush1.bf16.msra.mxu0 %v1262
        %4411 = vmatprep.subr.bf16.mxu0 0
        %4412 = vmatpush2.bf16.msra.mxu0 %v1277
        %4413 = vmatprep.subr.bf16.mxu0 0
        %4414 = vmatpush2.bf16.msra.mxu0 %v1276
        %4415 = vmatprep.subr.bf16.mxu0 0
        %4416 = vmatpush2.bf16.msra.mxu0 %v1275
        %4417 = vmatprep.subr.bf16.mxu0 0
        %4418 = vmatpush2.bf16.msra.mxu0 %v1274
        %4419 = vmatprep.subr.bf16.mxu0 0
        %4420 = vmatpush2.bf16.msra.mxu0 %v1273
        %4421 = vmatprep.subr.bf16.mxu0 0
        %4422 = vmatpush2.bf16.msra.mxu0 %v1272
        %4423 = vmatprep.subr.bf16.mxu0 0
        %4424 = vmatpush2.bf16.msra.mxu0 %v1271
        %4425 = vmatprep.subr.bf16.mxu0 0
        %4426 = vmatpush2.bf16.msra.mxu0 %v1270
        %4427 = vmatprep.mubr.bf16.mxu0 %v2879
        %4428 = vmatmul.mubr.bf16.gmra.mxu0 %v2877
        %v4429 = vpop.f32.mrf.mxu0
        %v4430 = vadd.f32 %v4390, %v4429
        %v4431 = vpop.f32.mrf.mxu0
        %v4432 = vpop.f32.mrf.mxu0
        %v4433 = vpop.f32.mrf.mxu0
        %4434 = vdwg.mxu0
        %4435 = vmatprep.subr.bf16.mxu0 0
        %4436 = vmatpush1.bf16.msra.mxu0 %v1285
        %4437 = vmatprep.subr.bf16.mxu0 0
        %4438 = vmatpush1.bf16.msra.mxu0 %v1284
        %4439 = vmatprep.subr.bf16.mxu0 0
        %4440 = vmatpush1.bf16.msra.mxu0 %v1283
        %4441 = vmatprep.subr.bf16.mxu0 0
        %4442 = vmatpush1.bf16.msra.mxu0 %v1282
        %4443 = vmatprep.subr.bf16.mxu0 0
        %4444 = vmatpush1.bf16.msra.mxu0 %v1281
        %4445 = vmatprep.subr.bf16.mxu0 0
        %4446 = vmatpush1.bf16.msra.mxu0 %v1280
        %4447 = vmatprep.subr.bf16.mxu0 0
        %4448 = vmatpush1.bf16.msra.mxu0 %v1279
        %4449 = vmatprep.subr.bf16.mxu0 0
        %4450 = vmatpush1.bf16.msra.mxu0 %v1278
        %4451 = vmatprep.subr.bf16.mxu0 0
        %4452 = vmatpush2.bf16.msra.mxu0 %v1293
        %4453 = vmatprep.subr.bf16.mxu0 0
        %4454 = vmatpush2.bf16.msra.mxu0 %v1292
        %4455 = vmatprep.subr.bf16.mxu0 0
        %4456 = vmatpush2.bf16.msra.mxu0 %v1291
        %4457 = vmatprep.subr.bf16.mxu0 0
        %4458 = vmatpush2.bf16.msra.mxu0 %v1290
        %4459 = vmatprep.subr.bf16.mxu0 0
        %4460 = vmatpush2.bf16.msra.mxu0 %v1289
        %4461 = vmatprep.subr.bf16.mxu0 0
        %4462 = vmatpush2.bf16.msra.mxu0 %v1288
        %4463 = vmatprep.subr.bf16.mxu0 0
        %4464 = vmatpush2.bf16.msra.mxu0 %v1287
        %4465 = vmatprep.subr.bf16.mxu0 0
        %4466 = vmatpush2.bf16.msra.mxu0 %v1286
        %4467 = vmatprep.mubr.bf16.mxu0 %v2876
        %4468 = vmatmul.mubr.bf16.gmra.mxu0 %v2862
        %v4469 = vpop.f32.mrf.mxu0
        %v4470 = vadd.f32 %v4430, %v4469
        %v4471 = vpop.f32.mrf.mxu0
        %v4472 = vpop.f32.mrf.mxu0
        %v4473 = vpop.f32.mrf.mxu0
        %4474 = vdwg.mxu0
        %4475 = vmatprep.subr.bf16.mxu0 0
        %4476 = vmatpush1.bf16.msra.mxu0 %v1301
        %4477 = vmatprep.subr.bf16.mxu0 0
        %4478 = vmatpush1.bf16.msra.mxu0 %v1300
        %4479 = vmatprep.subr.bf16.mxu0 0
        %4480 = vmatpush1.bf16.msra.mxu0 %v1299
        %4481 = vmatprep.subr.bf16.mxu0 0
        %4482 = vmatpush1.bf16.msra.mxu0 %v1298
        %4483 = vmatprep.subr.bf16.mxu0 0
        %4484 = vmatpush1.bf16.msra.mxu0 %v1297
        %4485 = vmatprep.subr.bf16.mxu0 0
        %4486 = vmatpush1.bf16.msra.mxu0 %v1296
        %4487 = vmatprep.subr.bf16.mxu0 0
        %4488 = vmatpush1.bf16.msra.mxu0 %v1295
        %4489 = vmatprep.subr.bf16.mxu0 0
        %4490 = vmatpush1.bf16.msra.mxu0 %v1294
        %4491 = vmatprep.subr.bf16.mxu0 0
        %4492 = vmatpush2.bf16.msra.mxu0 %v1309
        %4493 = vmatprep.subr.bf16.mxu0 0
        %4494 = vmatpush2.bf16.msra.mxu0 %v1308
        %4495 = vmatprep.subr.bf16.mxu0 0
        %4496 = vmatpush2.bf16.msra.mxu0 %v1307
        %4497 = vmatprep.subr.bf16.mxu0 0
        %4498 = vmatpush2.bf16.msra.mxu0 %v1306
        %4499 = vmatprep.subr.bf16.mxu0 0
        %4500 = vmatpush2.bf16.msra.mxu0 %v1305
        %4501 = vmatprep.subr.bf16.mxu0 0
        %4502 = vmatpush2.bf16.msra.mxu0 %v1304
        %4503 = vmatprep.subr.bf16.mxu0 0
        %4504 = vmatpush2.bf16.msra.mxu0 %v1303
        %4505 = vmatprep.subr.bf16.mxu0 0
        %4506 = vmatpush2.bf16.msra.mxu0 %v1302
        %4507 = vmatprep.mubr.bf16.mxu0 %v2880
        %4508 = vmatmul.mubr.bf16.gmra.mxu0 %v2878
        %v4509 = vpop.f32.mrf.mxu0
        %v4510 = vadd.f32 %v4470, %v4509
        %v4511 = vpop.f32.mrf.mxu0
        %v4512 = vpop.f32.mrf.mxu0
        %v4513 = vpop.f32.mrf.mxu0
        %4514 = vdwg.mxu0
        %4515 = vmatprep.subr.bf16.mxu0 0
        %4516 = vmatpush1.bf16.msra.mxu0 %v1317
        %4517 = vmatprep.subr.bf16.mxu0 0
        %4518 = vmatpush1.bf16.msra.mxu0 %v1316
        %4519 = vmatprep.subr.bf16.mxu0 0
        %4520 = vmatpush1.bf16.msra.mxu0 %v1315
        %4521 = vmatprep.subr.bf16.mxu0 0
        %4522 = vmatpush1.bf16.msra.mxu0 %v1314
        %4523 = vmatprep.subr.bf16.mxu0 0
        %4524 = vmatpush1.bf16.msra.mxu0 %v1313
        %4525 = vmatprep.subr.bf16.mxu0 0
        %4526 = vmatpush1.bf16.msra.mxu0 %v1312
        %4527 = vmatprep.subr.bf16.mxu0 0
        %4528 = vmatpush1.bf16.msra.mxu0 %v1311
        %4529 = vmatprep.subr.bf16.mxu0 0
        %4530 = vmatpush1.bf16.msra.mxu0 %v1310
        %4531 = vmatprep.subr.bf16.mxu0 0
        %4532 = vmatpush2.bf16.msra.mxu0 %v1325
        %4533 = vmatprep.subr.bf16.mxu0 0
        %4534 = vmatpush2.bf16.msra.mxu0 %v1324
        %4535 = vmatprep.subr.bf16.mxu0 0
        %4536 = vmatpush2.bf16.msra.mxu0 %v1323
        %4537 = vmatprep.subr.bf16.mxu0 0
        %4538 = vmatpush2.bf16.msra.mxu0 %v1322
        %4539 = vmatprep.subr.bf16.mxu0 0
        %4540 = vmatpush2.bf16.msra.mxu0 %v1321
        %4541 = vmatprep.subr.bf16.mxu0 0
        %4542 = vmatpush2.bf16.msra.mxu0 %v1320
        %4543 = vmatprep.subr.bf16.mxu0 0
        %4544 = vmatpush2.bf16.msra.mxu0 %v1319
        %4545 = vmatprep.subr.bf16.mxu0 0
        %4546 = vmatpush2.bf16.msra.mxu0 %v1318
        %4547 = vmatprep.mubr.bf16.mxu0 %v2918
        %4548 = vmatmul.mubr.bf16.gmra.mxu0 %v2904
        %v4549 = vpop.f32.mrf.mxu0
        %v4550 = vadd.f32 %v4510, %v4549
        %v4551 = vpop.f32.mrf.mxu0
        %v4552 = vpop.f32.mrf.mxu0
        %v4553 = vpop.f32.mrf.mxu0
        %4554 = vdwg.mxu0
        %4555 = vmatprep.subr.bf16.mxu0 0
        %4556 = vmatpush1.bf16.msra.mxu0 %v1333
        %4557 = vmatprep.subr.bf16.mxu0 0
        %4558 = vmatpush1.bf16.msra.mxu0 %v1332
        %4559 = vmatprep.subr.bf16.mxu0 0
        %4560 = vmatpush1.bf16.msra.mxu0 %v1331
        %4561 = vmatprep.subr.bf16.mxu0 0
        %4562 = vmatpush1.bf16.msra.mxu0 %v1330
        %4563 = vmatprep.subr.bf16.mxu0 0
        %4564 = vmatpush1.bf16.msra.mxu0 %v1329
        %4565 = vmatprep.subr.bf16.mxu0 0
        %4566 = vmatpush1.bf16.msra.mxu0 %v1328
        %4567 = vmatprep.subr.bf16.mxu0 0
        %4568 = vmatpush1.bf16.msra.mxu0 %v1327
        %4569 = vmatprep.subr.bf16.mxu0 0
        %4570 = vmatpush1.bf16.msra.mxu0 %v1326
        %4571 = vmatprep.subr.bf16.mxu0 0
        %4572 = vmatpush2.bf16.msra.mxu0 %v1341
        %4573 = vmatprep.subr.bf16.mxu0 0
        %4574 = vmatpush2.bf16.msra.mxu0 %v1340
        %4575 = vmatprep.subr.bf16.mxu0 0
        %4576 = vmatpush2.bf16.msra.mxu0 %v1339
        %4577 = vmatprep.subr.bf16.mxu0 0
        %4578 = vmatpush2.bf16.msra.mxu0 %v1338
        %4579 = vmatprep.subr.bf16.mxu0 0
        %4580 = vmatpush2.bf16.msra.mxu0 %v1337
        %4581 = vmatprep.subr.bf16.mxu0 0
        %4582 = vmatpush2.bf16.msra.mxu0 %v1336
        %4583 = vmatprep.subr.bf16.mxu0 0
        %4584 = vmatpush2.bf16.msra.mxu0 %v1335
        %4585 = vmatprep.subr.bf16.mxu0 0
        %4586 = vmatpush2.bf16.msra.mxu0 %v1334
        %4587 = vmatprep.mubr.bf16.mxu0 %v2928
        %4588 = vmatmul.mubr.bf16.gmra.mxu0 %v2926
        %v4589 = vpop.f32.mrf.mxu0
        %v4590 = vadd.f32 %v4550, %v4589
        %v4591 = vpop.f32.mrf.mxu0
        %v4592 = vpop.f32.mrf.mxu0
        %v4593 = vpop.f32.mrf.mxu0
        %4594 = vdwg.mxu0
        %4595 = vmatprep.subr.bf16.mxu0 0
        %4596 = vmatpush1.bf16.msra.mxu0 %v1349
        %4597 = vmatprep.subr.bf16.mxu0 0
        %4598 = vmatpush1.bf16.msra.mxu0 %v1348
        %4599 = vmatprep.subr.bf16.mxu0 0
        %4600 = vmatpush1.bf16.msra.mxu0 %v1347
        %4601 = vmatprep.subr.bf16.mxu0 0
        %4602 = vmatpush1.bf16.msra.mxu0 %v1346
        %4603 = vmatprep.subr.bf16.mxu0 0
        %4604 = vmatpush1.bf16.msra.mxu0 %v1345
        %4605 = vmatprep.subr.bf16.mxu0 0
        %4606 = vmatpush1.bf16.msra.mxu0 %v1344
        %4607 = vmatprep.subr.bf16.mxu0 0
        %4608 = vmatpush1.bf16.msra.mxu0 %v1343
        %4609 = vmatprep.subr.bf16.mxu0 0
        %4610 = vmatpush1.bf16.msra.mxu0 %v1342
        %4611 = vmatprep.subr.bf16.mxu0 0
        %4612 = vmatpush2.bf16.msra.mxu0 %v1357
        %4613 = vmatprep.subr.bf16.mxu0 0
        %4614 = vmatpush2.bf16.msra.mxu0 %v1356
        %4615 = vmatprep.subr.bf16.mxu0 0
        %4616 = vmatpush2.bf16.msra.mxu0 %v1355
        %4617 = vmatprep.subr.bf16.mxu0 0
        %4618 = vmatpush2.bf16.msra.mxu0 %v1354
        %4619 = vmatprep.subr.bf16.mxu0 0
        %4620 = vmatpush2.bf16.msra.mxu0 %v1353
        %4621 = vmatprep.subr.bf16.mxu0 0
        %4622 = vmatpush2.bf16.msra.mxu0 %v1352
        %4623 = vmatprep.subr.bf16.mxu0 0
        %4624 = vmatpush2.bf16.msra.mxu0 %v1351
        %4625 = vmatprep.subr.bf16.mxu0 0
        %4626 = vmatpush2.bf16.msra.mxu0 %v1350
        %4627 = vmatprep.mubr.bf16.mxu0 %v2925
        %4628 = vmatmul.mubr.bf16.gmra.mxu0 %v2911
        %v4629 = vpop.f32.mrf.mxu0
        %v4630 = vadd.f32 %v4590, %v4629
        %v4631 = vpop.f32.mrf.mxu0
        %v4632 = vpop.f32.mrf.mxu0
        %v4633 = vpop.f32.mrf.mxu0
        %4634 = vdwg.mxu0
        %4635 = vmatprep.subr.bf16.mxu0 0
        %4636 = vmatpush1.bf16.msra.mxu0 %v1365
        %4637 = vmatprep.subr.bf16.mxu0 0
        %4638 = vmatpush1.bf16.msra.mxu0 %v1364
        %4639 = vmatprep.subr.bf16.mxu0 0
        %4640 = vmatpush1.bf16.msra.mxu0 %v1363
        %4641 = vmatprep.subr.bf16.mxu0 0
        %4642 = vmatpush1.bf16.msra.mxu0 %v1362
        %4643 = vmatprep.subr.bf16.mxu0 0
        %4644 = vmatpush1.bf16.msra.mxu0 %v1361
        %4645 = vmatprep.subr.bf16.mxu0 0
        %4646 = vmatpush1.bf16.msra.mxu0 %v1360
        %4647 = vmatprep.subr.bf16.mxu0 0
        %4648 = vmatpush1.bf16.msra.mxu0 %v1359
        %4649 = vmatprep.subr.bf16.mxu0 0
        %4650 = vmatpush1.bf16.msra.mxu0 %v1358
        %4651 = vmatprep.subr.bf16.mxu0 0
        %4652 = vmatpush2.bf16.msra.mxu0 %v1373
        %4653 = vmatprep.subr.bf16.mxu0 0
        %4654 = vmatpush2.bf16.msra.mxu0 %v1372
        %4655 = vmatprep.subr.bf16.mxu0 0
        %4656 = vmatpush2.bf16.msra.mxu0 %v1371
        %4657 = vmatprep.subr.bf16.mxu0 0
        %4658 = vmatpush2.bf16.msra.mxu0 %v1370
        %4659 = vmatprep.subr.bf16.mxu0 0
        %4660 = vmatpush2.bf16.msra.mxu0 %v1369
        %4661 = vmatprep.subr.bf16.mxu0 0
        %4662 = vmatpush2.bf16.msra.mxu0 %v1368
        %4663 = vmatprep.subr.bf16.mxu0 0
        %4664 = vmatpush2.bf16.msra.mxu0 %v1367
        %4665 = vmatprep.subr.bf16.mxu0 0
        %4666 = vmatpush2.bf16.msra.mxu0 %v1366
        %4667 = vmatprep.mubr.bf16.mxu0 %v2929
        %4668 = vmatmul.mubr.bf16.gmra.mxu0 %v2927
        %v4669 = vpop.f32.mrf.mxu0
        %v4670 = vadd.f32 %v4630, %v4669
        %v4671 = vpop.f32.mrf.mxu0
        %v4672 = vpop.f32.mrf.mxu0
        %v4673 = vpop.f32.mrf.mxu0
        %4674 = vdwg.mxu0
        %4675 = vmatprep.subr.bf16.mxu0 0
        %4676 = vmatpush1.bf16.msra.mxu0 %v1381
        %4677 = vmatprep.subr.bf16.mxu0 0
        %4678 = vmatpush1.bf16.msra.mxu0 %v1380
        %4679 = vmatprep.subr.bf16.mxu0 0
        %4680 = vmatpush1.bf16.msra.mxu0 %v1379
        %4681 = vmatprep.subr.bf16.mxu0 0
        %4682 = vmatpush1.bf16.msra.mxu0 %v1378
        %4683 = vmatprep.subr.bf16.mxu0 0
        %4684 = vmatpush1.bf16.msra.mxu0 %v1377
        %4685 = vmatprep.subr.bf16.mxu0 0
        %4686 = vmatpush1.bf16.msra.mxu0 %v1376
        %4687 = vmatprep.subr.bf16.mxu0 0
        %4688 = vmatpush1.bf16.msra.mxu0 %v1375
        %4689 = vmatprep.subr.bf16.mxu0 0
        %4690 = vmatpush1.bf16.msra.mxu0 %v1374
        %4691 = vmatprep.subr.bf16.mxu0 0
        %4692 = vmatpush2.bf16.msra.mxu0 %v1389
        %4693 = vmatprep.subr.bf16.mxu0 0
        %4694 = vmatpush2.bf16.msra.mxu0 %v1388
        %4695 = vmatprep.subr.bf16.mxu0 0
        %4696 = vmatpush2.bf16.msra.mxu0 %v1387
        %4697 = vmatprep.subr.bf16.mxu0 0
        %4698 = vmatpush2.bf16.msra.mxu0 %v1386
        %4699 = vmatprep.subr.bf16.mxu0 0
        %4700 = vmatpush2.bf16.msra.mxu0 %v1385
        %4701 = vmatprep.subr.bf16.mxu0 0
        %4702 = vmatpush2.bf16.msra.mxu0 %v1384
        %4703 = vmatprep.subr.bf16.mxu0 0
        %4704 = vmatpush2.bf16.msra.mxu0 %v1383
        %4705 = vmatprep.subr.bf16.mxu0 0
        %4706 = vmatpush2.bf16.msra.mxu0 %v1382
        %4707 = vmatprep.mubr.bf16.mxu0 %v2967
        %4708 = vmatmul.mubr.bf16.gmra.mxu0 %v2953
        %v4709 = vpop.f32.mrf.mxu0
        %v4710 = vadd.f32 %v4670, %v4709
        %v4711 = vpop.f32.mrf.mxu0
        %v4712 = vpop.f32.mrf.mxu0
        %v4713 = vpop.f32.mrf.mxu0
        %4714 = vdwg.mxu0
        %4715 = vmatprep.subr.bf16.mxu0 0
        %4716 = vmatpush1.bf16.msra.mxu0 %v1397
        %4717 = vmatprep.subr.bf16.mxu0 0
        %4718 = vmatpush1.bf16.msra.mxu0 %v1396
        %4719 = vmatprep.subr.bf16.mxu0 0
        %4720 = vmatpush1.bf16.msra.mxu0 %v1395
        %4721 = vmatprep.subr.bf16.mxu0 0
        %4722 = vmatpush1.bf16.msra.mxu0 %v1394
        %4723 = vmatprep.subr.bf16.mxu0 0
        %4724 = vmatpush1.bf16.msra.mxu0 %v1393
        %4725 = vmatprep.subr.bf16.mxu0 0
        %4726 = vmatpush1.bf16.msra.mxu0 %v1392
        %4727 = vmatprep.subr.bf16.mxu0 0
        %4728 = vmatpush1.bf16.msra.mxu0 %v1391
        %4729 = vmatprep.subr.bf16.mxu0 0
        %4730 = vmatpush1.bf16.msra.mxu0 %v1390
        %4731 = vmatprep.subr.bf16.mxu0 0
        %4732 = vmatpush2.bf16.msra.mxu0 %v1405
        %4733 = vmatprep.subr.bf16.mxu0 0
        %4734 = vmatpush2.bf16.msra.mxu0 %v1404
        %4735 = vmatprep.subr.bf16.mxu0 0
        %4736 = vmatpush2.bf16.msra.mxu0 %v1403
        %4737 = vmatprep.subr.bf16.mxu0 0
        %4738 = vmatpush2.bf16.msra.mxu0 %v1402
        %4739 = vmatprep.subr.bf16.mxu0 0
        %4740 = vmatpush2.bf16.msra.mxu0 %v1401
        %4741 = vmatprep.subr.bf16.mxu0 0
        %4742 = vmatpush2.bf16.msra.mxu0 %v1400
        %4743 = vmatprep.subr.bf16.mxu0 0
        %4744 = vmatpush2.bf16.msra.mxu0 %v1399
        %4745 = vmatprep.subr.bf16.mxu0 0
        %4746 = vmatpush2.bf16.msra.mxu0 %v1398
        %4747 = vmatprep.mubr.bf16.mxu0 %v2977
        %4748 = vmatmul.mubr.bf16.gmra.mxu0 %v2975
        %v4749 = vpop.f32.mrf.mxu0
        %v4750 = vadd.f32 %v4710, %v4749
        %v4751 = vpop.f32.mrf.mxu0
        %v4752 = vpop.f32.mrf.mxu0
        %v4753 = vpop.f32.mrf.mxu0
        %4754 = vdwg.mxu0
        %4755 = vmatprep.subr.bf16.mxu0 0
        %4756 = vmatpush1.bf16.msra.mxu0 %v1413
        %4757 = vmatprep.subr.bf16.mxu0 0
        %4758 = vmatpush1.bf16.msra.mxu0 %v1412
        %4759 = vmatprep.subr.bf16.mxu0 0
        %4760 = vmatpush1.bf16.msra.mxu0 %v1411
        %4761 = vmatprep.subr.bf16.mxu0 0
        %4762 = vmatpush1.bf16.msra.mxu0 %v1410
        %4763 = vmatprep.subr.bf16.mxu0 0
        %4764 = vmatpush1.bf16.msra.mxu0 %v1409
        %4765 = vmatprep.subr.bf16.mxu0 0
        %4766 = vmatpush1.bf16.msra.mxu0 %v1408
        %4767 = vmatprep.subr.bf16.mxu0 0
        %4768 = vmatpush1.bf16.msra.mxu0 %v1407
        %4769 = vmatprep.subr.bf16.mxu0 0
        %4770 = vmatpush1.bf16.msra.mxu0 %v1406
        %4771 = vmatprep.subr.bf16.mxu0 0
        %4772 = vmatpush2.bf16.msra.mxu0 %v1421
        %4773 = vmatprep.subr.bf16.mxu0 0
        %4774 = vmatpush2.bf16.msra.mxu0 %v1420
        %4775 = vmatprep.subr.bf16.mxu0 0
        %4776 = vmatpush2.bf16.msra.mxu0 %v1419
        %4777 = vmatprep.subr.bf16.mxu0 0
        %4778 = vmatpush2.bf16.msra.mxu0 %v1418
        %4779 = vmatprep.subr.bf16.mxu0 0
        %4780 = vmatpush2.bf16.msra.mxu0 %v1417
        %4781 = vmatprep.subr.bf16.mxu0 0
        %4782 = vmatpush2.bf16.msra.mxu0 %v1416
        %4783 = vmatprep.subr.bf16.mxu0 0
        %4784 = vmatpush2.bf16.msra.mxu0 %v1415
        %4785 = vmatprep.subr.bf16.mxu0 0
        %4786 = vmatpush2.bf16.msra.mxu0 %v1414
        %4787 = vmatprep.mubr.bf16.mxu0 %v2974
        %4788 = vmatmul.mubr.bf16.gmra.mxu0 %v2960
        %v4789 = vpop.f32.mrf.mxu0
        %v4790 = vadd.f32 %v4750, %v4789
        %v4791 = vpop.f32.mrf.mxu0
        %v4792 = vpop.f32.mrf.mxu0
        %v4793 = vpop.f32.mrf.mxu0
        %4794 = vdwg.mxu0
        %4795 = vmatprep.subr.bf16.mxu0 0
        %4796 = vmatpush1.bf16.msra.mxu0 %v1429
        %4797 = vmatprep.subr.bf16.mxu0 0
        %4798 = vmatpush1.bf16.msra.mxu0 %v1428
        %4799 = vmatprep.subr.bf16.mxu0 0
        %4800 = vmatpush1.bf16.msra.mxu0 %v1427
        %4801 = vmatprep.subr.bf16.mxu0 0
        %4802 = vmatpush1.bf16.msra.mxu0 %v1426
        %4803 = vmatprep.subr.bf16.mxu0 0
        %4804 = vmatpush1.bf16.msra.mxu0 %v1425
        %4805 = vmatprep.subr.bf16.mxu0 0
        %4806 = vmatpush1.bf16.msra.mxu0 %v1424
        %4807 = vmatprep.subr.bf16.mxu0 0
        %4808 = vmatpush1.bf16.msra.mxu0 %v1423
        %4809 = vmatprep.subr.bf16.mxu0 0
        %4810 = vmatpush1.bf16.msra.mxu0 %v1422
        %4811 = vmatprep.subr.bf16.mxu0 0
        %4812 = vmatpush2.bf16.msra.mxu0 %v1437
        %4813 = vmatprep.subr.bf16.mxu0 0
        %4814 = vmatpush2.bf16.msra.mxu0 %v1436
        %4815 = vmatprep.subr.bf16.mxu0 0
        %4816 = vmatpush2.bf16.msra.mxu0 %v1435
        %4817 = vmatprep.subr.bf16.mxu0 0
        %4818 = vmatpush2.bf16.msra.mxu0 %v1434
        %4819 = vmatprep.subr.bf16.mxu0 0
        %4820 = vmatpush2.bf16.msra.mxu0 %v1433
        %4821 = vmatprep.subr.bf16.mxu0 0
        %4822 = vmatpush2.bf16.msra.mxu0 %v1432
        %4823 = vmatprep.subr.bf16.mxu0 0
        %4824 = vmatpush2.bf16.msra.mxu0 %v1431
        %4825 = vmatprep.subr.bf16.mxu0 0
        %4826 = vmatpush2.bf16.msra.mxu0 %v1430
        %4827 = vmatprep.mubr.bf16.mxu0 %v2978
        %4828 = vmatmul.mubr.bf16.gmra.mxu0 %v2976
        %v4829 = vpop.f32.mrf.mxu0
        %v4830 = vadd.f32 %v4790, %v4829
        %v4831 = vpop.f32.mrf.mxu0
        %v4832 = vpop.f32.mrf.mxu0
        %v4833 = vpop.f32.mrf.mxu0
        %4834 = vdwg.mxu0
        %4835 = vmatprep.subr.bf16.mxu0 0
        %4836 = vmatpush1.bf16.msra.mxu0 %v1445
        %4837 = vmatprep.subr.bf16.mxu0 0
        %4838 = vmatpush1.bf16.msra.mxu0 %v1444
        %4839 = vmatprep.subr.bf16.mxu0 0
        %4840 = vmatpush1.bf16.msra.mxu0 %v1443
        %4841 = vmatprep.subr.bf16.mxu0 0
        %4842 = vmatpush1.bf16.msra.mxu0 %v1442
        %4843 = vmatprep.subr.bf16.mxu0 0
        %4844 = vmatpush1.bf16.msra.mxu0 %v1441
        %4845 = vmatprep.subr.bf16.mxu0 0
        %4846 = vmatpush1.bf16.msra.mxu0 %v1440
        %4847 = vmatprep.subr.bf16.mxu0 0
        %4848 = vmatpush1.bf16.msra.mxu0 %v1439
        %4849 = vmatprep.subr.bf16.mxu0 0
        %4850 = vmatpush1.bf16.msra.mxu0 %v1438
        %4851 = vmatprep.subr.bf16.mxu0 0
        %4852 = vmatpush2.bf16.msra.mxu0 %v1453
        %4853 = vmatprep.subr.bf16.mxu0 0
        %4854 = vmatpush2.bf16.msra.mxu0 %v1452
        %4855 = vmatprep.subr.bf16.mxu0 0
        %4856 = vmatpush2.bf16.msra.mxu0 %v1451
        %4857 = vmatprep.subr.bf16.mxu0 0
        %4858 = vmatpush2.bf16.msra.mxu0 %v1450
        %4859 = vmatprep.subr.bf16.mxu0 0
        %4860 = vmatpush2.bf16.msra.mxu0 %v1449
        %4861 = vmatprep.subr.bf16.mxu0 0
        %4862 = vmatpush2.bf16.msra.mxu0 %v1448
        %4863 = vmatprep.subr.bf16.mxu0 0
        %4864 = vmatpush2.bf16.msra.mxu0 %v1447
        %4865 = vmatprep.subr.bf16.mxu0 0
        %4866 = vmatpush2.bf16.msra.mxu0 %v1446
        %4867 = vmatprep.mubr.bf16.mxu0 %v3016
        %4868 = vmatmul.mubr.bf16.gmra.mxu0 %v3002
        %v4869 = vpop.f32.mrf.mxu0
        %v4870 = vadd.f32 %v4830, %v4869
        %v4871 = vpop.f32.mrf.mxu0
        %v4872 = vpop.f32.mrf.mxu0
        %v4873 = vpop.f32.mrf.mxu0
        %4874 = vdwg.mxu0
        %4875 = vmatprep.subr.bf16.mxu0 0
        %4876 = vmatpush1.bf16.msra.mxu0 %v1461
        %4877 = vmatprep.subr.bf16.mxu0 0
        %4878 = vmatpush1.bf16.msra.mxu0 %v1460
        %4879 = vmatprep.subr.bf16.mxu0 0
        %4880 = vmatpush1.bf16.msra.mxu0 %v1459
        %4881 = vmatprep.subr.bf16.mxu0 0
        %4882 = vmatpush1.bf16.msra.mxu0 %v1458
        %4883 = vmatprep.subr.bf16.mxu0 0
        %4884 = vmatpush1.bf16.msra.mxu0 %v1457
        %4885 = vmatprep.subr.bf16.mxu0 0
        %4886 = vmatpush1.bf16.msra.mxu0 %v1456
        %4887 = vmatprep.subr.bf16.mxu0 0
        %4888 = vmatpush1.bf16.msra.mxu0 %v1455
        %4889 = vmatprep.subr.bf16.mxu0 0
        %4890 = vmatpush1.bf16.msra.mxu0 %v1454
        %4891 = vmatprep.subr.bf16.mxu0 0
        %4892 = vmatpush2.bf16.msra.mxu0 %v1469
        %4893 = vmatprep.subr.bf16.mxu0 0
        %4894 = vmatpush2.bf16.msra.mxu0 %v1468
        %4895 = vmatprep.subr.bf16.mxu0 0
        %4896 = vmatpush2.bf16.msra.mxu0 %v1467
        %4897 = vmatprep.subr.bf16.mxu0 0
        %4898 = vmatpush2.bf16.msra.mxu0 %v1466
        %4899 = vmatprep.subr.bf16.mxu0 0
        %4900 = vmatpush2.bf16.msra.mxu0 %v1465
        %4901 = vmatprep.subr.bf16.mxu0 0
        %4902 = vmatpush2.bf16.msra.mxu0 %v1464
        %4903 = vmatprep.subr.bf16.mxu0 0
        %4904 = vmatpush2.bf16.msra.mxu0 %v1463
        %4905 = vmatprep.subr.bf16.mxu0 0
        %4906 = vmatpush2.bf16.msra.mxu0 %v1462
        %4907 = vmatprep.mubr.bf16.mxu0 %v3026
        %4908 = vmatmul.mubr.bf16.gmra.mxu0 %v3024
        %v4909 = vpop.f32.mrf.mxu0
        %v4910 = vadd.f32 %v4870, %v4909
        %v4911 = vpop.f32.mrf.mxu0
        %v4912 = vpop.f32.mrf.mxu0
        %v4913 = vpop.f32.mrf.mxu0
        %4914 = vdwg.mxu0
        %4915 = vmatprep.subr.bf16.mxu0 0
        %4916 = vmatpush1.bf16.msra.mxu0 %v1477
        %4917 = vmatprep.subr.bf16.mxu0 0
        %4918 = vmatpush1.bf16.msra.mxu0 %v1476
        %4919 = vmatprep.subr.bf16.mxu0 0
        %4920 = vmatpush1.bf16.msra.mxu0 %v1475
        %4921 = vmatprep.subr.bf16.mxu0 0
        %4922 = vmatpush1.bf16.msra.mxu0 %v1474
        %4923 = vmatprep.subr.bf16.mxu0 0
        %4924 = vmatpush1.bf16.msra.mxu0 %v1473
        %4925 = vmatprep.subr.bf16.mxu0 0
        %4926 = vmatpush1.bf16.msra.mxu0 %v1472
        %4927 = vmatprep.subr.bf16.mxu0 0
        %4928 = vmatpush1.bf16.msra.mxu0 %v1471
        %4929 = vmatprep.subr.bf16.mxu0 0
        %4930 = vmatpush1.bf16.msra.mxu0 %v1470
        %4931 = vmatprep.subr.bf16.mxu0 0
        %4932 = vmatpush2.bf16.msra.mxu0 %v1485
        %4933 = vmatprep.subr.bf16.mxu0 0
        %4934 = vmatpush2.bf16.msra.mxu0 %v1484
        %4935 = vmatprep.subr.bf16.mxu0 0
        %4936 = vmatpush2.bf16.msra.mxu0 %v1483
        %4937 = vmatprep.subr.bf16.mxu0 0
        %4938 = vmatpush2.bf16.msra.mxu0 %v1482
        %4939 = vmatprep.subr.bf16.mxu0 0
        %4940 = vmatpush2.bf16.msra.mxu0 %v1481
        %4941 = vmatprep.subr.bf16.mxu0 0
        %4942 = vmatpush2.bf16.msra.mxu0 %v1480
        %4943 = vmatprep.subr.bf16.mxu0 0
        %4944 = vmatpush2.bf16.msra.mxu0 %v1479
        %4945 = vmatprep.subr.bf16.mxu0 0
        %4946 = vmatpush2.bf16.msra.mxu0 %v1478
        %4947 = vmatprep.mubr.bf16.mxu0 %v3023
        %4948 = vmatmul.mubr.bf16.gmra.mxu0 %v3009
        %v4949 = vpop.f32.mrf.mxu0
        %v4950 = vadd.f32 %v4910, %v4949
        %v4951 = vpop.f32.mrf.mxu0
        %v4952 = vpop.f32.mrf.mxu0
        %v4953 = vpop.f32.mrf.mxu0
        %4954 = vdwg.mxu0
        %4955 = vmatprep.subr.bf16.mxu0 0
        %4956 = vmatpush1.bf16.msra.mxu0 %v1493
        %4957 = vmatprep.subr.bf16.mxu0 0
        %4958 = vmatpush1.bf16.msra.mxu0 %v1492
        %4959 = vmatprep.subr.bf16.mxu0 0
        %4960 = vmatpush1.bf16.msra.mxu0 %v1491
        %4961 = vmatprep.subr.bf16.mxu0 0
        %4962 = vmatpush1.bf16.msra.mxu0 %v1490
        %4963 = vmatprep.subr.bf16.mxu0 0
        %4964 = vmatpush1.bf16.msra.mxu0 %v1489
        %4965 = vmatprep.subr.bf16.mxu0 0
        %4966 = vmatpush1.bf16.msra.mxu0 %v1488
        %4967 = vmatprep.subr.bf16.mxu0 0
        %4968 = vmatpush1.bf16.msra.mxu0 %v1487
        %4969 = vmatprep.subr.bf16.mxu0 0
        %4970 = vmatpush1.bf16.msra.mxu0 %v1486
        %4971 = vmatprep.subr.bf16.mxu0 0
        %4972 = vmatpush2.bf16.msra.mxu0 %v1501
        %4973 = vmatprep.subr.bf16.mxu0 0
        %4974 = vmatpush2.bf16.msra.mxu0 %v1500
        %4975 = vmatprep.subr.bf16.mxu0 0
        %4976 = vmatpush2.bf16.msra.mxu0 %v1499
        %4977 = vmatprep.subr.bf16.mxu0 0
        %4978 = vmatpush2.bf16.msra.mxu0 %v1498
        %4979 = vmatprep.subr.bf16.mxu0 0
        %4980 = vmatpush2.bf16.msra.mxu0 %v1497
        %4981 = vmatprep.subr.bf16.mxu0 0
        %4982 = vmatpush2.bf16.msra.mxu0 %v1496
        %4983 = vmatprep.subr.bf16.mxu0 0
        %4984 = vmatpush2.bf16.msra.mxu0 %v1495
        %4985 = vmatprep.subr.bf16.mxu0 0
        %4986 = vmatpush2.bf16.msra.mxu0 %v1494
        %4987 = vmatprep.mubr.bf16.mxu0 %v3027
        %4988 = vmatmul.mubr.bf16.gmra.mxu0 %v3025
        %v4989 = vpop.f32.mrf.mxu0
        %v4990 = vadd.f32 %v4950, %v4989
        %v4991 = vpop.f32.mrf.mxu0
        %v4992 = vpop.f32.mrf.mxu0
        %v4993 = vpop.f32.mrf.mxu0
        %4994 = vdwg.mxu0
        %4995 = vmatprep.subr.bf16.mxu0 0
        %4996 = vmatpush1.bf16.msra.mxu0 %v1509
        %4997 = vmatprep.subr.bf16.mxu0 0
        %4998 = vmatpush1.bf16.msra.mxu0 %v1508
        %4999 = vmatprep.subr.bf16.mxu0 0
        %5000 = vmatpush1.bf16.msra.mxu0 %v1507
        %5001 = vmatprep.subr.bf16.mxu0 0
        %5002 = vmatpush1.bf16.msra.mxu0 %v1506
        %5003 = vmatprep.subr.bf16.mxu0 0
        %5004 = vmatpush1.bf16.msra.mxu0 %v1505
        %5005 = vmatprep.subr.bf16.mxu0 0
        %5006 = vmatpush1.bf16.msra.mxu0 %v1504
        %5007 = vmatprep.subr.bf16.mxu0 0
        %5008 = vmatpush1.bf16.msra.mxu0 %v1503
        %5009 = vmatprep.subr.bf16.mxu0 0
        %5010 = vmatpush1.bf16.msra.mxu0 %v1502
        %5011 = vmatprep.subr.bf16.mxu0 0
        %5012 = vmatpush2.bf16.msra.mxu0 %v1517
        %5013 = vmatprep.subr.bf16.mxu0 0
        %5014 = vmatpush2.bf16.msra.mxu0 %v1516
        %5015 = vmatprep.subr.bf16.mxu0 0
        %5016 = vmatpush2.bf16.msra.mxu0 %v1515
        %5017 = vmatprep.subr.bf16.mxu0 0
        %5018 = vmatpush2.bf16.msra.mxu0 %v1514
        %5019 = vmatprep.subr.bf16.mxu0 0
        %5020 = vmatpush2.bf16.msra.mxu0 %v1513
        %5021 = vmatprep.subr.bf16.mxu0 0
        %5022 = vmatpush2.bf16.msra.mxu0 %v1512
        %5023 = vmatprep.subr.bf16.mxu0 0
        %5024 = vmatpush2.bf16.msra.mxu0 %v1511
        %5025 = vmatprep.subr.bf16.mxu0 0
        %5026 = vmatpush2.bf16.msra.mxu0 %v1510
        %5027 = vmatprep.mubr.bf16.mxu0 %v3065
        %5028 = vmatmul.mubr.bf16.gmra.mxu0 %v3051
        %v5029 = vpop.f32.mrf.mxu0
        %v5030 = vadd.f32 %v4990, %v5029
        %v5031 = vpop.f32.mrf.mxu0
        %v5032 = vpop.f32.mrf.mxu0
        %v5033 = vpop.f32.mrf.mxu0
        %5034 = vdwg.mxu0
        %5035 = vmatprep.subr.bf16.mxu0 0
        %5036 = vmatpush1.bf16.msra.mxu0 %v1525
        %5037 = vmatprep.subr.bf16.mxu0 0
        %5038 = vmatpush1.bf16.msra.mxu0 %v1524
        %5039 = vmatprep.subr.bf16.mxu0 0
        %5040 = vmatpush1.bf16.msra.mxu0 %v1523
        %5041 = vmatprep.subr.bf16.mxu0 0
        %5042 = vmatpush1.bf16.msra.mxu0 %v1522
        %5043 = vmatprep.subr.bf16.mxu0 0
        %5044 = vmatpush1.bf16.msra.mxu0 %v1521
        %5045 = vmatprep.subr.bf16.mxu0 0
        %5046 = vmatpush1.bf16.msra.mxu0 %v1520
        %5047 = vmatprep.subr.bf16.mxu0 0
        %5048 = vmatpush1.bf16.msra.mxu0 %v1519
        %5049 = vmatprep.subr.bf16.mxu0 0
        %5050 = vmatpush1.bf16.msra.mxu0 %v1518
        %5051 = vmatprep.subr.bf16.mxu0 0
        %5052 = vmatpush2.bf16.msra.mxu0 %v1533
        %5053 = vmatprep.subr.bf16.mxu0 0
        %5054 = vmatpush2.bf16.msra.mxu0 %v1532
        %5055 = vmatprep.subr.bf16.mxu0 0
        %5056 = vmatpush2.bf16.msra.mxu0 %v1531
        %5057 = vmatprep.subr.bf16.mxu0 0
        %5058 = vmatpush2.bf16.msra.mxu0 %v1530
        %5059 = vmatprep.subr.bf16.mxu0 0
        %5060 = vmatpush2.bf16.msra.mxu0 %v1529
        %5061 = vmatprep.subr.bf16.mxu0 0
        %5062 = vmatpush2.bf16.msra.mxu0 %v1528
        %5063 = vmatprep.subr.bf16.mxu0 0
        %5064 = vmatpush2.bf16.msra.mxu0 %v1527
        %5065 = vmatprep.subr.bf16.mxu0 0
        %5066 = vmatpush2.bf16.msra.mxu0 %v1526
        %5067 = vmatprep.mubr.bf16.mxu0 %v3075
        %5068 = vmatmul.mubr.bf16.gmra.mxu0 %v3073
        %v5069 = vpop.f32.mrf.mxu0
        %v5070 = vadd.f32 %v5030, %v5069
        %v5071 = vpop.f32.mrf.mxu0
        %v5072 = vpop.f32.mrf.mxu0
        %v5073 = vpop.f32.mrf.mxu0
        %5074 = vdwg.mxu0
        %5075 = vmatprep.subr.bf16.mxu0 0
        %5076 = vmatpush1.bf16.msra.mxu0 %v1541
        %5077 = vmatprep.subr.bf16.mxu0 0
        %5078 = vmatpush1.bf16.msra.mxu0 %v1540
        %5079 = vmatprep.subr.bf16.mxu0 0
        %5080 = vmatpush1.bf16.msra.mxu0 %v1539
        %5081 = vmatprep.subr.bf16.mxu0 0
        %5082 = vmatpush1.bf16.msra.mxu0 %v1538
        %5083 = vmatprep.subr.bf16.mxu0 0
        %5084 = vmatpush1.bf16.msra.mxu0 %v1537
        %5085 = vmatprep.subr.bf16.mxu0 0
        %5086 = vmatpush1.bf16.msra.mxu0 %v1536
        %5087 = vmatprep.subr.bf16.mxu0 0
        %5088 = vmatpush1.bf16.msra.mxu0 %v1535
        %5089 = vmatprep.subr.bf16.mxu0 0
        %5090 = vmatpush1.bf16.msra.mxu0 %v1534
        %5091 = vmatprep.subr.bf16.mxu0 0
        %5092 = vmatpush2.bf16.msra.mxu0 %v1549
        %5093 = vmatprep.subr.bf16.mxu0 0
        %5094 = vmatpush2.bf16.msra.mxu0 %v1548
        %5095 = vmatprep.subr.bf16.mxu0 0
        %5096 = vmatpush2.bf16.msra.mxu0 %v1547
        %5097 = vmatprep.subr.bf16.mxu0 0
        %5098 = vmatpush2.bf16.msra.mxu0 %v1546
        %5099 = vmatprep.subr.bf16.mxu0 0
        %5100 = vmatpush2.bf16.msra.mxu0 %v1545
        %5101 = vmatprep.subr.bf16.mxu0 0
        %5102 = vmatpush2.bf16.msra.mxu0 %v1544
        %5103 = vmatprep.subr.bf16.mxu0 0
        %5104 = vmatpush2.bf16.msra.mxu0 %v1543
        %5105 = vmatprep.subr.bf16.mxu0 0
        %5106 = vmatpush2.bf16.msra.mxu0 %v1542
        %5107 = vmatprep.mubr.bf16.mxu0 %v3072
        %5108 = vmatmul.mubr.bf16.gmra.mxu0 %v3058
        %v5109 = vpop.f32.mrf.mxu0
        %v5110 = vadd.f32 %v5070, %v5109
        %v5111 = vpop.f32.mrf.mxu0
        %v5112 = vpop.f32.mrf.mxu0
        %v5113 = vpop.f32.mrf.mxu0
        %5114 = vdwg.mxu0
        %5115 = vmatprep.subr.bf16.mxu0 0
        %5116 = vmatpush1.bf16.msra.mxu0 %v1557
        %5117 = vmatprep.subr.bf16.mxu0 0
        %5118 = vmatpush1.bf16.msra.mxu0 %v1556
        %5119 = vmatprep.subr.bf16.mxu0 0
        %5120 = vmatpush1.bf16.msra.mxu0 %v1555
        %5121 = vmatprep.subr.bf16.mxu0 0
        %5122 = vmatpush1.bf16.msra.mxu0 %v1554
        %5123 = vmatprep.subr.bf16.mxu0 0
        %5124 = vmatpush1.bf16.msra.mxu0 %v1553
        %5125 = vmatprep.subr.bf16.mxu0 0
        %5126 = vmatpush1.bf16.msra.mxu0 %v1552
        %5127 = vmatprep.subr.bf16.mxu0 0
        %5128 = vmatpush1.bf16.msra.mxu0 %v1551
        %5129 = vmatprep.subr.bf16.mxu0 0
        %5130 = vmatpush1.bf16.msra.mxu0 %v1550
        %5131 = vmatprep.subr.bf16.mxu0 0
        %5132 = vmatpush2.bf16.msra.mxu0 %v1565
        %5133 = vmatprep.subr.bf16.mxu0 0
        %5134 = vmatpush2.bf16.msra.mxu0 %v1564
        %5135 = vmatprep.subr.bf16.mxu0 0
        %5136 = vmatpush2.bf16.msra.mxu0 %v1563
        %5137 = vmatprep.subr.bf16.mxu0 0
        %5138 = vmatpush2.bf16.msra.mxu0 %v1562
        %5139 = vmatprep.subr.bf16.mxu0 0
        %5140 = vmatpush2.bf16.msra.mxu0 %v1561
        %5141 = vmatprep.subr.bf16.mxu0 0
        %5142 = vmatpush2.bf16.msra.mxu0 %v1560
        %5143 = vmatprep.subr.bf16.mxu0 0
        %5144 = vmatpush2.bf16.msra.mxu0 %v1559
        %5145 = vmatprep.subr.bf16.mxu0 0
        %5146 = vmatpush2.bf16.msra.mxu0 %v1558
        %5147 = vmatprep.mubr.bf16.mxu0 %v3076
        %5148 = vmatmul.mubr.bf16.gmra.mxu0 %v3074
        %v5149 = vpop.f32.mrf.mxu0
        %v5150 = vadd.f32 %v5110, %v5149
        %v5151 = vpop.f32.mrf.mxu0
        %v5152 = vpop.f32.mrf.mxu0
        %v5153 = vpop.f32.mrf.mxu0
        %5154 = vdwg.mxu0
        %5155 = vmatprep.subr.bf16.mxu0 0
        %5156 = vmatpush1.bf16.msra.mxu0 %v1573
        %5157 = vmatprep.subr.bf16.mxu0 0
        %5158 = vmatpush1.bf16.msra.mxu0 %v1572
        %5159 = vmatprep.subr.bf16.mxu0 0
        %5160 = vmatpush1.bf16.msra.mxu0 %v1571
        %5161 = vmatprep.subr.bf16.mxu0 0
        %5162 = vmatpush1.bf16.msra.mxu0 %v1570
        %5163 = vmatprep.subr.bf16.mxu0 0
        %5164 = vmatpush1.bf16.msra.mxu0 %v1569
        %5165 = vmatprep.subr.bf16.mxu0 0
        %5166 = vmatpush1.bf16.msra.mxu0 %v1568
        %5167 = vmatprep.subr.bf16.mxu0 0
        %5168 = vmatpush1.bf16.msra.mxu0 %v1567
        %5169 = vmatprep.subr.bf16.mxu0 0
        %5170 = vmatpush1.bf16.msra.mxu0 %v1566
        %5171 = vmatprep.subr.bf16.mxu0 0
        %5172 = vmatpush2.bf16.msra.mxu0 %v1581
        %5173 = vmatprep.subr.bf16.mxu0 0
        %5174 = vmatpush2.bf16.msra.mxu0 %v1580
        %5175 = vmatprep.subr.bf16.mxu0 0
        %5176 = vmatpush2.bf16.msra.mxu0 %v1579
        %5177 = vmatprep.subr.bf16.mxu0 0
        %5178 = vmatpush2.bf16.msra.mxu0 %v1578
        %5179 = vmatprep.subr.bf16.mxu0 0
        %5180 = vmatpush2.bf16.msra.mxu0 %v1577
        %5181 = vmatprep.subr.bf16.mxu0 0
        %5182 = vmatpush2.bf16.msra.mxu0 %v1576
        %5183 = vmatprep.subr.bf16.mxu0 0
        %5184 = vmatpush2.bf16.msra.mxu0 %v1575
        %5185 = vmatprep.subr.bf16.mxu0 0
        %5186 = vmatpush2.bf16.msra.mxu0 %v1574
        %5187 = vmatprep.mubr.bf16.mxu0 %v3114
        %5188 = vmatmul.mubr.bf16.gmra.mxu0 %v3100
        %v5189 = vpop.f32.mrf.mxu0
        %v5190 = vadd.f32 %v5150, %v5189
        %v5191 = vpop.f32.mrf.mxu0
        %v5192 = vpop.f32.mrf.mxu0
        %v5193 = vpop.f32.mrf.mxu0
        %5194 = vdwg.mxu0
        %5195 = vmatprep.subr.bf16.mxu0 0
        %5196 = vmatpush1.bf16.msra.mxu0 %v1589
        %5197 = vmatprep.subr.bf16.mxu0 0
        %5198 = vmatpush1.bf16.msra.mxu0 %v1588
        %5199 = vmatprep.subr.bf16.mxu0 0
        %5200 = vmatpush1.bf16.msra.mxu0 %v1587
        %5201 = vmatprep.subr.bf16.mxu0 0
        %5202 = vmatpush1.bf16.msra.mxu0 %v1586
        %5203 = vmatprep.subr.bf16.mxu0 0
        %5204 = vmatpush1.bf16.msra.mxu0 %v1585
        %5205 = vmatprep.subr.bf16.mxu0 0
        %5206 = vmatpush1.bf16.msra.mxu0 %v1584
        %5207 = vmatprep.subr.bf16.mxu0 0
        %5208 = vmatpush1.bf16.msra.mxu0 %v1583
        %5209 = vmatprep.subr.bf16.mxu0 0
        %5210 = vmatpush1.bf16.msra.mxu0 %v1582
        %5211 = vmatprep.subr.bf16.mxu0 0
        %5212 = vmatpush2.bf16.msra.mxu0 %v1597
        %5213 = vmatprep.subr.bf16.mxu0 0
        %5214 = vmatpush2.bf16.msra.mxu0 %v1596
        %5215 = vmatprep.subr.bf16.mxu0 0
        %5216 = vmatpush2.bf16.msra.mxu0 %v1595
        %5217 = vmatprep.subr.bf16.mxu0 0
        %5218 = vmatpush2.bf16.msra.mxu0 %v1594
        %5219 = vmatprep.subr.bf16.mxu0 0
        %5220 = vmatpush2.bf16.msra.mxu0 %v1593
        %5221 = vmatprep.subr.bf16.mxu0 0
        %5222 = vmatpush2.bf16.msra.mxu0 %v1592
        %5223 = vmatprep.subr.bf16.mxu0 0
        %5224 = vmatpush2.bf16.msra.mxu0 %v1591
        %5225 = vmatprep.subr.bf16.mxu0 0
        %5226 = vmatpush2.bf16.msra.mxu0 %v1590
        %5227 = vmatprep.mubr.bf16.mxu0 %v3124
        %5228 = vmatmul.mubr.bf16.gmra.mxu0 %v3122
        %v5229 = vpop.f32.mrf.mxu0
        %v5230 = vadd.f32 %v5190, %v5229
        %v5231 = vpop.f32.mrf.mxu0
        %v5232 = vpop.f32.mrf.mxu0
        %v5233 = vpop.f32.mrf.mxu0
        %5234 = vdwg.mxu0
        %5235 = vmatprep.subr.bf16.mxu0 0
        %5236 = vmatpush1.bf16.msra.mxu0 %v1605
        %5237 = vmatprep.subr.bf16.mxu0 0
        %5238 = vmatpush1.bf16.msra.mxu0 %v1604
        %5239 = vmatprep.subr.bf16.mxu0 0
        %5240 = vmatpush1.bf16.msra.mxu0 %v1603
        %5241 = vmatprep.subr.bf16.mxu0 0
        %5242 = vmatpush1.bf16.msra.mxu0 %v1602
        %5243 = vmatprep.subr.bf16.mxu0 0
        %5244 = vmatpush1.bf16.msra.mxu0 %v1601
        %5245 = vmatprep.subr.bf16.mxu0 0
        %5246 = vmatpush1.bf16.msra.mxu0 %v1600
        %5247 = vmatprep.subr.bf16.mxu0 0
        %5248 = vmatpush1.bf16.msra.mxu0 %v1599
        %5249 = vmatprep.subr.bf16.mxu0 0
        %5250 = vmatpush1.bf16.msra.mxu0 %v1598
        %5251 = vmatprep.subr.bf16.mxu0 0
        %5252 = vmatpush2.bf16.msra.mxu0 %v1613
        %5253 = vmatprep.subr.bf16.mxu0 0
        %5254 = vmatpush2.bf16.msra.mxu0 %v1612
        %5255 = vmatprep.subr.bf16.mxu0 0
        %5256 = vmatpush2.bf16.msra.mxu0 %v1611
        %5257 = vmatprep.subr.bf16.mxu0 0
        %5258 = vmatpush2.bf16.msra.mxu0 %v1610
        %5259 = vmatprep.subr.bf16.mxu0 0
        %5260 = vmatpush2.bf16.msra.mxu0 %v1609
        %5261 = vmatprep.subr.bf16.mxu0 0
        %5262 = vmatpush2.bf16.msra.mxu0 %v1608
        %5263 = vmatprep.subr.bf16.mxu0 0
        %5264 = vmatpush2.bf16.msra.mxu0 %v1607
        %5265 = vmatprep.subr.bf16.mxu0 0
        %5266 = vmatpush2.bf16.msra.mxu0 %v1606
        %5267 = vmatprep.mubr.bf16.mxu0 %v3121
        %5268 = vmatmul.mubr.bf16.gmra.mxu0 %v3107
        %v5269 = vpop.f32.mrf.mxu0
        %v5270 = vadd.f32 %v5230, %v5269
        %v5271 = vpop.f32.mrf.mxu0
        %v5272 = vpop.f32.mrf.mxu0
        %v5273 = vpop.f32.mrf.mxu0
        %5274 = vdwg.mxu0
        %5275 = vmatprep.subr.bf16.mxu0 0
        %5276 = vmatpush1.bf16.msra.mxu0 %v1621
        %5277 = vmatprep.subr.bf16.mxu0 0
        %5278 = vmatpush1.bf16.msra.mxu0 %v1620
        %5279 = vmatprep.subr.bf16.mxu0 0
        %5280 = vmatpush1.bf16.msra.mxu0 %v1619
        %5281 = vmatprep.subr.bf16.mxu0 0
        %5282 = vmatpush1.bf16.msra.mxu0 %v1618
        %5283 = vmatprep.subr.bf16.mxu0 0
        %5284 = vmatpush1.bf16.msra.mxu0 %v1617
        %5285 = vmatprep.subr.bf16.mxu0 0
        %5286 = vmatpush1.bf16.msra.mxu0 %v1616
        %5287 = vmatprep.subr.bf16.mxu0 0
        %5288 = vmatpush1.bf16.msra.mxu0 %v1615
        %5289 = vmatprep.subr.bf16.mxu0 0
        %5290 = vmatpush1.bf16.msra.mxu0 %v1614
        %5291 = vmatprep.subr.bf16.mxu0 0
        %5292 = vmatpush2.bf16.msra.mxu0 %v1629
        %5293 = vmatprep.subr.bf16.mxu0 0
        %5294 = vmatpush2.bf16.msra.mxu0 %v1628
        %5295 = vmatprep.subr.bf16.mxu0 0
        %5296 = vmatpush2.bf16.msra.mxu0 %v1627
        %5297 = vmatprep.subr.bf16.mxu0 0
        %5298 = vmatpush2.bf16.msra.mxu0 %v1626
        %5299 = vmatprep.subr.bf16.mxu0 0
        %5300 = vmatpush2.bf16.msra.mxu0 %v1625
        %5301 = vmatprep.subr.bf16.mxu0 0
        %5302 = vmatpush2.bf16.msra.mxu0 %v1624
        %5303 = vmatprep.subr.bf16.mxu0 0
        %5304 = vmatpush2.bf16.msra.mxu0 %v1623
        %5305 = vmatprep.subr.bf16.mxu0 0
        %5306 = vmatpush2.bf16.msra.mxu0 %v1622
        %5307 = vmatprep.mubr.bf16.mxu0 %v3125
        %5308 = vmatmul.mubr.bf16.gmra.mxu0 %v3123
        %v5309 = vpop.f32.mrf.mxu0
        %v5310 = vadd.f32 %v5270, %v5309
        %v5311 = vpop.f32.mrf.mxu0
        %v5312 = vpop.f32.mrf.mxu0
        %v5313 = vpop.f32.mrf.mxu0
        %5314 = vdwg.mxu0
        %5315 = vmatprep.subr.bf16.mxu0 0
        %5316 = vmatpush1.bf16.msra.mxu0 %v1637
        %5317 = vmatprep.subr.bf16.mxu0 0
        %5318 = vmatpush1.bf16.msra.mxu0 %v1636
        %5319 = vmatprep.subr.bf16.mxu0 0
        %5320 = vmatpush1.bf16.msra.mxu0 %v1635
        %5321 = vmatprep.subr.bf16.mxu0 0
        %5322 = vmatpush1.bf16.msra.mxu0 %v1634
        %5323 = vmatprep.subr.bf16.mxu0 0
        %5324 = vmatpush1.bf16.msra.mxu0 %v1633
        %5325 = vmatprep.subr.bf16.mxu0 0
        %5326 = vmatpush1.bf16.msra.mxu0 %v1632
        %5327 = vmatprep.subr.bf16.mxu0 0
        %5328 = vmatpush1.bf16.msra.mxu0 %v1631
        %5329 = vmatprep.subr.bf16.mxu0 0
        %5330 = vmatpush1.bf16.msra.mxu0 %v1630
        %5331 = vmatprep.subr.bf16.mxu0 0
        %5332 = vmatpush2.bf16.msra.mxu0 %v1645
        %5333 = vmatprep.subr.bf16.mxu0 0
        %5334 = vmatpush2.bf16.msra.mxu0 %v1644
        %5335 = vmatprep.subr.bf16.mxu0 0
        %5336 = vmatpush2.bf16.msra.mxu0 %v1643
        %5337 = vmatprep.subr.bf16.mxu0 0
        %5338 = vmatpush2.bf16.msra.mxu0 %v1642
        %5339 = vmatprep.subr.bf16.mxu0 0
        %5340 = vmatpush2.bf16.msra.mxu0 %v1641
        %5341 = vmatprep.subr.bf16.mxu0 0
        %5342 = vmatpush2.bf16.msra.mxu0 %v1640
        %5343 = vmatprep.subr.bf16.mxu0 0
        %5344 = vmatpush2.bf16.msra.mxu0 %v1639
        %5345 = vmatprep.subr.bf16.mxu0 0
        %5346 = vmatpush2.bf16.msra.mxu0 %v1638
        %5347 = vmatprep.mubr.bf16.mxu0 %v3163
        %5348 = vmatmul.mubr.bf16.gmra.mxu0 %v3149
        %v5349 = vpop.f32.mrf.mxu0
        %v5350 = vadd.f32 %v5310, %v5349
        %v5351 = vpop.f32.mrf.mxu0
        %v5352 = vpop.f32.mrf.mxu0
        %v5353 = vpop.f32.mrf.mxu0
        %5354 = vdwg.mxu0
        %5355 = vmatprep.subr.bf16.mxu0 0
        %5356 = vmatpush1.bf16.msra.mxu0 %v1653
        %5357 = vmatprep.subr.bf16.mxu0 0
        %5358 = vmatpush1.bf16.msra.mxu0 %v1652
        %5359 = vmatprep.subr.bf16.mxu0 0
        %5360 = vmatpush1.bf16.msra.mxu0 %v1651
        %5361 = vmatprep.subr.bf16.mxu0 0
        %5362 = vmatpush1.bf16.msra.mxu0 %v1650
        %5363 = vmatprep.subr.bf16.mxu0 0
        %5364 = vmatpush1.bf16.msra.mxu0 %v1649
        %5365 = vmatprep.subr.bf16.mxu0 0
        %5366 = vmatpush1.bf16.msra.mxu0 %v1648
        %5367 = vmatprep.subr.bf16.mxu0 0
        %5368 = vmatpush1.bf16.msra.mxu0 %v1647
        %5369 = vmatprep.subr.bf16.mxu0 0
        %5370 = vmatpush1.bf16.msra.mxu0 %v1646
        %5371 = vmatprep.subr.bf16.mxu0 0
        %5372 = vmatpush2.bf16.msra.mxu0 %v1661
        %5373 = vmatprep.subr.bf16.mxu0 0
        %5374 = vmatpush2.bf16.msra.mxu0 %v1660
        %5375 = vmatprep.subr.bf16.mxu0 0
        %5376 = vmatpush2.bf16.msra.mxu0 %v1659
        %5377 = vmatprep.subr.bf16.mxu0 0
        %5378 = vmatpush2.bf16.msra.mxu0 %v1658
        %5379 = vmatprep.subr.bf16.mxu0 0
        %5380 = vmatpush2.bf16.msra.mxu0 %v1657
        %5381 = vmatprep.subr.bf16.mxu0 0
        %5382 = vmatpush2.bf16.msra.mxu0 %v1656
        %5383 = vmatprep.subr.bf16.mxu0 0
        %5384 = vmatpush2.bf16.msra.mxu0 %v1655
        %5385 = vmatprep.subr.bf16.mxu0 0
        %5386 = vmatpush2.bf16.msra.mxu0 %v1654
        %5387 = vmatprep.mubr.bf16.mxu0 %v3173
        %5388 = vmatmul.mubr.bf16.gmra.mxu0 %v3171
        %v5389 = vpop.f32.mrf.mxu0
        %v5390 = vadd.f32 %v5350, %v5389
        %v5391 = vpop.f32.mrf.mxu0
        %v5392 = vpop.f32.mrf.mxu0
        %v5393 = vpop.f32.mrf.mxu0
        %5394 = vdwg.mxu0
        %5395 = vmatprep.subr.bf16.mxu0 0
        %5396 = vmatpush1.bf16.msra.mxu0 %v1669
        %5397 = vmatprep.subr.bf16.mxu0 0
        %5398 = vmatpush1.bf16.msra.mxu0 %v1668
        %5399 = vmatprep.subr.bf16.mxu0 0
        %5400 = vmatpush1.bf16.msra.mxu0 %v1667
        %5401 = vmatprep.subr.bf16.mxu0 0
        %5402 = vmatpush1.bf16.msra.mxu0 %v1666
        %5403 = vmatprep.subr.bf16.mxu0 0
        %5404 = vmatpush1.bf16.msra.mxu0 %v1665
        %5405 = vmatprep.subr.bf16.mxu0 0
        %5406 = vmatpush1.bf16.msra.mxu0 %v1664
        %5407 = vmatprep.subr.bf16.mxu0 0
        %5408 = vmatpush1.bf16.msra.mxu0 %v1663
        %5409 = vmatprep.subr.bf16.mxu0 0
        %5410 = vmatpush1.bf16.msra.mxu0 %v1662
        %5411 = vmatprep.subr.bf16.mxu0 0
        %5412 = vmatpush2.bf16.msra.mxu0 %v1677
        %5413 = vmatprep.subr.bf16.mxu0 0
        %5414 = vmatpush2.bf16.msra.mxu0 %v1676
        %5415 = vmatprep.subr.bf16.mxu0 0
        %5416 = vmatpush2.bf16.msra.mxu0 %v1675
        %5417 = vmatprep.subr.bf16.mxu0 0
        %5418 = vmatpush2.bf16.msra.mxu0 %v1674
        %5419 = vmatprep.subr.bf16.mxu0 0
        %5420 = vmatpush2.bf16.msra.mxu0 %v1673
        %5421 = vmatprep.subr.bf16.mxu0 0
        %5422 = vmatpush2.bf16.msra.mxu0 %v1672
        %5423 = vmatprep.subr.bf16.mxu0 0
        %5424 = vmatpush2.bf16.msra.mxu0 %v1671
        %5425 = vmatprep.subr.bf16.mxu0 0
        %5426 = vmatpush2.bf16.msra.mxu0 %v1670
        %5427 = vmatprep.mubr.bf16.mxu0 %v3170
        %5428 = vmatmul.mubr.bf16.gmra.mxu0 %v3156
        %v5429 = vpop.f32.mrf.mxu0
        %v5430 = vadd.f32 %v5390, %v5429
        %v5431 = vpop.f32.mrf.mxu0
        %v5432 = vpop.f32.mrf.mxu0
        %v5433 = vpop.f32.mrf.mxu0
        %5434 = vdwg.mxu0
        %5435 = vmatprep.subr.bf16.mxu0 0
        %5436 = vmatpush1.bf16.msra.mxu0 %v1685
        %5437 = vmatprep.subr.bf16.mxu0 0
        %5438 = vmatpush1.bf16.msra.mxu0 %v1684
        %5439 = vmatprep.subr.bf16.mxu0 0
        %5440 = vmatpush1.bf16.msra.mxu0 %v1683
        %5441 = vmatprep.subr.bf16.mxu0 0
        %5442 = vmatpush1.bf16.msra.mxu0 %v1682
        %5443 = vmatprep.subr.bf16.mxu0 0
        %5444 = vmatpush1.bf16.msra.mxu0 %v1681
        %5445 = vmatprep.subr.bf16.mxu0 0
        %5446 = vmatpush1.bf16.msra.mxu0 %v1680
        %5447 = vmatprep.subr.bf16.mxu0 0
        %5448 = vmatpush1.bf16.msra.mxu0 %v1679
        %5449 = vmatprep.subr.bf16.mxu0 0
        %5450 = vmatpush1.bf16.msra.mxu0 %v1678
        %5451 = vmatprep.subr.bf16.mxu0 0
        %5452 = vmatpush2.bf16.msra.mxu0 %v1693
        %5453 = vmatprep.subr.bf16.mxu0 0
        %5454 = vmatpush2.bf16.msra.mxu0 %v1692
        %5455 = vmatprep.subr.bf16.mxu0 0
        %5456 = vmatpush2.bf16.msra.mxu0 %v1691
        %5457 = vmatprep.subr.bf16.mxu0 0
        %5458 = vmatpush2.bf16.msra.mxu0 %v1690
        %5459 = vmatprep.subr.bf16.mxu0 0
        %5460 = vmatpush2.bf16.msra.mxu0 %v1689
        %5461 = vmatprep.subr.bf16.mxu0 0
        %5462 = vmatpush2.bf16.msra.mxu0 %v1688
        %5463 = vmatprep.subr.bf16.mxu0 0
        %5464 = vmatpush2.bf16.msra.mxu0 %v1687
        %5465 = vmatprep.subr.bf16.mxu0 0
        %5466 = vmatpush2.bf16.msra.mxu0 %v1686
        %5467 = vmatprep.mubr.bf16.mxu0 %v3174
        %5468 = vmatmul.mubr.bf16.gmra.mxu0 %v3172
        %v5469 = vpop.f32.mrf.mxu0
        %v5470 = vadd.f32 %v5430, %v5469
        %v5471 = vpop.f32.mrf.mxu0
        %v5472 = vpop.f32.mrf.mxu0
        %v5473 = vpop.f32.mrf.mxu0
        %5474 = vdwg.mxu0
        %5475 = vmatprep.subr.bf16.mxu0 0
        %5476 = vmatpush1.bf16.msra.mxu0 %v1701
        %5477 = vmatprep.subr.bf16.mxu0 0
        %5478 = vmatpush1.bf16.msra.mxu0 %v1700
        %5479 = vmatprep.subr.bf16.mxu0 0
        %5480 = vmatpush1.bf16.msra.mxu0 %v1699
        %5481 = vmatprep.subr.bf16.mxu0 0
        %5482 = vmatpush1.bf16.msra.mxu0 %v1698
        %5483 = vmatprep.subr.bf16.mxu0 0
        %5484 = vmatpush1.bf16.msra.mxu0 %v1697
        %5485 = vmatprep.subr.bf16.mxu0 0
        %5486 = vmatpush1.bf16.msra.mxu0 %v1696
        %5487 = vmatprep.subr.bf16.mxu0 0
        %5488 = vmatpush1.bf16.msra.mxu0 %v1695
        %5489 = vmatprep.subr.bf16.mxu0 0
        %5490 = vmatpush1.bf16.msra.mxu0 %v1694
        %5491 = vmatprep.subr.bf16.mxu0 0
        %5492 = vmatpush2.bf16.msra.mxu0 %v1709
        %5493 = vmatprep.subr.bf16.mxu0 0
        %5494 = vmatpush2.bf16.msra.mxu0 %v1708
        %5495 = vmatprep.subr.bf16.mxu0 0
        %5496 = vmatpush2.bf16.msra.mxu0 %v1707
        %5497 = vmatprep.subr.bf16.mxu0 0
        %5498 = vmatpush2.bf16.msra.mxu0 %v1706
        %5499 = vmatprep.subr.bf16.mxu0 0
        %5500 = vmatpush2.bf16.msra.mxu0 %v1705
        %5501 = vmatprep.subr.bf16.mxu0 0
        %5502 = vmatpush2.bf16.msra.mxu0 %v1704
        %5503 = vmatprep.subr.bf16.mxu0 0
        %5504 = vmatpush2.bf16.msra.mxu0 %v1703
        %5505 = vmatprep.subr.bf16.mxu0 0
        %5506 = vmatpush2.bf16.msra.mxu0 %v1702
        %5507 = vmatprep.mubr.bf16.mxu0 %v3212
        %5508 = vmatmul.mubr.bf16.gmra.mxu0 %v3198
        %v5509 = vpop.f32.mrf.mxu0
        %v5510 = vadd.f32 %v5470, %v5509
        %v5511 = vpop.f32.mrf.mxu0
        %v5512 = vpop.f32.mrf.mxu0
        %v5513 = vpop.f32.mrf.mxu0
        %5514 = vdwg.mxu0
        %5515 = vmatprep.subr.bf16.mxu0 0
        %5516 = vmatpush1.bf16.msra.mxu0 %v1717
        %5517 = vmatprep.subr.bf16.mxu0 0
        %5518 = vmatpush1.bf16.msra.mxu0 %v1716
        %5519 = vmatprep.subr.bf16.mxu0 0
        %5520 = vmatpush1.bf16.msra.mxu0 %v1715
        %5521 = vmatprep.subr.bf16.mxu0 0
        %5522 = vmatpush1.bf16.msra.mxu0 %v1714
        %5523 = vmatprep.subr.bf16.mxu0 0
        %5524 = vmatpush1.bf16.msra.mxu0 %v1713
        %5525 = vmatprep.subr.bf16.mxu0 0
        %5526 = vmatpush1.bf16.msra.mxu0 %v1712
        %5527 = vmatprep.subr.bf16.mxu0 0
        %5528 = vmatpush1.bf16.msra.mxu0 %v1711
        %5529 = vmatprep.subr.bf16.mxu0 0
        %5530 = vmatpush1.bf16.msra.mxu0 %v1710
        %5531 = vmatprep.subr.bf16.mxu0 0
        %5532 = vmatpush2.bf16.msra.mxu0 %v1725
        %5533 = vmatprep.subr.bf16.mxu0 0
        %5534 = vmatpush2.bf16.msra.mxu0 %v1724
        %5535 = vmatprep.subr.bf16.mxu0 0
        %5536 = vmatpush2.bf16.msra.mxu0 %v1723
        %5537 = vmatprep.subr.bf16.mxu0 0
        %5538 = vmatpush2.bf16.msra.mxu0 %v1722
        %5539 = vmatprep.subr.bf16.mxu0 0
        %5540 = vmatpush2.bf16.msra.mxu0 %v1721
        %5541 = vmatprep.subr.bf16.mxu0 0
        %5542 = vmatpush2.bf16.msra.mxu0 %v1720
        %5543 = vmatprep.subr.bf16.mxu0 0
        %5544 = vmatpush2.bf16.msra.mxu0 %v1719
        %5545 = vmatprep.subr.bf16.mxu0 0
        %5546 = vmatpush2.bf16.msra.mxu0 %v1718
        %5547 = vmatprep.mubr.bf16.mxu0 %v3222
        %5548 = vmatmul.mubr.bf16.gmra.mxu0 %v3220
        %v5549 = vpop.f32.mrf.mxu0
        %v5550 = vadd.f32 %v5510, %v5549
        %v5551 = vpop.f32.mrf.mxu0
        %v5552 = vpop.f32.mrf.mxu0
        %v5553 = vpop.f32.mrf.mxu0
        %5554 = vdwg.mxu0
        %5555 = vmatprep.subr.bf16.mxu0 0
        %5556 = vmatpush1.bf16.msra.mxu0 %v1733
        %5557 = vmatprep.subr.bf16.mxu0 0
        %5558 = vmatpush1.bf16.msra.mxu0 %v1732
        %5559 = vmatprep.subr.bf16.mxu0 0
        %5560 = vmatpush1.bf16.msra.mxu0 %v1731
        %5561 = vmatprep.subr.bf16.mxu0 0
        %5562 = vmatpush1.bf16.msra.mxu0 %v1730
        %5563 = vmatprep.subr.bf16.mxu0 0
        %5564 = vmatpush1.bf16.msra.mxu0 %v1729
        %5565 = vmatprep.subr.bf16.mxu0 0
        %5566 = vmatpush1.bf16.msra.mxu0 %v1728
        %5567 = vmatprep.subr.bf16.mxu0 0
        %5568 = vmatpush1.bf16.msra.mxu0 %v1727
        %5569 = vmatprep.subr.bf16.mxu0 0
        %5570 = vmatpush1.bf16.msra.mxu0 %v1726
        %5571 = vmatprep.subr.bf16.mxu0 0
        %5572 = vmatpush2.bf16.msra.mxu0 %v1741
        %5573 = vmatprep.subr.bf16.mxu0 0
        %5574 = vmatpush2.bf16.msra.mxu0 %v1740
        %5575 = vmatprep.subr.bf16.mxu0 0
        %5576 = vmatpush2.bf16.msra.mxu0 %v1739
        %5577 = vmatprep.subr.bf16.mxu0 0
        %5578 = vmatpush2.bf16.msra.mxu0 %v1738
        %5579 = vmatprep.subr.bf16.mxu0 0
        %5580 = vmatpush2.bf16.msra.mxu0 %v1737
        %5581 = vmatprep.subr.bf16.mxu0 0
        %5582 = vmatpush2.bf16.msra.mxu0 %v1736
        %5583 = vmatprep.subr.bf16.mxu0 0
        %5584 = vmatpush2.bf16.msra.mxu0 %v1735
        %5585 = vmatprep.subr.bf16.mxu0 0
        %5586 = vmatpush2.bf16.msra.mxu0 %v1734
        %5587 = vmatprep.mubr.bf16.mxu0 %v3219
        %5588 = vmatmul.mubr.bf16.gmra.mxu0 %v3205
        %v5589 = vpop.f32.mrf.mxu0
        %v5590 = vadd.f32 %v5550, %v5589
        %v5591 = vpop.f32.mrf.mxu0
        %v5592 = vpop.f32.mrf.mxu0
        %v5593 = vpop.f32.mrf.mxu0
        %5594 = vdwg.mxu0
        %5595 = vmatprep.subr.bf16.mxu0 0
        %5596 = vmatpush1.bf16.msra.mxu0 %v1749
        %5597 = vmatprep.subr.bf16.mxu0 0
        %5598 = vmatpush1.bf16.msra.mxu0 %v1748
        %5599 = vmatprep.subr.bf16.mxu0 0
        %5600 = vmatpush1.bf16.msra.mxu0 %v1747
        %5601 = vmatprep.subr.bf16.mxu0 0
        %5602 = vmatpush1.bf16.msra.mxu0 %v1746
        %5603 = vmatprep.subr.bf16.mxu0 0
        %5604 = vmatpush1.bf16.msra.mxu0 %v1745
        %5605 = vmatprep.subr.bf16.mxu0 0
        %5606 = vmatpush1.bf16.msra.mxu0 %v1744
        %5607 = vmatprep.subr.bf16.mxu0 0
        %5608 = vmatpush1.bf16.msra.mxu0 %v1743
        %5609 = vmatprep.subr.bf16.mxu0 0
        %5610 = vmatpush1.bf16.msra.mxu0 %v1742
        %5611 = vmatprep.subr.bf16.mxu0 0
        %5612 = vmatpush2.bf16.msra.mxu0 %v1757
        %5613 = vmatprep.subr.bf16.mxu0 0
        %5614 = vmatpush2.bf16.msra.mxu0 %v1756
        %5615 = vmatprep.subr.bf16.mxu0 0
        %5616 = vmatpush2.bf16.msra.mxu0 %v1755
        %5617 = vmatprep.subr.bf16.mxu0 0
        %5618 = vmatpush2.bf16.msra.mxu0 %v1754
        %5619 = vmatprep.subr.bf16.mxu0 0
        %5620 = vmatpush2.bf16.msra.mxu0 %v1753
        %5621 = vmatprep.subr.bf16.mxu0 0
        %5622 = vmatpush2.bf16.msra.mxu0 %v1752
        %5623 = vmatprep.subr.bf16.mxu0 0
        %5624 = vmatpush2.bf16.msra.mxu0 %v1751
        %5625 = vmatprep.subr.bf16.mxu0 0
        %5626 = vmatpush2.bf16.msra.mxu0 %v1750
        %5627 = vmatprep.mubr.bf16.mxu0 %v3223
        %5628 = vmatmul.mubr.bf16.gmra.mxu0 %v3221
        %v5629 = vpop.f32.mrf.mxu0
        %v5630 = vadd.f32 %v5590, %v5629
        %v5631 = vpop.f32.mrf.mxu0
        %v5632 = vpop.f32.mrf.mxu0
        %v5633 = vpop.f32.mrf.mxu0
        %5634 = vdwg.mxu0
        %5635 = vmatprep.subr.bf16.mxu0 0
        %5636 = vmatpush1.bf16.msra.mxu0 %v1765
        %5637 = vmatprep.subr.bf16.mxu0 0
        %5638 = vmatpush1.bf16.msra.mxu0 %v1764
        %5639 = vmatprep.subr.bf16.mxu0 0
        %5640 = vmatpush1.bf16.msra.mxu0 %v1763
        %5641 = vmatprep.subr.bf16.mxu0 0
        %5642 = vmatpush1.bf16.msra.mxu0 %v1762
        %5643 = vmatprep.subr.bf16.mxu0 0
        %5644 = vmatpush1.bf16.msra.mxu0 %v1761
        %5645 = vmatprep.subr.bf16.mxu0 0
        %5646 = vmatpush1.bf16.msra.mxu0 %v1760
        %5647 = vmatprep.subr.bf16.mxu0 0
        %5648 = vmatpush1.bf16.msra.mxu0 %v1759
        %5649 = vmatprep.subr.bf16.mxu0 0
        %5650 = vmatpush1.bf16.msra.mxu0 %v1758
        %5651 = vmatprep.subr.bf16.mxu0 0
        %5652 = vmatpush2.bf16.msra.mxu0 %v1773
        %5653 = vmatprep.subr.bf16.mxu0 0
        %5654 = vmatpush2.bf16.msra.mxu0 %v1772
        %5655 = vmatprep.subr.bf16.mxu0 0
        %5656 = vmatpush2.bf16.msra.mxu0 %v1771
        %5657 = vmatprep.subr.bf16.mxu0 0
        %5658 = vmatpush2.bf16.msra.mxu0 %v1770
        %5659 = vmatprep.subr.bf16.mxu0 0
        %5660 = vmatpush2.bf16.msra.mxu0 %v1769
        %5661 = vmatprep.subr.bf16.mxu0 0
        %5662 = vmatpush2.bf16.msra.mxu0 %v1768
        %5663 = vmatprep.subr.bf16.mxu0 0
        %5664 = vmatpush2.bf16.msra.mxu0 %v1767
        %5665 = vmatprep.subr.bf16.mxu0 0
        %5666 = vmatpush2.bf16.msra.mxu0 %v1766
        %5667 = vmatprep.mubr.bf16.mxu0 %v3261
        %5668 = vmatmul.mubr.bf16.gmra.mxu0 %v3247
        %v5669 = vpop.f32.mrf.mxu0
        %v5670 = vadd.f32 %v5630, %v5669
        %v5671 = vpop.f32.mrf.mxu0
        %v5672 = vpop.f32.mrf.mxu0
        %v5673 = vpop.f32.mrf.mxu0
        %5674 = vdwg.mxu0
        %5675 = vmatprep.subr.bf16.mxu0 0
        %5676 = vmatpush1.bf16.msra.mxu0 %v1781
        %5677 = vmatprep.subr.bf16.mxu0 0
        %5678 = vmatpush1.bf16.msra.mxu0 %v1780
        %5679 = vmatprep.subr.bf16.mxu0 0
        %5680 = vmatpush1.bf16.msra.mxu0 %v1779
        %5681 = vmatprep.subr.bf16.mxu0 0
        %5682 = vmatpush1.bf16.msra.mxu0 %v1778
        %5683 = vmatprep.subr.bf16.mxu0 0
        %5684 = vmatpush1.bf16.msra.mxu0 %v1777
        %5685 = vmatprep.subr.bf16.mxu0 0
        %5686 = vmatpush1.bf16.msra.mxu0 %v1776
        %5687 = vmatprep.subr.bf16.mxu0 0
        %5688 = vmatpush1.bf16.msra.mxu0 %v1775
        %5689 = vmatprep.subr.bf16.mxu0 0
        %5690 = vmatpush1.bf16.msra.mxu0 %v1774
        %5691 = vmatprep.subr.bf16.mxu0 0
        %5692 = vmatpush2.bf16.msra.mxu0 %v1789
        %5693 = vmatprep.subr.bf16.mxu0 0
        %5694 = vmatpush2.bf16.msra.mxu0 %v1788
        %5695 = vmatprep.subr.bf16.mxu0 0
        %5696 = vmatpush2.bf16.msra.mxu0 %v1787
        %5697 = vmatprep.subr.bf16.mxu0 0
        %5698 = vmatpush2.bf16.msra.mxu0 %v1786
        %5699 = vmatprep.subr.bf16.mxu0 0
        %5700 = vmatpush2.bf16.msra.mxu0 %v1785
        %5701 = vmatprep.subr.bf16.mxu0 0
        %5702 = vmatpush2.bf16.msra.mxu0 %v1784
        %5703 = vmatprep.subr.bf16.mxu0 0
        %5704 = vmatpush2.bf16.msra.mxu0 %v1783
        %5705 = vmatprep.subr.bf16.mxu0 0
        %5706 = vmatpush2.bf16.msra.mxu0 %v1782
        %5707 = vmatprep.mubr.bf16.mxu0 %v3271
        %5708 = vmatmul.mubr.bf16.gmra.mxu0 %v3269
        %v5709 = vpop.f32.mrf.mxu0
        %v5710 = vadd.f32 %v5670, %v5709
        %v5711 = vpop.f32.mrf.mxu0
        %v5712 = vpop.f32.mrf.mxu0
        %v5713 = vpop.f32.mrf.mxu0
        %5714 = vdwg.mxu0
        %5715 = vmatprep.subr.bf16.mxu0 0
        %5716 = vmatpush1.bf16.msra.mxu0 %v1797
        %5717 = vmatprep.subr.bf16.mxu0 0
        %5718 = vmatpush1.bf16.msra.mxu0 %v1796
        %5719 = vmatprep.subr.bf16.mxu0 0
        %5720 = vmatpush1.bf16.msra.mxu0 %v1795
        %5721 = vmatprep.subr.bf16.mxu0 0
        %5722 = vmatpush1.bf16.msra.mxu0 %v1794
        %5723 = vmatprep.subr.bf16.mxu0 0
        %5724 = vmatpush1.bf16.msra.mxu0 %v1793
        %5725 = vmatprep.subr.bf16.mxu0 0
        %5726 = vmatpush1.bf16.msra.mxu0 %v1792
        %5727 = vmatprep.subr.bf16.mxu0 0
        %5728 = vmatpush1.bf16.msra.mxu0 %v1791
        %5729 = vmatprep.subr.bf16.mxu0 0
        %5730 = vmatpush1.bf16.msra.mxu0 %v1790
        %5731 = vmatprep.subr.bf16.mxu0 0
        %5732 = vmatpush2.bf16.msra.mxu0 %v1805
        %5733 = vmatprep.subr.bf16.mxu0 0
        %5734 = vmatpush2.bf16.msra.mxu0 %v1804
        %5735 = vmatprep.subr.bf16.mxu0 0
        %5736 = vmatpush2.bf16.msra.mxu0 %v1803
        %5737 = vmatprep.subr.bf16.mxu0 0
        %5738 = vmatpush2.bf16.msra.mxu0 %v1802
        %5739 = vmatprep.subr.bf16.mxu0 0
        %5740 = vmatpush2.bf16.msra.mxu0 %v1801
        %5741 = vmatprep.subr.bf16.mxu0 0
        %5742 = vmatpush2.bf16.msra.mxu0 %v1800
        %5743 = vmatprep.subr.bf16.mxu0 0
        %5744 = vmatpush2.bf16.msra.mxu0 %v1799
        %5745 = vmatprep.subr.bf16.mxu0 0
        %5746 = vmatpush2.bf16.msra.mxu0 %v1798
        %5747 = vmatprep.mubr.bf16.mxu0 %v3268
        %5748 = vmatmul.mubr.bf16.gmra.mxu0 %v3254
        %v5749 = vpop.f32.mrf.mxu0
        %v5750 = vadd.f32 %v5710, %v5749
        %v5751 = vpop.f32.mrf.mxu0
        %v5752 = vpop.f32.mrf.mxu0
        %v5753 = vpop.f32.mrf.mxu0
        %5754 = vdwg.mxu0
        %5755 = vmatprep.subr.bf16.mxu0 0
        %5756 = vmatpush1.bf16.msra.mxu0 %v1813
        %5757 = vmatprep.subr.bf16.mxu0 0
        %5758 = vmatpush1.bf16.msra.mxu0 %v1812
        %5759 = vmatprep.subr.bf16.mxu0 0
        %5760 = vmatpush1.bf16.msra.mxu0 %v1811
        %5761 = vmatprep.subr.bf16.mxu0 0
        %5762 = vmatpush1.bf16.msra.mxu0 %v1810
        %5763 = vmatprep.subr.bf16.mxu0 0
        %5764 = vmatpush1.bf16.msra.mxu0 %v1809
        %5765 = vmatprep.subr.bf16.mxu0 0
        %5766 = vmatpush1.bf16.msra.mxu0 %v1808
        %5767 = vmatprep.subr.bf16.mxu0 0
        %5768 = vmatpush1.bf16.msra.mxu0 %v1807
        %5769 = vmatprep.subr.bf16.mxu0 0
        %5770 = vmatpush1.bf16.msra.mxu0 %v1806
        %5771 = vmatprep.subr.bf16.mxu0 0
        %5772 = vmatpush2.bf16.msra.mxu0 %v1821
        %5773 = vmatprep.subr.bf16.mxu0 0
        %5774 = vmatpush2.bf16.msra.mxu0 %v1820
        %5775 = vmatprep.subr.bf16.mxu0 0
        %5776 = vmatpush2.bf16.msra.mxu0 %v1819
        %5777 = vmatprep.subr.bf16.mxu0 0
        %5778 = vmatpush2.bf16.msra.mxu0 %v1818
        %5779 = vmatprep.subr.bf16.mxu0 0
        %5780 = vmatpush2.bf16.msra.mxu0 %v1817
        %5781 = vmatprep.subr.bf16.mxu0 0
        %5782 = vmatpush2.bf16.msra.mxu0 %v1816
        %5783 = vmatprep.subr.bf16.mxu0 0
        %5784 = vmatpush2.bf16.msra.mxu0 %v1815
        %5785 = vmatprep.subr.bf16.mxu0 0
        %5786 = vmatpush2.bf16.msra.mxu0 %v1814
        %5787 = vmatprep.mubr.bf16.mxu0 %v3272
        %5788 = vmatmul.mubr.bf16.gmra.mxu0 %v3270
        %v5789 = vpop.f32.mrf.mxu0
        %v5790 = vadd.f32 %v5750, %v5789
        %v5791 = vpop.f32.mrf.mxu0
        %v5792 = vpop.f32.mrf.mxu0
        %v5793 = vpop.f32.mrf.mxu0
        %5794 = vdwg.mxu0
        %5795 = vmatprep.subr.bf16.mxu0 0
        %5796 = vmatpush1.bf16.msra.mxu0 %v1829
        %5797 = vmatprep.subr.bf16.mxu0 0
        %5798 = vmatpush1.bf16.msra.mxu0 %v1828
        %5799 = vmatprep.subr.bf16.mxu0 0
        %5800 = vmatpush1.bf16.msra.mxu0 %v1827
        %5801 = vmatprep.subr.bf16.mxu0 0
        %5802 = vmatpush1.bf16.msra.mxu0 %v1826
        %5803 = vmatprep.subr.bf16.mxu0 0
        %5804 = vmatpush1.bf16.msra.mxu0 %v1825
        %5805 = vmatprep.subr.bf16.mxu0 0
        %5806 = vmatpush1.bf16.msra.mxu0 %v1824
        %5807 = vmatprep.subr.bf16.mxu0 0
        %5808 = vmatpush1.bf16.msra.mxu0 %v1823
        %5809 = vmatprep.subr.bf16.mxu0 0
        %5810 = vmatpush1.bf16.msra.mxu0 %v1822
        %5811 = vmatprep.subr.bf16.mxu0 0
        %5812 = vmatpush2.bf16.msra.mxu0 %v1837
        %5813 = vmatprep.subr.bf16.mxu0 0
        %5814 = vmatpush2.bf16.msra.mxu0 %v1836
        %5815 = vmatprep.subr.bf16.mxu0 0
        %5816 = vmatpush2.bf16.msra.mxu0 %v1835
        %5817 = vmatprep.subr.bf16.mxu0 0
        %5818 = vmatpush2.bf16.msra.mxu0 %v1834
        %5819 = vmatprep.subr.bf16.mxu0 0
        %5820 = vmatpush2.bf16.msra.mxu0 %v1833
        %5821 = vmatprep.subr.bf16.mxu0 0
        %5822 = vmatpush2.bf16.msra.mxu0 %v1832
        %5823 = vmatprep.subr.bf16.mxu0 0
        %5824 = vmatpush2.bf16.msra.mxu0 %v1831
        %5825 = vmatprep.subr.bf16.mxu0 0
        %5826 = vmatpush2.bf16.msra.mxu0 %v1830
        %5827 = vmatprep.mubr.bf16.mxu0 %v3310
        %5828 = vmatmul.mubr.bf16.gmra.mxu0 %v3296
        %v5829 = vpop.f32.mrf.mxu0
        %v5830 = vadd.f32 %v5790, %v5829
        %v5831 = vpop.f32.mrf.mxu0
        %v5832 = vpop.f32.mrf.mxu0
        %v5833 = vpop.f32.mrf.mxu0
        %5834 = vdwg.mxu0
        %5835 = vmatprep.subr.bf16.mxu0 0
        %5836 = vmatpush1.bf16.msra.mxu0 %v1845
        %5837 = vmatprep.subr.bf16.mxu0 0
        %5838 = vmatpush1.bf16.msra.mxu0 %v1844
        %5839 = vmatprep.subr.bf16.mxu0 0
        %5840 = vmatpush1.bf16.msra.mxu0 %v1843
        %5841 = vmatprep.subr.bf16.mxu0 0
        %5842 = vmatpush1.bf16.msra.mxu0 %v1842
        %5843 = vmatprep.subr.bf16.mxu0 0
        %5844 = vmatpush1.bf16.msra.mxu0 %v1841
        %5845 = vmatprep.subr.bf16.mxu0 0
        %5846 = vmatpush1.bf16.msra.mxu0 %v1840
        %5847 = vmatprep.subr.bf16.mxu0 0
        %5848 = vmatpush1.bf16.msra.mxu0 %v1839
        %5849 = vmatprep.subr.bf16.mxu0 0
        %5850 = vmatpush1.bf16.msra.mxu0 %v1838
        %5851 = vmatprep.subr.bf16.mxu0 0
        %5852 = vmatpush2.bf16.msra.mxu0 %v1853
        %5853 = vmatprep.subr.bf16.mxu0 0
        %5854 = vmatpush2.bf16.msra.mxu0 %v1852
        %5855 = vmatprep.subr.bf16.mxu0 0
        %5856 = vmatpush2.bf16.msra.mxu0 %v1851
        %5857 = vmatprep.subr.bf16.mxu0 0
        %5858 = vmatpush2.bf16.msra.mxu0 %v1850
        %5859 = vmatprep.subr.bf16.mxu0 0
        %5860 = vmatpush2.bf16.msra.mxu0 %v1849
        %5861 = vmatprep.subr.bf16.mxu0 0
        %5862 = vmatpush2.bf16.msra.mxu0 %v1848
        %5863 = vmatprep.subr.bf16.mxu0 0
        %5864 = vmatpush2.bf16.msra.mxu0 %v1847
        %5865 = vmatprep.subr.bf16.mxu0 0
        %5866 = vmatpush2.bf16.msra.mxu0 %v1846
        %5867 = vmatprep.mubr.bf16.mxu0 %v3320
        %5868 = vmatmul.mubr.bf16.gmra.mxu0 %v3318
        %v5869 = vpop.f32.mrf.mxu0
        %v5870 = vadd.f32 %v5830, %v5869
        %v5871 = vpop.f32.mrf.mxu0
        %v5872 = vpop.f32.mrf.mxu0
        %v5873 = vpop.f32.mrf.mxu0
        %5874 = vdwg.mxu0
        %5875 = vmatprep.subr.bf16.mxu0 0
        %5876 = vmatpush1.bf16.msra.mxu0 %v1861
        %5877 = vmatprep.subr.bf16.mxu0 0
        %5878 = vmatpush1.bf16.msra.mxu0 %v1860
        %5879 = vmatprep.subr.bf16.mxu0 0
        %5880 = vmatpush1.bf16.msra.mxu0 %v1859
        %5881 = vmatprep.subr.bf16.mxu0 0
        %5882 = vmatpush1.bf16.msra.mxu0 %v1858
        %5883 = vmatprep.subr.bf16.mxu0 0
        %5884 = vmatpush1.bf16.msra.mxu0 %v1857
        %5885 = vmatprep.subr.bf16.mxu0 0
        %5886 = vmatpush1.bf16.msra.mxu0 %v1856
        %5887 = vmatprep.subr.bf16.mxu0 0
        %5888 = vmatpush1.bf16.msra.mxu0 %v1855
        %5889 = vmatprep.subr.bf16.mxu0 0
        %5890 = vmatpush1.bf16.msra.mxu0 %v1854
        %5891 = vmatprep.subr.bf16.mxu0 0
        %5892 = vmatpush2.bf16.msra.mxu0 %v1869
        %5893 = vmatprep.subr.bf16.mxu0 0
        %5894 = vmatpush2.bf16.msra.mxu0 %v1868
        %5895 = vmatprep.subr.bf16.mxu0 0
        %5896 = vmatpush2.bf16.msra.mxu0 %v1867
        %5897 = vmatprep.subr.bf16.mxu0 0
        %5898 = vmatpush2.bf16.msra.mxu0 %v1866
        %5899 = vmatprep.subr.bf16.mxu0 0
        %5900 = vmatpush2.bf16.msra.mxu0 %v1865
        %5901 = vmatprep.subr.bf16.mxu0 0
        %5902 = vmatpush2.bf16.msra.mxu0 %v1864
        %5903 = vmatprep.subr.bf16.mxu0 0
        %5904 = vmatpush2.bf16.msra.mxu0 %v1863
        %5905 = vmatprep.subr.bf16.mxu0 0
        %5906 = vmatpush2.bf16.msra.mxu0 %v1862
        %5907 = vmatprep.mubr.bf16.mxu0 %v3317
        %5908 = vmatmul.mubr.bf16.gmra.mxu0 %v3303
        %v5909 = vpop.f32.mrf.mxu0
        %v5910 = vadd.f32 %v5870, %v5909
        %v5911 = vpop.f32.mrf.mxu0
        %v5912 = vpop.f32.mrf.mxu0
        %v5913 = vpop.f32.mrf.mxu0
        %5914 = vdwg.mxu0
        %5915 = vmatprep.subr.bf16.mxu0 0
        %5916 = vmatpush1.bf16.msra.mxu0 %v1877
        %5917 = vmatprep.subr.bf16.mxu0 0
        %5918 = vmatpush1.bf16.msra.mxu0 %v1876
        %5919 = vmatprep.subr.bf16.mxu0 0
        %5920 = vmatpush1.bf16.msra.mxu0 %v1875
        %5921 = vmatprep.subr.bf16.mxu0 0
        %5922 = vmatpush1.bf16.msra.mxu0 %v1874
        %5923 = vmatprep.subr.bf16.mxu0 0
        %5924 = vmatpush1.bf16.msra.mxu0 %v1873
        %5925 = vmatprep.subr.bf16.mxu0 0
        %5926 = vmatpush1.bf16.msra.mxu0 %v1872
        %5927 = vmatprep.subr.bf16.mxu0 0
        %5928 = vmatpush1.bf16.msra.mxu0 %v1871
        %5929 = vmatprep.subr.bf16.mxu0 0
        %5930 = vmatpush1.bf16.msra.mxu0 %v1870
        %5931 = vmatprep.subr.bf16.mxu0 0
        %5932 = vmatpush2.bf16.msra.mxu0 %v1885
        %5933 = vmatprep.subr.bf16.mxu0 0
        %5934 = vmatpush2.bf16.msra.mxu0 %v1884
        %5935 = vmatprep.subr.bf16.mxu0 0
        %5936 = vmatpush2.bf16.msra.mxu0 %v1883
        %5937 = vmatprep.subr.bf16.mxu0 0
        %5938 = vmatpush2.bf16.msra.mxu0 %v1882
        %5939 = vmatprep.subr.bf16.mxu0 0
        %5940 = vmatpush2.bf16.msra.mxu0 %v1881
        %5941 = vmatprep.subr.bf16.mxu0 0
        %5942 = vmatpush2.bf16.msra.mxu0 %v1880
        %5943 = vmatprep.subr.bf16.mxu0 0
        %5944 = vmatpush2.bf16.msra.mxu0 %v1879
        %5945 = vmatprep.subr.bf16.mxu0 0
        %5946 = vmatpush2.bf16.msra.mxu0 %v1878
        %5947 = vmatprep.mubr.bf16.mxu0 %v3321
        %5948 = vmatmul.mubr.bf16.gmra.mxu0 %v3319
        %v5949 = vpop.f32.mrf.mxu0
        %v5950 = vadd.f32 %v5910, %v5949
        %v5951 = vpop.f32.mrf.mxu0
        %v5952 = vpop.f32.mrf.mxu0
        %v5953 = vpop.f32.mrf.mxu0
        %5954 = vdwg.mxu0
        %5955 = vmatprep.subr.bf16.mxu0 0
        %5956 = vmatpush1.bf16.msra.mxu0 %v1893
        %5957 = vmatprep.subr.bf16.mxu0 0
        %5958 = vmatpush1.bf16.msra.mxu0 %v1892
        %5959 = vmatprep.subr.bf16.mxu0 0
        %5960 = vmatpush1.bf16.msra.mxu0 %v1891
        %5961 = vmatprep.subr.bf16.mxu0 0
        %5962 = vmatpush1.bf16.msra.mxu0 %v1890
        %5963 = vmatprep.subr.bf16.mxu0 0
        %5964 = vmatpush1.bf16.msra.mxu0 %v1889
        %5965 = vmatprep.subr.bf16.mxu0 0
        %5966 = vmatpush1.bf16.msra.mxu0 %v1888
        %5967 = vmatprep.subr.bf16.mxu0 0
        %5968 = vmatpush1.bf16.msra.mxu0 %v1887
        %5969 = vmatprep.subr.bf16.mxu0 0
        %5970 = vmatpush1.bf16.msra.mxu0 %v1886
        %5971 = vmatprep.subr.bf16.mxu0 0
        %5972 = vmatpush2.bf16.msra.mxu0 %v1901
        %5973 = vmatprep.subr.bf16.mxu0 0
        %5974 = vmatpush2.bf16.msra.mxu0 %v1900
        %5975 = vmatprep.subr.bf16.mxu0 0
        %5976 = vmatpush2.bf16.msra.mxu0 %v1899
        %5977 = vmatprep.subr.bf16.mxu0 0
        %5978 = vmatpush2.bf16.msra.mxu0 %v1898
        %5979 = vmatprep.subr.bf16.mxu0 0
        %5980 = vmatpush2.bf16.msra.mxu0 %v1897
        %5981 = vmatprep.subr.bf16.mxu0 0
        %5982 = vmatpush2.bf16.msra.mxu0 %v1896
        %5983 = vmatprep.subr.bf16.mxu0 0
        %5984 = vmatpush2.bf16.msra.mxu0 %v1895
        %5985 = vmatprep.subr.bf16.mxu0 0
        %5986 = vmatpush2.bf16.msra.mxu0 %v1894
        %5987 = vmatprep.mubr.bf16.mxu0 %v3359
        %5988 = vmatmul.mubr.bf16.gmra.mxu0 %v3345
        %v5989 = vpop.f32.mrf.mxu0
        %v5990 = vadd.f32 %v5950, %v5989
        %v5991 = vpop.f32.mrf.mxu0
        %v5992 = vpop.f32.mrf.mxu0
        %v5993 = vpop.f32.mrf.mxu0
        %5994 = vdwg.mxu0
        %5995 = vmatprep.subr.bf16.mxu0 0
        %5996 = vmatpush1.bf16.msra.mxu0 %v1909
        %5997 = vmatprep.subr.bf16.mxu0 0
        %5998 = vmatpush1.bf16.msra.mxu0 %v1908
        %5999 = vmatprep.subr.bf16.mxu0 0
        %6000 = vmatpush1.bf16.msra.mxu0 %v1907
        %6001 = vmatprep.subr.bf16.mxu0 0
        %6002 = vmatpush1.bf16.msra.mxu0 %v1906
        %6003 = vmatprep.subr.bf16.mxu0 0
        %6004 = vmatpush1.bf16.msra.mxu0 %v1905
        %6005 = vmatprep.subr.bf16.mxu0 0
        %6006 = vmatpush1.bf16.msra.mxu0 %v1904
        %6007 = vmatprep.subr.bf16.mxu0 0
        %6008 = vmatpush1.bf16.msra.mxu0 %v1903
        %6009 = vmatprep.subr.bf16.mxu0 0
        %6010 = vmatpush1.bf16.msra.mxu0 %v1902
        %6011 = vmatprep.subr.bf16.mxu0 0
        %6012 = vmatpush2.bf16.msra.mxu0 %v1917
        %6013 = vmatprep.subr.bf16.mxu0 0
        %6014 = vmatpush2.bf16.msra.mxu0 %v1916
        %6015 = vmatprep.subr.bf16.mxu0 0
        %6016 = vmatpush2.bf16.msra.mxu0 %v1915
        %6017 = vmatprep.subr.bf16.mxu0 0
        %6018 = vmatpush2.bf16.msra.mxu0 %v1914
        %6019 = vmatprep.subr.bf16.mxu0 0
        %6020 = vmatpush2.bf16.msra.mxu0 %v1913
        %6021 = vmatprep.subr.bf16.mxu0 0
        %6022 = vmatpush2.bf16.msra.mxu0 %v1912
        %6023 = vmatprep.subr.bf16.mxu0 0
        %6024 = vmatpush2.bf16.msra.mxu0 %v1911
        %6025 = vmatprep.subr.bf16.mxu0 0
        %6026 = vmatpush2.bf16.msra.mxu0 %v1910
        %6027 = vmatprep.mubr.bf16.mxu0 %v3369
        %6028 = vmatmul.mubr.bf16.gmra.mxu0 %v3367
        %v6029 = vpop.f32.mrf.mxu0
        %v6030 = vadd.f32 %v5990, %v6029
        %v6031 = vpop.f32.mrf.mxu0
        %v6032 = vpop.f32.mrf.mxu0
        %v6033 = vpop.f32.mrf.mxu0
        %6034 = vdwg.mxu0
        %6035 = vmatprep.subr.bf16.mxu0 0
        %6036 = vmatpush1.bf16.msra.mxu0 %v1925
        %6037 = vmatprep.subr.bf16.mxu0 0
        %6038 = vmatpush1.bf16.msra.mxu0 %v1924
        %6039 = vmatprep.subr.bf16.mxu0 0
        %6040 = vmatpush1.bf16.msra.mxu0 %v1923
        %6041 = vmatprep.subr.bf16.mxu0 0
        %6042 = vmatpush1.bf16.msra.mxu0 %v1922
        %6043 = vmatprep.subr.bf16.mxu0 0
        %6044 = vmatpush1.bf16.msra.mxu0 %v1921
        %6045 = vmatprep.subr.bf16.mxu0 0
        %6046 = vmatpush1.bf16.msra.mxu0 %v1920
        %6047 = vmatprep.subr.bf16.mxu0 0
        %6048 = vmatpush1.bf16.msra.mxu0 %v1919
        %6049 = vmatprep.subr.bf16.mxu0 0
        %6050 = vmatpush1.bf16.msra.mxu0 %v1918
        %6051 = vmatprep.subr.bf16.mxu0 0
        %6052 = vmatpush2.bf16.msra.mxu0 %v1933
        %6053 = vmatprep.subr.bf16.mxu0 0
        %6054 = vmatpush2.bf16.msra.mxu0 %v1932
        %6055 = vmatprep.subr.bf16.mxu0 0
        %6056 = vmatpush2.bf16.msra.mxu0 %v1931
        %6057 = vmatprep.subr.bf16.mxu0 0
        %6058 = vmatpush2.bf16.msra.mxu0 %v1930
        %6059 = vmatprep.subr.bf16.mxu0 0
        %6060 = vmatpush2.bf16.msra.mxu0 %v1929
        %6061 = vmatprep.subr.bf16.mxu0 0
        %6062 = vmatpush2.bf16.msra.mxu0 %v1928
        %6063 = vmatprep.subr.bf16.mxu0 0
        %6064 = vmatpush2.bf16.msra.mxu0 %v1927
        %6065 = vmatprep.subr.bf16.mxu0 0
        %6066 = vmatpush2.bf16.msra.mxu0 %v1926
        %6067 = vmatprep.mubr.bf16.mxu0 %v3366
        %6068 = vmatmul.mubr.bf16.gmra.mxu0 %v3352
        %v6069 = vpop.f32.mrf.mxu0
        %v6070 = vadd.f32 %v6030, %v6069
        %v6071 = vpop.f32.mrf.mxu0
        %v6072 = vpop.f32.mrf.mxu0
        %v6073 = vpop.f32.mrf.mxu0
        %6074 = vdwg.mxu0
        %6075 = vmatprep.subr.bf16.mxu0 0
        %6076 = vmatpush1.bf16.msra.mxu0 %v1941
        %6077 = vmatprep.subr.bf16.mxu0 0
        %6078 = vmatpush1.bf16.msra.mxu0 %v1940
        %6079 = vmatprep.subr.bf16.mxu0 0
        %6080 = vmatpush1.bf16.msra.mxu0 %v1939
        %6081 = vmatprep.subr.bf16.mxu0 0
        %6082 = vmatpush1.bf16.msra.mxu0 %v1938
        %6083 = vmatprep.subr.bf16.mxu0 0
        %6084 = vmatpush1.bf16.msra.mxu0 %v1937
        %6085 = vmatprep.subr.bf16.mxu0 0
        %6086 = vmatpush1.bf16.msra.mxu0 %v1936
        %6087 = vmatprep.subr.bf16.mxu0 0
        %6088 = vmatpush1.bf16.msra.mxu0 %v1935
        %6089 = vmatprep.subr.bf16.mxu0 0
        %6090 = vmatpush1.bf16.msra.mxu0 %v1934
        %6091 = vmatprep.subr.bf16.mxu0 0
        %6092 = vmatpush2.bf16.msra.mxu0 %v1949
        %6093 = vmatprep.subr.bf16.mxu0 0
        %6094 = vmatpush2.bf16.msra.mxu0 %v1948
        %6095 = vmatprep.subr.bf16.mxu0 0
        %6096 = vmatpush2.bf16.msra.mxu0 %v1947
        %6097 = vmatprep.subr.bf16.mxu0 0
        %6098 = vmatpush2.bf16.msra.mxu0 %v1946
        %6099 = vmatprep.subr.bf16.mxu0 0
        %6100 = vmatpush2.bf16.msra.mxu0 %v1945
        %6101 = vmatprep.subr.bf16.mxu0 0
        %6102 = vmatpush2.bf16.msra.mxu0 %v1944
        %6103 = vmatprep.subr.bf16.mxu0 0
        %6104 = vmatpush2.bf16.msra.mxu0 %v1943
        %6105 = vmatprep.subr.bf16.mxu0 0
        %6106 = vmatpush2.bf16.msra.mxu0 %v1942
        %6107 = vmatprep.mubr.bf16.mxu0 %v3370
        %6108 = vmatmul.mubr.bf16.gmra.mxu0 %v3368
        %v6109 = vpop.f32.mrf.mxu0
        %v6110 = vadd.f32 %v6070, %v6109
        %v6111 = vpop.f32.mrf.mxu0
        %v6112 = vpop.f32.mrf.mxu0
        %v6113 = vpop.f32.mrf.mxu0
        %6114 = vdwg.mxu0
        %6115 = vmatprep.subr.bf16.mxu0 0
        %6116 = vmatpush1.bf16.msra.mxu0 %v1957
        %6117 = vmatprep.subr.bf16.mxu0 0
        %6118 = vmatpush1.bf16.msra.mxu0 %v1956
        %6119 = vmatprep.subr.bf16.mxu0 0
        %6120 = vmatpush1.bf16.msra.mxu0 %v1955
        %6121 = vmatprep.subr.bf16.mxu0 0
        %6122 = vmatpush1.bf16.msra.mxu0 %v1954
        %6123 = vmatprep.subr.bf16.mxu0 0
        %6124 = vmatpush1.bf16.msra.mxu0 %v1953
        %6125 = vmatprep.subr.bf16.mxu0 0
        %6126 = vmatpush1.bf16.msra.mxu0 %v1952
        %6127 = vmatprep.subr.bf16.mxu0 0
        %6128 = vmatpush1.bf16.msra.mxu0 %v1951
        %6129 = vmatprep.subr.bf16.mxu0 0
        %6130 = vmatpush1.bf16.msra.mxu0 %v1950
        %6131 = vmatprep.subr.bf16.mxu0 0
        %6132 = vmatpush2.bf16.msra.mxu0 %v1965
        %6133 = vmatprep.subr.bf16.mxu0 0
        %6134 = vmatpush2.bf16.msra.mxu0 %v1964
        %6135 = vmatprep.subr.bf16.mxu0 0
        %6136 = vmatpush2.bf16.msra.mxu0 %v1963
        %6137 = vmatprep.subr.bf16.mxu0 0
        %6138 = vmatpush2.bf16.msra.mxu0 %v1962
        %6139 = vmatprep.subr.bf16.mxu0 0
        %6140 = vmatpush2.bf16.msra.mxu0 %v1961
        %6141 = vmatprep.subr.bf16.mxu0 0
        %6142 = vmatpush2.bf16.msra.mxu0 %v1960
        %6143 = vmatprep.subr.bf16.mxu0 0
        %6144 = vmatpush2.bf16.msra.mxu0 %v1959
        %6145 = vmatprep.subr.bf16.mxu0 0
        %6146 = vmatpush2.bf16.msra.mxu0 %v1958
        %6147 = vmatprep.mubr.bf16.mxu0 %v3408
        %6148 = vmatmul.mubr.bf16.gmra.mxu0 %v3394
        %v6149 = vpop.f32.mrf.mxu0
        %v6150 = vadd.f32 %v6110, %v6149
        %v6151 = vpop.f32.mrf.mxu0
        %v6152 = vpop.f32.mrf.mxu0
        %v6153 = vpop.f32.mrf.mxu0
        %6154 = vdwg.mxu0
        %6155 = vmatprep.subr.bf16.mxu0 0
        %6156 = vmatpush1.bf16.msra.mxu0 %v1973
        %6157 = vmatprep.subr.bf16.mxu0 0
        %6158 = vmatpush1.bf16.msra.mxu0 %v1972
        %6159 = vmatprep.subr.bf16.mxu0 0
        %6160 = vmatpush1.bf16.msra.mxu0 %v1971
        %6161 = vmatprep.subr.bf16.mxu0 0
        %6162 = vmatpush1.bf16.msra.mxu0 %v1970
        %6163 = vmatprep.subr.bf16.mxu0 0
        %6164 = vmatpush1.bf16.msra.mxu0 %v1969
        %6165 = vmatprep.subr.bf16.mxu0 0
        %6166 = vmatpush1.bf16.msra.mxu0 %v1968
        %6167 = vmatprep.subr.bf16.mxu0 0
        %6168 = vmatpush1.bf16.msra.mxu0 %v1967
        %6169 = vmatprep.subr.bf16.mxu0 0
        %6170 = vmatpush1.bf16.msra.mxu0 %v1966
        %6171 = vmatprep.subr.bf16.mxu0 0
        %6172 = vmatpush2.bf16.msra.mxu0 %v1981
        %6173 = vmatprep.subr.bf16.mxu0 0
        %6174 = vmatpush2.bf16.msra.mxu0 %v1980
        %6175 = vmatprep.subr.bf16.mxu0 0
        %6176 = vmatpush2.bf16.msra.mxu0 %v1979
        %6177 = vmatprep.subr.bf16.mxu0 0
        %6178 = vmatpush2.bf16.msra.mxu0 %v1978
        %6179 = vmatprep.subr.bf16.mxu0 0
        %6180 = vmatpush2.bf16.msra.mxu0 %v1977
        %6181 = vmatprep.subr.bf16.mxu0 0
        %6182 = vmatpush2.bf16.msra.mxu0 %v1976
        %6183 = vmatprep.subr.bf16.mxu0 0
        %6184 = vmatpush2.bf16.msra.mxu0 %v1975
        %6185 = vmatprep.subr.bf16.mxu0 0
        %6186 = vmatpush2.bf16.msra.mxu0 %v1974
        %6187 = vmatprep.mubr.bf16.mxu0 %v3418
        %6188 = vmatmul.mubr.bf16.gmra.mxu0 %v3416
        %v6189 = vpop.f32.mrf.mxu0
        %v6190 = vadd.f32 %v6150, %v6189
        %v6191 = vpop.f32.mrf.mxu0
        %v6192 = vpop.f32.mrf.mxu0
        %v6193 = vpop.f32.mrf.mxu0
        %6194 = vdwg.mxu0
        %6195 = vmatprep.subr.bf16.mxu0 0
        %6196 = vmatpush1.bf16.msra.mxu0 %v1989
        %6197 = vmatprep.subr.bf16.mxu0 0
        %6198 = vmatpush1.bf16.msra.mxu0 %v1988
        %6199 = vmatprep.subr.bf16.mxu0 0
        %6200 = vmatpush1.bf16.msra.mxu0 %v1987
        %6201 = vmatprep.subr.bf16.mxu0 0
        %6202 = vmatpush1.bf16.msra.mxu0 %v1986
        %6203 = vmatprep.subr.bf16.mxu0 0
        %6204 = vmatpush1.bf16.msra.mxu0 %v1985
        %6205 = vmatprep.subr.bf16.mxu0 0
        %6206 = vmatpush1.bf16.msra.mxu0 %v1984
        %6207 = vmatprep.subr.bf16.mxu0 0
        %6208 = vmatpush1.bf16.msra.mxu0 %v1983
        %6209 = vmatprep.subr.bf16.mxu0 0
        %6210 = vmatpush1.bf16.msra.mxu0 %v1982
        %6211 = vmatprep.subr.bf16.mxu0 0
        %6212 = vmatpush2.bf16.msra.mxu0 %v1997
        %6213 = vmatprep.subr.bf16.mxu0 0
        %6214 = vmatpush2.bf16.msra.mxu0 %v1996
        %6215 = vmatprep.subr.bf16.mxu0 0
        %6216 = vmatpush2.bf16.msra.mxu0 %v1995
        %6217 = vmatprep.subr.bf16.mxu0 0
        %6218 = vmatpush2.bf16.msra.mxu0 %v1994
        %6219 = vmatprep.subr.bf16.mxu0 0
        %6220 = vmatpush2.bf16.msra.mxu0 %v1993
        %6221 = vmatprep.subr.bf16.mxu0 0
        %6222 = vmatpush2.bf16.msra.mxu0 %v1992
        %6223 = vmatprep.subr.bf16.mxu0 0
        %6224 = vmatpush2.bf16.msra.mxu0 %v1991
        %6225 = vmatprep.subr.bf16.mxu0 0
        %6226 = vmatpush2.bf16.msra.mxu0 %v1990
        %6227 = vmatprep.mubr.bf16.mxu0 %v3415
        %6228 = vmatmul.mubr.bf16.gmra.mxu0 %v3401
        %v6229 = vpop.f32.mrf.mxu0
        %v6230 = vadd.f32 %v6190, %v6229
        %v6231 = vpop.f32.mrf.mxu0
        %v6232 = vpop.f32.mrf.mxu0
        %v6233 = vpop.f32.mrf.mxu0
        %6234 = vdwg.mxu0
        %6235 = vmatprep.subr.bf16.mxu0 0
        %6236 = vmatpush1.bf16.msra.mxu0 %v2005
        %6237 = vmatprep.subr.bf16.mxu0 0
        %6238 = vmatpush1.bf16.msra.mxu0 %v2004
        %6239 = vmatprep.subr.bf16.mxu0 0
        %6240 = vmatpush1.bf16.msra.mxu0 %v2003
        %6241 = vmatprep.subr.bf16.mxu0 0
        %6242 = vmatpush1.bf16.msra.mxu0 %v2002
        %6243 = vmatprep.subr.bf16.mxu0 0
        %6244 = vmatpush1.bf16.msra.mxu0 %v2001
        %6245 = vmatprep.subr.bf16.mxu0 0
        %6246 = vmatpush1.bf16.msra.mxu0 %v2000
        %6247 = vmatprep.subr.bf16.mxu0 0
        %6248 = vmatpush1.bf16.msra.mxu0 %v1999
        %6249 = vmatprep.subr.bf16.mxu0 0
        %6250 = vmatpush1.bf16.msra.mxu0 %v1998
        %6251 = vmatprep.subr.bf16.mxu0 0
        %6252 = vmatpush2.bf16.msra.mxu0 %v2013
        %6253 = vmatprep.subr.bf16.mxu0 0
        %6254 = vmatpush2.bf16.msra.mxu0 %v2012
        %6255 = vmatprep.subr.bf16.mxu0 0
        %6256 = vmatpush2.bf16.msra.mxu0 %v2011
        %6257 = vmatprep.subr.bf16.mxu0 0
        %6258 = vmatpush2.bf16.msra.mxu0 %v2010
        %6259 = vmatprep.subr.bf16.mxu0 0
        %6260 = vmatpush2.bf16.msra.mxu0 %v2009
        %6261 = vmatprep.subr.bf16.mxu0 0
        %6262 = vmatpush2.bf16.msra.mxu0 %v2008
        %6263 = vmatprep.subr.bf16.mxu0 0
        %6264 = vmatpush2.bf16.msra.mxu0 %v2007
        %6265 = vmatprep.subr.bf16.mxu0 0
        %6266 = vmatpush2.bf16.msra.mxu0 %v2006
        %6267 = vmatprep.mubr.bf16.mxu0 %v3419
        %6268 = vmatmul.mubr.bf16.gmra.mxu0 %v3417
        %v6269 = vpop.f32.mrf.mxu0
        %v6270 = vadd.f32 %v6230, %v6269
        %v6271 = vpop.f32.mrf.mxu0
        %v6272 = vpop.f32.mrf.mxu0
        %v6273 = vpop.f32.mrf.mxu0
        %6274 = vdwg.mxu0
        %6275 = vmatprep.subr.bf16.mxu0 0
        %6276 = vmatpush1.bf16.msra.mxu0 %v2021
        %6277 = vmatprep.subr.bf16.mxu0 0
        %6278 = vmatpush1.bf16.msra.mxu0 %v2020
        %6279 = vmatprep.subr.bf16.mxu0 0
        %6280 = vmatpush1.bf16.msra.mxu0 %v2019
        %6281 = vmatprep.subr.bf16.mxu0 0
        %6282 = vmatpush1.bf16.msra.mxu0 %v2018
        %6283 = vmatprep.subr.bf16.mxu0 0
        %6284 = vmatpush1.bf16.msra.mxu0 %v2017
        %6285 = vmatprep.subr.bf16.mxu0 0
        %6286 = vmatpush1.bf16.msra.mxu0 %v2016
        %6287 = vmatprep.subr.bf16.mxu0 0
        %6288 = vmatpush1.bf16.msra.mxu0 %v2015
        %6289 = vmatprep.subr.bf16.mxu0 0
        %6290 = vmatpush1.bf16.msra.mxu0 %v2014
        %6291 = vmatprep.subr.bf16.mxu0 0
        %6292 = vmatpush2.bf16.msra.mxu0 %v2029
        %6293 = vmatprep.subr.bf16.mxu0 0
        %6294 = vmatpush2.bf16.msra.mxu0 %v2028
        %6295 = vmatprep.subr.bf16.mxu0 0
        %6296 = vmatpush2.bf16.msra.mxu0 %v2027
        %6297 = vmatprep.subr.bf16.mxu0 0
        %6298 = vmatpush2.bf16.msra.mxu0 %v2026
        %6299 = vmatprep.subr.bf16.mxu0 0
        %6300 = vmatpush2.bf16.msra.mxu0 %v2025
        %6301 = vmatprep.subr.bf16.mxu0 0
        %6302 = vmatpush2.bf16.msra.mxu0 %v2024
        %6303 = vmatprep.subr.bf16.mxu0 0
        %6304 = vmatpush2.bf16.msra.mxu0 %v2023
        %6305 = vmatprep.subr.bf16.mxu0 0
        %6306 = vmatpush2.bf16.msra.mxu0 %v2022
        %6307 = vmatprep.mubr.bf16.mxu0 %v3457
        %6308 = vmatmul.mubr.bf16.gmra.mxu0 %v3443
        %v6309 = vpop.f32.mrf.mxu0
        %v6310 = vadd.f32 %v6270, %v6309
        %v6311 = vpop.f32.mrf.mxu0
        %v6312 = vpop.f32.mrf.mxu0
        %v6313 = vpop.f32.mrf.mxu0
        %6314 = vdwg.mxu0
        %6315 = vmatprep.subr.bf16.mxu0 0
        %6316 = vmatpush1.bf16.msra.mxu0 %v2037
        %6317 = vmatprep.subr.bf16.mxu0 0
        %6318 = vmatpush1.bf16.msra.mxu0 %v2036
        %6319 = vmatprep.subr.bf16.mxu0 0
        %6320 = vmatpush1.bf16.msra.mxu0 %v2035
        %6321 = vmatprep.subr.bf16.mxu0 0
        %6322 = vmatpush1.bf16.msra.mxu0 %v2034
        %6323 = vmatprep.subr.bf16.mxu0 0
        %6324 = vmatpush1.bf16.msra.mxu0 %v2033
        %6325 = vmatprep.subr.bf16.mxu0 0
        %6326 = vmatpush1.bf16.msra.mxu0 %v2032
        %6327 = vmatprep.subr.bf16.mxu0 0
        %6328 = vmatpush1.bf16.msra.mxu0 %v2031
        %6329 = vmatprep.subr.bf16.mxu0 0
        %6330 = vmatpush1.bf16.msra.mxu0 %v2030
        %6331 = vmatprep.subr.bf16.mxu0 0
        %6332 = vmatpush2.bf16.msra.mxu0 %v2045
        %6333 = vmatprep.subr.bf16.mxu0 0
        %6334 = vmatpush2.bf16.msra.mxu0 %v2044
        %6335 = vmatprep.subr.bf16.mxu0 0
        %6336 = vmatpush2.bf16.msra.mxu0 %v2043
        %6337 = vmatprep.subr.bf16.mxu0 0
        %6338 = vmatpush2.bf16.msra.mxu0 %v2042
        %6339 = vmatprep.subr.bf16.mxu0 0
        %6340 = vmatpush2.bf16.msra.mxu0 %v2041
        %6341 = vmatprep.subr.bf16.mxu0 0
        %6342 = vmatpush2.bf16.msra.mxu0 %v2040
        %6343 = vmatprep.subr.bf16.mxu0 0
        %6344 = vmatpush2.bf16.msra.mxu0 %v2039
        %6345 = vmatprep.subr.bf16.mxu0 0
        %6346 = vmatpush2.bf16.msra.mxu0 %v2038
        %6347 = vmatprep.mubr.bf16.mxu0 %v3467
        %6348 = vmatmul.mubr.bf16.gmra.mxu0 %v3465
        %v6349 = vpop.f32.mrf.mxu0
        %v6350 = vadd.f32 %v6310, %v6349
        %v6351 = vpop.f32.mrf.mxu0
        %v6352 = vpop.f32.mrf.mxu0
        %v6353 = vpop.f32.mrf.mxu0
        %6354 = vdwg.mxu0
        %6355 = vmatprep.subr.bf16.mxu0 0
        %6356 = vmatpush1.bf16.msra.mxu0 %v2053
        %6357 = vmatprep.subr.bf16.mxu0 0
        %6358 = vmatpush1.bf16.msra.mxu0 %v2052
        %6359 = vmatprep.subr.bf16.mxu0 0
        %6360 = vmatpush1.bf16.msra.mxu0 %v2051
        %6361 = vmatprep.subr.bf16.mxu0 0
        %6362 = vmatpush1.bf16.msra.mxu0 %v2050
        %6363 = vmatprep.subr.bf16.mxu0 0
        %6364 = vmatpush1.bf16.msra.mxu0 %v2049
        %6365 = vmatprep.subr.bf16.mxu0 0
        %6366 = vmatpush1.bf16.msra.mxu0 %v2048
        %6367 = vmatprep.subr.bf16.mxu0 0
        %6368 = vmatpush1.bf16.msra.mxu0 %v2047
        %6369 = vmatprep.subr.bf16.mxu0 0
        %6370 = vmatpush1.bf16.msra.mxu0 %v2046
        %6371 = vmatprep.subr.bf16.mxu0 0
        %6372 = vmatpush2.bf16.msra.mxu0 %v2061
        %6373 = vmatprep.subr.bf16.mxu0 0
        %6374 = vmatpush2.bf16.msra.mxu0 %v2060
        %6375 = vmatprep.subr.bf16.mxu0 0
        %6376 = vmatpush2.bf16.msra.mxu0 %v2059
        %6377 = vmatprep.subr.bf16.mxu0 0
        %6378 = vmatpush2.bf16.msra.mxu0 %v2058
        %6379 = vmatprep.subr.bf16.mxu0 0
        %6380 = vmatpush2.bf16.msra.mxu0 %v2057
        %6381 = vmatprep.subr.bf16.mxu0 0
        %6382 = vmatpush2.bf16.msra.mxu0 %v2056
        %6383 = vmatprep.subr.bf16.mxu0 0
        %6384 = vmatpush2.bf16.msra.mxu0 %v2055
        %6385 = vmatprep.subr.bf16.mxu0 0
        %6386 = vmatpush2.bf16.msra.mxu0 %v2054
        %6387 = vmatprep.mubr.bf16.mxu0 %v3464
        %6388 = vmatmul.mubr.bf16.gmra.mxu0 %v3450
        %v6389 = vpop.f32.mrf.mxu0
        %v6390 = vadd.f32 %v6350, %v6389
        %v6391 = vpop.f32.mrf.mxu0
        %v6392 = vpop.f32.mrf.mxu0
        %v6393 = vpop.f32.mrf.mxu0
        %6394 = vdwg.mxu0
        %6395 = vmatprep.subr.bf16.mxu0 0
        %6396 = vmatpush1.bf16.msra.mxu0 %v2069
        %6397 = vmatprep.subr.bf16.mxu0 0
        %6398 = vmatpush1.bf16.msra.mxu0 %v2068
        %6399 = vmatprep.subr.bf16.mxu0 0
        %6400 = vmatpush1.bf16.msra.mxu0 %v2067
        %6401 = vmatprep.subr.bf16.mxu0 0
        %6402 = vmatpush1.bf16.msra.mxu0 %v2066
        %6403 = vmatprep.subr.bf16.mxu0 0
        %6404 = vmatpush1.bf16.msra.mxu0 %v2065
        %6405 = vmatprep.subr.bf16.mxu0 0
        %6406 = vmatpush1.bf16.msra.mxu0 %v2064
        %6407 = vmatprep.subr.bf16.mxu0 0
        %6408 = vmatpush1.bf16.msra.mxu0 %v2063
        %6409 = vmatprep.subr.bf16.mxu0 0
        %6410 = vmatpush1.bf16.msra.mxu0 %v2062
        %6411 = vmatprep.subr.bf16.mxu0 0
        %6412 = vmatpush2.bf16.msra.mxu0 %v2077
        %6413 = vmatprep.subr.bf16.mxu0 0
        %6414 = vmatpush2.bf16.msra.mxu0 %v2076
        %6415 = vmatprep.subr.bf16.mxu0 0
        %6416 = vmatpush2.bf16.msra.mxu0 %v2075
        %6417 = vmatprep.subr.bf16.mxu0 0
        %6418 = vmatpush2.bf16.msra.mxu0 %v2074
        %6419 = vmatprep.subr.bf16.mxu0 0
        %6420 = vmatpush2.bf16.msra.mxu0 %v2073
        %6421 = vmatprep.subr.bf16.mxu0 0
        %6422 = vmatpush2.bf16.msra.mxu0 %v2072
        %6423 = vmatprep.subr.bf16.mxu0 0
        %6424 = vmatpush2.bf16.msra.mxu0 %v2071
        %6425 = vmatprep.subr.bf16.mxu0 0
        %6426 = vmatpush2.bf16.msra.mxu0 %v2070
        %6427 = vmatprep.mubr.bf16.mxu0 %v3468
        %6428 = vmatmul.mubr.bf16.gmra.mxu0 %v3466
        %v6429 = vpop.f32.mrf.mxu0
        %v6430 = vadd.f32 %v6390, %v6429
        %v6431 = vpop.f32.mrf.mxu0
        %v6432 = vpop.f32.mrf.mxu0
        %v6433 = vpop.f32.mrf.mxu0
        %6434 = vdwg.mxu0
        %6435 = vmatprep.subr.bf16.mxu0 0
        %6436 = vmatpush1.bf16.msra.mxu0 %v2085
        %6437 = vmatprep.subr.bf16.mxu0 0
        %6438 = vmatpush1.bf16.msra.mxu0 %v2084
        %6439 = vmatprep.subr.bf16.mxu0 0
        %6440 = vmatpush1.bf16.msra.mxu0 %v2083
        %6441 = vmatprep.subr.bf16.mxu0 0
        %6442 = vmatpush1.bf16.msra.mxu0 %v2082
        %6443 = vmatprep.subr.bf16.mxu0 0
        %6444 = vmatpush1.bf16.msra.mxu0 %v2081
        %6445 = vmatprep.subr.bf16.mxu0 0
        %6446 = vmatpush1.bf16.msra.mxu0 %v2080
        %6447 = vmatprep.subr.bf16.mxu0 0
        %6448 = vmatpush1.bf16.msra.mxu0 %v2079
        %6449 = vmatprep.subr.bf16.mxu0 0
        %6450 = vmatpush1.bf16.msra.mxu0 %v2078
        %6451 = vmatprep.subr.bf16.mxu0 0
        %6452 = vmatpush2.bf16.msra.mxu0 %v2093
        %6453 = vmatprep.subr.bf16.mxu0 0
        %6454 = vmatpush2.bf16.msra.mxu0 %v2092
        %6455 = vmatprep.subr.bf16.mxu0 0
        %6456 = vmatpush2.bf16.msra.mxu0 %v2091
        %6457 = vmatprep.subr.bf16.mxu0 0
        %6458 = vmatpush2.bf16.msra.mxu0 %v2090
        %6459 = vmatprep.subr.bf16.mxu0 0
        %6460 = vmatpush2.bf16.msra.mxu0 %v2089
        %6461 = vmatprep.subr.bf16.mxu0 0
        %6462 = vmatpush2.bf16.msra.mxu0 %v2088
        %6463 = vmatprep.subr.bf16.mxu0 0
        %6464 = vmatpush2.bf16.msra.mxu0 %v2087
        %6465 = vmatprep.subr.bf16.mxu0 0
        %6466 = vmatpush2.bf16.msra.mxu0 %v2086
        %6467 = vmatprep.mubr.bf16.mxu0 %v3506
        %6468 = vmatmul.mubr.bf16.gmra.mxu0 %v3492
        %v6469 = vpop.f32.mrf.mxu0
        %v6470 = vadd.f32 %v6430, %v6469
        %v6471 = vpop.f32.mrf.mxu0
        %v6472 = vpop.f32.mrf.mxu0
        %v6473 = vpop.f32.mrf.mxu0
        %6474 = vdwg.mxu0
        %6475 = vmatprep.subr.bf16.mxu0 0
        %6476 = vmatpush1.bf16.msra.mxu0 %v2101
        %6477 = vmatprep.subr.bf16.mxu0 0
        %6478 = vmatpush1.bf16.msra.mxu0 %v2100
        %6479 = vmatprep.subr.bf16.mxu0 0
        %6480 = vmatpush1.bf16.msra.mxu0 %v2099
        %6481 = vmatprep.subr.bf16.mxu0 0
        %6482 = vmatpush1.bf16.msra.mxu0 %v2098
        %6483 = vmatprep.subr.bf16.mxu0 0
        %6484 = vmatpush1.bf16.msra.mxu0 %v2097
        %6485 = vmatprep.subr.bf16.mxu0 0
        %6486 = vmatpush1.bf16.msra.mxu0 %v2096
        %6487 = vmatprep.subr.bf16.mxu0 0
        %6488 = vmatpush1.bf16.msra.mxu0 %v2095
        %6489 = vmatprep.subr.bf16.mxu0 0
        %6490 = vmatpush1.bf16.msra.mxu0 %v2094
        %6491 = vmatprep.subr.bf16.mxu0 0
        %6492 = vmatpush2.bf16.msra.mxu0 %v2109
        %6493 = vmatprep.subr.bf16.mxu0 0
        %6494 = vmatpush2.bf16.msra.mxu0 %v2108
        %6495 = vmatprep.subr.bf16.mxu0 0
        %6496 = vmatpush2.bf16.msra.mxu0 %v2107
        %6497 = vmatprep.subr.bf16.mxu0 0
        %6498 = vmatpush2.bf16.msra.mxu0 %v2106
        %6499 = vmatprep.subr.bf16.mxu0 0
        %6500 = vmatpush2.bf16.msra.mxu0 %v2105
        %6501 = vmatprep.subr.bf16.mxu0 0
        %6502 = vmatpush2.bf16.msra.mxu0 %v2104
        %6503 = vmatprep.subr.bf16.mxu0 0
        %6504 = vmatpush2.bf16.msra.mxu0 %v2103
        %6505 = vmatprep.subr.bf16.mxu0 0
        %6506 = vmatpush2.bf16.msra.mxu0 %v2102
        %6507 = vmatprep.mubr.bf16.mxu0 %v3516
        %6508 = vmatmul.mubr.bf16.gmra.mxu0 %v3514
        %v6509 = vpop.f32.mrf.mxu0
        %v6510 = vadd.f32 %v6470, %v6509
        %v6511 = vpop.f32.mrf.mxu0
        %v6512 = vpop.f32.mrf.mxu0
        %v6513 = vpop.f32.mrf.mxu0
        %6514 = vdwg.mxu0
        %6515 = vmatprep.subr.bf16.mxu0 0
        %6516 = vmatpush1.bf16.msra.mxu0 %v2117
        %6517 = vmatprep.subr.bf16.mxu0 0
        %6518 = vmatpush1.bf16.msra.mxu0 %v2116
        %6519 = vmatprep.subr.bf16.mxu0 0
        %6520 = vmatpush1.bf16.msra.mxu0 %v2115
        %6521 = vmatprep.subr.bf16.mxu0 0
        %6522 = vmatpush1.bf16.msra.mxu0 %v2114
        %6523 = vmatprep.subr.bf16.mxu0 0
        %6524 = vmatpush1.bf16.msra.mxu0 %v2113
        %6525 = vmatprep.subr.bf16.mxu0 0
        %6526 = vmatpush1.bf16.msra.mxu0 %v2112
        %6527 = vmatprep.subr.bf16.mxu0 0
        %6528 = vmatpush1.bf16.msra.mxu0 %v2111
        %6529 = vmatprep.subr.bf16.mxu0 0
        %6530 = vmatpush1.bf16.msra.mxu0 %v2110
        %6531 = vmatprep.subr.bf16.mxu0 0
        %6532 = vmatpush2.bf16.msra.mxu0 %v2125
        %6533 = vmatprep.subr.bf16.mxu0 0
        %6534 = vmatpush2.bf16.msra.mxu0 %v2124
        %6535 = vmatprep.subr.bf16.mxu0 0
        %6536 = vmatpush2.bf16.msra.mxu0 %v2123
        %6537 = vmatprep.subr.bf16.mxu0 0
        %6538 = vmatpush2.bf16.msra.mxu0 %v2122
        %6539 = vmatprep.subr.bf16.mxu0 0
        %6540 = vmatpush2.bf16.msra.mxu0 %v2121
        %6541 = vmatprep.subr.bf16.mxu0 0
        %6542 = vmatpush2.bf16.msra.mxu0 %v2120
        %6543 = vmatprep.subr.bf16.mxu0 0
        %6544 = vmatpush2.bf16.msra.mxu0 %v2119
        %6545 = vmatprep.subr.bf16.mxu0 0
        %6546 = vmatpush2.bf16.msra.mxu0 %v2118
        %6547 = vmatprep.mubr.bf16.mxu0 %v3513
        %6548 = vmatmul.mubr.bf16.gmra.mxu0 %v3499
        %v6549 = vpop.f32.mrf.mxu0
        %v6550 = vadd.f32 %v6510, %v6549
        %v6551 = vpop.f32.mrf.mxu0
        %v6552 = vpop.f32.mrf.mxu0
        %v6553 = vpop.f32.mrf.mxu0
        %6554 = vdwg.mxu0
        %6555 = vmatprep.subr.bf16.mxu0 0
        %6556 = vmatpush1.bf16.msra.mxu0 %v2133
        %6557 = vmatprep.subr.bf16.mxu0 0
        %6558 = vmatpush1.bf16.msra.mxu0 %v2132
        %6559 = vmatprep.subr.bf16.mxu0 0
        %6560 = vmatpush1.bf16.msra.mxu0 %v2131
        %6561 = vmatprep.subr.bf16.mxu0 0
        %6562 = vmatpush1.bf16.msra.mxu0 %v2130
        %6563 = vmatprep.subr.bf16.mxu0 0
        %6564 = vmatpush1.bf16.msra.mxu0 %v2129
        %6565 = vmatprep.subr.bf16.mxu0 0
        %6566 = vmatpush1.bf16.msra.mxu0 %v2128
        %6567 = vmatprep.subr.bf16.mxu0 0
        %6568 = vmatpush1.bf16.msra.mxu0 %v2127
        %6569 = vmatprep.subr.bf16.mxu0 0
        %6570 = vmatpush1.bf16.msra.mxu0 %v2126
        %6571 = vmatprep.subr.bf16.mxu0 0
        %6572 = vmatpush2.bf16.msra.mxu0 %v2141
        %6573 = vmatprep.subr.bf16.mxu0 0
        %6574 = vmatpush2.bf16.msra.mxu0 %v2140
        %6575 = vmatprep.subr.bf16.mxu0 0
        %6576 = vmatpush2.bf16.msra.mxu0 %v2139
        %6577 = vmatprep.subr.bf16.mxu0 0
        %6578 = vmatpush2.bf16.msra.mxu0 %v2138
        %6579 = vmatprep.subr.bf16.mxu0 0
        %6580 = vmatpush2.bf16.msra.mxu0 %v2137
        %6581 = vmatprep.subr.bf16.mxu0 0
        %6582 = vmatpush2.bf16.msra.mxu0 %v2136
        %6583 = vmatprep.subr.bf16.mxu0 0
        %6584 = vmatpush2.bf16.msra.mxu0 %v2135
        %6585 = vmatprep.subr.bf16.mxu0 0
        %6586 = vmatpush2.bf16.msra.mxu0 %v2134
        %6587 = vmatprep.mubr.bf16.mxu0 %v3517
        %6588 = vmatmul.mubr.bf16.gmra.mxu0 %v3515
        %v6589 = vpop.f32.mrf.mxu0
        %v6590 = vadd.f32 %v6550, %v6589
        %v6591 = vpop.f32.mrf.mxu0
        %v6592 = vpop.f32.mrf.mxu0
        %v6593 = vpop.f32.mrf.mxu0
        %6594 = vdwg.mxu0
        %6595 = vmatprep.subr.bf16.mxu0 0
        %6596 = vmatpush1.bf16.msra.mxu0 %v2149
        %6597 = vmatprep.subr.bf16.mxu0 0
        %6598 = vmatpush1.bf16.msra.mxu0 %v2148
        %6599 = vmatprep.subr.bf16.mxu0 0
        %6600 = vmatpush1.bf16.msra.mxu0 %v2147
        %6601 = vmatprep.subr.bf16.mxu0 0
        %6602 = vmatpush1.bf16.msra.mxu0 %v2146
        %6603 = vmatprep.subr.bf16.mxu0 0
        %6604 = vmatpush1.bf16.msra.mxu0 %v2145
        %6605 = vmatprep.subr.bf16.mxu0 0
        %6606 = vmatpush1.bf16.msra.mxu0 %v2144
        %6607 = vmatprep.subr.bf16.mxu0 0
        %6608 = vmatpush1.bf16.msra.mxu0 %v2143
        %6609 = vmatprep.subr.bf16.mxu0 0
        %6610 = vmatpush1.bf16.msra.mxu0 %v2142
        %6611 = vmatprep.subr.bf16.mxu0 0
        %6612 = vmatpush2.bf16.msra.mxu0 %v2157
        %6613 = vmatprep.subr.bf16.mxu0 0
        %6614 = vmatpush2.bf16.msra.mxu0 %v2156
        %6615 = vmatprep.subr.bf16.mxu0 0
        %6616 = vmatpush2.bf16.msra.mxu0 %v2155
        %6617 = vmatprep.subr.bf16.mxu0 0
        %6618 = vmatpush2.bf16.msra.mxu0 %v2154
        %6619 = vmatprep.subr.bf16.mxu0 0
        %6620 = vmatpush2.bf16.msra.mxu0 %v2153
        %6621 = vmatprep.subr.bf16.mxu0 0
        %6622 = vmatpush2.bf16.msra.mxu0 %v2152
        %6623 = vmatprep.subr.bf16.mxu0 0
        %6624 = vmatpush2.bf16.msra.mxu0 %v2151
        %6625 = vmatprep.subr.bf16.mxu0 0
        %6626 = vmatpush2.bf16.msra.mxu0 %v2150
        %6627 = vmatprep.mubr.bf16.mxu0 %v3555
        %6628 = vmatmul.mubr.bf16.gmra.mxu0 %v3541
        %v6629 = vpop.f32.mrf.mxu0
        %v6630 = vadd.f32 %v6590, %v6629
        %v6631 = vpop.f32.mrf.mxu0
        %v6632 = vpop.f32.mrf.mxu0
        %v6633 = vpop.f32.mrf.mxu0
        %6634 = vdwg.mxu0
        %6635 = vmatprep.subr.bf16.mxu0 0
        %6636 = vmatpush1.bf16.msra.mxu0 %v2165
        %6637 = vmatprep.subr.bf16.mxu0 0
        %6638 = vmatpush1.bf16.msra.mxu0 %v2164
        %6639 = vmatprep.subr.bf16.mxu0 0
        %6640 = vmatpush1.bf16.msra.mxu0 %v2163
        %6641 = vmatprep.subr.bf16.mxu0 0
        %6642 = vmatpush1.bf16.msra.mxu0 %v2162
        %6643 = vmatprep.subr.bf16.mxu0 0
        %6644 = vmatpush1.bf16.msra.mxu0 %v2161
        %6645 = vmatprep.subr.bf16.mxu0 0
        %6646 = vmatpush1.bf16.msra.mxu0 %v2160
        %6647 = vmatprep.subr.bf16.mxu0 0
        %6648 = vmatpush1.bf16.msra.mxu0 %v2159
        %6649 = vmatprep.subr.bf16.mxu0 0
        %6650 = vmatpush1.bf16.msra.mxu0 %v2158
        %6651 = vmatprep.subr.bf16.mxu0 0
        %6652 = vmatpush2.bf16.msra.mxu0 %v2173
        %6653 = vmatprep.subr.bf16.mxu0 0
        %6654 = vmatpush2.bf16.msra.mxu0 %v2172
        %6655 = vmatprep.subr.bf16.mxu0 0
        %6656 = vmatpush2.bf16.msra.mxu0 %v2171
        %6657 = vmatprep.subr.bf16.mxu0 0
        %6658 = vmatpush2.bf16.msra.mxu0 %v2170
        %6659 = vmatprep.subr.bf16.mxu0 0
        %6660 = vmatpush2.bf16.msra.mxu0 %v2169
        %6661 = vmatprep.subr.bf16.mxu0 0
        %6662 = vmatpush2.bf16.msra.mxu0 %v2168
        %6663 = vmatprep.subr.bf16.mxu0 0
        %6664 = vmatpush2.bf16.msra.mxu0 %v2167
        %6665 = vmatprep.subr.bf16.mxu0 0
        %6666 = vmatpush2.bf16.msra.mxu0 %v2166
        %6667 = vmatprep.mubr.bf16.mxu0 %v3565
        %6668 = vmatmul.mubr.bf16.gmra.mxu0 %v3563
        %v6669 = vpop.f32.mrf.mxu0
        %v6670 = vadd.f32 %v6630, %v6669
        %v6671 = vpop.f32.mrf.mxu0
        %v6672 = vpop.f32.mrf.mxu0
        %v6673 = vpop.f32.mrf.mxu0
        %6674 = vdwg.mxu0
        %6675 = vmatprep.subr.bf16.mxu0 0
        %6676 = vmatpush1.bf16.msra.mxu0 %v2181
        %6677 = vmatprep.subr.bf16.mxu0 0
        %6678 = vmatpush1.bf16.msra.mxu0 %v2180
        %6679 = vmatprep.subr.bf16.mxu0 0
        %6680 = vmatpush1.bf16.msra.mxu0 %v2179
        %6681 = vmatprep.subr.bf16.mxu0 0
        %6682 = vmatpush1.bf16.msra.mxu0 %v2178
        %6683 = vmatprep.subr.bf16.mxu0 0
        %6684 = vmatpush1.bf16.msra.mxu0 %v2177
        %6685 = vmatprep.subr.bf16.mxu0 0
        %6686 = vmatpush1.bf16.msra.mxu0 %v2176
        %6687 = vmatprep.subr.bf16.mxu0 0
        %6688 = vmatpush1.bf16.msra.mxu0 %v2175
        %6689 = vmatprep.subr.bf16.mxu0 0
        %6690 = vmatpush1.bf16.msra.mxu0 %v2174
        %6691 = vmatprep.subr.bf16.mxu0 0
        %6692 = vmatpush2.bf16.msra.mxu0 %v2189
        %6693 = vmatprep.subr.bf16.mxu0 0
        %6694 = vmatpush2.bf16.msra.mxu0 %v2188
        %6695 = vmatprep.subr.bf16.mxu0 0
        %6696 = vmatpush2.bf16.msra.mxu0 %v2187
        %6697 = vmatprep.subr.bf16.mxu0 0
        %6698 = vmatpush2.bf16.msra.mxu0 %v2186
        %6699 = vmatprep.subr.bf16.mxu0 0
        %6700 = vmatpush2.bf16.msra.mxu0 %v2185
        %6701 = vmatprep.subr.bf16.mxu0 0
        %6702 = vmatpush2.bf16.msra.mxu0 %v2184
        %6703 = vmatprep.subr.bf16.mxu0 0
        %6704 = vmatpush2.bf16.msra.mxu0 %v2183
        %6705 = vmatprep.subr.bf16.mxu0 0
        %6706 = vmatpush2.bf16.msra.mxu0 %v2182
        %6707 = vmatprep.mubr.bf16.mxu0 %v3562
        %6708 = vmatmul.mubr.bf16.gmra.mxu0 %v3548
        %v6709 = vpop.f32.mrf.mxu0
        %v6710 = vadd.f32 %v6670, %v6709
        %v6711 = vpop.f32.mrf.mxu0
        %v6712 = vpop.f32.mrf.mxu0
        %v6713 = vpop.f32.mrf.mxu0
        %6714 = vdwg.mxu0
        %6715 = vmatprep.subr.bf16.mxu0 0
        %6716 = vmatpush1.bf16.msra.mxu0 %v2197
        %6717 = vmatprep.subr.bf16.mxu0 0
        %6718 = vmatpush1.bf16.msra.mxu0 %v2196
        %6719 = vmatprep.subr.bf16.mxu0 0
        %6720 = vmatpush1.bf16.msra.mxu0 %v2195
        %6721 = vmatprep.subr.bf16.mxu0 0
        %6722 = vmatpush1.bf16.msra.mxu0 %v2194
        %6723 = vmatprep.subr.bf16.mxu0 0
        %6724 = vmatpush1.bf16.msra.mxu0 %v2193
        %6725 = vmatprep.subr.bf16.mxu0 0
        %6726 = vmatpush1.bf16.msra.mxu0 %v2192
        %6727 = vmatprep.subr.bf16.mxu0 0
        %6728 = vmatpush1.bf16.msra.mxu0 %v2191
        %6729 = vmatprep.subr.bf16.mxu0 0
        %6730 = vmatpush1.bf16.msra.mxu0 %v2190
        %6731 = vmatprep.subr.bf16.mxu0 0
        %6732 = vmatpush2.bf16.msra.mxu0 %v2205
        %6733 = vmatprep.subr.bf16.mxu0 0
        %6734 = vmatpush2.bf16.msra.mxu0 %v2204
        %6735 = vmatprep.subr.bf16.mxu0 0
        %6736 = vmatpush2.bf16.msra.mxu0 %v2203
        %6737 = vmatprep.subr.bf16.mxu0 0
        %6738 = vmatpush2.bf16.msra.mxu0 %v2202
        %6739 = vmatprep.subr.bf16.mxu0 0
        %6740 = vmatpush2.bf16.msra.mxu0 %v2201
        %6741 = vmatprep.subr.bf16.mxu0 0
        %6742 = vmatpush2.bf16.msra.mxu0 %v2200
        %6743 = vmatprep.subr.bf16.mxu0 0
        %6744 = vmatpush2.bf16.msra.mxu0 %v2199
        %6745 = vmatprep.subr.bf16.mxu0 0
        %6746 = vmatpush2.bf16.msra.mxu0 %v2198
        %6747 = vmatprep.mubr.bf16.mxu0 %v3566
        %6748 = vmatmul.mubr.bf16.gmra.mxu0 %v3564
        %v6749 = vpop.f32.mrf.mxu0
        %v6750 = vadd.f32 %v6710, %v6749
        %v6751 = vpop.f32.mrf.mxu0
        %v6752 = vpop.f32.mrf.mxu0
        %v6753 = vpop.f32.mrf.mxu0
        %6754 = vdwg.mxu0
        %6755 = vmatprep.subr.bf16.mxu0 0
        %6756 = vmatpush1.bf16.msra.mxu0 %v2213
        %6757 = vmatprep.subr.bf16.mxu0 0
        %6758 = vmatpush1.bf16.msra.mxu0 %v2212
        %6759 = vmatprep.subr.bf16.mxu0 0
        %6760 = vmatpush1.bf16.msra.mxu0 %v2211
        %6761 = vmatprep.subr.bf16.mxu0 0
        %6762 = vmatpush1.bf16.msra.mxu0 %v2210
        %6763 = vmatprep.subr.bf16.mxu0 0
        %6764 = vmatpush1.bf16.msra.mxu0 %v2209
        %6765 = vmatprep.subr.bf16.mxu0 0
        %6766 = vmatpush1.bf16.msra.mxu0 %v2208
        %6767 = vmatprep.subr.bf16.mxu0 0
        %6768 = vmatpush1.bf16.msra.mxu0 %v2207
        %6769 = vmatprep.subr.bf16.mxu0 0
        %6770 = vmatpush1.bf16.msra.mxu0 %v2206
        %6771 = vmatprep.subr.bf16.mxu0 0
        %6772 = vmatpush2.bf16.msra.mxu0 %v2221
        %6773 = vmatprep.subr.bf16.mxu0 0
        %6774 = vmatpush2.bf16.msra.mxu0 %v2220
        %6775 = vmatprep.subr.bf16.mxu0 0
        %6776 = vmatpush2.bf16.msra.mxu0 %v2219
        %6777 = vmatprep.subr.bf16.mxu0 0
        %6778 = vmatpush2.bf16.msra.mxu0 %v2218
        %6779 = vmatprep.subr.bf16.mxu0 0
        %6780 = vmatpush2.bf16.msra.mxu0 %v2217
        %6781 = vmatprep.subr.bf16.mxu0 0
        %6782 = vmatpush2.bf16.msra.mxu0 %v2216
        %6783 = vmatprep.subr.bf16.mxu0 0
        %6784 = vmatpush2.bf16.msra.mxu0 %v2215
        %6785 = vmatprep.subr.bf16.mxu0 0
        %6786 = vmatpush2.bf16.msra.mxu0 %v2214
        %6787 = vmatprep.mubr.bf16.mxu0 %v3604
        %6788 = vmatmul.mubr.bf16.gmra.mxu0 %v3590
        %v6789 = vpop.f32.mrf.mxu0
        %v6790 = vadd.f32 %v6750, %v6789
        %v6791 = vpop.f32.mrf.mxu0
        %v6792 = vpop.f32.mrf.mxu0
        %v6793 = vpop.f32.mrf.mxu0
        %6794 = vdwg.mxu0
        %6795 = vmatprep.subr.bf16.mxu0 0
        %6796 = vmatpush1.bf16.msra.mxu0 %v2229
        %6797 = vmatprep.subr.bf16.mxu0 0
        %6798 = vmatpush1.bf16.msra.mxu0 %v2228
        %6799 = vmatprep.subr.bf16.mxu0 0
        %6800 = vmatpush1.bf16.msra.mxu0 %v2227
        %6801 = vmatprep.subr.bf16.mxu0 0
        %6802 = vmatpush1.bf16.msra.mxu0 %v2226
        %6803 = vmatprep.subr.bf16.mxu0 0
        %6804 = vmatpush1.bf16.msra.mxu0 %v2225
        %6805 = vmatprep.subr.bf16.mxu0 0
        %6806 = vmatpush1.bf16.msra.mxu0 %v2224
        %6807 = vmatprep.subr.bf16.mxu0 0
        %6808 = vmatpush1.bf16.msra.mxu0 %v2223
        %6809 = vmatprep.subr.bf16.mxu0 0
        %6810 = vmatpush1.bf16.msra.mxu0 %v2222
        %6811 = vmatprep.subr.bf16.mxu0 0
        %6812 = vmatpush2.bf16.msra.mxu0 %v2237
        %6813 = vmatprep.subr.bf16.mxu0 0
        %6814 = vmatpush2.bf16.msra.mxu0 %v2236
        %6815 = vmatprep.subr.bf16.mxu0 0
        %6816 = vmatpush2.bf16.msra.mxu0 %v2235
        %6817 = vmatprep.subr.bf16.mxu0 0
        %6818 = vmatpush2.bf16.msra.mxu0 %v2234
        %6819 = vmatprep.subr.bf16.mxu0 0
        %6820 = vmatpush2.bf16.msra.mxu0 %v2233
        %6821 = vmatprep.subr.bf16.mxu0 0
        %6822 = vmatpush2.bf16.msra.mxu0 %v2232
        %6823 = vmatprep.subr.bf16.mxu0 0
        %6824 = vmatpush2.bf16.msra.mxu0 %v2231
        %6825 = vmatprep.subr.bf16.mxu0 0
        %6826 = vmatpush2.bf16.msra.mxu0 %v2230
        %6827 = vmatprep.mubr.bf16.mxu0 %v3614
        %6828 = vmatmul.mubr.bf16.gmra.mxu0 %v3612
        %v6829 = vpop.f32.mrf.mxu0
        %v6830 = vadd.f32 %v6790, %v6829
        %v6831 = vpop.f32.mrf.mxu0
        %v6832 = vpop.f32.mrf.mxu0
        %v6833 = vpop.f32.mrf.mxu0
        %6834 = vdwg.mxu0
        %6835 = vmatprep.subr.bf16.mxu0 0
        %6836 = vmatpush1.bf16.msra.mxu0 %v2245
        %6837 = vmatprep.subr.bf16.mxu0 0
        %6838 = vmatpush1.bf16.msra.mxu0 %v2244
        %6839 = vmatprep.subr.bf16.mxu0 0
        %6840 = vmatpush1.bf16.msra.mxu0 %v2243
        %6841 = vmatprep.subr.bf16.mxu0 0
        %6842 = vmatpush1.bf16.msra.mxu0 %v2242
        %6843 = vmatprep.subr.bf16.mxu0 0
        %6844 = vmatpush1.bf16.msra.mxu0 %v2241
        %6845 = vmatprep.subr.bf16.mxu0 0
        %6846 = vmatpush1.bf16.msra.mxu0 %v2240
        %6847 = vmatprep.subr.bf16.mxu0 0
        %6848 = vmatpush1.bf16.msra.mxu0 %v2239
        %6849 = vmatprep.subr.bf16.mxu0 0
        %6850 = vmatpush1.bf16.msra.mxu0 %v2238
        %6851 = vmatprep.subr.bf16.mxu0 0
        %6852 = vmatpush2.bf16.msra.mxu0 %v2253
        %6853 = vmatprep.subr.bf16.mxu0 0
        %6854 = vmatpush2.bf16.msra.mxu0 %v2252
        %6855 = vmatprep.subr.bf16.mxu0 0
        %6856 = vmatpush2.bf16.msra.mxu0 %v2251
        %6857 = vmatprep.subr.bf16.mxu0 0
        %6858 = vmatpush2.bf16.msra.mxu0 %v2250
        %6859 = vmatprep.subr.bf16.mxu0 0
        %6860 = vmatpush2.bf16.msra.mxu0 %v2249
        %6861 = vmatprep.subr.bf16.mxu0 0
        %6862 = vmatpush2.bf16.msra.mxu0 %v2248
        %6863 = vmatprep.subr.bf16.mxu0 0
        %6864 = vmatpush2.bf16.msra.mxu0 %v2247
        %6865 = vmatprep.subr.bf16.mxu0 0
        %6866 = vmatpush2.bf16.msra.mxu0 %v2246
        %6867 = vmatprep.mubr.bf16.mxu0 %v3611
        %6868 = vmatmul.mubr.bf16.gmra.mxu0 %v3597
        %v6869 = vpop.f32.mrf.mxu0
        %v6870 = vadd.f32 %v6830, %v6869
        %v6871 = vpop.f32.mrf.mxu0
        %v6872 = vpop.f32.mrf.mxu0
        %v6873 = vpop.f32.mrf.mxu0
        %6874 = vdwg.mxu0
        %6875 = vmatprep.subr.bf16.mxu0 0
        %6876 = vmatpush1.bf16.msra.mxu0 %v2261
        %6877 = vmatprep.subr.bf16.mxu0 0
        %6878 = vmatpush1.bf16.msra.mxu0 %v2260
        %6879 = vmatprep.subr.bf16.mxu0 0
        %6880 = vmatpush1.bf16.msra.mxu0 %v2259
        %6881 = vmatprep.subr.bf16.mxu0 0
        %6882 = vmatpush1.bf16.msra.mxu0 %v2258
        %6883 = vmatprep.subr.bf16.mxu0 0
        %6884 = vmatpush1.bf16.msra.mxu0 %v2257
        %6885 = vmatprep.subr.bf16.mxu0 0
        %6886 = vmatpush1.bf16.msra.mxu0 %v2256
        %6887 = vmatprep.subr.bf16.mxu0 0
        %6888 = vmatpush1.bf16.msra.mxu0 %v2255
        %6889 = vmatprep.subr.bf16.mxu0 0
        %6890 = vmatpush1.bf16.msra.mxu0 %v2254
        %6891 = vmatprep.subr.bf16.mxu0 0
        %6892 = vmatpush2.bf16.msra.mxu0 %v2269
        %6893 = vmatprep.subr.bf16.mxu0 0
        %6894 = vmatpush2.bf16.msra.mxu0 %v2268
        %6895 = vmatprep.subr.bf16.mxu0 0
        %6896 = vmatpush2.bf16.msra.mxu0 %v2267
        %6897 = vmatprep.subr.bf16.mxu0 0
        %6898 = vmatpush2.bf16.msra.mxu0 %v2266
        %6899 = vmatprep.subr.bf16.mxu0 0
        %6900 = vmatpush2.bf16.msra.mxu0 %v2265
        %6901 = vmatprep.subr.bf16.mxu0 0
        %6902 = vmatpush2.bf16.msra.mxu0 %v2264
        %6903 = vmatprep.subr.bf16.mxu0 0
        %6904 = vmatpush2.bf16.msra.mxu0 %v2263
        %6905 = vmatprep.subr.bf16.mxu0 0
        %6906 = vmatpush2.bf16.msra.mxu0 %v2262
        %6907 = vmatprep.mubr.bf16.mxu0 %v3615
        %6908 = vmatmul.mubr.bf16.gmra.mxu0 %v3613
        %v6909 = vpop.f32.mrf.mxu0
        %v6910 = vadd.f32 %v6870, %v6909
        %v6911 = vpop.f32.mrf.mxu0
        %v6912 = vpop.f32.mrf.mxu0
        %v6913 = vpop.f32.mrf.mxu0
        %6914 = vdwg.mxu0
        %6915 = vmatprep.subr.bf16.mxu0 0
        %6916 = vmatpush1.bf16.msra.mxu0 %v2277
        %6917 = vmatprep.subr.bf16.mxu0 0
        %6918 = vmatpush1.bf16.msra.mxu0 %v2276
        %6919 = vmatprep.subr.bf16.mxu0 0
        %6920 = vmatpush1.bf16.msra.mxu0 %v2275
        %6921 = vmatprep.subr.bf16.mxu0 0
        %6922 = vmatpush1.bf16.msra.mxu0 %v2274
        %6923 = vmatprep.subr.bf16.mxu0 0
        %6924 = vmatpush1.bf16.msra.mxu0 %v2273
        %6925 = vmatprep.subr.bf16.mxu0 0
        %6926 = vmatpush1.bf16.msra.mxu0 %v2272
        %6927 = vmatprep.subr.bf16.mxu0 0
        %6928 = vmatpush1.bf16.msra.mxu0 %v2271
        %6929 = vmatprep.subr.bf16.mxu0 0
        %6930 = vmatpush1.bf16.msra.mxu0 %v2270
        %6931 = vmatprep.subr.bf16.mxu0 0
        %6932 = vmatpush2.bf16.msra.mxu0 %v2285
        %6933 = vmatprep.subr.bf16.mxu0 0
        %6934 = vmatpush2.bf16.msra.mxu0 %v2284
        %6935 = vmatprep.subr.bf16.mxu0 0
        %6936 = vmatpush2.bf16.msra.mxu0 %v2283
        %6937 = vmatprep.subr.bf16.mxu0 0
        %6938 = vmatpush2.bf16.msra.mxu0 %v2282
        %6939 = vmatprep.subr.bf16.mxu0 0
        %6940 = vmatpush2.bf16.msra.mxu0 %v2281
        %6941 = vmatprep.subr.bf16.mxu0 0
        %6942 = vmatpush2.bf16.msra.mxu0 %v2280
        %6943 = vmatprep.subr.bf16.mxu0 0
        %6944 = vmatpush2.bf16.msra.mxu0 %v2279
        %6945 = vmatprep.subr.bf16.mxu0 0
        %6946 = vmatpush2.bf16.msra.mxu0 %v2278
        %6947 = vmatprep.mubr.bf16.mxu0 %v3653
        %6948 = vmatmul.mubr.bf16.gmra.mxu0 %v3639
        %v6949 = vpop.f32.mrf.mxu0
        %v6950 = vadd.f32 %v6910, %v6949
        %v6951 = vpop.f32.mrf.mxu0
        %v6952 = vpop.f32.mrf.mxu0
        %v6953 = vpop.f32.mrf.mxu0
        %6954 = vdwg.mxu0
        %6955 = vmatprep.subr.bf16.mxu0 0
        %6956 = vmatpush1.bf16.msra.mxu0 %v2293
        %6957 = vmatprep.subr.bf16.mxu0 0
        %6958 = vmatpush1.bf16.msra.mxu0 %v2292
        %6959 = vmatprep.subr.bf16.mxu0 0
        %6960 = vmatpush1.bf16.msra.mxu0 %v2291
        %6961 = vmatprep.subr.bf16.mxu0 0
        %6962 = vmatpush1.bf16.msra.mxu0 %v2290
        %6963 = vmatprep.subr.bf16.mxu0 0
        %6964 = vmatpush1.bf16.msra.mxu0 %v2289
        %6965 = vmatprep.subr.bf16.mxu0 0
        %6966 = vmatpush1.bf16.msra.mxu0 %v2288
        %6967 = vmatprep.subr.bf16.mxu0 0
        %6968 = vmatpush1.bf16.msra.mxu0 %v2287
        %6969 = vmatprep.subr.bf16.mxu0 0
        %6970 = vmatpush1.bf16.msra.mxu0 %v2286
        %6971 = vmatprep.subr.bf16.mxu0 0
        %6972 = vmatpush2.bf16.msra.mxu0 %v2301
        %6973 = vmatprep.subr.bf16.mxu0 0
        %6974 = vmatpush2.bf16.msra.mxu0 %v2300
        %6975 = vmatprep.subr.bf16.mxu0 0
        %6976 = vmatpush2.bf16.msra.mxu0 %v2299
        %6977 = vmatprep.subr.bf16.mxu0 0
        %6978 = vmatpush2.bf16.msra.mxu0 %v2298
        %6979 = vmatprep.subr.bf16.mxu0 0
        %6980 = vmatpush2.bf16.msra.mxu0 %v2297
        %6981 = vmatprep.subr.bf16.mxu0 0
        %6982 = vmatpush2.bf16.msra.mxu0 %v2296
        %6983 = vmatprep.subr.bf16.mxu0 0
        %6984 = vmatpush2.bf16.msra.mxu0 %v2295
        %6985 = vmatprep.subr.bf16.mxu0 0
        %6986 = vmatpush2.bf16.msra.mxu0 %v2294
        %6987 = vmatprep.mubr.bf16.mxu0 %v3663
        %6988 = vmatmul.mubr.bf16.gmra.mxu0 %v3661
        %v6989 = vpop.f32.mrf.mxu0
        %v6990 = vadd.f32 %v6950, %v6989
        %v6991 = vpop.f32.mrf.mxu0
        %v6992 = vpop.f32.mrf.mxu0
        %v6993 = vpop.f32.mrf.mxu0
        %6994 = vdwg.mxu0
        %6995 = vmatprep.subr.bf16.mxu0 0
        %6996 = vmatpush1.bf16.msra.mxu0 %v2309
        %6997 = vmatprep.subr.bf16.mxu0 0
        %6998 = vmatpush1.bf16.msra.mxu0 %v2308
        %6999 = vmatprep.subr.bf16.mxu0 0
        %7000 = vmatpush1.bf16.msra.mxu0 %v2307
        %7001 = vmatprep.subr.bf16.mxu0 0
        %7002 = vmatpush1.bf16.msra.mxu0 %v2306
        %7003 = vmatprep.subr.bf16.mxu0 0
        %7004 = vmatpush1.bf16.msra.mxu0 %v2305
        %7005 = vmatprep.subr.bf16.mxu0 0
        %7006 = vmatpush1.bf16.msra.mxu0 %v2304
        %7007 = vmatprep.subr.bf16.mxu0 0
        %7008 = vmatpush1.bf16.msra.mxu0 %v2303
        %7009 = vmatprep.subr.bf16.mxu0 0
        %7010 = vmatpush1.bf16.msra.mxu0 %v2302
        %7011 = vmatprep.subr.bf16.mxu0 0
        %7012 = vmatpush2.bf16.msra.mxu0 %v2317
        %7013 = vmatprep.subr.bf16.mxu0 0
        %7014 = vmatpush2.bf16.msra.mxu0 %v2316
        %7015 = vmatprep.subr.bf16.mxu0 0
        %7016 = vmatpush2.bf16.msra.mxu0 %v2315
        %7017 = vmatprep.subr.bf16.mxu0 0
        %7018 = vmatpush2.bf16.msra.mxu0 %v2314
        %7019 = vmatprep.subr.bf16.mxu0 0
        %7020 = vmatpush2.bf16.msra.mxu0 %v2313
        %7021 = vmatprep.subr.bf16.mxu0 0
        %7022 = vmatpush2.bf16.msra.mxu0 %v2312
        %7023 = vmatprep.subr.bf16.mxu0 0
        %7024 = vmatpush2.bf16.msra.mxu0 %v2311
        %7025 = vmatprep.subr.bf16.mxu0 0
        %7026 = vmatpush2.bf16.msra.mxu0 %v2310
        %7027 = vmatprep.mubr.bf16.mxu0 %v3660
        %7028 = vmatmul.mubr.bf16.gmra.mxu0 %v3646
        %v7029 = vpop.f32.mrf.mxu0
        %v7030 = vadd.f32 %v6990, %v7029
        %v7031 = vpop.f32.mrf.mxu0
        %v7032 = vpop.f32.mrf.mxu0
        %v7033 = vpop.f32.mrf.mxu0
        %7034 = vdwg.mxu0
        %7035 = vmatprep.subr.bf16.mxu0 0
        %7036 = vmatpush1.bf16.msra.mxu0 %v2325
        %7037 = vmatprep.subr.bf16.mxu0 0
        %7038 = vmatpush1.bf16.msra.mxu0 %v2324
        %7039 = vmatprep.subr.bf16.mxu0 0
        %7040 = vmatpush1.bf16.msra.mxu0 %v2323
        %7041 = vmatprep.subr.bf16.mxu0 0
        %7042 = vmatpush1.bf16.msra.mxu0 %v2322
        %7043 = vmatprep.subr.bf16.mxu0 0
        %7044 = vmatpush1.bf16.msra.mxu0 %v2321
        %7045 = vmatprep.subr.bf16.mxu0 0
        %7046 = vmatpush1.bf16.msra.mxu0 %v2320
        %7047 = vmatprep.subr.bf16.mxu0 0
        %7048 = vmatpush1.bf16.msra.mxu0 %v2319
        %7049 = vmatprep.subr.bf16.mxu0 0
        %7050 = vmatpush1.bf16.msra.mxu0 %v2318
        %7051 = vmatprep.subr.bf16.mxu0 0
        %7052 = vmatpush2.bf16.msra.mxu0 %v2333
        %7053 = vmatprep.subr.bf16.mxu0 0
        %7054 = vmatpush2.bf16.msra.mxu0 %v2332
        %7055 = vmatprep.subr.bf16.mxu0 0
        %7056 = vmatpush2.bf16.msra.mxu0 %v2331
        %7057 = vmatprep.subr.bf16.mxu0 0
        %7058 = vmatpush2.bf16.msra.mxu0 %v2330
        %7059 = vmatprep.subr.bf16.mxu0 0
        %7060 = vmatpush2.bf16.msra.mxu0 %v2329
        %7061 = vmatprep.subr.bf16.mxu0 0
        %7062 = vmatpush2.bf16.msra.mxu0 %v2328
        %7063 = vmatprep.subr.bf16.mxu0 0
        %7064 = vmatpush2.bf16.msra.mxu0 %v2327
        %7065 = vmatprep.subr.bf16.mxu0 0
        %7066 = vmatpush2.bf16.msra.mxu0 %v2326
        %7067 = vmatprep.mubr.bf16.mxu0 %v3664
        %7068 = vmatmul.mubr.bf16.gmra.mxu0 %v3662
        %v7069 = vpop.f32.mrf.mxu0
        %v7070 = vadd.f32 %v7030, %v7069
        %v7071 = vpop.f32.mrf.mxu0
        %v7072 = vpop.f32.mrf.mxu0
        %v7073 = vpop.f32.mrf.mxu0
        %7074 = vdwg.mxu0
        %7075 = vmatprep.subr.bf16.mxu0 0
        %7076 = vmatpush1.bf16.msra.mxu0 %v2341
        %7077 = vmatprep.subr.bf16.mxu0 0
        %7078 = vmatpush1.bf16.msra.mxu0 %v2340
        %7079 = vmatprep.subr.bf16.mxu0 0
        %7080 = vmatpush1.bf16.msra.mxu0 %v2339
        %7081 = vmatprep.subr.bf16.mxu0 0
        %7082 = vmatpush1.bf16.msra.mxu0 %v2338
        %7083 = vmatprep.subr.bf16.mxu0 0
        %7084 = vmatpush1.bf16.msra.mxu0 %v2337
        %7085 = vmatprep.subr.bf16.mxu0 0
        %7086 = vmatpush1.bf16.msra.mxu0 %v2336
        %7087 = vmatprep.subr.bf16.mxu0 0
        %7088 = vmatpush1.bf16.msra.mxu0 %v2335
        %7089 = vmatprep.subr.bf16.mxu0 0
        %7090 = vmatpush1.bf16.msra.mxu0 %v2334
        %7091 = vmatprep.subr.bf16.mxu0 0
        %7092 = vmatpush2.bf16.msra.mxu0 %v2349
        %7093 = vmatprep.subr.bf16.mxu0 0
        %7094 = vmatpush2.bf16.msra.mxu0 %v2348
        %7095 = vmatprep.subr.bf16.mxu0 0
        %7096 = vmatpush2.bf16.msra.mxu0 %v2347
        %7097 = vmatprep.subr.bf16.mxu0 0
        %7098 = vmatpush2.bf16.msra.mxu0 %v2346
        %7099 = vmatprep.subr.bf16.mxu0 0
        %7100 = vmatpush2.bf16.msra.mxu0 %v2345
        %7101 = vmatprep.subr.bf16.mxu0 0
        %7102 = vmatpush2.bf16.msra.mxu0 %v2344
        %7103 = vmatprep.subr.bf16.mxu0 0
        %7104 = vmatpush2.bf16.msra.mxu0 %v2343
        %7105 = vmatprep.subr.bf16.mxu0 0
        %7106 = vmatpush2.bf16.msra.mxu0 %v2342
        %7107 = vmatprep.mubr.bf16.mxu0 %v3702
        %7108 = vmatmul.mubr.bf16.gmra.mxu0 %v3688
        %v7109 = vpop.f32.mrf.mxu0
        %v7110 = vadd.f32 %v7070, %v7109
        %v7111 = vpop.f32.mrf.mxu0
        %v7112 = vpop.f32.mrf.mxu0
        %v7113 = vpop.f32.mrf.mxu0
        %7114 = vdwg.mxu0
        %7115 = vmatprep.subr.bf16.mxu0 0
        %7116 = vmatpush1.bf16.msra.mxu0 %v2357
        %7117 = vmatprep.subr.bf16.mxu0 0
        %7118 = vmatpush1.bf16.msra.mxu0 %v2356
        %7119 = vmatprep.subr.bf16.mxu0 0
        %7120 = vmatpush1.bf16.msra.mxu0 %v2355
        %7121 = vmatprep.subr.bf16.mxu0 0
        %7122 = vmatpush1.bf16.msra.mxu0 %v2354
        %7123 = vmatprep.subr.bf16.mxu0 0
        %7124 = vmatpush1.bf16.msra.mxu0 %v2353
        %7125 = vmatprep.subr.bf16.mxu0 0
        %7126 = vmatpush1.bf16.msra.mxu0 %v2352
        %7127 = vmatprep.subr.bf16.mxu0 0
        %7128 = vmatpush1.bf16.msra.mxu0 %v2351
        %7129 = vmatprep.subr.bf16.mxu0 0
        %7130 = vmatpush1.bf16.msra.mxu0 %v2350
        %7131 = vmatprep.subr.bf16.mxu0 0
        %7132 = vmatpush2.bf16.msra.mxu0 %v2365
        %7133 = vmatprep.subr.bf16.mxu0 0
        %7134 = vmatpush2.bf16.msra.mxu0 %v2364
        %7135 = vmatprep.subr.bf16.mxu0 0
        %7136 = vmatpush2.bf16.msra.mxu0 %v2363
        %7137 = vmatprep.subr.bf16.mxu0 0
        %7138 = vmatpush2.bf16.msra.mxu0 %v2362
        %7139 = vmatprep.subr.bf16.mxu0 0
        %7140 = vmatpush2.bf16.msra.mxu0 %v2361
        %7141 = vmatprep.subr.bf16.mxu0 0
        %7142 = vmatpush2.bf16.msra.mxu0 %v2360
        %7143 = vmatprep.subr.bf16.mxu0 0
        %7144 = vmatpush2.bf16.msra.mxu0 %v2359
        %7145 = vmatprep.subr.bf16.mxu0 0
        %7146 = vmatpush2.bf16.msra.mxu0 %v2358
        %7147 = vmatprep.mubr.bf16.mxu0 %v3712
        %7148 = vmatmul.mubr.bf16.gmra.mxu0 %v3710
        %v7149 = vpop.f32.mrf.mxu0
        %v7150 = vadd.f32 %v7110, %v7149
        %v7151 = vpop.f32.mrf.mxu0
        %v7152 = vpop.f32.mrf.mxu0
        %v7153 = vpop.f32.mrf.mxu0
        %7154 = vdwg.mxu0
        %7155 = vmatprep.subr.bf16.mxu0 0
        %7156 = vmatpush1.bf16.msra.mxu0 %v2373
        %7157 = vmatprep.subr.bf16.mxu0 0
        %7158 = vmatpush1.bf16.msra.mxu0 %v2372
        %7159 = vmatprep.subr.bf16.mxu0 0
        %7160 = vmatpush1.bf16.msra.mxu0 %v2371
        %7161 = vmatprep.subr.bf16.mxu0 0
        %7162 = vmatpush1.bf16.msra.mxu0 %v2370
        %7163 = vmatprep.subr.bf16.mxu0 0
        %7164 = vmatpush1.bf16.msra.mxu0 %v2369
        %7165 = vmatprep.subr.bf16.mxu0 0
        %7166 = vmatpush1.bf16.msra.mxu0 %v2368
        %7167 = vmatprep.subr.bf16.mxu0 0
        %7168 = vmatpush1.bf16.msra.mxu0 %v2367
        %7169 = vmatprep.subr.bf16.mxu0 0
        %7170 = vmatpush1.bf16.msra.mxu0 %v2366
        %7171 = vmatprep.subr.bf16.mxu0 0
        %7172 = vmatpush2.bf16.msra.mxu0 %v2381
        %7173 = vmatprep.subr.bf16.mxu0 0
        %7174 = vmatpush2.bf16.msra.mxu0 %v2380
        %7175 = vmatprep.subr.bf16.mxu0 0
        %7176 = vmatpush2.bf16.msra.mxu0 %v2379
        %7177 = vmatprep.subr.bf16.mxu0 0
        %7178 = vmatpush2.bf16.msra.mxu0 %v2378
        %7179 = vmatprep.subr.bf16.mxu0 0
        %7180 = vmatpush2.bf16.msra.mxu0 %v2377
        %7181 = vmatprep.subr.bf16.mxu0 0
        %7182 = vmatpush2.bf16.msra.mxu0 %v2376
        %7183 = vmatprep.subr.bf16.mxu0 0
        %7184 = vmatpush2.bf16.msra.mxu0 %v2375
        %7185 = vmatprep.subr.bf16.mxu0 0
        %7186 = vmatpush2.bf16.msra.mxu0 %v2374
        %7187 = vmatprep.mubr.bf16.mxu0 %v3709
        %7188 = vmatmul.mubr.bf16.gmra.mxu0 %v3695
        %v7189 = vpop.f32.mrf.mxu0
        %v7190 = vadd.f32 %v7150, %v7189
        %v7191 = vpop.f32.mrf.mxu0
        %v7192 = vpop.f32.mrf.mxu0
        %v7193 = vpop.f32.mrf.mxu0
        %7194 = vdwg.mxu0
        %7195 = vmatprep.subr.bf16.mxu0 0
        %7196 = vmatpush1.bf16.msra.mxu0 %v2389
        %7197 = vmatprep.subr.bf16.mxu0 0
        %7198 = vmatpush1.bf16.msra.mxu0 %v2388
        %7199 = vmatprep.subr.bf16.mxu0 0
        %7200 = vmatpush1.bf16.msra.mxu0 %v2387
        %7201 = vmatprep.subr.bf16.mxu0 0
        %7202 = vmatpush1.bf16.msra.mxu0 %v2386
        %7203 = vmatprep.subr.bf16.mxu0 0
        %7204 = vmatpush1.bf16.msra.mxu0 %v2385
        %7205 = vmatprep.subr.bf16.mxu0 0
        %7206 = vmatpush1.bf16.msra.mxu0 %v2384
        %7207 = vmatprep.subr.bf16.mxu0 0
        %7208 = vmatpush1.bf16.msra.mxu0 %v2383
        %7209 = vmatprep.subr.bf16.mxu0 0
        %7210 = vmatpush1.bf16.msra.mxu0 %v2382
        %7211 = vmatprep.subr.bf16.mxu0 0
        %7212 = vmatpush2.bf16.msra.mxu0 %v2397
        %7213 = vmatprep.subr.bf16.mxu0 0
        %7214 = vmatpush2.bf16.msra.mxu0 %v2396
        %7215 = vmatprep.subr.bf16.mxu0 0
        %7216 = vmatpush2.bf16.msra.mxu0 %v2395
        %7217 = vmatprep.subr.bf16.mxu0 0
        %7218 = vmatpush2.bf16.msra.mxu0 %v2394
        %7219 = vmatprep.subr.bf16.mxu0 0
        %7220 = vmatpush2.bf16.msra.mxu0 %v2393
        %7221 = vmatprep.subr.bf16.mxu0 0
        %7222 = vmatpush2.bf16.msra.mxu0 %v2392
        %7223 = vmatprep.subr.bf16.mxu0 0
        %7224 = vmatpush2.bf16.msra.mxu0 %v2391
        %7225 = vmatprep.subr.bf16.mxu0 0
        %7226 = vmatpush2.bf16.msra.mxu0 %v2390
        %7227 = vmatprep.mubr.bf16.mxu0 %v3713
        %7228 = vmatmul.mubr.bf16.gmra.mxu0 %v3711
        %v7229 = vpop.f32.mrf.mxu0
        %v7230 = vadd.f32 %v7190, %v7229
        %v7231 = vpop.f32.mrf.mxu0
        %v7232 = vpop.f32.mrf.mxu0
        %v7233 = vpop.f32.mrf.mxu0
        %7234 = vdwg.mxu0
        %7235 = vmatprep.subr.bf16.mxu0 0
        %7236 = vmatpush1.bf16.msra.mxu0 %v2405
        %7237 = vmatprep.subr.bf16.mxu0 0
        %7238 = vmatpush1.bf16.msra.mxu0 %v2404
        %7239 = vmatprep.subr.bf16.mxu0 0
        %7240 = vmatpush1.bf16.msra.mxu0 %v2403
        %7241 = vmatprep.subr.bf16.mxu0 0
        %7242 = vmatpush1.bf16.msra.mxu0 %v2402
        %7243 = vmatprep.subr.bf16.mxu0 0
        %7244 = vmatpush1.bf16.msra.mxu0 %v2401
        %7245 = vmatprep.subr.bf16.mxu0 0
        %7246 = vmatpush1.bf16.msra.mxu0 %v2400
        %7247 = vmatprep.subr.bf16.mxu0 0
        %7248 = vmatpush1.bf16.msra.mxu0 %v2399
        %7249 = vmatprep.subr.bf16.mxu0 0
        %7250 = vmatpush1.bf16.msra.mxu0 %v2398
        %7251 = vmatprep.subr.bf16.mxu0 0
        %7252 = vmatpush2.bf16.msra.mxu0 %v2413
        %7253 = vmatprep.subr.bf16.mxu0 0
        %7254 = vmatpush2.bf16.msra.mxu0 %v2412
        %7255 = vmatprep.subr.bf16.mxu0 0
        %7256 = vmatpush2.bf16.msra.mxu0 %v2411
        %7257 = vmatprep.subr.bf16.mxu0 0
        %7258 = vmatpush2.bf16.msra.mxu0 %v2410
        %7259 = vmatprep.subr.bf16.mxu0 0
        %7260 = vmatpush2.bf16.msra.mxu0 %v2409
        %7261 = vmatprep.subr.bf16.mxu0 0
        %7262 = vmatpush2.bf16.msra.mxu0 %v2408
        %7263 = vmatprep.subr.bf16.mxu0 0
        %7264 = vmatpush2.bf16.msra.mxu0 %v2407
        %7265 = vmatprep.subr.bf16.mxu0 0
        %7266 = vmatpush2.bf16.msra.mxu0 %v2406
        %7267 = vmatprep.mubr.bf16.mxu0 %v3751
        %7268 = vmatmul.mubr.bf16.gmra.mxu0 %v3737
        %v7269 = vpop.f32.mrf.mxu0
        %v7270 = vadd.f32 %v7230, %v7269
        %v7271 = vpop.f32.mrf.mxu0
        %v7272 = vpop.f32.mrf.mxu0
        %v7273 = vpop.f32.mrf.mxu0
        %7274 = vdwg.mxu0
        %7275 = vmatprep.subr.bf16.mxu0 0
        %7276 = vmatpush1.bf16.msra.mxu0 %v2421
        %7277 = vmatprep.subr.bf16.mxu0 0
        %7278 = vmatpush1.bf16.msra.mxu0 %v2420
        %7279 = vmatprep.subr.bf16.mxu0 0
        %7280 = vmatpush1.bf16.msra.mxu0 %v2419
        %7281 = vmatprep.subr.bf16.mxu0 0
        %7282 = vmatpush1.bf16.msra.mxu0 %v2418
        %7283 = vmatprep.subr.bf16.mxu0 0
        %7284 = vmatpush1.bf16.msra.mxu0 %v2417
        %7285 = vmatprep.subr.bf16.mxu0 0
        %7286 = vmatpush1.bf16.msra.mxu0 %v2416
        %7287 = vmatprep.subr.bf16.mxu0 0
        %7288 = vmatpush1.bf16.msra.mxu0 %v2415
        %7289 = vmatprep.subr.bf16.mxu0 0
        %7290 = vmatpush1.bf16.msra.mxu0 %v2414
        %7291 = vmatprep.subr.bf16.mxu0 0
        %7292 = vmatpush2.bf16.msra.mxu0 %v2429
        %7293 = vmatprep.subr.bf16.mxu0 0
        %7294 = vmatpush2.bf16.msra.mxu0 %v2428
        %7295 = vmatprep.subr.bf16.mxu0 0
        %7296 = vmatpush2.bf16.msra.mxu0 %v2427
        %7297 = vmatprep.subr.bf16.mxu0 0
        %7298 = vmatpush2.bf16.msra.mxu0 %v2426
        %7299 = vmatprep.subr.bf16.mxu0 0
        %7300 = vmatpush2.bf16.msra.mxu0 %v2425
        %7301 = vmatprep.subr.bf16.mxu0 0
        %7302 = vmatpush2.bf16.msra.mxu0 %v2424
        %7303 = vmatprep.subr.bf16.mxu0 0
        %7304 = vmatpush2.bf16.msra.mxu0 %v2423
        %7305 = vmatprep.subr.bf16.mxu0 0
        %7306 = vmatpush2.bf16.msra.mxu0 %v2422
        %7307 = vmatprep.mubr.bf16.mxu0 %v3761
        %7308 = vmatmul.mubr.bf16.gmra.mxu0 %v3759
        %v7309 = vpop.f32.mrf.mxu0
        %v7310 = vadd.f32 %v7270, %v7309
        %v7311 = vpop.f32.mrf.mxu0
        %v7312 = vpop.f32.mrf.mxu0
        %v7313 = vpop.f32.mrf.mxu0
        %7314 = vdwg.mxu0
        %7315 = vmatprep.subr.bf16.mxu0 0
        %7316 = vmatpush1.bf16.msra.mxu0 %v2437
        %7317 = vmatprep.subr.bf16.mxu0 0
        %7318 = vmatpush1.bf16.msra.mxu0 %v2436
        %7319 = vmatprep.subr.bf16.mxu0 0
        %7320 = vmatpush1.bf16.msra.mxu0 %v2435
        %7321 = vmatprep.subr.bf16.mxu0 0
        %7322 = vmatpush1.bf16.msra.mxu0 %v2434
        %7323 = vmatprep.subr.bf16.mxu0 0
        %7324 = vmatpush1.bf16.msra.mxu0 %v2433
        %7325 = vmatprep.subr.bf16.mxu0 0
        %7326 = vmatpush1.bf16.msra.mxu0 %v2432
        %7327 = vmatprep.subr.bf16.mxu0 0
        %7328 = vmatpush1.bf16.msra.mxu0 %v2431
        %7329 = vmatprep.subr.bf16.mxu0 0
        %7330 = vmatpush1.bf16.msra.mxu0 %v2430
        %7331 = vmatprep.subr.bf16.mxu0 0
        %7332 = vmatpush2.bf16.msra.mxu0 %v2445
        %7333 = vmatprep.subr.bf16.mxu0 0
        %7334 = vmatpush2.bf16.msra.mxu0 %v2444
        %7335 = vmatprep.subr.bf16.mxu0 0
        %7336 = vmatpush2.bf16.msra.mxu0 %v2443
        %7337 = vmatprep.subr.bf16.mxu0 0
        %7338 = vmatpush2.bf16.msra.mxu0 %v2442
        %7339 = vmatprep.subr.bf16.mxu0 0
        %7340 = vmatpush2.bf16.msra.mxu0 %v2441
        %7341 = vmatprep.subr.bf16.mxu0 0
        %7342 = vmatpush2.bf16.msra.mxu0 %v2440
        %7343 = vmatprep.subr.bf16.mxu0 0
        %7344 = vmatpush2.bf16.msra.mxu0 %v2439
        %7345 = vmatprep.subr.bf16.mxu0 0
        %7346 = vmatpush2.bf16.msra.mxu0 %v2438
        %7347 = vmatprep.mubr.bf16.mxu0 %v3758
        %7348 = vmatmul.mubr.bf16.gmra.mxu0 %v3744
        %v7349 = vpop.f32.mrf.mxu0
        %v7350 = vadd.f32 %v7310, %v7349
        %v7351 = vpop.f32.mrf.mxu0
        %v7352 = vpop.f32.mrf.mxu0
        %v7353 = vpop.f32.mrf.mxu0
        %7354 = vdwg.mxu0
        %7355 = vmatprep.subr.bf16.mxu0 0
        %7356 = vmatpush1.bf16.msra.mxu0 %v2453
        %7357 = vmatprep.subr.bf16.mxu0 0
        %7358 = vmatpush1.bf16.msra.mxu0 %v2452
        %7359 = vmatprep.subr.bf16.mxu0 0
        %7360 = vmatpush1.bf16.msra.mxu0 %v2451
        %7361 = vmatprep.subr.bf16.mxu0 0
        %7362 = vmatpush1.bf16.msra.mxu0 %v2450
        %7363 = vmatprep.subr.bf16.mxu0 0
        %7364 = vmatpush1.bf16.msra.mxu0 %v2449
        %7365 = vmatprep.subr.bf16.mxu0 0
        %7366 = vmatpush1.bf16.msra.mxu0 %v2448
        %7367 = vmatprep.subr.bf16.mxu0 0
        %7368 = vmatpush1.bf16.msra.mxu0 %v2447
        %7369 = vmatprep.subr.bf16.mxu0 0
        %7370 = vmatpush1.bf16.msra.mxu0 %v2446
        %7371 = vmatprep.subr.bf16.mxu0 0
        %7372 = vmatpush2.bf16.msra.mxu0 %v2461
        %7373 = vmatprep.subr.bf16.mxu0 0
        %7374 = vmatpush2.bf16.msra.mxu0 %v2460
        %7375 = vmatprep.subr.bf16.mxu0 0
        %7376 = vmatpush2.bf16.msra.mxu0 %v2459
        %7377 = vmatprep.subr.bf16.mxu0 0
        %7378 = vmatpush2.bf16.msra.mxu0 %v2458
        %7379 = vmatprep.subr.bf16.mxu0 0
        %7380 = vmatpush2.bf16.msra.mxu0 %v2457
        %7381 = vmatprep.subr.bf16.mxu0 0
        %7382 = vmatpush2.bf16.msra.mxu0 %v2456
        %7383 = vmatprep.subr.bf16.mxu0 0
        %7384 = vmatpush2.bf16.msra.mxu0 %v2455
        %7385 = vmatprep.subr.bf16.mxu0 0
        %7386 = vmatpush2.bf16.msra.mxu0 %v2454
        %7387 = vmatprep.mubr.bf16.mxu0 %v3762
        %7388 = vmatmul.mubr.bf16.gmra.mxu0 %v3760
        %v7389 = vpop.f32.mrf.mxu0
        %v7390 = vadd.f32 %v7350, %v7389
        %v7391 = vpop.f32.mrf.mxu0
        %v7392 = vpop.f32.mrf.mxu0
        %v7393 = vpop.f32.mrf.mxu0
        %7394 = vdwg.mxu0
        %7395 = vmatprep.subr.bf16.mxu0 0
        %7396 = vmatpush1.bf16.msra.mxu0 %v2469
        %7397 = vmatprep.subr.bf16.mxu0 0
        %7398 = vmatpush1.bf16.msra.mxu0 %v2468
        %7399 = vmatprep.subr.bf16.mxu0 0
        %7400 = vmatpush1.bf16.msra.mxu0 %v2467
        %7401 = vmatprep.subr.bf16.mxu0 0
        %7402 = vmatpush1.bf16.msra.mxu0 %v2466
        %7403 = vmatprep.subr.bf16.mxu0 0
        %7404 = vmatpush1.bf16.msra.mxu0 %v2465
        %7405 = vmatprep.subr.bf16.mxu0 0
        %7406 = vmatpush1.bf16.msra.mxu0 %v2464
        %7407 = vmatprep.subr.bf16.mxu0 0
        %7408 = vmatpush1.bf16.msra.mxu0 %v2463
        %7409 = vmatprep.subr.bf16.mxu0 0
        %7410 = vmatpush1.bf16.msra.mxu0 %v2462
        %7411 = vmatprep.subr.bf16.mxu0 0
        %7412 = vmatpush2.bf16.msra.mxu0 %v2477
        %7413 = vmatprep.subr.bf16.mxu0 0
        %7414 = vmatpush2.bf16.msra.mxu0 %v2476
        %7415 = vmatprep.subr.bf16.mxu0 0
        %7416 = vmatpush2.bf16.msra.mxu0 %v2475
        %7417 = vmatprep.subr.bf16.mxu0 0
        %7418 = vmatpush2.bf16.msra.mxu0 %v2474
        %7419 = vmatprep.subr.bf16.mxu0 0
        %7420 = vmatpush2.bf16.msra.mxu0 %v2473
        %7421 = vmatprep.subr.bf16.mxu0 0
        %7422 = vmatpush2.bf16.msra.mxu0 %v2472
        %7423 = vmatprep.subr.bf16.mxu0 0
        %7424 = vmatpush2.bf16.msra.mxu0 %v2471
        %7425 = vmatprep.subr.bf16.mxu0 0
        %7426 = vmatpush2.bf16.msra.mxu0 %v2470
        %7427 = vmatprep.mubr.bf16.mxu0 %v3800
        %7428 = vmatmul.mubr.bf16.gmra.mxu0 %v3786
        %v7429 = vpop.f32.mrf.mxu0
        %v7430 = vadd.f32 %v7390, %v7429
        %v7431 = vpop.f32.mrf.mxu0
        %v7432 = vpop.f32.mrf.mxu0
        %v7433 = vpop.f32.mrf.mxu0
        %7434 = vdwg.mxu0
        %7435 = vmatprep.subr.bf16.mxu0 0
        %7436 = vmatpush1.bf16.msra.mxu0 %v2485
        %7437 = vmatprep.subr.bf16.mxu0 0
        %7438 = vmatpush1.bf16.msra.mxu0 %v2484
        %7439 = vmatprep.subr.bf16.mxu0 0
        %7440 = vmatpush1.bf16.msra.mxu0 %v2483
        %7441 = vmatprep.subr.bf16.mxu0 0
        %7442 = vmatpush1.bf16.msra.mxu0 %v2482
        %7443 = vmatprep.subr.bf16.mxu0 0
        %7444 = vmatpush1.bf16.msra.mxu0 %v2481
        %7445 = vmatprep.subr.bf16.mxu0 0
        %7446 = vmatpush1.bf16.msra.mxu0 %v2480
        %7447 = vmatprep.subr.bf16.mxu0 0
        %7448 = vmatpush1.bf16.msra.mxu0 %v2479
        %7449 = vmatprep.subr.bf16.mxu0 0
        %7450 = vmatpush1.bf16.msra.mxu0 %v2478
        %7451 = vmatprep.subr.bf16.mxu0 0
        %7452 = vmatpush2.bf16.msra.mxu0 %v2493
        %7453 = vmatprep.subr.bf16.mxu0 0
        %7454 = vmatpush2.bf16.msra.mxu0 %v2492
        %7455 = vmatprep.subr.bf16.mxu0 0
        %7456 = vmatpush2.bf16.msra.mxu0 %v2491
        %7457 = vmatprep.subr.bf16.mxu0 0
        %7458 = vmatpush2.bf16.msra.mxu0 %v2490
        %7459 = vmatprep.subr.bf16.mxu0 0
        %7460 = vmatpush2.bf16.msra.mxu0 %v2489
        %7461 = vmatprep.subr.bf16.mxu0 0
        %7462 = vmatpush2.bf16.msra.mxu0 %v2488
        %7463 = vmatprep.subr.bf16.mxu0 0
        %7464 = vmatpush2.bf16.msra.mxu0 %v2487
        %7465 = vmatprep.subr.bf16.mxu0 0
        %7466 = vmatpush2.bf16.msra.mxu0 %v2486
        %7467 = vmatprep.mubr.bf16.mxu0 %v3810
        %7468 = vmatmul.mubr.bf16.gmra.mxu0 %v3808
        %v7469 = vpop.f32.mrf.mxu0
        %v7470 = vadd.f32 %v7430, %v7469
        %v7471 = vpop.f32.mrf.mxu0
        %v7472 = vpop.f32.mrf.mxu0
        %v7473 = vpop.f32.mrf.mxu0
        %7474 = vdwg.mxu0
        %7475 = vmatprep.subr.bf16.mxu0 0
        %7476 = vmatpush1.bf16.msra.mxu0 %v2501
        %7477 = vmatprep.subr.bf16.mxu0 0
        %7478 = vmatpush1.bf16.msra.mxu0 %v2500
        %7479 = vmatprep.subr.bf16.mxu0 0
        %7480 = vmatpush1.bf16.msra.mxu0 %v2499
        %7481 = vmatprep.subr.bf16.mxu0 0
        %7482 = vmatpush1.bf16.msra.mxu0 %v2498
        %7483 = vmatprep.subr.bf16.mxu0 0
        %7484 = vmatpush1.bf16.msra.mxu0 %v2497
        %7485 = vmatprep.subr.bf16.mxu0 0
        %7486 = vmatpush1.bf16.msra.mxu0 %v2496
        %7487 = vmatprep.subr.bf16.mxu0 0
        %7488 = vmatpush1.bf16.msra.mxu0 %v2495
        %7489 = vmatprep.subr.bf16.mxu0 0
        %7490 = vmatpush1.bf16.msra.mxu0 %v2494
        %7491 = vmatprep.subr.bf16.mxu0 0
        %7492 = vmatpush2.bf16.msra.mxu0 %v2509
        %7493 = vmatprep.subr.bf16.mxu0 0
        %7494 = vmatpush2.bf16.msra.mxu0 %v2508
        %7495 = vmatprep.subr.bf16.mxu0 0
        %7496 = vmatpush2.bf16.msra.mxu0 %v2507
        %7497 = vmatprep.subr.bf16.mxu0 0
        %7498 = vmatpush2.bf16.msra.mxu0 %v2506
        %7499 = vmatprep.subr.bf16.mxu0 0
        %7500 = vmatpush2.bf16.msra.mxu0 %v2505
        %7501 = vmatprep.subr.bf16.mxu0 0
        %7502 = vmatpush2.bf16.msra.mxu0 %v2504
        %7503 = vmatprep.subr.bf16.mxu0 0
        %7504 = vmatpush2.bf16.msra.mxu0 %v2503
        %7505 = vmatprep.subr.bf16.mxu0 0
        %7506 = vmatpush2.bf16.msra.mxu0 %v2502
        %7507 = vmatprep.mubr.bf16.mxu0 %v3807
        %7508 = vmatmul.mubr.bf16.gmra.mxu0 %v3793
        %v7509 = vpop.f32.mrf.mxu0
        %v7510 = vadd.f32 %v7470, %v7509
        %v7511 = vpop.f32.mrf.mxu0
        %v7512 = vpop.f32.mrf.mxu0
        %v7513 = vpop.f32.mrf.mxu0
        %7514 = vdwg.mxu0
        %7515 = vmatprep.subr.bf16.mxu0 0
        %7516 = vmatpush1.bf16.msra.mxu0 %v2517
        %7517 = vmatprep.subr.bf16.mxu0 0
        %7518 = vmatpush1.bf16.msra.mxu0 %v2516
        %7519 = vmatprep.subr.bf16.mxu0 0
        %7520 = vmatpush1.bf16.msra.mxu0 %v2515
        %7521 = vmatprep.subr.bf16.mxu0 0
        %7522 = vmatpush1.bf16.msra.mxu0 %v2514
        %7523 = vmatprep.subr.bf16.mxu0 0
        %7524 = vmatpush1.bf16.msra.mxu0 %v2513
        %7525 = vmatprep.subr.bf16.mxu0 0
        %7526 = vmatpush1.bf16.msra.mxu0 %v2512
        %7527 = vmatprep.subr.bf16.mxu0 0
        %7528 = vmatpush1.bf16.msra.mxu0 %v2511
        %7529 = vmatprep.subr.bf16.mxu0 0
        %7530 = vmatpush1.bf16.msra.mxu0 %v2510
        %7531 = vmatprep.subr.bf16.mxu0 0
        %7532 = vmatpush2.bf16.msra.mxu0 %v2525
        %7533 = vmatprep.subr.bf16.mxu0 0
        %7534 = vmatpush2.bf16.msra.mxu0 %v2524
        %7535 = vmatprep.subr.bf16.mxu0 0
        %7536 = vmatpush2.bf16.msra.mxu0 %v2523
        %7537 = vmatprep.subr.bf16.mxu0 0
        %7538 = vmatpush2.bf16.msra.mxu0 %v2522
        %7539 = vmatprep.subr.bf16.mxu0 0
        %7540 = vmatpush2.bf16.msra.mxu0 %v2521
        %7541 = vmatprep.subr.bf16.mxu0 0
        %7542 = vmatpush2.bf16.msra.mxu0 %v2520
        %7543 = vmatprep.subr.bf16.mxu0 0
        %7544 = vmatpush2.bf16.msra.mxu0 %v2519
        %7545 = vmatprep.subr.bf16.mxu0 0
        %7546 = vmatpush2.bf16.msra.mxu0 %v2518
        %7547 = vmatprep.mubr.bf16.mxu0 %v3811
        %7548 = vmatmul.mubr.bf16.gmra.mxu0 %v3809
        %v7549 = vpop.f32.mrf.mxu0
        %v7550 = vadd.f32 %v7510, %v7549
        %v7551 = vpop.f32.mrf.mxu0
        %v7552 = vpop.f32.mrf.mxu0
        %v7553 = vpop.f32.mrf.mxu0
        %7554 = vdwg.mxu0
        %7555 = vmatprep.subr.bf16.mxu0 0
        %7556 = vmatpush1.bf16.msra.mxu0 %v2533
        %7557 = vmatprep.subr.bf16.mxu0 0
        %7558 = vmatpush1.bf16.msra.mxu0 %v2532
        %7559 = vmatprep.subr.bf16.mxu0 0
        %7560 = vmatpush1.bf16.msra.mxu0 %v2531
        %7561 = vmatprep.subr.bf16.mxu0 0
        %7562 = vmatpush1.bf16.msra.mxu0 %v2530
        %7563 = vmatprep.subr.bf16.mxu0 0
        %7564 = vmatpush1.bf16.msra.mxu0 %v2529
        %7565 = vmatprep.subr.bf16.mxu0 0
        %7566 = vmatpush1.bf16.msra.mxu0 %v2528
        %7567 = vmatprep.subr.bf16.mxu0 0
        %7568 = vmatpush1.bf16.msra.mxu0 %v2527
        %7569 = vmatprep.subr.bf16.mxu0 0
        %7570 = vmatpush1.bf16.msra.mxu0 %v2526
        %7571 = vmatprep.subr.bf16.mxu0 0
        %7572 = vmatpush2.bf16.msra.mxu0 %v2541
        %7573 = vmatprep.subr.bf16.mxu0 0
        %7574 = vmatpush2.bf16.msra.mxu0 %v2540
        %7575 = vmatprep.subr.bf16.mxu0 0
        %7576 = vmatpush2.bf16.msra.mxu0 %v2539
        %7577 = vmatprep.subr.bf16.mxu0 0
        %7578 = vmatpush2.bf16.msra.mxu0 %v2538
        %7579 = vmatprep.subr.bf16.mxu0 0
        %7580 = vmatpush2.bf16.msra.mxu0 %v2537
        %7581 = vmatprep.subr.bf16.mxu0 0
        %7582 = vmatpush2.bf16.msra.mxu0 %v2536
        %7583 = vmatprep.subr.bf16.mxu0 0
        %7584 = vmatpush2.bf16.msra.mxu0 %v2535
        %7585 = vmatprep.subr.bf16.mxu0 0
        %7586 = vmatpush2.bf16.msra.mxu0 %v2534
        %7587 = vmatprep.mubr.bf16.mxu0 %v3849
        %7588 = vmatmul.mubr.bf16.gmra.mxu0 %v3835
        %v7589 = vpop.f32.mrf.mxu0
        %v7590 = vadd.f32 %v7550, %v7589
        %v7591 = vpop.f32.mrf.mxu0
        %v7592 = vpop.f32.mrf.mxu0
        %v7593 = vpop.f32.mrf.mxu0
        %7594 = vdwg.mxu0
        %7595 = vmatprep.subr.bf16.mxu0 0
        %7596 = vmatpush1.bf16.msra.mxu0 %v2549
        %7597 = vmatprep.subr.bf16.mxu0 0
        %7598 = vmatpush1.bf16.msra.mxu0 %v2548
        %7599 = vmatprep.subr.bf16.mxu0 0
        %7600 = vmatpush1.bf16.msra.mxu0 %v2547
        %7601 = vmatprep.subr.bf16.mxu0 0
        %7602 = vmatpush1.bf16.msra.mxu0 %v2546
        %7603 = vmatprep.subr.bf16.mxu0 0
        %7604 = vmatpush1.bf16.msra.mxu0 %v2545
        %7605 = vmatprep.subr.bf16.mxu0 0
        %7606 = vmatpush1.bf16.msra.mxu0 %v2544
        %7607 = vmatprep.subr.bf16.mxu0 0
        %7608 = vmatpush1.bf16.msra.mxu0 %v2543
        %7609 = vmatprep.subr.bf16.mxu0 0
        %7610 = vmatpush1.bf16.msra.mxu0 %v2542
        %7611 = vmatprep.subr.bf16.mxu0 0
        %7612 = vmatpush2.bf16.msra.mxu0 %v2557
        %7613 = vmatprep.subr.bf16.mxu0 0
        %7614 = vmatpush2.bf16.msra.mxu0 %v2556
        %7615 = vmatprep.subr.bf16.mxu0 0
        %7616 = vmatpush2.bf16.msra.mxu0 %v2555
        %7617 = vmatprep.subr.bf16.mxu0 0
        %7618 = vmatpush2.bf16.msra.mxu0 %v2554
        %7619 = vmatprep.subr.bf16.mxu0 0
        %7620 = vmatpush2.bf16.msra.mxu0 %v2553
        %7621 = vmatprep.subr.bf16.mxu0 0
        %7622 = vmatpush2.bf16.msra.mxu0 %v2552
        %7623 = vmatprep.subr.bf16.mxu0 0
        %7624 = vmatpush2.bf16.msra.mxu0 %v2551
        %7625 = vmatprep.subr.bf16.mxu0 0
        %7626 = vmatpush2.bf16.msra.mxu0 %v2550
        %7627 = vmatprep.mubr.bf16.mxu0 %v3859
        %7628 = vmatmul.mubr.bf16.gmra.mxu0 %v3857
        %v7629 = vpop.f32.mrf.mxu0
        %v7630 = vadd.f32 %v7590, %v7629
        %v7631 = vpop.f32.mrf.mxu0
        %v7632 = vpop.f32.mrf.mxu0
        %v7633 = vpop.f32.mrf.mxu0
        %7634 = vdwg.mxu0
        %7635 = vmatprep.subr.bf16.mxu0 0
        %7636 = vmatpush1.bf16.msra.mxu0 %v2565
        %7637 = vmatprep.subr.bf16.mxu0 0
        %7638 = vmatpush1.bf16.msra.mxu0 %v2564
        %7639 = vmatprep.subr.bf16.mxu0 0
        %7640 = vmatpush1.bf16.msra.mxu0 %v2563
        %7641 = vmatprep.subr.bf16.mxu0 0
        %7642 = vmatpush1.bf16.msra.mxu0 %v2562
        %7643 = vmatprep.subr.bf16.mxu0 0
        %7644 = vmatpush1.bf16.msra.mxu0 %v2561
        %7645 = vmatprep.subr.bf16.mxu0 0
        %7646 = vmatpush1.bf16.msra.mxu0 %v2560
        %7647 = vmatprep.subr.bf16.mxu0 0
        %7648 = vmatpush1.bf16.msra.mxu0 %v2559
        %7649 = vmatprep.subr.bf16.mxu0 0
        %7650 = vmatpush1.bf16.msra.mxu0 %v2558
        %7651 = vmatprep.subr.bf16.mxu0 0
        %7652 = vmatpush2.bf16.msra.mxu0 %v2573
        %7653 = vmatprep.subr.bf16.mxu0 0
        %7654 = vmatpush2.bf16.msra.mxu0 %v2572
        %7655 = vmatprep.subr.bf16.mxu0 0
        %7656 = vmatpush2.bf16.msra.mxu0 %v2571
        %7657 = vmatprep.subr.bf16.mxu0 0
        %7658 = vmatpush2.bf16.msra.mxu0 %v2570
        %7659 = vmatprep.subr.bf16.mxu0 0
        %7660 = vmatpush2.bf16.msra.mxu0 %v2569
        %7661 = vmatprep.subr.bf16.mxu0 0
        %7662 = vmatpush2.bf16.msra.mxu0 %v2568
        %7663 = vmatprep.subr.bf16.mxu0 0
        %7664 = vmatpush2.bf16.msra.mxu0 %v2567
        %7665 = vmatprep.subr.bf16.mxu0 0
        %7666 = vmatpush2.bf16.msra.mxu0 %v2566
        %7667 = vmatprep.mubr.bf16.mxu0 %v3856
        %7668 = vmatmul.mubr.bf16.gmra.mxu0 %v3842
        %v7669 = vpop.f32.mrf.mxu0
        %v7670 = vadd.f32 %v7630, %v7669
        %v7671 = vpop.f32.mrf.mxu0
        %v7672 = vpop.f32.mrf.mxu0
        %v7673 = vpop.f32.mrf.mxu0
        %7674 = vdwg.mxu0
        %7675 = vmatprep.subr.bf16.mxu0 0
        %7676 = vmatpush1.bf16.msra.mxu0 %v2581
        %7677 = vmatprep.subr.bf16.mxu0 0
        %7678 = vmatpush1.bf16.msra.mxu0 %v2580
        %7679 = vmatprep.subr.bf16.mxu0 0
        %7680 = vmatpush1.bf16.msra.mxu0 %v2579
        %7681 = vmatprep.subr.bf16.mxu0 0
        %7682 = vmatpush1.bf16.msra.mxu0 %v2578
        %7683 = vmatprep.subr.bf16.mxu0 0
        %7684 = vmatpush1.bf16.msra.mxu0 %v2577
        %7685 = vmatprep.subr.bf16.mxu0 0
        %7686 = vmatpush1.bf16.msra.mxu0 %v2576
        %7687 = vmatprep.subr.bf16.mxu0 0
        %7688 = vmatpush1.bf16.msra.mxu0 %v2575
        %7689 = vmatprep.subr.bf16.mxu0 0
        %7690 = vmatpush1.bf16.msra.mxu0 %v2574
        %7691 = vmatprep.subr.bf16.mxu0 0
        %7692 = vmatpush2.bf16.msra.mxu0 %v2589
        %7693 = vmatprep.subr.bf16.mxu0 0
        %7694 = vmatpush2.bf16.msra.mxu0 %v2588
        %7695 = vmatprep.subr.bf16.mxu0 0
        %7696 = vmatpush2.bf16.msra.mxu0 %v2587
        %7697 = vmatprep.subr.bf16.mxu0 0
        %7698 = vmatpush2.bf16.msra.mxu0 %v2586
        %7699 = vmatprep.subr.bf16.mxu0 0
        %7700 = vmatpush2.bf16.msra.mxu0 %v2585
        %7701 = vmatprep.subr.bf16.mxu0 0
        %7702 = vmatpush2.bf16.msra.mxu0 %v2584
        %7703 = vmatprep.subr.bf16.mxu0 0
        %7704 = vmatpush2.bf16.msra.mxu0 %v2583
        %7705 = vmatprep.subr.bf16.mxu0 0
        %7706 = vmatpush2.bf16.msra.mxu0 %v2582
        %7707 = vmatprep.mubr.bf16.mxu0 %v3860
        %7708 = vmatmul.mubr.bf16.gmra.mxu0 %v3858
        %v7709 = vpop.f32.mrf.mxu0
        %v7710 = vadd.f32 %v7670, %v7709
        %v7711 = vpop.f32.mrf.mxu0
        %v7712 = vpop.f32.mrf.mxu0
        %v7713 = vpop.f32.mrf.mxu0
        %7714 = vdwg.mxu0
        %7715 = vmatprep.subr.bf16.mxu0 0
        %7716 = vmatpush1.bf16.msra.mxu0 %v2597
        %7717 = vmatprep.subr.bf16.mxu0 0
        %7718 = vmatpush1.bf16.msra.mxu0 %v2596
        %7719 = vmatprep.subr.bf16.mxu0 0
        %7720 = vmatpush1.bf16.msra.mxu0 %v2595
        %7721 = vmatprep.subr.bf16.mxu0 0
        %7722 = vmatpush1.bf16.msra.mxu0 %v2594
        %7723 = vmatprep.subr.bf16.mxu0 0
        %7724 = vmatpush1.bf16.msra.mxu0 %v2593
        %7725 = vmatprep.subr.bf16.mxu0 0
        %7726 = vmatpush1.bf16.msra.mxu0 %v2592
        %7727 = vmatprep.subr.bf16.mxu0 0
        %7728 = vmatpush1.bf16.msra.mxu0 %v2591
        %7729 = vmatprep.subr.bf16.mxu0 0
        %7730 = vmatpush1.bf16.msra.mxu0 %v2590
        %7731 = vmatprep.subr.bf16.mxu0 0
        %7732 = vmatpush2.bf16.msra.mxu0 %v2605
        %7733 = vmatprep.subr.bf16.mxu0 0
        %7734 = vmatpush2.bf16.msra.mxu0 %v2604
        %7735 = vmatprep.subr.bf16.mxu0 0
        %7736 = vmatpush2.bf16.msra.mxu0 %v2603
        %7737 = vmatprep.subr.bf16.mxu0 0
        %7738 = vmatpush2.bf16.msra.mxu0 %v2602
        %7739 = vmatprep.subr.bf16.mxu0 0
        %7740 = vmatpush2.bf16.msra.mxu0 %v2601
        %7741 = vmatprep.subr.bf16.mxu0 0
        %7742 = vmatpush2.bf16.msra.mxu0 %v2600
        %7743 = vmatprep.subr.bf16.mxu0 0
        %7744 = vmatpush2.bf16.msra.mxu0 %v2599
        %7745 = vmatprep.subr.bf16.mxu0 0
        %7746 = vmatpush2.bf16.msra.mxu0 %v2598
        %7747 = vmatprep.mubr.bf16.mxu0 %v3898
        %7748 = vmatmul.mubr.bf16.gmra.mxu0 %v3884
        %v7749 = vpop.f32.mrf.mxu0
        %v7750 = vadd.f32 %v7710, %v7749
        %v7751 = vpop.f32.mrf.mxu0
        %v7752 = vpop.f32.mrf.mxu0
        %v7753 = vpop.f32.mrf.mxu0
        %7754 = vdwg.mxu0
        %7755 = vmatprep.subr.bf16.mxu0 0
        %7756 = vmatpush1.bf16.msra.mxu0 %v2613
        %7757 = vmatprep.subr.bf16.mxu0 0
        %7758 = vmatpush1.bf16.msra.mxu0 %v2612
        %7759 = vmatprep.subr.bf16.mxu0 0
        %7760 = vmatpush1.bf16.msra.mxu0 %v2611
        %7761 = vmatprep.subr.bf16.mxu0 0
        %7762 = vmatpush1.bf16.msra.mxu0 %v2610
        %7763 = vmatprep.subr.bf16.mxu0 0
        %7764 = vmatpush1.bf16.msra.mxu0 %v2609
        %7765 = vmatprep.subr.bf16.mxu0 0
        %7766 = vmatpush1.bf16.msra.mxu0 %v2608
        %7767 = vmatprep.subr.bf16.mxu0 0
        %7768 = vmatpush1.bf16.msra.mxu0 %v2607
        %7769 = vmatprep.subr.bf16.mxu0 0
        %7770 = vmatpush1.bf16.msra.mxu0 %v2606
        %7771 = vmatprep.subr.bf16.mxu0 0
        %7772 = vmatpush2.bf16.msra.mxu0 %v2621
        %7773 = vmatprep.subr.bf16.mxu0 0
        %7774 = vmatpush2.bf16.msra.mxu0 %v2620
        %7775 = vmatprep.subr.bf16.mxu0 0
        %7776 = vmatpush2.bf16.msra.mxu0 %v2619
        %7777 = vmatprep.subr.bf16.mxu0 0
        %7778 = vmatpush2.bf16.msra.mxu0 %v2618
        %7779 = vmatprep.subr.bf16.mxu0 0
        %7780 = vmatpush2.bf16.msra.mxu0 %v2617
        %7781 = vmatprep.subr.bf16.mxu0 0
        %7782 = vmatpush2.bf16.msra.mxu0 %v2616
        %7783 = vmatprep.subr.bf16.mxu0 0
        %7784 = vmatpush2.bf16.msra.mxu0 %v2615
        %7785 = vmatprep.subr.bf16.mxu0 0
        %7786 = vmatpush2.bf16.msra.mxu0 %v2614
        %7787 = vmatprep.mubr.bf16.mxu0 %v3908
        %7788 = vmatmul.mubr.bf16.gmra.mxu0 %v3906
        %v7789 = vpop.f32.mrf.mxu0
        %v7790 = vadd.f32 %v7750, %v7789
        %v7791 = vpop.f32.mrf.mxu0
        %v7792 = vpop.f32.mrf.mxu0
        %v7793 = vpop.f32.mrf.mxu0
        %7794 = vdwg.mxu0
        %7795 = vmatprep.subr.bf16.mxu0 0
        %7796 = vmatpush1.bf16.msra.mxu0 %v2629
        %7797 = vmatprep.subr.bf16.mxu0 0
        %7798 = vmatpush1.bf16.msra.mxu0 %v2628
        %7799 = vmatprep.subr.bf16.mxu0 0
        %7800 = vmatpush1.bf16.msra.mxu0 %v2627
        %7801 = vmatprep.subr.bf16.mxu0 0
        %7802 = vmatpush1.bf16.msra.mxu0 %v2626
        %7803 = vmatprep.subr.bf16.mxu0 0
        %7804 = vmatpush1.bf16.msra.mxu0 %v2625
        %7805 = vmatprep.subr.bf16.mxu0 0
        %7806 = vmatpush1.bf16.msra.mxu0 %v2624
        %7807 = vmatprep.subr.bf16.mxu0 0
        %7808 = vmatpush1.bf16.msra.mxu0 %v2623
        %7809 = vmatprep.subr.bf16.mxu0 0
        %7810 = vmatpush1.bf16.msra.mxu0 %v2622
        %7811 = vmatprep.subr.bf16.mxu0 0
        %7812 = vmatpush2.bf16.msra.mxu0 %v2637
        %7813 = vmatprep.subr.bf16.mxu0 0
        %7814 = vmatpush2.bf16.msra.mxu0 %v2636
        %7815 = vmatprep.subr.bf16.mxu0 0
        %7816 = vmatpush2.bf16.msra.mxu0 %v2635
        %7817 = vmatprep.subr.bf16.mxu0 0
        %7818 = vmatpush2.bf16.msra.mxu0 %v2634
        %7819 = vmatprep.subr.bf16.mxu0 0
        %7820 = vmatpush2.bf16.msra.mxu0 %v2633
        %7821 = vmatprep.subr.bf16.mxu0 0
        %7822 = vmatpush2.bf16.msra.mxu0 %v2632
        %7823 = vmatprep.subr.bf16.mxu0 0
        %7824 = vmatpush2.bf16.msra.mxu0 %v2631
        %7825 = vmatprep.subr.bf16.mxu0 0
        %7826 = vmatpush2.bf16.msra.mxu0 %v2630
        %7827 = vmatprep.mubr.bf16.mxu0 %v3905
        %7828 = vmatmul.mubr.bf16.gmra.mxu0 %v3891
        %v7829 = vpop.f32.mrf.mxu0
        %v7830 = vadd.f32 %v7790, %v7829
        %v7831 = vpop.f32.mrf.mxu0
        %v7832 = vpop.f32.mrf.mxu0
        %v7833 = vpop.f32.mrf.mxu0
        %7834 = vdwg.mxu0
        %7835 = vmatprep.subr.bf16.mxu0 0
        %7836 = vmatpush1.bf16.msra.mxu0 %v2645
        %7837 = vmatprep.subr.bf16.mxu0 0
        %7838 = vmatpush1.bf16.msra.mxu0 %v2644
        %7839 = vmatprep.subr.bf16.mxu0 0
        %7840 = vmatpush1.bf16.msra.mxu0 %v2643
        %7841 = vmatprep.subr.bf16.mxu0 0
        %7842 = vmatpush1.bf16.msra.mxu0 %v2642
        %7843 = vmatprep.subr.bf16.mxu0 0
        %7844 = vmatpush1.bf16.msra.mxu0 %v2641
        %7845 = vmatprep.subr.bf16.mxu0 0
        %7846 = vmatpush1.bf16.msra.mxu0 %v2640
        %7847 = vmatprep.subr.bf16.mxu0 0
        %7848 = vmatpush1.bf16.msra.mxu0 %v2639
        %7849 = vmatprep.subr.bf16.mxu0 0
        %7850 = vmatpush1.bf16.msra.mxu0 %v2638
        %7851 = vmatprep.subr.bf16.mxu0 0
        %7852 = vmatpush2.bf16.msra.mxu0 %v2653
        %7853 = vmatprep.subr.bf16.mxu0 0
        %7854 = vmatpush2.bf16.msra.mxu0 %v2652
        %7855 = vmatprep.subr.bf16.mxu0 0
        %7856 = vmatpush2.bf16.msra.mxu0 %v2651
        %7857 = vmatprep.subr.bf16.mxu0 0
        %7858 = vmatpush2.bf16.msra.mxu0 %v2650
        %7859 = vmatprep.subr.bf16.mxu0 0
        %7860 = vmatpush2.bf16.msra.mxu0 %v2649
        %7861 = vmatprep.subr.bf16.mxu0 0
        %7862 = vmatpush2.bf16.msra.mxu0 %v2648
        %7863 = vmatprep.subr.bf16.mxu0 0
        %7864 = vmatpush2.bf16.msra.mxu0 %v2647
        %7865 = vmatprep.subr.bf16.mxu0 0
        %7866 = vmatpush2.bf16.msra.mxu0 %v2646
        %7867 = vmatprep.mubr.bf16.mxu0 %v3909
        %7868 = vmatmul.mubr.bf16.gmra.mxu0 %v3907
        %v7869 = vpop.f32.mrf.mxu0
        %v7870 = vadd.f32 %v7830, %v7869
        %v7871 = vpop.f32.mrf.mxu0
        %v7872 = vpop.f32.mrf.mxu0
        %v7873 = vpop.f32.mrf.mxu0
        %7874 = vdwg.mxu0
        %7875 = vmatprep.subr.bf16.mxu0 0
        %7876 = vmatpush1.bf16.msra.mxu0 %v2661
        %7877 = vmatprep.subr.bf16.mxu0 0
        %7878 = vmatpush1.bf16.msra.mxu0 %v2660
        %7879 = vmatprep.subr.bf16.mxu0 0
        %7880 = vmatpush1.bf16.msra.mxu0 %v2659
        %7881 = vmatprep.subr.bf16.mxu0 0
        %7882 = vmatpush1.bf16.msra.mxu0 %v2658
        %7883 = vmatprep.subr.bf16.mxu0 0
        %7884 = vmatpush1.bf16.msra.mxu0 %v2657
        %7885 = vmatprep.subr.bf16.mxu0 0
        %7886 = vmatpush1.bf16.msra.mxu0 %v2656
        %7887 = vmatprep.subr.bf16.mxu0 0
        %7888 = vmatpush1.bf16.msra.mxu0 %v2655
        %7889 = vmatprep.subr.bf16.mxu0 0
        %7890 = vmatpush1.bf16.msra.mxu0 %v2654
        %7891 = vmatprep.subr.bf16.mxu0 0
        %7892 = vmatpush2.bf16.msra.mxu0 %v2669
        %7893 = vmatprep.subr.bf16.mxu0 0
        %7894 = vmatpush2.bf16.msra.mxu0 %v2668
        %7895 = vmatprep.subr.bf16.mxu0 0
        %7896 = vmatpush2.bf16.msra.mxu0 %v2667
        %7897 = vmatprep.subr.bf16.mxu0 0
        %7898 = vmatpush2.bf16.msra.mxu0 %v2666
        %7899 = vmatprep.subr.bf16.mxu0 0
        %7900 = vmatpush2.bf16.msra.mxu0 %v2665
        %7901 = vmatprep.subr.bf16.mxu0 0
        %7902 = vmatpush2.bf16.msra.mxu0 %v2664
        %7903 = vmatprep.subr.bf16.mxu0 0
        %7904 = vmatpush2.bf16.msra.mxu0 %v2663
        %7905 = vmatprep.subr.bf16.mxu0 0
        %7906 = vmatpush2.bf16.msra.mxu0 %v2662
        %7907 = vmatprep.mubr.bf16.mxu0 %v3947
        %7908 = vmatmul.mubr.bf16.gmra.mxu0 %v3933
        %v7909 = vpop.f32.mrf.mxu0
        %v7910 = vadd.f32 %v7870, %v7909
        %v7911 = vpop.f32.mrf.mxu0
        %v7912 = vpop.f32.mrf.mxu0
        %v7913 = vpop.f32.mrf.mxu0
        %7914 = vdwg.mxu0
        %7915 = vmatprep.subr.bf16.mxu0 0
        %7916 = vmatpush1.bf16.msra.mxu0 %v2677
        %7917 = vmatprep.subr.bf16.mxu0 0
        %7918 = vmatpush1.bf16.msra.mxu0 %v2676
        %7919 = vmatprep.subr.bf16.mxu0 0
        %7920 = vmatpush1.bf16.msra.mxu0 %v2675
        %7921 = vmatprep.subr.bf16.mxu0 0
        %7922 = vmatpush1.bf16.msra.mxu0 %v2674
        %7923 = vmatprep.subr.bf16.mxu0 0
        %7924 = vmatpush1.bf16.msra.mxu0 %v2673
        %7925 = vmatprep.subr.bf16.mxu0 0
        %7926 = vmatpush1.bf16.msra.mxu0 %v2672
        %7927 = vmatprep.subr.bf16.mxu0 0
        %7928 = vmatpush1.bf16.msra.mxu0 %v2671
        %7929 = vmatprep.subr.bf16.mxu0 0
        %7930 = vmatpush1.bf16.msra.mxu0 %v2670
        %7931 = vmatprep.subr.bf16.mxu0 0
        %7932 = vmatpush2.bf16.msra.mxu0 %v2685
        %7933 = vmatprep.subr.bf16.mxu0 0
        %7934 = vmatpush2.bf16.msra.mxu0 %v2684
        %7935 = vmatprep.subr.bf16.mxu0 0
        %7936 = vmatpush2.bf16.msra.mxu0 %v2683
        %7937 = vmatprep.subr.bf16.mxu0 0
        %7938 = vmatpush2.bf16.msra.mxu0 %v2682
        %7939 = vmatprep.subr.bf16.mxu0 0
        %7940 = vmatpush2.bf16.msra.mxu0 %v2681
        %7941 = vmatprep.subr.bf16.mxu0 0
        %7942 = vmatpush2.bf16.msra.mxu0 %v2680
        %7943 = vmatprep.subr.bf16.mxu0 0
        %7944 = vmatpush2.bf16.msra.mxu0 %v2679
        %7945 = vmatprep.subr.bf16.mxu0 0
        %7946 = vmatpush2.bf16.msra.mxu0 %v2678
        %7947 = vmatprep.mubr.bf16.mxu0 %v3957
        %7948 = vmatmul.mubr.bf16.gmra.mxu0 %v3955
        %v7949 = vpop.f32.mrf.mxu0
        %v7950 = vadd.f32 %v7910, %v7949
        %v7951 = vpop.f32.mrf.mxu0
        %v7952 = vpop.f32.mrf.mxu0
        %v7953 = vpop.f32.mrf.mxu0
        %7954 = vdwg.mxu0
        %7955 = vmatprep.subr.bf16.mxu0 0
        %7956 = vmatpush1.bf16.msra.mxu0 %v2693
        %7957 = vmatprep.subr.bf16.mxu0 0
        %7958 = vmatpush1.bf16.msra.mxu0 %v2692
        %7959 = vmatprep.subr.bf16.mxu0 0
        %7960 = vmatpush1.bf16.msra.mxu0 %v2691
        %7961 = vmatprep.subr.bf16.mxu0 0
        %7962 = vmatpush1.bf16.msra.mxu0 %v2690
        %7963 = vmatprep.subr.bf16.mxu0 0
        %7964 = vmatpush1.bf16.msra.mxu0 %v2689
        %7965 = vmatprep.subr.bf16.mxu0 0
        %7966 = vmatpush1.bf16.msra.mxu0 %v2688
        %7967 = vmatprep.subr.bf16.mxu0 0
        %7968 = vmatpush1.bf16.msra.mxu0 %v2687
        %7969 = vmatprep.subr.bf16.mxu0 0
        %7970 = vmatpush1.bf16.msra.mxu0 %v2686
        %7971 = vmatprep.subr.bf16.mxu0 0
        %7972 = vmatpush2.bf16.msra.mxu0 %v2701
        %7973 = vmatprep.subr.bf16.mxu0 0
        %7974 = vmatpush2.bf16.msra.mxu0 %v2700
        %7975 = vmatprep.subr.bf16.mxu0 0
        %7976 = vmatpush2.bf16.msra.mxu0 %v2699
        %7977 = vmatprep.subr.bf16.mxu0 0
        %7978 = vmatpush2.bf16.msra.mxu0 %v2698
        %7979 = vmatprep.subr.bf16.mxu0 0
        %7980 = vmatpush2.bf16.msra.mxu0 %v2697
        %7981 = vmatprep.subr.bf16.mxu0 0
        %7982 = vmatpush2.bf16.msra.mxu0 %v2696
        %7983 = vmatprep.subr.bf16.mxu0 0
        %7984 = vmatpush2.bf16.msra.mxu0 %v2695
        %7985 = vmatprep.subr.bf16.mxu0 0
        %7986 = vmatpush2.bf16.msra.mxu0 %v2694
        %7987 = vmatprep.mubr.bf16.mxu0 %v3954
        %7988 = vmatmul.mubr.bf16.gmra.mxu0 %v3940
        %v7989 = vpop.f32.mrf.mxu0
        %v7990 = vadd.f32 %v7950, %v7989
        %v7991 = vpop.f32.mrf.mxu0
        %v7992 = vpop.f32.mrf.mxu0
        %v7993 = vpop.f32.mrf.mxu0
        %7994 = vdwg.mxu0
        %7995 = vmatprep.subr.bf16.mxu0 0
        %7996 = vmatpush1.bf16.msra.mxu0 %v2709
        %7997 = vmatprep.subr.bf16.mxu0 0
        %7998 = vmatpush1.bf16.msra.mxu0 %v2708
        %7999 = vmatprep.subr.bf16.mxu0 0
        %8000 = vmatpush1.bf16.msra.mxu0 %v2707
        %8001 = vmatprep.subr.bf16.mxu0 0
        %8002 = vmatpush1.bf16.msra.mxu0 %v2706
        %8003 = vmatprep.subr.bf16.mxu0 0
        %8004 = vmatpush1.bf16.msra.mxu0 %v2705
        %8005 = vmatprep.subr.bf16.mxu0 0
        %8006 = vmatpush1.bf16.msra.mxu0 %v2704
        %8007 = vmatprep.subr.bf16.mxu0 0
        %8008 = vmatpush1.bf16.msra.mxu0 %v2703
        %8009 = vmatprep.subr.bf16.mxu0 0
        %8010 = vmatpush1.bf16.msra.mxu0 %v2702
        %8011 = vmatprep.subr.bf16.mxu0 0
        %8012 = vmatpush2.bf16.msra.mxu0 %v2717
        %8013 = vmatprep.subr.bf16.mxu0 0
        %8014 = vmatpush2.bf16.msra.mxu0 %v2716
        %8015 = vmatprep.subr.bf16.mxu0 0
        %8016 = vmatpush2.bf16.msra.mxu0 %v2715
        %8017 = vmatprep.subr.bf16.mxu0 0
        %8018 = vmatpush2.bf16.msra.mxu0 %v2714
        %8019 = vmatprep.subr.bf16.mxu0 0
        %8020 = vmatpush2.bf16.msra.mxu0 %v2713
        %8021 = vmatprep.subr.bf16.mxu0 0
        %8022 = vmatpush2.bf16.msra.mxu0 %v2712
        %8023 = vmatprep.subr.bf16.mxu0 0
        %8024 = vmatpush2.bf16.msra.mxu0 %v2711
        %8025 = vmatprep.subr.bf16.mxu0 0
        %8026 = vmatpush2.bf16.msra.mxu0 %v2710
        %8027 = vmatprep.mubr.bf16.mxu0 %v3958
        %8028 = vmatmul.mubr.bf16.gmra.mxu0 %v3956
        %v8029 = vpop.f32.mrf.mxu0
        %v8030 = vadd.f32 %v7990, %v8029
        %v8031 = vpop.f32.mrf.mxu0
        %v8032 = vpop.f32.mrf.mxu0
        %v8033 = vpop.f32.mrf.mxu0
        %8034 = vdwg.mxu0
        %8035 = vmatprep.subr.bf16.mxu0 0
        %8036 = vmatpush1.bf16.msra.mxu0 %v2725
        %8037 = vmatprep.subr.bf16.mxu0 0
        %8038 = vmatpush1.bf16.msra.mxu0 %v2724
        %8039 = vmatprep.subr.bf16.mxu0 0
        %8040 = vmatpush1.bf16.msra.mxu0 %v2723
        %8041 = vmatprep.subr.bf16.mxu0 0
        %8042 = vmatpush1.bf16.msra.mxu0 %v2722
        %8043 = vmatprep.subr.bf16.mxu0 0
        %8044 = vmatpush1.bf16.msra.mxu0 %v2721
        %8045 = vmatprep.subr.bf16.mxu0 0
        %8046 = vmatpush1.bf16.msra.mxu0 %v2720
        %8047 = vmatprep.subr.bf16.mxu0 0
        %8048 = vmatpush1.bf16.msra.mxu0 %v2719
        %8049 = vmatprep.subr.bf16.mxu0 0
        %8050 = vmatpush1.bf16.msra.mxu0 %v2718
        %8051 = vmatprep.subr.bf16.mxu0 0
        %8052 = vmatpush2.bf16.msra.mxu0 %v2733
        %8053 = vmatprep.subr.bf16.mxu0 0
        %8054 = vmatpush2.bf16.msra.mxu0 %v2732
        %8055 = vmatprep.subr.bf16.mxu0 0
        %8056 = vmatpush2.bf16.msra.mxu0 %v2731
        %8057 = vmatprep.subr.bf16.mxu0 0
        %8058 = vmatpush2.bf16.msra.mxu0 %v2730
        %8059 = vmatprep.subr.bf16.mxu0 0
        %8060 = vmatpush2.bf16.msra.mxu0 %v2729
        %8061 = vmatprep.subr.bf16.mxu0 0
        %8062 = vmatpush2.bf16.msra.mxu0 %v2728
        %8063 = vmatprep.subr.bf16.mxu0 0
        %8064 = vmatpush2.bf16.msra.mxu0 %v2727
        %8065 = vmatprep.subr.bf16.mxu0 0
        %8066 = vmatpush2.bf16.msra.mxu0 %v2726
        %8067 = vmatprep.mubr.bf16.mxu0 %v3995
        %8068 = vmatmul.mubr.bf16.gmra.mxu0 %v3981
        %v8069 = vpop.f32.mrf.mxu0
        %v8070 = vadd.f32 %v8030, %v8069
        %v8071 = vpop.f32.mrf.mxu0
        %v8072 = vpop.f32.mrf.mxu0
        %v8073 = vpop.f32.mrf.mxu0
        %8074 = vdwg.mxu0
        %8075 = vmatprep.subr.bf16.mxu0 0
        %8076 = vmatpush1.bf16.msra.mxu0 %v2741
        %8077 = vmatprep.subr.bf16.mxu0 0
        %8078 = vmatpush1.bf16.msra.mxu0 %v2740
        %8079 = vmatprep.subr.bf16.mxu0 0
        %8080 = vmatpush1.bf16.msra.mxu0 %v2739
        %8081 = vmatprep.subr.bf16.mxu0 0
        %8082 = vmatpush1.bf16.msra.mxu0 %v2738
        %8083 = vmatprep.subr.bf16.mxu0 0
        %8084 = vmatpush1.bf16.msra.mxu0 %v2737
        %8085 = vmatprep.subr.bf16.mxu0 0
        %8086 = vmatpush1.bf16.msra.mxu0 %v2736
        %8087 = vmatprep.subr.bf16.mxu0 0
        %8088 = vmatpush1.bf16.msra.mxu0 %v2735
        %8089 = vmatprep.subr.bf16.mxu0 0
        %8090 = vmatpush1.bf16.msra.mxu0 %v2734
        %8091 = vmatprep.subr.bf16.mxu0 0
        %8092 = vmatpush2.bf16.msra.mxu0 %v2749
        %8093 = vmatprep.subr.bf16.mxu0 0
        %8094 = vmatpush2.bf16.msra.mxu0 %v2748
        %8095 = vmatprep.subr.bf16.mxu0 0
        %8096 = vmatpush2.bf16.msra.mxu0 %v2747
        %8097 = vmatprep.subr.bf16.mxu0 0
        %8098 = vmatpush2.bf16.msra.mxu0 %v2746
        %8099 = vmatprep.subr.bf16.mxu0 0
        %8100 = vmatpush2.bf16.msra.mxu0 %v2745
        %8101 = vmatprep.subr.bf16.mxu0 0
        %8102 = vmatpush2.bf16.msra.mxu0 %v2744
        %8103 = vmatprep.subr.bf16.mxu0 0
        %8104 = vmatpush2.bf16.msra.mxu0 %v2743
        %8105 = vmatprep.subr.bf16.mxu0 0
        %8106 = vmatpush2.bf16.msra.mxu0 %v2742
        %8107 = vmatprep.mubr.bf16.mxu0 %v3997
        %8108 = vmatmul.mubr.bf16.gmra.mxu0 %v3996
        %v8109 = vpop.f32.mrf.mxu0
        %v8110 = vadd.f32 %v8070, %v8109
        %v8111 = vpop.f32.mrf.mxu0
        %v8112 = vpop.f32.mrf.mxu0
        %v8113 = vpop.f32.mrf.mxu0
        %8114 = vdwg.mxu0
        %8115 = vmatprep.subr.bf16.mxu0 0
        %8116 = vmatpush1.bf16.msra.mxu0 %v2757
        %8117 = vmatprep.subr.bf16.mxu0 0
        %8118 = vmatpush1.bf16.msra.mxu0 %v2756
        %8119 = vmatprep.subr.bf16.mxu0 0
        %8120 = vmatpush1.bf16.msra.mxu0 %v2755
        %8121 = vmatprep.subr.bf16.mxu0 0
        %8122 = vmatpush1.bf16.msra.mxu0 %v2754
        %8123 = vmatprep.subr.bf16.mxu0 0
        %8124 = vmatpush1.bf16.msra.mxu0 %v2753
        %8125 = vmatprep.subr.bf16.mxu0 0
        %8126 = vmatpush1.bf16.msra.mxu0 %v2752
        %8127 = vmatprep.subr.bf16.mxu0 0
        %8128 = vmatpush1.bf16.msra.mxu0 %v2751
        %8129 = vmatprep.subr.bf16.mxu0 0
        %8130 = vmatpush1.bf16.msra.mxu0 %v2750
        %8131 = vmatprep.subr.bf16.mxu0 0
        %8132 = vmatpush2.bf16.msra.mxu0 0
        %8133 = vmatprep.subr.bf16.mxu0 0
        %8134 = vmatpush2.bf16.msra.mxu0 0
        %8135 = vmatprep.subr.bf16.mxu0 0
        %8136 = vmatpush2.bf16.msra.mxu0 0
        %8137 = vmatprep.subr.bf16.mxu0 0
        %8138 = vmatpush2.bf16.msra.mxu0 0
        %8139 = vmatprep.subr.bf16.mxu0 0
        %8140 = vmatpush2.bf16.msra.mxu0 0
        %8141 = vmatprep.subr.bf16.mxu0 0
        %8142 = vmatpush2.bf16.msra.mxu0 0
        %8143 = vmatprep.subr.bf16.mxu0 0
        %8144 = vmatpush2.bf16.msra.mxu0 0
        %8145 = vmatprep.subr.bf16.mxu0 0
        %8146 = vmatpush2.bf16.msra.mxu0 0
        %8147 = vmatprep.mubr.bf16.mxu0 0
        %8148 = vmatmul.mubr.bf16.gmra.mxu0 %v3988
        %v8149 = vpop.f32.mrf.mxu0
        %v8150 = vadd.f32 %v8110, %v8149
        %v8151 = vpop.f32.mrf.mxu0
        %v8152 = vpop.f32.mrf.mxu0
        %v8153 = vpop.f32.mrf.mxu0
        %8154 = vdwg.mxu0
        %v8155 = vadd.f32 %v368, %v8150
        %8156 = vst [vmem:[#allocation2] sm:$0x1] %v8155
        %p8157 = scmp.eq.s32.totalorder %s27, 2
        // Predicated region
        $region57: #{_forward.1} parent=39 // pred_check
          %p8158 = pneg %p8157
        $region58: #{_forward.1} parent=39 // pred_check_branch
          %8160 = sbr.rel (%p8158) target = $region60
        $region59: #{_forward.1} parent=39 // pred_region
          %v8161 = vld [vmem:[#allocation2] sm:$0x1]
          %v8162 = vld [vmem:[%s298] sm:$0x1]
          %v8163 = vmul.f32 %v8161, %v8162
          %v8164 = vld [vmem:[%s306] sm:$0x1]
          %v8165 = vadd.f32 %v8163, %v8164
          %v8166 = vmax.f32 %v8165, 0.0
          %v8167 = vpack.c.bf16 %v8166, %v8166
          %v8168 = vld [vmem:[%s358] sm:$0xf]
          %v8169 = vld [vmem:[%s358 + $0x4] sm:$0xf]
          %v8170 = vld [vmem:[%s358 + $0x8] sm:$0xf]
          %v8171 = vld [vmem:[%s358 + $0xc] sm:$0xf]
          %v8172 = vld [vmem:[%s358 + $0x10] sm:$0xf]
          %v8173 = vld [vmem:[%s358 + $0x14] sm:$0xf]
          %v8174 = vld [vmem:[%s358 + $0x18] sm:$0xf]
          %v8175 = vld [vmem:[%s358 + $0x1c] sm:$0xf]
          %v8176 = vld [vmem:[%s358 + $0x20] sm:$0xf]
          %v8177 = vld [vmem:[%s358 + $0x24] sm:$0xf]
          %v8178 = vld [vmem:[%s358 + $0x28] sm:$0xf]
          %v8179 = vld [vmem:[%s358 + $0x2c] sm:$0xf]
          %v8180 = vld [vmem:[%s358 + $0x30] sm:$0xf]
          %v8181 = vld [vmem:[%s358 + $0x34] sm:$0xf]
          %v8182 = vld [vmem:[%s358 + $0x38] sm:$0xf]
          %v8183 = vld [vmem:[%s358 + $0x3c] sm:$0xf]
          %v8200 = vunpack.c.l.b16 %v8168
          %v8201 = vunpack.c.l.b16 %v8169
          %v8202 = vunpack.c.l.b16 %v8170
          %v8203 = vunpack.c.l.b16 %v8171
          %v8204 = vunpack.c.l.b16 %v8172
          %v8205 = vunpack.c.l.b16 %v8173
          %v8206 = vunpack.c.l.b16 %v8174
          %v8207 = vunpack.c.l.b16 %v8175
          %v8208 = vunpack.c.l.b16 %v8176
          %v8209 = vunpack.c.l.b16 %v8177
          %v8210 = vunpack.c.l.b16 %v8178
          %v8211 = vunpack.c.l.b16 %v8179
          %v8212 = vunpack.c.l.b16 %v8180
          %v8213 = vunpack.c.l.b16 %v8181
          %v8214 = vunpack.c.l.b16 %v8182
          %v8215 = vunpack.c.l.b16 %v8183
          %v8216 = vpack.c.b16 %v8201, %v8200
          %v8217 = vpack.c.b16 %v8203, %v8202
          %v8218 = vpack.c.b16 %v8205, %v8204
          %v8219 = vpack.c.b16 %v8207, %v8206
          %v8220 = vpack.c.b16 %v8209, %v8208
          %v8221 = vpack.c.b16 %v8211, %v8210
          %v8222 = vpack.c.b16 %v8213, %v8212
          %v8223 = vpack.c.b16 %v8215, %v8214
          %8232 = vmatprep.subr.bf16.mxu0 0
          %8233 = vmatpush1.bf16.msra.mxu0 %v8223
          %8234 = vmatprep.subr.bf16.mxu0 0
          %8235 = vmatpush1.bf16.msra.mxu0 %v8222
          %8236 = vmatprep.subr.bf16.mxu0 0
          %8237 = vmatpush1.bf16.msra.mxu0 %v8221
          %8238 = vmatprep.subr.bf16.mxu0 0
          %8239 = vmatpush1.bf16.msra.mxu0 %v8220
          %8240 = vmatprep.subr.bf16.mxu0 0
          %8241 = vmatpush1.bf16.msra.mxu0 %v8219
          %8242 = vmatprep.subr.bf16.mxu0 0
          %8243 = vmatpush1.bf16.msra.mxu0 %v8218
          %8244 = vmatprep.subr.bf16.mxu0 0
          %8245 = vmatpush1.bf16.msra.mxu0 %v8217
          %8246 = vmatprep.subr.bf16.mxu0 0
          %8247 = vmatpush1.bf16.msra.mxu0 %v8216
          %8248 = vmatprep.subr.bf16.mxu0 0
          %8249 = vmatpush2.bf16.msra.mxu0 0
          %8250 = vmatprep.subr.bf16.mxu0 0
          %8251 = vmatpush2.bf16.msra.mxu0 0
          %8252 = vmatprep.subr.bf16.mxu0 0
          %8253 = vmatpush2.bf16.msra.mxu0 0
          %8254 = vmatprep.subr.bf16.mxu0 0
          %8255 = vmatpush2.bf16.msra.mxu0 0
          %8256 = vmatprep.subr.bf16.mxu0 0
          %8257 = vmatpush2.bf16.msra.mxu0 0
          %8258 = vmatprep.subr.bf16.mxu0 0
          %8259 = vmatpush2.bf16.msra.mxu0 0
          %8260 = vmatprep.subr.bf16.mxu0 0
          %8261 = vmatpush2.bf16.msra.mxu0 0
          %8262 = vmatprep.subr.bf16.mxu0 0
          %8263 = vmatpush2.bf16.msra.mxu0 0
          %8264 = vmatprep.mubr.bf16.mxu0 0
          %8265 = vmatmul.mubr.bf16.gmra.mxu0 %v8167
          %v8266 = vpop.f32.mrf.mxu0
          %v8267 = vadd.f32 0.0, %v8266
          %v8268 = vpop.f32.mrf.mxu0
          %v8269 = vpop.f32.mrf.mxu0
          %v8270 = vpop.f32.mrf.mxu0
          %8271 = vdwg.mxu0
          %vm8272 = vcmask 65536
          %8273 = vst.msk [vmem:[%s361] sm:$0x1] %vm8272, %v8267
        $region60: #{_forward.1} parent=39 // pred_fallthru
          _
        %p8274 = scmp.lt.s32.totalorder %s26, 1
        %s8275 = scalar_select %p8274, %s26, 1
        %s8276 = scalar_lea.vmem %s5, %s8275
        // Predicated region
        $region61: #{_forward.1} parent=39 // pred_check
          %p8277 = pneg %p184
        $region62: #{_forward.1} parent=39 // pred_check_branch
          %8279 = sbr.rel (%p8277) target = $region64
        $region63: #{_forward.1} parent=39 // pred_region
          _
        $region64: #{_forward.1} parent=39 // pred_fallthru
          _
      $region40: #{_forward.1} parent=5 // pred_fallthru
        _
      %p8280 = scmp.le.s32.totalorder 2, %s17
      // Predicated region
      $region65: #{_forward.1} parent=5 // pred_check
        %p8281 = pneg %p8280
      $region66: #{_forward.1} parent=5 // pred_check_branch
        %8283 = sbr.rel (%p8281) target = $region68
      $region67: #{_forward.1} parent=5 // pred_region
        %s8284 = ssub.s32 %s17, 2
        // Predicated region
        $region69: #{_forward.1} parent=67 // pred_check
          %p8285 = pneg %p190
        $region70: #{_forward.1} parent=67 // pred_check_branch
          %8287 = sbr.rel (%p8285) target = $region72
        $region71: #{_forward.1} parent=67 // pred_region
          %p8288 = scmp.lt.s32.totalorder %s28, 1
          %s8289 = scalar_select %p8288, %s28, 1
          %s8290 = scalar_lea.vmem %s5, %s8289
        $region72: #{_forward.1} parent=67 // pred_fallthru
          _
      $region68: #{_forward.1} parent=5 // pred_fallthru
        _
    $region6: #{_forward.1} parent=1 // loop_footer
      %s21 = sadd.s32 1, %s17
    $region7: #{_forward.1} parent=1 // loop_footer_branch
      %16 = sbr.rel target = $region3
    $region8: #{_forward.1} parent=1 // loop_exit
      _
    %8291 = vsyncpa [#allocation4], 1
    %s8292 = scalar_lea.sflag [#allocation4], 1
    %8293 = vsyncpa %s8292, 1
    %8294 = vsyncpa [#allocation6], 1
    %s8295 = scalar_lea.sflag [#allocation6], 1
    %8296 = vsyncpa %s8295, 1

</llo_original>
